<compile_context>
chip_gen: v6e
topology: v6e:2x2x1
jax: 0.10.0
libtpu: 0.0.40
codegen_flags: <defaults>
</compile_context>

<pallas_src>
import functools

import jax
import jax.numpy as jnp
from jax import lax
from jax.experimental import pallas as pl
from jax.experimental.pallas import tpu as pltpu


def _largest_divisor_at_most(n, target):
    d = max(1, min(n, target))
    while n % d:
        d -= 1
    return d


def _round_up(n, m):
    return pl.cdiv(n, m) * m


# ---------------------------------------------------------------------------
# Tiled matmul (bf16 MXU inputs cast in-kernel, f32 accumulation).
# ---------------------------------------------------------------------------
def _matmul_kernel(a_ref, b_ref, o_ref, acc_ref):
    k = pl.program_id(2)

    @pl.when(k == 0)
    def _():
        acc_ref[...] = jnp.zeros_like(acc_ref)

    acc_ref[...] += jnp.dot(a_ref[...].astype(jnp.bfloat16),
                            b_ref[...].astype(jnp.bfloat16),
                            preferred_element_type=jnp.float32)

    @pl.when(k == pl.num_programs(2) - 1)
    def _():
        o_ref[...] = acc_ref[...].astype(o_ref.dtype)


def pallas_matmul(a, b, *, tm=512, tn=256, tk=512):
    """Tiled matmul. Activations are cast to bf16 inside the kernel (no extra HBM pass);
    weights are expected to be bf16 already. f32 VMEM accumulator, megacore-shardable."""
    M, K = a.shape
    K2, N = b.shape
    assert K == K2
    if b.dtype != jnp.bfloat16:
        b = b.astype(jnp.bfloat16)

    tm, tn, tk = min(tm, M), min(tn, N), min(tk, K)
    Mp, Np, Kp = _round_up(M, tm), _round_up(N, tn), _round_up(K, tk)
    if (Mp, Kp) != (M, K):
        a = jnp.pad(a, ((0, Mp - M), (0, Kp - K)))
    if (Kp, Np) != (K, N):
        b = jnp.pad(b, ((0, Kp - K), (0, Np - N)))

    out = pl.pallas_call(
        _matmul_kernel,
        out_shape=jax.ShapeDtypeStruct((Mp, Np), jnp.float32),
        grid_spec=pltpu.PrefetchScalarGridSpec(
            num_scalar_prefetch=0,
            grid=(Mp // tm, Np // tn, Kp // tk),
            in_specs=[pl.BlockSpec((tm, tk), lambda i, j, k: (i, k)),
                      pl.BlockSpec((tk, tn), lambda i, j, k: (k, j))],
            out_specs=pl.BlockSpec((tm, tn), lambda i, j, k: (i, j)),
            scratch_shapes=[pltpu.VMEM((tm, tn), jnp.float32)],
        ),
        compiler_params=pltpu.CompilerParams(
            dimension_semantics=("parallel", "parallel", "arbitrary")),
    )(a, b)
    if (Mp, Np) != (M, N):
        out = out[:M, :N]
    return out


# ---------------------------------------------------------------------------
# Embedding lookup + sum over the K tokens per (t, b) row.
# Table resident in VMEM (constant index_map); ids scalar-prefetched to SMEM;
# a block of rows per grid step with in-kernel dynamic row gathers.
# ---------------------------------------------------------------------------
def _embed_sum_kernel(ids_ref, tbl_ref, out_ref, *, tokens_per_row, unroll):
    i = pl.program_id(0)
    rows = out_ref.shape[0]
    base = i * rows * tokens_per_row

    def row(r, carry):
        off = base + r * tokens_per_row
        acc = tbl_ref[ids_ref[off]].astype(jnp.float32)          # (1, E)
        for k in range(1, tokens_per_row):
            acc = acc + tbl_ref[ids_ref[off + k]].astype(jnp.float32)
        out_ref[r] = acc.astype(out_ref.dtype)
        return carry

    lax.fori_loop(0, rows, row, 0, unroll=unroll)


def embedding_sum(ids_flat, emb_table, num_rows, tokens_per_row, *, row_block=256):
    """rows[i] = sum_k emb_table[ids_flat[i*K + k]]  ->  (num_rows, E) f32."""
    V, E = emb_table.shape
    R, K = num_rows, tokens_per_row
    Rb = _largest_divisor_at_most(R, row_block)
    unroll = Rb if Rb <= 32 else 8
    # TODO(synk): for vocabularies too large to keep resident in VMEM, page the table with
    # manual make_async_copy gathers instead of one constant-index block.
    tbl3 = emb_table.reshape(V, 1, E)

    out = pl.pallas_call(
        functools.partial(_embed_sum_kernel, tokens_per_row=K, unroll=unroll),
        out_shape=jax.ShapeDtypeStruct((R, 1, E), jnp.float32),
        grid_spec=pltpu.PrefetchScalarGridSpec(
            num_scalar_prefetch=1,
            grid=(R // Rb,),
            in_specs=[pl.BlockSpec((V, 1, E), lambda i, ids: (0, 0, 0))],
            out_specs=pl.BlockSpec((Rb, 1, E), lambda i, ids: (i, 0, 0)),
        ),
        compiler_params=pltpu.CompilerParams(dimension_semantics=("parallel",)),
    )(ids_flat, tbl3)
    return out.reshape(R, E)


# ---------------------------------------------------------------------------
# One GRU layer, with the input projection fused into the kernel.
#
# PyTorch GRU equations (gate order r, z, n) with folded biases
# bi3 = [bir+bhr | biz+bhz | bin], bhn kept inside the r-gated term:
#   xg = x @ [Wir|Wiz|Win] + bi3
#   hh = h @ [Whr|Whz|Whn]
#   r  = sigmoid(xg_r + hh_r)
#   z  = sigmoid(xg_z + hh_z)
#   n  = tanh   (xg_n + r * (hh_n + bhn))
#   h  = (1 - z) * n + z * h
# ---------------------------------------------------------------------------
def _gru_layer_kernel(x_ref, h0_ref, wi_ref, wh_ref, bi3_ref, bhn_ref,
                      out_ref, hT_ref, h_scratch, *, unroll):
    c = pl.program_id(1)                        # time-chunk index (innermost)
    Tc = x_ref.shape[0]
    H = h_scratch.shape[-1]

    @pl.when(c == 0)
    def _():
        h_scratch[...] = h0_ref[...]

    def step(s, h_prev):
        # Fused input projection: small extra MXU call per step, no HBM xproj tensor.
        x_t = x_ref[s].astype(jnp.bfloat16)                          # (Bt, E)
        xg = jnp.dot(x_t, wi_ref[...],
                     preferred_element_type=jnp.float32) + bi3_ref[...]
        hh = jnp.dot(h_prev.astype(jnp.bfloat16), wh_ref[...],
                     preferred_element_type=jnp.float32)
        r = jax.nn.sigmoid(xg[:, :H] + hh[:, :H])
        z = jax.nn.sigmoid(xg[:, H:2 * H] + hh[:, H:2 * H])
        n = jnp.tanh(xg[:, 2 * H:] + r * (hh[:, 2 * H:] + bhn_ref[...]))
        h_new = (1.0 - z) * n + z * h_prev                           # f32 gate math (v5e-safe)
        out_ref[s] = h_new.astype(out_ref.dtype)
        return h_new

    h_last = lax.fori_loop(0, Tc, step, h_scratch[...], unroll=unroll)
    h_scratch[...] = h_last

    @pl.when(c == pl.num_programs(1) - 1)       # guarded final-hidden writeback
    def _():
        hT_ref[...] = h_last


def _gru_vmem_bytes(Tc, Bt, E, H, in_bytes, out_bytes):
    buf = 2 * Tc * Bt * (E * in_bytes + H * out_bytes)       # double-buffered x / out blocks
    weights = 2 * (E + H) * 3 * H * 2                        # bf16 wi + wh (double-buffered)
    misc = 4 * Bt * H * 4 + 8 * H * 4 + Bt * H * 4           # h0/hT blocks, biases, scratch
    return buf + weights + misc


def gru_layer(x_tbe, h0, wi, wh, bi3, bhn, *, time_chunk=32, batch_tile=None,
              vmem_budget=24 * 1024 * 1024):
    """x_tbe: (T, B, E) time-major layer input. Returns (out (T, B, H), h_T (B, H))."""
    T, B, E = x_tbe.shape
    H = wh.shape[0]

    if batch_tile is not None:
        Bt = batch_tile
    elif B % 32 == 0:
        Bt = B // 2          # >=2 batch tiles so the 'parallel' axis can shard on v7x megacore
    else:
        Bt = B
    assert B % Bt == 0

    # bf16 inter-layer activations only when the batch tile fills packed (16,128) tiles;
    # otherwise keep f32 (safe masked stores for tiny batch tiles).
    out_dtype = jnp.bfloat16 if Bt % 16 == 0 else jnp.float32
    in_bytes = 2 if x_tbe.dtype == jnp.bfloat16 else 4
    out_bytes = 2 if out_dtype == jnp.bfloat16 else 4

    Tc = _largest_divisor_at_most(T, time_chunk)
    while Tc > 1 and _gru_vmem_bytes(Tc, Bt, E, H, in_bytes, out_bytes) > vmem_budget:
        Tc = _largest_divisor_at_most(T, max(1, Tc // 2))
    unroll = min(Tc, 8)                      # bounded unroll: LLO window without vreg blowup

    out, h_final = pl.pallas_call(
        functools.partial(_gru_layer_kernel, unroll=unroll),
        out_shape=(jax.ShapeDtypeStruct((T, B, H), out_dtype),
                   jax.ShapeDtypeStruct((B, H), jnp.float32)),
        grid_spec=pltpu.PrefetchScalarGridSpec(
            num_scalar_prefetch=0,
            grid=(B // Bt, T // Tc),
            in_specs=[
                pl.BlockSpec((Tc, Bt, E), lambda bt, c: (c, bt, 0)),
                pl.BlockSpec((Bt, H), lambda bt, c: (bt, 0)),
                pl.BlockSpec((E, 3 * H), lambda bt, c: (0, 0)),
                pl.BlockSpec((H, 3 * H), lambda bt, c: (0, 0)),
                pl.BlockSpec((1, 3 * H), lambda bt, c: (0, 0)),
                pl.BlockSpec((1, H), lambda bt, c: (0, 0)),
            ],
            out_specs=[
                pl.BlockSpec((Tc, Bt, H), lambda bt, c: (c, bt, 0)),
                pl.BlockSpec((Bt, H), lambda bt, c: (bt, 0)),
            ],
            scratch_shapes=[pltpu.VMEM((Bt, H), jnp.float32)],
        ),
        compiler_params=pltpu.CompilerParams(
            dimension_semantics=("parallel", "arbitrary"),
            vmem_limit_bytes=32 * 1024 * 1024),
    )(x_tbe, h0, wi, wh, bi3, bhn)
    return out, h_final


# ---------------------------------------------------------------------------
# Parameters (synthetic) and forward pass.
# ---------------------------------------------------------------------------
def init_params(key, vocab, emb_dim, hidden_dim, output_dim, num_layers):
    keys = jax.random.split(key, 2 + num_layers)
    scale = 1.0 / float(hidden_dim) ** 0.5
    params = {"emb": jax.random.normal(keys[0], (vocab, emb_dim), jnp.float32)}
    gru = []
    for layer in range(num_layers):
        e_in = emb_dim if layer == 0 else hidden_dim
        k = jax.random.split(keys[2 + layer], 8)
        u = lambda kk, s: jax.random.uniform(kk, s, jnp.float32, -scale, scale)
        wi = u(k[0], (e_in, 3 * hidden_dim))                  # columns ordered [r | z | n]
        wh = u(k[1], (hidden_dim, 3 * hidden_dim))
        b_ir, b_iz, b_in_ = u(k[2], (hidden_dim,)), u(k[3], (hidden_dim,)), u(k[4], (hidden_dim,))
        b_hr, b_hz, b_hn = u(k[5], (hidden_dim,)), u(k[6], (hidden_dim,)), u(k[7], (hidden_dim,))
        # Folded biases: [bir+bhr | biz+bhz | bin] added to the input projection; bhn separate.
        bi3 = jnp.concatenate([b_ir + b_hr, b_iz + b_hz, b_in_]).reshape(1, 3 * hidden_dim)
        bhn = b_hn.reshape(1, hidden_dim)
        gru.append((wi.astype(jnp.bfloat16), wh.astype(jnp.bfloat16), bi3, bhn))
    params["gru"] = gru
    linear = jax.random.uniform(keys[1], (hidden_dim, output_dim), jnp.float32, -scale, scale)
    params["linear"] = linear                                 # f32 copy (reference / O shape)
    o_pad = _round_up(output_dim, 128)                        # lane-dense padded kernel weight
    params["linear_pad"] = jnp.pad(
        linear, ((0, 0), (0, o_pad - output_dim))).astype(jnp.bfloat16)
    return params


def my_classifier_forward(x, params, num_layers, hidden_dim, hs=None, time_chunk=32):
    B, T, K = x.shape
    H = hidden_dim
    if hs is None:
        hs = jnp.zeros((num_layers, B, H), jnp.float32)

    # Embedding lookup + sum over dim=2, emitted in time-major row order (row = t*B + b).
    ids_flat = jnp.transpose(x, (1, 0, 2)).reshape(T * B * K).astype(jnp.int32)
    layer_in = embedding_sum(ids_flat, params["emb"], T * B, K).reshape(T, B, -1)

    h_finals = []
    for layer in range(num_layers):
        wi, wh, bi3, bhn = params["gru"][layer]
        layer_in, h_last = gru_layer(layer_in, hs[layer], wi, wh, bi3, bhn,
                                     time_chunk=time_chunk)
        h_finals.append(h_last)
        # TODO(synk): nn.GRU inter-layer dropout (training mode only) is not applied (eval semantics).
    h0 = jnp.stack(h_finals, axis=0)                          # (num_layers, B, H)

    # Final Linear on the lane-dense padded weight; rows already ordered t*B + b.
    O = params["linear"].shape[1]
    out = pallas_matmul(layer_in.reshape(T * B, H), params["linear_pad"])[:, :O]
    return out, h0


# ---------------------------------------------------------------------------
# Pure-JAX f32 reference for validation.
# ---------------------------------------------------------------------------
def reference_forward(x, params, num_layers, hidden_dim):
    B, T, K = x.shape
    H = hidden_dim
    layer_in = jnp.sum(params["emb"][x], axis=2)              # (B, T, E)
    h_fin = []
    for layer in range(num_layers):
        wi, wh, bi3, bhn = params["gru"][layer]
        wi = wi.astype(jnp.float32)
        wh = wh.astype(jnp.float32)

        def step(h_prev, x_t, wi=wi, wh=wh, bi3=bi3, bhn=bhn):
            xg = x_t @ wi + bi3
            hg = h_prev @ wh
            r = jax.nn.sigmoid(xg[:, :H] + hg[:, :H])
            z = jax.nn.sigmoid(xg[:, H:2 * H] + hg[:, H:2 * H])
            n = jnp.tanh(xg[:, 2 * H:] + r * (hg[:, 2 * H:] + bhn))
            h_new = (1.0 - z) * n + z * h_prev
            return h_new, h_new

        hT, outs = lax.scan(step, jnp.zeros((B, H), jnp.float32),
                            jnp.transpose(layer_in, (1, 0, 2)))
        layer_in = jnp.transpose(outs, (1, 0, 2))             # (B, T, H)
        h_fin.append(hT)
    h0 = jnp.stack(h_fin, axis=0)
    lin = layer_in.reshape(B * T, H) @ params["linear"].astype(jnp.float32)
    out = lin.reshape(B, T, -1).transpose(1, 0, 2).reshape(T * B, -1)
    return out, h0


if __name__ == "__main__":
    VOCAB, EMB, HID, OUT, NUM_LAYERS = 64, 32, 128, 8, 2
    B, T, K = 2, 8, 3

    key = jax.random.PRNGKey(0)
    kx, kp = jax.random.split(key)
    x = jax.random.randint(kx, (B, T, K), 0, VOCAB, dtype=jnp.int32)
    params = init_params(kp, VOCAB, EMB, HID, OUT, NUM_LAYERS)

    fwd = jax.jit(functools.partial(my_classifier_forward,
                                    num_layers=NUM_LAYERS, hidden_dim=HID))
    out, h0 = fwd(x, params)
    jax.block_until_ready((out, h0))

    assert out.shape == (T * B, OUT), out.shape
    assert h0.shape == (NUM_LAYERS, B, HID), h0.shape

    ref_out, ref_h0 = reference_forward(x, params, NUM_LAYERS, HID)
    assert jnp.allclose(out, ref_out, atol=5e-2, rtol=5e-2), \
        float(jnp.max(jnp.abs(out - ref_out)))
    assert jnp.allclose(h0, ref_h0, atol=5e-2, rtol=5e-2), \
        float(jnp.max(jnp.abs(h0 - ref_h0)))

    print("KERNEL_OK")
</pallas_src>

<mosaic_0001>
module attributes {stable_mosaic.version = 11 : i64} {
  func.func @_embed_sum_kernel(%arg0: i32, %arg1: memref<48xi32, #tpu.memory_space<smem>>, %arg2: memref<64x1x32xf32, #tpu.memory_space<vmem>>, %arg3: memref<16x1x32xf32, #tpu.memory_space<vmem>>) attributes {dimension_semantics = [#tpu.dimension_semantics<parallel>], iteration_bounds = array<i64: 1>, scalar_prefetch = 1 : i64, scratch_operands = 0 : i64, tpu.core_type = #tpu.core_type<tc>, window_params = [{pipeline_mode = #tpu.pipeline_mode<synchronous>, transform_indices = @transform_0, window_bounds = array<i64: 64, 1, 32>}, {transform_indices = @transform_1, window_bounds = array<i64: 16, 1, 32>}]} {
    %c16_i32 = arith.constant 16 : i32
    %0 = arith.muli %arg0, %c16_i32 : i32
    %c3_i32 = arith.constant 3 : i32
    %1 = arith.muli %0, %c3_i32 : i32
    %c0_i32 = arith.constant 0 : i32
    %c3_i32_0 = arith.constant 3 : i32
    %2 = arith.muli %c0_i32, %c3_i32_0 : i32
    %3 = arith.addi %1, %2 : i32
    %4 = arith.index_cast %3 : i32 to index
    %5 = memref.load %arg1[%4] : memref<48xi32, #tpu.memory_space<smem>>
    %6 = arith.index_cast %5 : i32 to index
    %c0 = arith.constant 0 : index
    %c0_1 = arith.constant 0 : index
    %7 = vector.load %arg2[%6, %c0, %c0_1] : memref<64x1x32xf32, #tpu.memory_space<vmem>>, vector<1x1x32xf32>
    %8 = vector.shape_cast %7 : vector<1x1x32xf32> to vector<1x32xf32>
    %c1_i32 = arith.constant 1 : i32
    %9 = arith.addi %3, %c1_i32 : i32
    %10 = arith.index_cast %9 : i32 to index
    %11 = memref.load %arg1[%10] : memref<48xi32, #tpu.memory_space<smem>>
    %12 = arith.index_cast %11 : i32 to index
    %c0_2 = arith.constant 0 : index
    %c0_3 = arith.constant 0 : index
    %13 = vector.load %arg2[%12, %c0_2, %c0_3] : memref<64x1x32xf32, #tpu.memory_space<vmem>>, vector<1x1x32xf32>
    %14 = vector.shape_cast %13 : vector<1x1x32xf32> to vector<1x32xf32>
    %15 = arith.addf %8, %14 : vector<1x32xf32>
    %c2_i32 = arith.constant 2 : i32
    %16 = arith.addi %3, %c2_i32 : i32
    %17 = arith.index_cast %16 : i32 to index
    %18 = memref.load %arg1[%17] : memref<48xi32, #tpu.memory_space<smem>>
    %19 = arith.index_cast %18 : i32 to index
    %c0_4 = arith.constant 0 : index
    %c0_5 = arith.constant 0 : index
    %20 = vector.load %arg2[%19, %c0_4, %c0_5] : memref<64x1x32xf32, #tpu.memory_space<vmem>>, vector<1x1x32xf32>
    %21 = vector.shape_cast %20 : vector<1x1x32xf32> to vector<1x32xf32>
    %22 = arith.addf %15, %21 : vector<1x32xf32>
    %23 = arith.index_cast %c0_i32 : i32 to index
    %c0_6 = arith.constant 0 : index
    %c0_7 = arith.constant 0 : index
    %24 = vector.load %arg3[%23, %c0_6, %c0_7] : memref<16x1x32xf32, #tpu.memory_space<vmem>>, vector<1x1x32xf32>
    %25 = vector.shape_cast %24 : vector<1x1x32xf32> to vector<1x32xf32>
    %26 = vector.shape_cast %22 : vector<1x32xf32> to vector<1x1x32xf32>
    tpu.vector_store %arg3[%23, %c0_6, %c0_7], %26 {strides = array<i32>} : memref<16x1x32xf32, #tpu.memory_space<vmem>>, vector<1x1x32xf32>,
    %c1_i32_8 = arith.constant 1 : i32
    %c3_i32_9 = arith.constant 3 : i32
    %27 = arith.muli %c1_i32_8, %c3_i32_9 : i32
    %28 = arith.addi %1, %27 : i32
    %29 = arith.index_cast %28 : i32 to index
    %30 = memref.load %arg1[%29] : memref<48xi32, #tpu.memory_space<smem>>
    %31 = arith.index_cast %30 : i32 to index
    %c0_10 = arith.constant 0 : index
    %c0_11 = arith.constant 0 : index
    %32 = vector.load %arg2[%31, %c0_10, %c0_11] : memref<64x1x32xf32, #tpu.memory_space<vmem>>, vector<1x1x32xf32>
    %33 = vector.shape_cast %32 : vector<1x1x32xf32> to vector<1x32xf32>
    %c1_i32_12 = arith.constant 1 : i32
    %34 = arith.addi %28, %c1_i32_12 : i32
    %35 = arith.index_cast %34 : i32 to index
    %36 = memref.load %arg1[%35] : memref<48xi32, #tpu.memory_space<smem>>
    %37 = arith.index_cast %36 : i32 to index
    %c0_13 = arith.constant 0 : index
    %c0_14 = arith.constant 0 : index
    %38 = vector.load %arg2[%37, %c0_13, %c0_14] : memref<64x1x32xf32, #tpu.memory_space<vmem>>, vector<1x1x32xf32>
    %39 = vector.shape_cast %38 : vector<1x1x32xf32> to vector<1x32xf32>
    %40 = arith.addf %33, %39 : vector<1x32xf32>
    %c2_i32_15 = arith.constant 2 : i32
    %41 = arith.addi %28, %c2_i32_15 : i32
    %42 = arith.index_cast %41 : i32 to index
    %43 = memref.load %arg1[%42] : memref<48xi32, #tpu.memory_space<smem>>
    %44 = arith.index_cast %43 : i32 to index
    %c0_16 = arith.constant 0 : index
    %c0_17 = arith.constant 0 : index
    %45 = vector.load %arg2[%44, %c0_16, %c0_17] : memref<64x1x32xf32, #tpu.memory_space<vmem>>, vector<1x1x32xf32>
    %46 = vector.shape_cast %45 : vector<1x1x32xf32> to vector<1x32xf32>
    %47 = arith.addf %40, %46 : vector<1x32xf32>
    %48 = arith.index_cast %c1_i32_8 : i32 to index
    %c0_18 = arith.constant 0 : index
    %c0_19 = arith.constant 0 : index
    %49 = vector.load %arg3[%48, %c0_18, %c0_19] : memref<16x1x32xf32, #tpu.memory_space<vmem>>, vector<1x1x32xf32>
    %50 = vector.shape_cast %49 : vector<1x1x32xf32> to vector<1x32xf32>
    %51 = vector.shape_cast %47 : vector<1x32xf32> to vector<1x1x32xf32>
    tpu.vector_store %arg3[%48, %c0_18, %c0_19], %51 {strides = array<i32>} : memref<16x1x32xf32, #tpu.memory_space<vmem>>, vector<1x1x32xf32>,
    %c2_i32_20 = arith.constant 2 : i32
    %c3_i32_21 = arith.constant 3 : i32
    %52 = arith.muli %c2_i32_20, %c3_i32_21 : i32
    %53 = arith.addi %1, %52 : i32
    %54 = arith.index_cast %53 : i32 to index
    %55 = memref.load %arg1[%54] : memref<48xi32, #tpu.memory_space<smem>>
    %56 = arith.index_cast %55 : i32 to index
    %c0_22 = arith.constant 0 : index
    %c0_23 = arith.constant 0 : index
    %57 = vector.load %arg2[%56, %c0_22, %c0_23] : memref<64x1x32xf32, #tpu.memory_space<vmem>>, vector<1x1x32xf32>
    %58 = vector.shape_cast %57 : vector<1x1x32xf32> to vector<1x32xf32>
    %c1_i32_24 = arith.constant 1 : i32
    %59 = arith.addi %53, %c1_i32_24 : i32
    %60 = arith.index_cast %59 : i32 to index
    %61 = memref.load %arg1[%60] : memref<48xi32, #tpu.memory_space<smem>>
    %62 = arith.index_cast %61 : i32 to index
    %c0_25 = arith.constant 0 : index
    %c0_26 = arith.constant 0 : index
    %63 = vector.load %arg2[%62, %c0_25, %c0_26] : memref<64x1x32xf32, #tpu.memory_space<vmem>>, vector<1x1x32xf32>
    %64 = vector.shape_cast %63 : vector<1x1x32xf32> to vector<1x32xf32>
    %65 = arith.addf %58, %64 : vector<1x32xf32>
    %c2_i32_27 = arith.constant 2 : i32
    %66 = arith.addi %53, %c2_i32_27 : i32
    %67 = arith.index_cast %66 : i32 to index
    %68 = memref.load %arg1[%67] : memref<48xi32, #tpu.memory_space<smem>>
    %69 = arith.index_cast %68 : i32 to index
    %c0_28 = arith.constant 0 : index
    %c0_29 = arith.constant 0 : index
    %70 = vector.load %arg2[%69, %c0_28, %c0_29] : memref<64x1x32xf32, #tpu.memory_space<vmem>>, vector<1x1x32xf32>
    %71 = vector.shape_cast %70 : vector<1x1x32xf32> to vector<1x32xf32>
    %72 = arith.addf %65, %71 : vector<1x32xf32>
    %73 = arith.index_cast %c2_i32_20 : i32 to index
    %c0_30 = arith.constant 0 : index
    %c0_31 = arith.constant 0 : index
    %74 = vector.load %arg3[%73, %c0_30, %c0_31] : memref<16x1x32xf32, #tpu.memory_space<vmem>>, vector<1x1x32xf32>
    %75 = vector.shape_cast %74 : vector<1x1x32xf32> to vector<1x32xf32>
    %76 = vector.shape_cast %72 : vector<1x32xf32> to vector<1x1x32xf32>
    tpu.vector_store %arg3[%73, %c0_30, %c0_31], %76 {strides = array<i32>} : memref<16x1x32xf32, #tpu.memory_space<vmem>>, vector<1x1x32xf32>,
    %c3_i32_32 = arith.constant 3 : i32
    %c3_i32_33 = arith.constant 3 : i32
    %77 = arith.muli %c3_i32_32, %c3_i32_33 : i32
    %78 = arith.addi %1, %77 : i32
    %79 = arith.index_cast %78 : i32 to index
    %80 = memref.load %arg1[%79] : memref<48xi32, #tpu.memory_space<smem>>
    %81 = arith.index_cast %80 : i32 to index
    %c0_34 = arith.constant 0 : index
    %c0_35 = arith.constant 0 : index
    %82 = vector.load %arg2[%81, %c0_34, %c0_35] : memref<64x1x32xf32, #tpu.memory_space<vmem>>, vector<1x1x32xf32>
    %83 = vector.shape_cast %82 : vector<1x1x32xf32> to vector<1x32xf32>
    %c1_i32_36 = arith.constant 1 : i32
    %84 = arith.addi %78, %c1_i32_36 : i32
    %85 = arith.index_cast %84 : i32 to index
    %86 = memref.load %arg1[%85] : memref<48xi32, #tpu.memory_space<smem>>
    %87 = arith.index_cast %86 : i32 to index
    %c0_37 = arith.constant 0 : index
    %c0_38 = arith.constant 0 : index
    %88 = vector.load %arg2[%87, %c0_37, %c0_38] : memref<64x1x32xf32, #tpu.memory_space<vmem>>, vector<1x1x32xf32>
    %89 = vector.shape_cast %88 : vector<1x1x32xf32> to vector<1x32xf32>
    %90 = arith.addf %83, %89 : vector<1x32xf32>
    %c2_i32_39 = arith.constant 2 : i32
    %91 = arith.addi %78, %c2_i32_39 : i32
    %92 = arith.index_cast %91 : i32 to index
    %93 = memref.load %arg1[%92] : memref<48xi32, #tpu.memory_space<smem>>
    %94 = arith.index_cast %93 : i32 to index
    %c0_40 = arith.constant 0 : index
    %c0_41 = arith.constant 0 : index
    %95 = vector.load %arg2[%94, %c0_40, %c0_41] : memref<64x1x32xf32, #tpu.memory_space<vmem>>, vector<1x1x32xf32>
    %96 = vector.shape_cast %95 : vector<1x1x32xf32> to vector<1x32xf32>
    %97 = arith.addf %90, %96 : vector<1x32xf32>
    %98 = arith.index_cast %c3_i32_32 : i32 to index
    %c0_42 = arith.constant 0 : index
    %c0_43 = arith.constant 0 : index
    %99 = vector.load %arg3[%98, %c0_42, %c0_43] : memref<16x1x32xf32, #tpu.memory_space<vmem>>, vector<1x1x32xf32>
    %100 = vector.shape_cast %99 : vector<1x1x32xf32> to vector<1x32xf32>
    %101 = vector.shape_cast %97 : vector<1x32xf32> to vector<1x1x32xf32>
    tpu.vector_store %arg3[%98, %c0_42, %c0_43], %101 {strides = array<i32>} : memref<16x1x32xf32, #tpu.memory_space<vmem>>, vector<1x1x32xf32>,
    %c4_i32 = arith.constant 4 : i32
    %c3_i32_44 = arith.constant 3 : i32
    %102 = arith.muli %c4_i32, %c3_i32_44 : i32
    %103 = arith.addi %1, %102 : i32
    %104 = arith.index_cast %103 : i32 to index
    %105 = memref.load %arg1[%104] : memref<48xi32, #tpu.memory_space<smem>>
    %106 = arith.index_cast %105 : i32 to index
    %c0_45 = arith.constant 0 : index
    %c0_46 = arith.constant 0 : index
    %107 = vector.load %arg2[%106, %c0_45, %c0_46] : memref<64x1x32xf32, #tpu.memory_space<vmem>>, vector<1x1x32xf32>
    %108 = vector.shape_cast %107 : vector<1x1x32xf32> to vector<1x32xf32>
    %c1_i32_47 = arith.constant 1 : i32
    %109 = arith.addi %103, %c1_i32_47 : i32
    %110 = arith.index_cast %109 : i32 to index
    %111 = memref.load %arg1[%110] : memref<48xi32, #tpu.memory_space<smem>>
    %112 = arith.index_cast %111 : i32 to index
    %c0_48 = arith.constant 0 : index
    %c0_49 = arith.constant 0 : index
    %113 = vector.load %arg2[%112, %c0_48, %c0_49] : memref<64x1x32xf32, #tpu.memory_space<vmem>>, vector<1x1x32xf32>
    %114 = vector.shape_cast %113 : vector<1x1x32xf32> to vector<1x32xf32>
    %115 = arith.addf %108, %114 : vector<1x32xf32>
    %c2_i32_50 = arith.constant 2 : i32
    %116 = arith.addi %103, %c2_i32_50 : i32
    %117 = arith.index_cast %116 : i32 to index
    %118 = memref.load %arg1[%117] : memref<48xi32, #tpu.memory_space<smem>>
    %119 = arith.index_cast %118 : i32 to index
    %c0_51 = arith.constant 0 : index
    %c0_52 = arith.constant 0 : index
    %120 = vector.load %arg2[%119, %c0_51, %c0_52] : memref<64x1x32xf32, #tpu.memory_space<vmem>>, vector<1x1x32xf32>
    %121 = vector.shape_cast %120 : vector<1x1x32xf32> to vector<1x32xf32>
    %122 = arith.addf %115, %121 : vector<1x32xf32>
    %123 = arith.index_cast %c4_i32 : i32 to index
    %c0_53 = arith.constant 0 : index
    %c0_54 = arith.constant 0 : index
    %124 = vector.load %arg3[%123, %c0_53, %c0_54] : memref<16x1x32xf32, #tpu.memory_space<vmem>>, vector<1x1x32xf32>
    %125 = vector.shape_cast %124 : vector<1x1x32xf32> to vector<1x32xf32>
    %126 = vector.shape_cast %122 : vector<1x32xf32> to vector<1x1x32xf32>
    tpu.vector_store %arg3[%123, %c0_53, %c0_54], %126 {strides = array<i32>} : memref<16x1x32xf32, #tpu.memory_space<vmem>>, vector<1x1x32xf32>,
    %c5_i32 = arith.constant 5 : i32
    %c3_i32_55 = arith.constant 3 : i32
    %127 = arith.muli %c5_i32, %c3_i32_55 : i32
    %128 = arith.addi %1, %127 : i32
    %129 = arith.index_cast %128 : i32 to index
    %130 = memref.load %arg1[%129] : memref<48xi32, #tpu.memory_space<smem>>
    %131 = arith.index_cast %130 : i32 to index
    %c0_56 = arith.constant 0 : index
    %c0_57 = arith.constant 0 : index
    %132 = vector.load %arg2[%131, %c0_56, %c0_57] : memref<64x1x32xf32, #tpu.memory_space<vmem>>, vector<1x1x32xf32>
    %133 = vector.shape_cast %132 : vector<1x1x32xf32> to vector<1x32xf32>
    %c1_i32_58 = arith.constant 1 : i32
    %134 = arith.addi %128, %c1_i32_58 : i32
    %135 = arith.index_cast %134 : i32 to index
    %136 = memref.load %arg1[%135] : memref<48xi32, #tpu.memory_space<smem>>
    %137 = arith.index_cast %136 : i32 to index
    %c0_59 = arith.constant 0 : index
    %c0_60 = arith.constant 0 : index
    %138 = vector.load %arg2[%137, %c0_59, %c0_60] : memref<64x1x32xf32, #tpu.memory_space<vmem>>, vector<1x1x32xf32>
    %139 = vector.shape_cast %138 : vector<1x1x32xf32> to vector<1x32xf32>
    %140 = arith.addf %133, %139 : vector<1x32xf32>
    %c2_i32_61 = arith.constant 2 : i32
    %141 = arith.addi %128, %c2_i32_61 : i32
    %142 = arith.index_cast %141 : i32 to index
    %143 = memref.load %arg1[%142] : memref<48xi32, #tpu.memory_space<smem>>
    %144 = arith.index_cast %143 : i32 to index
    %c0_62 = arith.constant 0 : index
    %c0_63 = arith.constant 0 : index
    %145 = vector.load %arg2[%144, %c0_62, %c0_63] : memref<64x1x32xf32, #tpu.memory_space<vmem>>, vector<1x1x32xf32>
    %146 = vector.shape_cast %145 : vector<1x1x32xf32> to vector<1x32xf32>
    %147 = arith.addf %140, %146 : vector<1x32xf32>
    %148 = arith.index_cast %c5_i32 : i32 to index
    %c0_64 = arith.constant 0 : index
    %c0_65 = arith.constant 0 : index
    %149 = vector.load %arg3[%148, %c0_64, %c0_65] : memref<16x1x32xf32, #tpu.memory_space<vmem>>, vector<1x1x32xf32>
    %150 = vector.shape_cast %149 : vector<1x1x32xf32> to vector<1x32xf32>
    %151 = vector.shape_cast %147 : vector<1x32xf32> to vector<1x1x32xf32>
    tpu.vector_store %arg3[%148, %c0_64, %c0_65], %151 {strides = array<i32>} : memref<16x1x32xf32, #tpu.memory_space<vmem>>, vector<1x1x32xf32>,
    %c6_i32 = arith.constant 6 : i32
    %c3_i32_66 = arith.constant 3 : i32
    %152 = arith.muli %c6_i32, %c3_i32_66 : i32
    %153 = arith.addi %1, %152 : i32
    %154 = arith.index_cast %153 : i32 to index
    %155 = memref.load %arg1[%154] : memref<48xi32, #tpu.memory_space<smem>>
    %156 = arith.index_cast %155 : i32 to index
    %c0_67 = arith.constant 0 : index
    %c0_68 = arith.constant 0 : index
    %157 = vector.load %arg2[%156, %c0_67, %c0_68] : memref<64x1x32xf32, #tpu.memory_space<vmem>>, vector<1x1x32xf32>
    %158 = vector.shape_cast %157 : vector<1x1x32xf32> to vector<1x32xf32>
    %c1_i32_69 = arith.constant 1 : i32
    %159 = arith.addi %153, %c1_i32_69 : i32
    %160 = arith.index_cast %159 : i32 to index
    %161 = memref.load %arg1[%160] : memref<48xi32, #tpu.memory_space<smem>>
    %162 = arith.index_cast %161 : i32 to index
    %c0_70 = arith.constant 0 : index
    %c0_71 = arith.constant 0 : index
    %163 = vector.load %arg2[%162, %c0_70, %c0_71] : memref<64x1x32xf32, #tpu.memory_space<vmem>>, vector<1x1x32xf32>
    %164 = vector.shape_cast %163 : vector<1x1x32xf32> to vector<1x32xf32>
    %165 = arith.addf %158, %164 : vector<1x32xf32>
    %c2_i32_72 = arith.constant 2 : i32
    %166 = arith.addi %153, %c2_i32_72 : i32
    %167 = arith.index_cast %166 : i32 to index
    %168 = memref.load %arg1[%167] : memref<48xi32, #tpu.memory_space<smem>>
    %169 = arith.index_cast %168 : i32 to index
    %c0_73 = arith.constant 0 : index
    %c0_74 = arith.constant 0 : index
    %170 = vector.load %arg2[%169, %c0_73, %c0_74] : memref<64x1x32xf32, #tpu.memory_space<vmem>>, vector<1x1x32xf32>
    %171 = vector.shape_cast %170 : vector<1x1x32xf32> to vector<1x32xf32>
    %172 = arith.addf %165, %171 : vector<1x32xf32>
    %173 = arith.index_cast %c6_i32 : i32 to index
    %c0_75 = arith.constant 0 : index
    %c0_76 = arith.constant 0 : index
    %174 = vector.load %arg3[%173, %c0_75, %c0_76] : memref<16x1x32xf32, #tpu.memory_space<vmem>>, vector<1x1x32xf32>
    %175 = vector.shape_cast %174 : vector<1x1x32xf32> to vector<1x32xf32>
    %176 = vector.shape_cast %172 : vector<1x32xf32> to vector<1x1x32xf32>
    tpu.vector_store %arg3[%173, %c0_75, %c0_76], %176 {strides = array<i32>} : memref<16x1x32xf32, #tpu.memory_space<vmem>>, vector<1x1x32xf32>,
    %c7_i32 = arith.constant 7 : i32
    %c3_i32_77 = arith.constant 3 : i32
    %177 = arith.muli %c7_i32, %c3_i32_77 : i32
    %178 = arith.addi %1, %177 : i32
    %179 = arith.index_cast %178 : i32 to index
    %180 = memref.load %arg1[%179] : memref<48xi32, #tpu.memory_space<smem>>
    %181 = arith.index_cast %180 : i32 to index
    %c0_78 = arith.constant 0 : index
    %c0_79 = arith.constant 0 : index
    %182 = vector.load %arg2[%181, %c0_78, %c0_79] : memref<64x1x32xf32, #tpu.memory_space<vmem>>, vector<1x1x32xf32>
    %183 = vector.shape_cast %182 : vector<1x1x32xf32> to vector<1x32xf32>
    %c1_i32_80 = arith.constant 1 : i32
    %184 = arith.addi %178, %c1_i32_80 : i32
    %185 = arith.index_cast %184 : i32 to index
    %186 = memref.load %arg1[%185] : memref<48xi32, #tpu.memory_space<smem>>
    %187 = arith.index_cast %186 : i32 to index
    %c0_81 = arith.constant 0 : index
    %c0_82 = arith.constant 0 : index
    %188 = vector.load %arg2[%187, %c0_81, %c0_82] : memref<64x1x32xf32, #tpu.memory_space<vmem>>, vector<1x1x32xf32>
    %189 = vector.shape_cast %188 : vector<1x1x32xf32> to vector<1x32xf32>
    %190 = arith.addf %183, %189 : vector<1x32xf32>
    %c2_i32_83 = arith.constant 2 : i32
    %191 = arith.addi %178, %c2_i32_83 : i32
    %192 = arith.index_cast %191 : i32 to index
    %193 = memref.load %arg1[%192] : memref<48xi32, #tpu.memory_space<smem>>
    %194 = arith.index_cast %193 : i32 to index
    %c0_84 = arith.constant 0 : index
    %c0_85 = arith.constant 0 : index
    %195 = vector.load %arg2[%194, %c0_84, %c0_85] : memref<64x1x32xf32, #tpu.memory_space<vmem>>, vector<1x1x32xf32>
    %196 = vector.shape_cast %195 : vector<1x1x32xf32> to vector<1x32xf32>
    %197 = arith.addf %190, %196 : vector<1x32xf32>
    %198 = arith.index_cast %c7_i32 : i32 to index
    %c0_86 = arith.constant 0 : index
    %c0_87 = arith.constant 0 : index
    %199 = vector.load %arg3[%198, %c0_86, %c0_87] : memref<16x1x32xf32, #tpu.memory_space<vmem>>, vector<1x1x32xf32>
    %200 = vector.shape_cast %199 : vector<1x1x32xf32> to vector<1x32xf32>
    %201 = vector.shape_cast %197 : vector<1x32xf32> to vector<1x1x32xf32>
    tpu.vector_store %arg3[%198, %c0_86, %c0_87], %201 {strides = array<i32>} : memref<16x1x32xf32, #tpu.memory_space<vmem>>, vector<1x1x32xf32>,
    %c8_i32 = arith.constant 8 : i32
    %c3_i32_88 = arith.constant 3 : i32
    %202 = arith.muli %c8_i32, %c3_i32_88 : i32
    %203 = arith.addi %1, %202 : i32
    %204 = arith.index_cast %203 : i32 to index
    %205 = memref.load %arg1[%204] : memref<48xi32, #tpu.memory_space<smem>>
    %206 = arith.index_cast %205 : i32 to index
    %c0_89 = arith.constant 0 : index
    %c0_90 = arith.constant 0 : index
    %207 = vector.load %arg2[%206, %c0_89, %c0_90] : memref<64x1x32xf32, #tpu.memory_space<vmem>>, vector<1x1x32xf32>
    %208 = vector.shape_cast %207 : vector<1x1x32xf32> to vector<1x32xf32>
    %c1_i32_91 = arith.constant 1 : i32
    %209 = arith.addi %203, %c1_i32_91 : i32
    %210 = arith.index_cast %209 : i32 to index
    %211 = memref.load %arg1[%210] : memref<48xi32, #tpu.memory_space<smem>>
    %212 = arith.index_cast %211 : i32 to index
    %c0_92 = arith.constant 0 : index
    %c0_93 = arith.constant 0 : index
    %213 = vector.load %arg2[%212, %c0_92, %c0_93] : memref<64x1x32xf32, #tpu.memory_space<vmem>>, vector<1x1x32xf32>
    %214 = vector.shape_cast %213 : vector<1x1x32xf32> to vector<1x32xf32>
    %215 = arith.addf %208, %214 : vector<1x32xf32>
    %c2_i32_94 = arith.constant 2 : i32
    %216 = arith.addi %203, %c2_i32_94 : i32
    %217 = arith.index_cast %216 : i32 to index
    %218 = memref.load %arg1[%217] : memref<48xi32, #tpu.memory_space<smem>>
    %219 = arith.index_cast %218 : i32 to index
    %c0_95 = arith.constant 0 : index
    %c0_96 = arith.constant 0 : index
    %220 = vector.load %arg2[%219, %c0_95, %c0_96] : memref<64x1x32xf32, #tpu.memory_space<vmem>>, vector<1x1x32xf32>
    %221 = vector.shape_cast %220 : vector<1x1x32xf32> to vector<1x32xf32>
    %222 = arith.addf %215, %221 : vector<1x32xf32>
    %223 = arith.index_cast %c8_i32 : i32 to index
    %c0_97 = arith.constant 0 : index
    %c0_98 = arith.constant 0 : index
    %224 = vector.load %arg3[%223, %c0_97, %c0_98] : memref<16x1x32xf32, #tpu.memory_space<vmem>>, vector<1x1x32xf32>
    %225 = vector.shape_cast %224 : vector<1x1x32xf32> to vector<1x32xf32>
    %226 = vector.shape_cast %222 : vector<1x32xf32> to vector<1x1x32xf32>
    tpu.vector_store %arg3[%223, %c0_97, %c0_98], %226 {strides = array<i32>} : memref<16x1x32xf32, #tpu.memory_space<vmem>>, vector<1x1x32xf32>,
    %c9_i32 = arith.constant 9 : i32
    %c3_i32_99 = arith.constant 3 : i32
    %227 = arith.muli %c9_i32, %c3_i32_99 : i32
    %228 = arith.addi %1, %227 : i32
    %229 = arith.index_cast %228 : i32 to index
    %230 = memref.load %arg1[%229] : memref<48xi32, #tpu.memory_space<smem>>
    %231 = arith.index_cast %230 : i32 to index
    %c0_100 = arith.constant 0 : index
    %c0_101 = arith.constant 0 : index
    %232 = vector.load %arg2[%231, %c0_100, %c0_101] : memref<64x1x32xf32, #tpu.memory_space<vmem>>, vector<1x1x32xf32>
    %233 = vector.shape_cast %232 : vector<1x1x32xf32> to vector<1x32xf32>
    %c1_i32_102 = arith.constant 1 : i32
    %234 = arith.addi %228, %c1_i32_102 : i32
    %235 = arith.index_cast %234 : i32 to index
    %236 = memref.load %arg1[%235] : memref<48xi32, #tpu.memory_space<smem>>
    %237 = arith.index_cast %236 : i32 to index
    %c0_103 = arith.constant 0 : index
    %c0_104 = arith.constant 0 : index
    %238 = vector.load %arg2[%237, %c0_103, %c0_104] : memref<64x1x32xf32, #tpu.memory_space<vmem>>, vector<1x1x32xf32>
    %239 = vector.shape_cast %238 : vector<1x1x32xf32> to vector<1x32xf32>
    %240 = arith.addf %233, %239 : vector<1x32xf32>
    %c2_i32_105 = arith.constant 2 : i32
    %241 = arith.addi %228, %c2_i32_105 : i32
    %242 = arith.index_cast %241 : i32 to index
    %243 = memref.load %arg1[%242] : memref<48xi32, #tpu.memory_space<smem>>
    %244 = arith.index_cast %243 : i32 to index
    %c0_106 = arith.constant 0 : index
    %c0_107 = arith.constant 0 : index
    %245 = vector.load %arg2[%244, %c0_106, %c0_107] : memref<64x1x32xf32, #tpu.memory_space<vmem>>, vector<1x1x32xf32>
    %246 = vector.shape_cast %245 : vector<1x1x32xf32> to vector<1x32xf32>
    %247 = arith.addf %240, %246 : vector<1x32xf32>
    %248 = arith.index_cast %c9_i32 : i32 to index
    %c0_108 = arith.constant 0 : index
    %c0_109 = arith.constant 0 : index
    %249 = vector.load %arg3[%248, %c0_108, %c0_109] : memref<16x1x32xf32, #tpu.memory_space<vmem>>, vector<1x1x32xf32>
    %250 = vector.shape_cast %249 : vector<1x1x32xf32> to vector<1x32xf32>
    %251 = vector.shape_cast %247 : vector<1x32xf32> to vector<1x1x32xf32>
    tpu.vector_store %arg3[%248, %c0_108, %c0_109], %251 {strides = array<i32>} : memref<16x1x32xf32, #tpu.memory_space<vmem>>, vector<1x1x32xf32>,
    %c10_i32 = arith.constant 10 : i32
    %c3_i32_110 = arith.constant 3 : i32
    %252 = arith.muli %c10_i32, %c3_i32_110 : i32
    %253 = arith.addi %1, %252 : i32
    %254 = arith.index_cast %253 : i32 to index
    %255 = memref.load %arg1[%254] : memref<48xi32, #tpu.memory_space<smem>>
    %256 = arith.index_cast %255 : i32 to index
    %c0_111 = arith.constant 0 : index
    %c0_112 = arith.constant 0 : index
    %257 = vector.load %arg2[%256, %c0_111, %c0_112] : memref<64x1x32xf32, #tpu.memory_space<vmem>>, vector<1x1x32xf32>
    %258 = vector.shape_cast %257 : vector<1x1x32xf32> to vector<1x32xf32>
    %c1_i32_113 = arith.constant 1 : i32
    %259 = arith.addi %253, %c1_i32_113 : i32
    %260 = arith.index_cast %259 : i32 to index
    %261 = memref.load %arg1[%260] : memref<48xi32, #tpu.memory_space<smem>>
    %262 = arith.index_cast %261 : i32 to index
    %c0_114 = arith.constant 0 : index
    %c0_115 = arith.constant 0 : index
    %263 = vector.load %arg2[%262, %c0_114, %c0_115] : memref<64x1x32xf32, #tpu.memory_space<vmem>>, vector<1x1x32xf32>
    %264 = vector.shape_cast %263 : vector<1x1x32xf32> to vector<1x32xf32>
    %265 = arith.addf %258, %264 : vector<1x32xf32>
    %c2_i32_116 = arith.constant 2 : i32
    %266 = arith.addi %253, %c2_i32_116 : i32
    %267 = arith.index_cast %266 : i32 to index
    %268 = memref.load %arg1[%267] : memref<48xi32, #tpu.memory_space<smem>>
    %269 = arith.index_cast %268 : i32 to index
    %c0_117 = arith.constant 0 : index
    %c0_118 = arith.constant 0 : index
    %270 = vector.load %arg2[%269, %c0_117, %c0_118] : memref<64x1x32xf32, #tpu.memory_space<vmem>>, vector<1x1x32xf32>
    %271 = vector.shape_cast %270 : vector<1x1x32xf32> to vector<1x32xf32>
    %272 = arith.addf %265, %271 : vector<1x32xf32>
    %273 = arith.index_cast %c10_i32 : i32 to index
    %c0_119 = arith.constant 0 : index
    %c0_120 = arith.constant 0 : index
    %274 = vector.load %arg3[%273, %c0_119, %c0_120] : memref<16x1x32xf32, #tpu.memory_space<vmem>>, vector<1x1x32xf32>
    %275 = vector.shape_cast %274 : vector<1x1x32xf32> to vector<1x32xf32>
    %276 = vector.shape_cast %272 : vector<1x32xf32> to vector<1x1x32xf32>
    tpu.vector_store %arg3[%273, %c0_119, %c0_120], %276 {strides = array<i32>} : memref<16x1x32xf32, #tpu.memory_space<vmem>>, vector<1x1x32xf32>,
    %c11_i32 = arith.constant 11 : i32
    %c3_i32_121 = arith.constant 3 : i32
    %277 = arith.muli %c11_i32, %c3_i32_121 : i32
    %278 = arith.addi %1, %277 : i32
    %279 = arith.index_cast %278 : i32 to index
    %280 = memref.load %arg1[%279] : memref<48xi32, #tpu.memory_space<smem>>
    %281 = arith.index_cast %280 : i32 to index
    %c0_122 = arith.constant 0 : index
    %c0_123 = arith.constant 0 : index
    %282 = vector.load %arg2[%281, %c0_122, %c0_123] : memref<64x1x32xf32, #tpu.memory_space<vmem>>, vector<1x1x32xf32>
    %283 = vector.shape_cast %282 : vector<1x1x32xf32> to vector<1x32xf32>
    %c1_i32_124 = arith.constant 1 : i32
    %284 = arith.addi %278, %c1_i32_124 : i32
    %285 = arith.index_cast %284 : i32 to index
    %286 = memref.load %arg1[%285] : memref<48xi32, #tpu.memory_space<smem>>
    %287 = arith.index_cast %286 : i32 to index
    %c0_125 = arith.constant 0 : index
    %c0_126 = arith.constant 0 : index
    %288 = vector.load %arg2[%287, %c0_125, %c0_126] : memref<64x1x32xf32, #tpu.memory_space<vmem>>, vector<1x1x32xf32>
    %289 = vector.shape_cast %288 : vector<1x1x32xf32> to vector<1x32xf32>
    %290 = arith.addf %283, %289 : vector<1x32xf32>
    %c2_i32_127 = arith.constant 2 : i32
    %291 = arith.addi %278, %c2_i32_127 : i32
    %292 = arith.index_cast %291 : i32 to index
    %293 = memref.load %arg1[%292] : memref<48xi32, #tpu.memory_space<smem>>
    %294 = arith.index_cast %293 : i32 to index
    %c0_128 = arith.constant 0 : index
    %c0_129 = arith.constant 0 : index
    %295 = vector.load %arg2[%294, %c0_128, %c0_129] : memref<64x1x32xf32, #tpu.memory_space<vmem>>, vector<1x1x32xf32>
    %296 = vector.shape_cast %295 : vector<1x1x32xf32> to vector<1x32xf32>
    %297 = arith.addf %290, %296 : vector<1x32xf32>
    %298 = arith.index_cast %c11_i32 : i32 to index
    %c0_130 = arith.constant 0 : index
    %c0_131 = arith.constant 0 : index
    %299 = vector.load %arg3[%298, %c0_130, %c0_131] : memref<16x1x32xf32, #tpu.memory_space<vmem>>, vector<1x1x32xf32>
    %300 = vector.shape_cast %299 : vector<1x1x32xf32> to vector<1x32xf32>
    %301 = vector.shape_cast %297 : vector<1x32xf32> to vector<1x1x32xf32>
    tpu.vector_store %arg3[%298, %c0_130, %c0_131], %301 {strides = array<i32>} : memref<16x1x32xf32, #tpu.memory_space<vmem>>, vector<1x1x32xf32>,
    %c12_i32 = arith.constant 12 : i32
    %c3_i32_132 = arith.constant 3 : i32
    %302 = arith.muli %c12_i32, %c3_i32_132 : i32
    %303 = arith.addi %1, %302 : i32
    %304 = arith.index_cast %303 : i32 to index
    %305 = memref.load %arg1[%304] : memref<48xi32, #tpu.memory_space<smem>>
    %306 = arith.index_cast %305 : i32 to index
    %c0_133 = arith.constant 0 : index
    %c0_134 = arith.constant 0 : index
    %307 = vector.load %arg2[%306, %c0_133, %c0_134] : memref<64x1x32xf32, #tpu.memory_space<vmem>>, vector<1x1x32xf32>
    %308 = vector.shape_cast %307 : vector<1x1x32xf32> to vector<1x32xf32>
    %c1_i32_135 = arith.constant 1 : i32
    %309 = arith.addi %303, %c1_i32_135 : i32
    %310 = arith.index_cast %309 : i32 to index
    %311 = memref.load %arg1[%310] : memref<48xi32, #tpu.memory_space<smem>>
    %312 = arith.index_cast %311 : i32 to index
    %c0_136 = arith.constant 0 : index
    %c0_137 = arith.constant 0 : index
    %313 = vector.load %arg2[%312, %c0_136, %c0_137] : memref<64x1x32xf32, #tpu.memory_space<vmem>>, vector<1x1x32xf32>
    %314 = vector.shape_cast %313 : vector<1x1x32xf32> to vector<1x32xf32>
    %315 = arith.addf %308, %314 : vector<1x32xf32>
    %c2_i32_138 = arith.constant 2 : i32
    %316 = arith.addi %303, %c2_i32_138 : i32
    %317 = arith.index_cast %316 : i32 to index
    %318 = memref.load %arg1[%317] : memref<48xi32, #tpu.memory_space<smem>>
    %319 = arith.index_cast %318 : i32 to index
    %c0_139 = arith.constant 0 : index
    %c0_140 = arith.constant 0 : index
    %320 = vector.load %arg2[%319, %c0_139, %c0_140] : memref<64x1x32xf32, #tpu.memory_space<vmem>>, vector<1x1x32xf32>
    %321 = vector.shape_cast %320 : vector<1x1x32xf32> to vector<1x32xf32>
    %322 = arith.addf %315, %321 : vector<1x32xf32>
    %323 = arith.index_cast %c12_i32 : i32 to index
    %c0_141 = arith.constant 0 : index
    %c0_142 = arith.constant 0 : index
    %324 = vector.load %arg3[%323, %c0_141, %c0_142] : memref<16x1x32xf32, #tpu.memory_space<vmem>>, vector<1x1x32xf32>
    %325 = vector.shape_cast %324 : vector<1x1x32xf32> to vector<1x32xf32>
    %326 = vector.shape_cast %322 : vector<1x32xf32> to vector<1x1x32xf32>
    tpu.vector_store %arg3[%323, %c0_141, %c0_142], %326 {strides = array<i32>} : memref<16x1x32xf32, #tpu.memory_space<vmem>>, vector<1x1x32xf32>,
    %c13_i32 = arith.constant 13 : i32
    %c3_i32_143 = arith.constant 3 : i32
    %327 = arith.muli %c13_i32, %c3_i32_143 : i32
    %328 = arith.addi %1, %327 : i32
    %329 = arith.index_cast %328 : i32 to index
    %330 = memref.load %arg1[%329] : memref<48xi32, #tpu.memory_space<smem>>
    %331 = arith.index_cast %330 : i32 to index
    %c0_144 = arith.constant 0 : index
    %c0_145 = arith.constant 0 : index
    %332 = vector.load %arg2[%331, %c0_144, %c0_145] : memref<64x1x32xf32, #tpu.memory_space<vmem>>, vector<1x1x32xf32>
    %333 = vector.shape_cast %332 : vector<1x1x32xf32> to vector<1x32xf32>
    %c1_i32_146 = arith.constant 1 : i32
    %334 = arith.addi %328, %c1_i32_146 : i32
    %335 = arith.index_cast %334 : i32 to index
    %336 = memref.load %arg1[%335] : memref<48xi32, #tpu.memory_space<smem>>
    %337 = arith.index_cast %336 : i32 to index
    %c0_147 = arith.constant 0 : index
    %c0_148 = arith.constant 0 : index
    %338 = vector.load %arg2[%337, %c0_147, %c0_148] : memref<64x1x32xf32, #tpu.memory_space<vmem>>, vector<1x1x32xf32>
    %339 = vector.shape_cast %338 : vector<1x1x32xf32> to vector<1x32xf32>
    %340 = arith.addf %333, %339 : vector<1x32xf32>
    %c2_i32_149 = arith.constant 2 : i32
    %341 = arith.addi %328, %c2_i32_149 : i32
    %342 = arith.index_cast %341 : i32 to index
    %343 = memref.load %arg1[%342] : memref<48xi32, #tpu.memory_space<smem>>
    %344 = arith.index_cast %343 : i32 to index
    %c0_150 = arith.constant 0 : index
    %c0_151 = arith.constant 0 : index
    %345 = vector.load %arg2[%344, %c0_150, %c0_151] : memref<64x1x32xf32, #tpu.memory_space<vmem>>, vector<1x1x32xf32>
    %346 = vector.shape_cast %345 : vector<1x1x32xf32> to vector<1x32xf32>
    %347 = arith.addf %340, %346 : vector<1x32xf32>
    %348 = arith.index_cast %c13_i32 : i32 to index
    %c0_152 = arith.constant 0 : index
    %c0_153 = arith.constant 0 : index
    %349 = vector.load %arg3[%348, %c0_152, %c0_153] : memref<16x1x32xf32, #tpu.memory_space<vmem>>, vector<1x1x32xf32>
    %350 = vector.shape_cast %349 : vector<1x1x32xf32> to vector<1x32xf32>
    %351 = vector.shape_cast %347 : vector<1x32xf32> to vector<1x1x32xf32>
    tpu.vector_store %arg3[%348, %c0_152, %c0_153], %351 {strides = array<i32>} : memref<16x1x32xf32, #tpu.memory_space<vmem>>, vector<1x1x32xf32>,
    %c14_i32 = arith.constant 14 : i32
    %c3_i32_154 = arith.constant 3 : i32
    %352 = arith.muli %c14_i32, %c3_i32_154 : i32
    %353 = arith.addi %1, %352 : i32
    %354 = arith.index_cast %353 : i32 to index
    %355 = memref.load %arg1[%354] : memref<48xi32, #tpu.memory_space<smem>>
    %356 = arith.index_cast %355 : i32 to index
    %c0_155 = arith.constant 0 : index
    %c0_156 = arith.constant 0 : index
    %357 = vector.load %arg2[%356, %c0_155, %c0_156] : memref<64x1x32xf32, #tpu.memory_space<vmem>>, vector<1x1x32xf32>
    %358 = vector.shape_cast %357 : vector<1x1x32xf32> to vector<1x32xf32>
    %c1_i32_157 = arith.constant 1 : i32
    %359 = arith.addi %353, %c1_i32_157 : i32
    %360 = arith.index_cast %359 : i32 to index
    %361 = memref.load %arg1[%360] : memref<48xi32, #tpu.memory_space<smem>>
    %362 = arith.index_cast %361 : i32 to index
    %c0_158 = arith.constant 0 : index
    %c0_159 = arith.constant 0 : index
    %363 = vector.load %arg2[%362, %c0_158, %c0_159] : memref<64x1x32xf32, #tpu.memory_space<vmem>>, vector<1x1x32xf32>
    %364 = vector.shape_cast %363 : vector<1x1x32xf32> to vector<1x32xf32>
    %365 = arith.addf %358, %364 : vector<1x32xf32>
    %c2_i32_160 = arith.constant 2 : i32
    %366 = arith.addi %353, %c2_i32_160 : i32
    %367 = arith.index_cast %366 : i32 to index
    %368 = memref.load %arg1[%367] : memref<48xi32, #tpu.memory_space<smem>>
    %369 = arith.index_cast %368 : i32 to index
    %c0_161 = arith.constant 0 : index
    %c0_162 = arith.constant 0 : index
    %370 = vector.load %arg2[%369, %c0_161, %c0_162] : memref<64x1x32xf32, #tpu.memory_space<vmem>>, vector<1x1x32xf32>
    %371 = vector.shape_cast %370 : vector<1x1x32xf32> to vector<1x32xf32>
    %372 = arith.addf %365, %371 : vector<1x32xf32>
    %373 = arith.index_cast %c14_i32 : i32 to index
    %c0_163 = arith.constant 0 : index
    %c0_164 = arith.constant 0 : index
    %374 = vector.load %arg3[%373, %c0_163, %c0_164] : memref<16x1x32xf32, #tpu.memory_space<vmem>>, vector<1x1x32xf32>
    %375 = vector.shape_cast %374 : vector<1x1x32xf32> to vector<1x32xf32>
    %376 = vector.shape_cast %372 : vector<1x32xf32> to vector<1x1x32xf32>
    tpu.vector_store %arg3[%373, %c0_163, %c0_164], %376 {strides = array<i32>} : memref<16x1x32xf32, #tpu.memory_space<vmem>>, vector<1x1x32xf32>,
    %c15_i32 = arith.constant 15 : i32
    %c3_i32_165 = arith.constant 3 : i32
    %377 = arith.muli %c15_i32, %c3_i32_165 : i32
    %378 = arith.addi %1, %377 : i32
    %379 = arith.index_cast %378 : i32 to index
    %380 = memref.load %arg1[%379] : memref<48xi32, #tpu.memory_space<smem>>
    %381 = arith.index_cast %380 : i32 to index
    %c0_166 = arith.constant 0 : index
    %c0_167 = arith.constant 0 : index
    %382 = vector.load %arg2[%381, %c0_166, %c0_167] : memref<64x1x32xf32, #tpu.memory_space<vmem>>, vector<1x1x32xf32>
    %383 = vector.shape_cast %382 : vector<1x1x32xf32> to vector<1x32xf32>
    %c1_i32_168 = arith.constant 1 : i32
    %384 = arith.addi %378, %c1_i32_168 : i32
    %385 = arith.index_cast %384 : i32 to index
    %386 = memref.load %arg1[%385] : memref<48xi32, #tpu.memory_space<smem>>
    %387 = arith.index_cast %386 : i32 to index
    %c0_169 = arith.constant 0 : index
    %c0_170 = arith.constant 0 : index
    %388 = vector.load %arg2[%387, %c0_169, %c0_170] : memref<64x1x32xf32, #tpu.memory_space<vmem>>, vector<1x1x32xf32>
    %389 = vector.shape_cast %388 : vector<1x1x32xf32> to vector<1x32xf32>
    %390 = arith.addf %383, %389 : vector<1x32xf32>
    %c2_i32_171 = arith.constant 2 : i32
    %391 = arith.addi %378, %c2_i32_171 : i32
    %392 = arith.index_cast %391 : i32 to index
    %393 = memref.load %arg1[%392] : memref<48xi32, #tpu.memory_space<smem>>
    %394 = arith.index_cast %393 : i32 to index
    %c0_172 = arith.constant 0 : index
    %c0_173 = arith.constant 0 : index
    %395 = vector.load %arg2[%394, %c0_172, %c0_173] : memref<64x1x32xf32, #tpu.memory_space<vmem>>, vector<1x1x32xf32>
    %396 = vector.shape_cast %395 : vector<1x1x32xf32> to vector<1x32xf32>
    %397 = arith.addf %390, %396 : vector<1x32xf32>
    %398 = arith.index_cast %c15_i32 : i32 to index
    %c0_174 = arith.constant 0 : index
    %c0_175 = arith.constant 0 : index
    %399 = vector.load %arg3[%398, %c0_174, %c0_175] : memref<16x1x32xf32, #tpu.memory_space<vmem>>, vector<1x1x32xf32>
    %400 = vector.shape_cast %399 : vector<1x1x32xf32> to vector<1x32xf32>
    %401 = vector.shape_cast %397 : vector<1x32xf32> to vector<1x1x32xf32>
    tpu.vector_store %arg3[%398, %c0_174, %c0_175], %401 {strides = array<i32>} : memref<16x1x32xf32, #tpu.memory_space<vmem>>, vector<1x1x32xf32>,
    %c16_i32_176 = arith.constant 16 : i32
    return
  }
  func.func @transform_0(%arg0: i32, %arg1: memref<48xi32, #tpu.memory_space<smem>>) -> (i32, i32, i32) {
    %c0_i32 = arith.constant 0 : i32
    %c0_i32_0 = arith.constant 0 : i32
    %c0_i32_1 = arith.constant 0 : i32
    %c0_i32_2 = arith.constant 0 : i32
    return %c0_i32, %c0_i32_0, %c0_i32_1 : i32, i32, i32
  }
  func.func @transform_1(%arg0: i32, %arg1: memref<48xi32, #tpu.memory_space<smem>>) -> (i32, i32, i32) {
    %c0_i32 = arith.constant 0 : i32
    %c0_i32_0 = arith.constant 0 : i32
    %c0_i32_1 = arith.constant 0 : i32
    return %arg0, %c0_i32, %c0_i32_0 : i32, i32, i32
  }
}

module attributes {stable_mosaic.version = 11 : i64} {
  func.func @_matmul_kernel(%arg0: i32, %arg1: i32, %arg2: i32, %arg3: memref<16x128xf32, #tpu.memory_space<vmem>>, %arg4: memref<128x128xbf16, #tpu.memory_space<vmem>>, %arg5: memref<16x128xf32, #tpu.memory_space<vmem>>, %arg6: memref<16x128xf32, #tpu.memory_space<vmem>>) attributes {dimension_semantics = [#tpu.dimension_semantics<parallel>, #tpu.dimension_semantics<parallel>, #tpu.dimension_semantics<arbitrary>], iteration_bounds = array<i64: 1, 1, 1>, scalar_prefetch = 0 : i64, scratch_operands = 1 : i64, tpu.core_type = #tpu.core_type<tc>, window_params = [{transform_indices = @transform_0, window_bounds = array<i64: 16, 128>}, {transform_indices = @transform_1, window_bounds = array<i64: 128, 128>}, {transform_indices = @transform_2, window_bounds = array<i64: 16, 128>}]} {
    %c0_i32 = arith.constant 0 : i32
    %0 = arith.cmpi eq, %arg2, %c0_i32 : i32
    %1 = arith.extui %0 : i1 to i32
    %c0_i32_0 = arith.constant 0 : i32
    %2 = arith.cmpi ne, %1, %c0_i32_0 : i32
    scf.if %2 {
      %cst_10 = arith.constant 0.000000e+00 : f32
      %13 = vector.broadcast %cst_10 : f32 to vector<16x128xf32>
      %c0_11 = arith.constant 0 : index
      %c0_12 = arith.constant 0 : index
      %14 = vector.load %arg6[%c0_11, %c0_12] : memref<16x128xf32, #tpu.memory_space<vmem>>, vector<16x128xf32>
      tpu.vector_store %arg6[%c0_11, %c0_12], %13 {strides = array<i32>} : memref<16x128xf32, #tpu.memory_space<vmem>>, vector<16x128xf32>,
    } else {
    }
    %c0 = arith.constant 0 : index
    %c0_1 = arith.constant 0 : index
    %3 = vector.load %arg6[%c0, %c0_1] : memref<16x128xf32, #tpu.memory_space<vmem>>, vector<16x128xf32>
    %c0_2 = arith.constant 0 : index
    %c0_3 = arith.constant 0 : index
    %4 = vector.load %arg3[%c0_2, %c0_3] : memref<16x128xf32, #tpu.memory_space<vmem>>, vector<16x128xf32>
    %5 = arith.truncf %4 : vector<16x128xf32> to vector<16x128xbf16>
    %c0_4 = arith.constant 0 : index
    %c0_5 = arith.constant 0 : index
    %6 = vector.load %arg4[%c0_4, %c0_5] : memref<128x128xbf16, #tpu.memory_space<vmem>>, vector<128x128xbf16>
    %cst = arith.constant dense<0.000000e+00> : vector<16x128xf32>
    %7 = tpu.matmul %5, %6, %cst {dimension_numbers = #tpu.dot_dimension_numbers<[1], [0], [0], [1], [0, 0, 1, 1], [], []>} : vector<16x128xbf16>, vector<128x128xbf16>, vector<16x128xf32> -> vector<16x128xf32>
    %8 = arith.addf %3, %7 : vector<16x128xf32>
    %c0_6 = arith.constant 0 : index
    %c0_7 = arith.constant 0 : index
    %9 = vector.load %arg6[%c0_6, %c0_7] : memref<16x128xf32, #tpu.memory_space<vmem>>, vector<16x128xf32>
    tpu.vector_store %arg6[%c0_6, %c0_7], %8 {strides = array<i32>} : memref<16x128xf32, #tpu.memory_space<vmem>>, vector<16x128xf32>,
    %c0_i32_8 = arith.constant 0 : i32
    %10 = arith.cmpi eq, %arg2, %c0_i32_8 : i32
    %11 = arith.extui %10 : i1 to i32
    %c0_i32_9 = arith.constant 0 : i32
    %12 = arith.cmpi ne, %11, %c0_i32_9 : i32
    scf.if %12 {
      %c0_10 = arith.constant 0 : index
      %c0_11 = arith.constant 0 : index
      %13 = vector.load %arg6[%c0_10, %c0_11] : memref<16x128xf32, #tpu.memory_space<vmem>>, vector<16x128xf32>
      %c0_12 = arith.constant 0 : index
      %c0_13 = arith.constant 0 : index
      %14 = vector.load %arg5[%c0_12, %c0_13] : memref<16x128xf32, #tpu.memory_space<vmem>>, vector<16x128xf32>
      tpu.vector_store %arg5[%c0_12, %c0_13], %13 {strides = array<i32>} : memref<16x128xf32, #tpu.memory_space<vmem>>, vector<16x128xf32>,
    } else {
    }
    return
  }
  func.func @transform_0(%arg0: i32, %arg1: i32, %arg2: i32) -> (i32, i32) {
    %c0_i32 = arith.constant 0 : i32
    return %arg0, %arg2 : i32, i32
  }
  func.func @transform_1(%arg0: i32, %arg1: i32, %arg2: i32) -> (i32, i32) {
    %c0_i32 = arith.constant 0 : i32
    return %arg2, %arg1 : i32, i32
  }
  func.func @transform_2(%arg0: i32, %arg1: i32, %arg2: i32) -> (i32, i32) {
    %c0_i32 = arith.constant 0 : i32
    return %arg0, %arg1 : i32, i32
  }
}

module attributes {stable_mosaic.version = 11 : i64} {
  func.func @_gru_layer_kernel(%arg0: i32, %arg1: i32, %arg2: memref<8x2x32xf32, #tpu.memory_space<vmem>>, %arg3: memref<2x128xf32, #tpu.memory_space<vmem>>, %arg4: memref<32x384xbf16, #tpu.memory_space<vmem>>, %arg5: memref<128x384xbf16, #tpu.memory_space<vmem>>, %arg6: memref<1x384xf32, #tpu.memory_space<vmem>>, %arg7: memref<1x128xf32, #tpu.memory_space<vmem>>, %arg8: memref<8x2x128xf32, #tpu.memory_space<vmem>>, %arg9: memref<2x128xf32, #tpu.memory_space<vmem>>, %arg10: memref<2x128xf32, #tpu.memory_space<vmem>>) attributes {dimension_semantics = [#tpu.dimension_semantics<parallel>, #tpu.dimension_semantics<arbitrary>], iteration_bounds = array<i64: 1, 1>, scalar_prefetch = 0 : i64, scratch_operands = 1 : i64, tpu.core_type = #tpu.core_type<tc>, window_params = [{transform_indices = @transform_0, window_bounds = array<i64: 8, 2, 32>}, {transform_indices = @transform_1, window_bounds = array<i64: 2, 128>}, {pipeline_mode = #tpu.pipeline_mode<synchronous>, transform_indices = @transform_2, window_bounds = array<i64: 32, 384>}, {pipeline_mode = #tpu.pipeline_mode<synchronous>, transform_indices = @transform_3, window_bounds = array<i64: 128, 384>}, {pipeline_mode = #tpu.pipeline_mode<synchronous>, transform_indices = @transform_4, window_bounds = array<i64: 1, 384>}, {pipeline_mode = #tpu.pipeline_mode<synchronous>, transform_indices = @transform_5, window_bounds = array<i64: 1, 128>}, {transform_indices = @transform_6, window_bounds = array<i64: 8, 2, 128>}, {transform_indices = @transform_7, window_bounds = array<i64: 2, 128>}]} {
    %c0_i32 = arith.constant 0 : i32
    %0 = arith.cmpi eq, %arg1, %c0_i32 : i32
    %1 = arith.extui %0 : i1 to i32
    %c0_i32_0 = arith.constant 0 : i32
    %2 = arith.cmpi ne, %1, %c0_i32_0 : i32
    scf.if %2 {
      %c0_142 = arith.constant 0 : index
      %c0_143 = arith.constant 0 : index
      %368 = vector.load %arg3[%c0_142, %c0_143] : memref<2x128xf32, #tpu.memory_space<vmem>>, vector<2x128xf32>
      %c0_144 = arith.constant 0 : index
      %c0_145 = arith.constant 0 : index
      %369 = vector.load %arg10[%c0_144, %c0_145] : memref<2x128xf32, #tpu.memory_space<vmem>>, vector<2x128xf32>
      tpu.vector_store %arg10[%c0_144, %c0_145], %368 {strides = array<i32>} : memref<2x128xf32, #tpu.memory_space<vmem>>, vector<2x128xf32>,
    } else {
    }
    %c0 = arith.constant 0 : index
    %c0_1 = arith.constant 0 : index
    %3 = vector.load %arg10[%c0, %c0_1] : memref<2x128xf32, #tpu.memory_space<vmem>>, vector<2x128xf32>
    %c0_i32_2 = arith.constant 0 : i32
    %4 = arith.index_cast %c0_i32_2 : i32 to index
    %c0_3 = arith.constant 0 : index
    %c0_4 = arith.constant 0 : index
    %5 = vector.load %arg2[%4, %c0_3, %c0_4] : memref<8x2x32xf32, #tpu.memory_space<vmem>>, vector<1x2x32xf32>
    %6 = vector.shape_cast %5 : vector<1x2x32xf32> to vector<2x32xf32>
    %7 = arith.truncf %6 : vector<2x32xf32> to vector<2x32xbf16>
    %c0_5 = arith.constant 0 : index
    %c0_6 = arith.constant 0 : index
    %8 = vector.load %arg4[%c0_5, %c0_6] : memref<32x384xbf16, #tpu.memory_space<vmem>>, vector<32x384xbf16>
    %cst = arith.constant dense<0.000000e+00> : vector<2x384xf32>
    %9 = tpu.matmul %7, %8, %cst {dimension_numbers = #tpu.dot_dimension_numbers<[1], [0], [0], [1], [0, 0, 1, 1], [], []>} : vector<2x32xbf16>, vector<32x384xbf16>, vector<2x384xf32> -> vector<2x384xf32>
    %c0_7 = arith.constant 0 : index
    %c0_8 = arith.constant 0 : index
    %10 = vector.load %arg6[%c0_7, %c0_8] : memref<1x384xf32, #tpu.memory_space<vmem>>, vector<1x384xf32>
    %11 = vector.broadcast %10 : vector<1x384xf32> to vector<2x384xf32>
    %12 = arith.addf %9, %11 : vector<2x384xf32>
    %13 = arith.truncf %3 : vector<2x128xf32> to vector<2x128xbf16>
    %c0_9 = arith.constant 0 : index
    %c0_10 = arith.constant 0 : index
    %14 = vector.load %arg5[%c0_9, %c0_10] : memref<128x384xbf16, #tpu.memory_space<vmem>>, vector<128x384xbf16>
    %cst_11 = arith.constant dense<0.000000e+00> : vector<2x384xf32>
    %15 = tpu.matmul %13, %14, %cst_11 {dimension_numbers = #tpu.dot_dimension_numbers<[1], [0], [0], [1], [0, 0, 1, 1], [], []>} : vector<2x128xbf16>, vector<128x384xbf16>, vector<2x384xf32> -> vector<2x384xf32>
    %16 = vector.extract_strided_slice %12 {offsets = [0, 0], sizes = [2, 128], strides = [1, 1]} : vector<2x384xf32> to vector<2x128xf32>
    %17 = vector.extract_strided_slice %15 {offsets = [0, 0], sizes = [2, 128], strides = [1, 1]} : vector<2x384xf32> to vector<2x128xf32>
    %18 = arith.addf %16, %17 : vector<2x128xf32>
    %19 = arith.negf %18 : vector<2x128xf32>
    %20 = math.exp %19 : vector<2x128xf32>
    %cst_12 = arith.constant 1.000000e+00 : f32
    %21 = vector.broadcast %cst_12 : f32 to vector<2x128xf32>
    %22 = arith.addf %21, %20 : vector<2x128xf32>
    %23 = arith.divf %21, %22 : vector<2x128xf32>
    %24 = vector.extract_strided_slice %12 {offsets = [0, 128], sizes = [2, 128], strides = [1, 1]} : vector<2x384xf32> to vector<2x128xf32>
    %25 = vector.extract_strided_slice %15 {offsets = [0, 128], sizes = [2, 128], strides = [1, 1]} : vector<2x384xf32> to vector<2x128xf32>
    %26 = arith.addf %24, %25 : vector<2x128xf32>
    %27 = arith.negf %26 : vector<2x128xf32>
    %28 = math.exp %27 : vector<2x128xf32>
    %cst_13 = arith.constant 1.000000e+00 : f32
    %29 = vector.broadcast %cst_13 : f32 to vector<2x128xf32>
    %30 = arith.addf %29, %28 : vector<2x128xf32>
    %31 = arith.divf %29, %30 : vector<2x128xf32>
    %32 = vector.extract_strided_slice %12 {offsets = [0, 256], sizes = [2, 128], strides = [1, 1]} : vector<2x384xf32> to vector<2x128xf32>
    %33 = vector.extract_strided_slice %15 {offsets = [0, 256], sizes = [2, 128], strides = [1, 1]} : vector<2x384xf32> to vector<2x128xf32>
    %c0_14 = arith.constant 0 : index
    %c0_15 = arith.constant 0 : index
    %34 = vector.load %arg7[%c0_14, %c0_15] : memref<1x128xf32, #tpu.memory_space<vmem>>, vector<1x128xf32>
    %35 = vector.broadcast %34 : vector<1x128xf32> to vector<2x128xf32>
    %36 = arith.addf %33, %35 : vector<2x128xf32>
    %37 = arith.mulf %23, %36 : vector<2x128xf32>
    %38 = arith.addf %32, %37 : vector<2x128xf32>
    %39 = math.tanh %38 : vector<2x128xf32>
    %cst_16 = arith.constant 1.000000e+00 : f32
    %40 = vector.broadcast %cst_16 : f32 to vector<2x128xf32>
    %41 = arith.subf %40, %31 : vector<2x128xf32>
    %42 = arith.mulf %41, %39 : vector<2x128xf32>
    %43 = arith.mulf %31, %3 : vector<2x128xf32>
    %44 = arith.addf %42, %43 : vector<2x128xf32>
    %45 = arith.index_cast %c0_i32_2 : i32 to index
    %c0_17 = arith.constant 0 : index
    %c0_18 = arith.constant 0 : index
    %46 = vector.load %arg8[%45, %c0_17, %c0_18] : memref<8x2x128xf32, #tpu.memory_space<vmem>>, vector<1x2x128xf32>
    %47 = vector.shape_cast %46 : vector<1x2x128xf32> to vector<2x128xf32>
    %48 = vector.shape_cast %44 : vector<2x128xf32> to vector<1x2x128xf32>
    tpu.vector_store %arg8[%45, %c0_17, %c0_18], %48 {strides = array<i32>} : memref<8x2x128xf32, #tpu.memory_space<vmem>>, vector<1x2x128xf32>,
    %c1_i32 = arith.constant 1 : i32
    %49 = arith.index_cast %c1_i32 : i32 to index
    %c0_19 = arith.constant 0 : index
    %c0_20 = arith.constant 0 : index
    %50 = vector.load %arg2[%49, %c0_19, %c0_20] : memref<8x2x32xf32, #tpu.memory_space<vmem>>, vector<1x2x32xf32>
    %51 = vector.shape_cast %50 : vector<1x2x32xf32> to vector<2x32xf32>
    %52 = arith.truncf %51 : vector<2x32xf32> to vector<2x32xbf16>
    %c0_21 = arith.constant 0 : index
    %c0_22 = arith.constant 0 : index
    %53 = vector.load %arg4[%c0_21, %c0_22] : memref<32x384xbf16, #tpu.memory_space<vmem>>, vector<32x384xbf16>
    %cst_23 = arith.constant dense<0.000000e+00> : vector<2x384xf32>
    %54 = tpu.matmul %52, %53, %cst_23 {dimension_numbers = #tpu.dot_dimension_numbers<[1], [0], [0], [1], [0, 0, 1, 1], [], []>} : vector<2x32xbf16>, vector<32x384xbf16>, vector<2x384xf32> -> vector<2x384xf32>
    %c0_24 = arith.constant 0 : index
    %c0_25 = arith.constant 0 : index
    %55 = vector.load %arg6[%c0_24, %c0_25] : memref<1x384xf32, #tpu.memory_space<vmem>>, vector<1x384xf32>
    %56 = vector.broadcast %55 : vector<1x384xf32> to vector<2x384xf32>
    %57 = arith.addf %54, %56 : vector<2x384xf32>
    %58 = arith.truncf %44 : vector<2x128xf32> to vector<2x128xbf16>
    %c0_26 = arith.constant 0 : index
    %c0_27 = arith.constant 0 : index
    %59 = vector.load %arg5[%c0_26, %c0_27] : memref<128x384xbf16, #tpu.memory_space<vmem>>, vector<128x384xbf16>
    %cst_28 = arith.constant dense<0.000000e+00> : vector<2x384xf32>
    %60 = tpu.matmul %58, %59, %cst_28 {dimension_numbers = #tpu.dot_dimension_numbers<[1], [0], [0], [1], [0, 0, 1, 1], [], []>} : vector<2x128xbf16>, vector<128x384xbf16>, vector<2x384xf32> -> vector<2x384xf32>
    %61 = vector.extract_strided_slice %57 {offsets = [0, 0], sizes = [2, 128], strides = [1, 1]} : vector<2x384xf32> to vector<2x128xf32>
    %62 = vector.extract_strided_slice %60 {offsets = [0, 0], sizes = [2, 128], strides = [1, 1]} : vector<2x384xf32> to vector<2x128xf32>
    %63 = arith.addf %61, %62 : vector<2x128xf32>
    %64 = arith.negf %63 : vector<2x128xf32>
    %65 = math.exp %64 : vector<2x128xf32>
    %cst_29 = arith.constant 1.000000e+00 : f32
    %66 = vector.broadcast %cst_29 : f32 to vector<2x128xf32>
    %67 = arith.addf %66, %65 : vector<2x128xf32>
    %68 = arith.divf %66, %67 : vector<2x128xf32>
    %69 = vector.extract_strided_slice %57 {offsets = [0, 128], sizes = [2, 128], strides = [1, 1]} : vector<2x384xf32> to vector<2x128xf32>
    %70 = vector.extract_strided_slice %60 {offsets = [0, 128], sizes = [2, 128], strides = [1, 1]} : vector<2x384xf32> to vector<2x128xf32>
    %71 = arith.addf %69, %70 : vector<2x128xf32>
    %72 = arith.negf %71 : vector<2x128xf32>
    %73 = math.exp %72 : vector<2x128xf32>
    %cst_30 = arith.constant 1.000000e+00 : f32
    %74 = vector.broadcast %cst_30 : f32 to vector<2x128xf32>
    %75 = arith.addf %74, %73 : vector<2x128xf32>
    %76 = arith.divf %74, %75 : vector<2x128xf32>
    %77 = vector.extract_strided_slice %57 {offsets = [0, 256], sizes = [2, 128], strides = [1, 1]} : vector<2x384xf32> to vector<2x128xf32>
    %78 = vector.extract_strided_slice %60 {offsets = [0, 256], sizes = [2, 128], strides = [1, 1]} : vector<2x384xf32> to vector<2x128xf32>
    %c0_31 = arith.constant 0 : index
    %c0_32 = arith.constant 0 : index
    %79 = vector.load %arg7[%c0_31, %c0_32] : memref<1x128xf32, #tpu.memory_space<vmem>>, vector<1x128xf32>
    %80 = vector.broadcast %79 : vector<1x128xf32> to vector<2x128xf32>
    %81 = arith.addf %78, %80 : vector<2x128xf32>
    %82 = arith.mulf %68, %81 : vector<2x128xf32>
    %83 = arith.addf %77, %82 : vector<2x128xf32>
    %84 = math.tanh %83 : vector<2x128xf32>
    %cst_33 = arith.constant 1.000000e+00 : f32
    %85 = vector.broadcast %cst_33 : f32 to vector<2x128xf32>
    %86 = arith.subf %85, %76 : vector<2x128xf32>
    %87 = arith.mulf %86, %84 : vector<2x128xf32>
    %88 = arith.mulf %76, %44 : vector<2x128xf32>
    %89 = arith.addf %87, %88 : vector<2x128xf32>
    %90 = arith.index_cast %c1_i32 : i32 to index
    %c0_34 = arith.constant 0 : index
    %c0_35 = arith.constant 0 : index
    %91 = vector.load %arg8[%90, %c0_34, %c0_35] : memref<8x2x128xf32, #tpu.memory_space<vmem>>, vector<1x2x128xf32>
    %92 = vector.shape_cast %91 : vector<1x2x128xf32> to vector<2x128xf32>
    %93 = vector.shape_cast %89 : vector<2x128xf32> to vector<1x2x128xf32>
    tpu.vector_store %arg8[%90, %c0_34, %c0_35], %93 {strides = array<i32>} : memref<8x2x128xf32, #tpu.memory_space<vmem>>, vector<1x2x128xf32>,
    %c2_i32 = arith.constant 2 : i32
    %94 = arith.index_cast %c2_i32 : i32 to index
    %c0_36 = arith.constant 0 : index
    %c0_37 = arith.constant 0 : index
    %95 = vector.load %arg2[%94, %c0_36, %c0_37] : memref<8x2x32xf32, #tpu.memory_space<vmem>>, vector<1x2x32xf32>
    %96 = vector.shape_cast %95 : vector<1x2x32xf32> to vector<2x32xf32>
    %97 = arith.truncf %96 : vector<2x32xf32> to vector<2x32xbf16>
    %c0_38 = arith.constant 0 : index
    %c0_39 = arith.constant 0 : index
    %98 = vector.load %arg4[%c0_38, %c0_39] : memref<32x384xbf16, #tpu.memory_space<vmem>>, vector<32x384xbf16>
    %cst_40 = arith.constant dense<0.000000e+00> : vector<2x384xf32>
    %99 = tpu.matmul %97, %98, %cst_40 {dimension_numbers = #tpu.dot_dimension_numbers<[1], [0], [0], [1], [0, 0, 1, 1], [], []>} : vector<2x32xbf16>, vector<32x384xbf16>, vector<2x384xf32> -> vector<2x384xf32>
    %c0_41 = arith.constant 0 : index
    %c0_42 = arith.constant 0 : index
    %100 = vector.load %arg6[%c0_41, %c0_42] : memref<1x384xf32, #tpu.memory_space<vmem>>, vector<1x384xf32>
    %101 = vector.broadcast %100 : vector<1x384xf32> to vector<2x384xf32>
    %102 = arith.addf %99, %101 : vector<2x384xf32>
    %103 = arith.truncf %89 : vector<2x128xf32> to vector<2x128xbf16>
    %c0_43 = arith.constant 0 : index
    %c0_44 = arith.constant 0 : index
    %104 = vector.load %arg5[%c0_43, %c0_44] : memref<128x384xbf16, #tpu.memory_space<vmem>>, vector<128x384xbf16>
    %cst_45 = arith.constant dense<0.000000e+00> : vector<2x384xf32>
    %105 = tpu.matmul %103, %104, %cst_45 {dimension_numbers = #tpu.dot_dimension_numbers<[1], [0], [0], [1], [0, 0, 1, 1], [], []>} : vector<2x128xbf16>, vector<128x384xbf16>, vector<2x384xf32> -> vector<2x384xf32>
    %106 = vector.extract_strided_slice %102 {offsets = [0, 0], sizes = [2, 128], strides = [1, 1]} : vector<2x384xf32> to vector<2x128xf32>
    %107 = vector.extract_strided_slice %105 {offsets = [0, 0], sizes = [2, 128], strides = [1, 1]} : vector<2x384xf32> to vector<2x128xf32>
    %108 = arith.addf %106, %107 : vector<2x128xf32>
    %109 = arith.negf %108 : vector<2x128xf32>
    %110 = math.exp %109 : vector<2x128xf32>
    %cst_46 = arith.constant 1.000000e+00 : f32
    %111 = vector.broadcast %cst_46 : f32 to vector<2x128xf32>
    %112 = arith.addf %111, %110 : vector<2x128xf32>
    %113 = arith.divf %111, %112 : vector<2x128xf32>
    %114 = vector.extract_strided_slice %102 {offsets = [0, 128], sizes = [2, 128], strides = [1, 1]} : vector<2x384xf32> to vector<2x128xf32>
    %115 = vector.extract_strided_slice %105 {offsets = [0, 128], sizes = [2, 128], strides = [1, 1]} : vector<2x384xf32> to vector<2x128xf32>
    %116 = arith.addf %114, %115 : vector<2x128xf32>
    %117 = arith.negf %116 : vector<2x128xf32>
    %118 = math.exp %117 : vector<2x128xf32>
    %cst_47 = arith.constant 1.000000e+00 : f32
    %119 = vector.broadcast %cst_47 : f32 to vector<2x128xf32>
    %120 = arith.addf %119, %118 : vector<2x128xf32>
    %121 = arith.divf %119, %120 : vector<2x128xf32>
    %122 = vector.extract_strided_slice %102 {offsets = [0, 256], sizes = [2, 128], strides = [1, 1]} : vector<2x384xf32> to vector<2x128xf32>
    %123 = vector.extract_strided_slice %105 {offsets = [0, 256], sizes = [2, 128], strides = [1, 1]} : vector<2x384xf32> to vector<2x128xf32>
    %c0_48 = arith.constant 0 : index
    %c0_49 = arith.constant 0 : index
    %124 = vector.load %arg7[%c0_48, %c0_49] : memref<1x128xf32, #tpu.memory_space<vmem>>, vector<1x128xf32>
    %125 = vector.broadcast %124 : vector<1x128xf32> to vector<2x128xf32>
    %126 = arith.addf %123, %125 : vector<2x128xf32>
    %127 = arith.mulf %113, %126 : vector<2x128xf32>
    %128 = arith.addf %122, %127 : vector<2x128xf32>
    %129 = math.tanh %128 : vector<2x128xf32>
    %cst_50 = arith.constant 1.000000e+00 : f32
    %130 = vector.broadcast %cst_50 : f32 to vector<2x128xf32>
    %131 = arith.subf %130, %121 : vector<2x128xf32>
    %132 = arith.mulf %131, %129 : vector<2x128xf32>
    %133 = arith.mulf %121, %89 : vector<2x128xf32>
    %134 = arith.addf %132, %133 : vector<2x128xf32>
    %135 = arith.index_cast %c2_i32 : i32 to index
    %c0_51 = arith.constant 0 : index
    %c0_52 = arith.constant 0 : index
    %136 = vector.load %arg8[%135, %c0_51, %c0_52] : memref<8x2x128xf32, #tpu.memory_space<vmem>>, vector<1x2x128xf32>
    %137 = vector.shape_cast %136 : vector<1x2x128xf32> to vector<2x128xf32>
    %138 = vector.shape_cast %134 : vector<2x128xf32> to vector<1x2x128xf32>
    tpu.vector_store %arg8[%135, %c0_51, %c0_52], %138 {strides = array<i32>} : memref<8x2x128xf32, #tpu.memory_space<vmem>>, vector<1x2x128xf32>,
    %c3_i32 = arith.constant 3 : i32
    %139 = arith.index_cast %c3_i32 : i32 to index
    %c0_53 = arith.constant 0 : index
    %c0_54 = arith.constant 0 : index
    %140 = vector.load %arg2[%139, %c0_53, %c0_54] : memref<8x2x32xf32, #tpu.memory_space<vmem>>, vector<1x2x32xf32>
    %141 = vector.shape_cast %140 : vector<1x2x32xf32> to vector<2x32xf32>
    %142 = arith.truncf %141 : vector<2x32xf32> to vector<2x32xbf16>
    %c0_55 = arith.constant 0 : index
    %c0_56 = arith.constant 0 : index
    %143 = vector.load %arg4[%c0_55, %c0_56] : memref<32x384xbf16, #tpu.memory_space<vmem>>, vector<32x384xbf16>
    %cst_57 = arith.constant dense<0.000000e+00> : vector<2x384xf32>
    %144 = tpu.matmul %142, %143, %cst_57 {dimension_numbers = #tpu.dot_dimension_numbers<[1], [0], [0], [1], [0, 0, 1, 1], [], []>} : vector<2x32xbf16>, vector<32x384xbf16>, vector<2x384xf32> -> vector<2x384xf32>
    %c0_58 = arith.constant 0 : index
    %c0_59 = arith.constant 0 : index
    %145 = vector.load %arg6[%c0_58, %c0_59] : memref<1x384xf32, #tpu.memory_space<vmem>>, vector<1x384xf32>
    %146 = vector.broadcast %145 : vector<1x384xf32> to vector<2x384xf32>
    %147 = arith.addf %144, %146 : vector<2x384xf32>
    %148 = arith.truncf %134 : vector<2x128xf32> to vector<2x128xbf16>
    %c0_60 = arith.constant 0 : index
    %c0_61 = arith.constant 0 : index
    %149 = vector.load %arg5[%c0_60, %c0_61] : memref<128x384xbf16, #tpu.memory_space<vmem>>, vector<128x384xbf16>
    %cst_62 = arith.constant dense<0.000000e+00> : vector<2x384xf32>
    %150 = tpu.matmul %148, %149, %cst_62 {dimension_numbers = #tpu.dot_dimension_numbers<[1], [0], [0], [1], [0, 0, 1, 1], [], []>} : vector<2x128xbf16>, vector<128x384xbf16>, vector<2x384xf32> -> vector<2x384xf32>
    %151 = vector.extract_strided_slice %147 {offsets = [0, 0], sizes = [2, 128], strides = [1, 1]} : vector<2x384xf32> to vector<2x128xf32>
    %152 = vector.extract_strided_slice %150 {offsets = [0, 0], sizes = [2, 128], strides = [1, 1]} : vector<2x384xf32> to vector<2x128xf32>
    %153 = arith.addf %151, %152 : vector<2x128xf32>
    %154 = arith.negf %153 : vector<2x128xf32>
    %155 = math.exp %154 : vector<2x128xf32>
    %cst_63 = arith.constant 1.000000e+00 : f32
    %156 = vector.broadcast %cst_63 : f32 to vector<2x128xf32>
    %157 = arith.addf %156, %155 : vector<2x128xf32>
    %158 = arith.divf %156, %157 : vector<2x128xf32>
    %159 = vector.extract_strided_slice %147 {offsets = [0, 128], sizes = [2, 128], strides = [1, 1]} : vector<2x384xf32> to vector<2x128xf32>
    %160 = vector.extract_strided_slice %150 {offsets = [0, 128], sizes = [2, 128], strides = [1, 1]} : vector<2x384xf32> to vector<2x128xf32>
    %161 = arith.addf %159, %160 : vector<2x128xf32>
    %162 = arith.negf %161 : vector<2x128xf32>
    %163 = math.exp %162 : vector<2x128xf32>
    %cst_64 = arith.constant 1.000000e+00 : f32
    %164 = vector.broadcast %cst_64 : f32 to vector<2x128xf32>
    %165 = arith.addf %164, %163 : vector<2x128xf32>
    %166 = arith.divf %164, %165 : vector<2x128xf32>
    %167 = vector.extract_strided_slice %147 {offsets = [0, 256], sizes = [2, 128], strides = [1, 1]} : vector<2x384xf32> to vector<2x128xf32>
    %168 = vector.extract_strided_slice %150 {offsets = [0, 256], sizes = [2, 128], strides = [1, 1]} : vector<2x384xf32> to vector<2x128xf32>
    %c0_65 = arith.constant 0 : index
    %c0_66 = arith.constant 0 : index
    %169 = vector.load %arg7[%c0_65, %c0_66] : memref<1x128xf32, #tpu.memory_space<vmem>>, vector<1x128xf32>
    %170 = vector.broadcast %169 : vector<1x128xf32> to vector<2x128xf32>
    %171 = arith.addf %168, %170 : vector<2x128xf32>
    %172 = arith.mulf %158, %171 : vector<2x128xf32>
    %173 = arith.addf %167, %172 : vector<2x128xf32>
    %174 = math.tanh %173 : vector<2x128xf32>
    %cst_67 = arith.constant 1.000000e+00 : f32
    %175 = vector.broadcast %cst_67 : f32 to vector<2x128xf32>
    %176 = arith.subf %175, %166 : vector<2x128xf32>
    %177 = arith.mulf %176, %174 : vector<2x128xf32>
    %178 = arith.mulf %166, %134 : vector<2x128xf32>
    %179 = arith.addf %177, %178 : vector<2x128xf32>
    %180 = arith.index_cast %c3_i32 : i32 to index
    %c0_68 = arith.constant 0 : index
    %c0_69 = arith.constant 0 : index
    %181 = vector.load %arg8[%180, %c0_68, %c0_69] : memref<8x2x128xf32, #tpu.memory_space<vmem>>, vector<1x2x128xf32>
    %182 = vector.shape_cast %181 : vector<1x2x128xf32> to vector<2x128xf32>
    %183 = vector.shape_cast %179 : vector<2x128xf32> to vector<1x2x128xf32>
    tpu.vector_store %arg8[%180, %c0_68, %c0_69], %183 {strides = array<i32>} : memref<8x2x128xf32, #tpu.memory_space<vmem>>, vector<1x2x128xf32>,
    %c4_i32 = arith.constant 4 : i32
    %184 = arith.index_cast %c4_i32 : i32 to index
    %c0_70 = arith.constant 0 : index
    %c0_71 = arith.constant 0 : index
    %185 = vector.load %arg2[%184, %c0_70, %c0_71] : memref<8x2x32xf32, #tpu.memory_space<vmem>>, vector<1x2x32xf32>
    %186 = vector.shape_cast %185 : vector<1x2x32xf32> to vector<2x32xf32>
    %187 = arith.truncf %186 : vector<2x32xf32> to vector<2x32xbf16>
    %c0_72 = arith.constant 0 : index
    %c0_73 = arith.constant 0 : index
    %188 = vector.load %arg4[%c0_72, %c0_73] : memref<32x384xbf16, #tpu.memory_space<vmem>>, vector<32x384xbf16>
    %cst_74 = arith.constant dense<0.000000e+00> : vector<2x384xf32>
    %189 = tpu.matmul %187, %188, %cst_74 {dimension_numbers = #tpu.dot_dimension_numbers<[1], [0], [0], [1], [0, 0, 1, 1], [], []>} : vector<2x32xbf16>, vector<32x384xbf16>, vector<2x384xf32> -> vector<2x384xf32>
    %c0_75 = arith.constant 0 : index
    %c0_76 = arith.constant 0 : index
    %190 = vector.load %arg6[%c0_75, %c0_76] : memref<1x384xf32, #tpu.memory_space<vmem>>, vector<1x384xf32>
    %191 = vector.broadcast %190 : vector<1x384xf32> to vector<2x384xf32>
    %192 = arith.addf %189, %191 : vector<2x384xf32>
    %193 = arith.truncf %179 : vector<2x128xf32> to vector<2x128xbf16>
    %c0_77 = arith.constant 0 : index
    %c0_78 = arith.constant 0 : index
    %194 = vector.load %arg5[%c0_77, %c0_78] : memref<128x384xbf16, #tpu.memory_space<vmem>>, vector<128x384xbf16>
    %cst_79 = arith.constant dense<0.000000e+00> : vector<2x384xf32>
    %195 = tpu.matmul %193, %194, %cst_79 {dimension_numbers = #tpu.dot_dimension_numbers<[1], [0], [0], [1], [0, 0, 1, 1], [], []>} : vector<2x128xbf16>, vector<128x384xbf16>, vector<2x384xf32> -> vector<2x384xf32>
    %196 = vector.extract_strided_slice %192 {offsets = [0, 0], sizes = [2, 128], strides = [1, 1]} : vector<2x384xf32> to vector<2x128xf32>
    %197 = vector.extract_strided_slice %195 {offsets = [0, 0], sizes = [2, 128], strides = [1, 1]} : vector<2x384xf32> to vector<2x128xf32>
    %198 = arith.addf %196, %197 : vector<2x128xf32>
    %199 = arith.negf %198 : vector<2x128xf32>
    %200 = math.exp %199 : vector<2x128xf32>
    %cst_80 = arith.constant 1.000000e+00 : f32
    %201 = vector.broadcast %cst_80 : f32 to vector<2x128xf32>
    %202 = arith.addf %201, %200 : vector<2x128xf32>
    %203 = arith.divf %201, %202 : vector<2x128xf32>
    %204 = vector.extract_strided_slice %192 {offsets = [0, 128], sizes = [2, 128], strides = [1, 1]} : vector<2x384xf32> to vector<2x128xf32>
    %205 = vector.extract_strided_slice %195 {offsets = [0, 128], sizes = [2, 128], strides = [1, 1]} : vector<2x384xf32> to vector<2x128xf32>
    %206 = arith.addf %204, %205 : vector<2x128xf32>
    %207 = arith.negf %206 : vector<2x128xf32>
    %208 = math.exp %207 : vector<2x128xf32>
    %cst_81 = arith.constant 1.000000e+00 : f32
    %209 = vector.broadcast %cst_81 : f32 to vector<2x128xf32>
    %210 = arith.addf %209, %208 : vector<2x128xf32>
    %211 = arith.divf %209, %210 : vector<2x128xf32>
    %212 = vector.extract_strided_slice %192 {offsets = [0, 256], sizes = [2, 128], strides = [1, 1]} : vector<2x384xf32> to vector<2x128xf32>
    %213 = vector.extract_strided_slice %195 {offsets = [0, 256], sizes = [2, 128], strides = [1, 1]} : vector<2x384xf32> to vector<2x128xf32>
    %c0_82 = arith.constant 0 : index
    %c0_83 = arith.constant 0 : index
    %214 = vector.load %arg7[%c0_82, %c0_83] : memref<1x128xf32, #tpu.memory_space<vmem>>, vector<1x128xf32>
    %215 = vector.broadcast %214 : vector<1x128xf32> to vector<2x128xf32>
    %216 = arith.addf %213, %215 : vector<2x128xf32>
    %217 = arith.mulf %203, %216 : vector<2x128xf32>
    %218 = arith.addf %212, %217 : vector<2x128xf32>
    %219 = math.tanh %218 : vector<2x128xf32>
    %cst_84 = arith.constant 1.000000e+00 : f32
    %220 = vector.broadcast %cst_84 : f32 to vector<2x128xf32>
    %221 = arith.subf %220, %211 : vector<2x128xf32>
    %222 = arith.mulf %221, %219 : vector<2x128xf32>
    %223 = arith.mulf %211, %179 : vector<2x128xf32>
    %224 = arith.addf %222, %223 : vector<2x128xf32>
    %225 = arith.index_cast %c4_i32 : i32 to index
    %c0_85 = arith.constant 0 : index
    %c0_86 = arith.constant 0 : index
    %226 = vector.load %arg8[%225, %c0_85, %c0_86] : memref<8x2x128xf32, #tpu.memory_space<vmem>>, vector<1x2x128xf32>
    %227 = vector.shape_cast %226 : vector<1x2x128xf32> to vector<2x128xf32>
    %228 = vector.shape_cast %224 : vector<2x128xf32> to vector<1x2x128xf32>
    tpu.vector_store %arg8[%225, %c0_85, %c0_86], %228 {strides = array<i32>} : memref<8x2x128xf32, #tpu.memory_space<vmem>>, vector<1x2x128xf32>,
    %c5_i32 = arith.constant 5 : i32
    %229 = arith.index_cast %c5_i32 : i32 to index
    %c0_87 = arith.constant 0 : index
    %c0_88 = arith.constant 0 : index
    %230 = vector.load %arg2[%229, %c0_87, %c0_88] : memref<8x2x32xf32, #tpu.memory_space<vmem>>, vector<1x2x32xf32>
    %231 = vector.shape_cast %230 : vector<1x2x32xf32> to vector<2x32xf32>
    %232 = arith.truncf %231 : vector<2x32xf32> to vector<2x32xbf16>
    %c0_89 = arith.constant 0 : index
    %c0_90 = arith.constant 0 : index
    %233 = vector.load %arg4[%c0_89, %c0_90] : memref<32x384xbf16, #tpu.memory_space<vmem>>, vector<32x384xbf16>
    %cst_91 = arith.constant dense<0.000000e+00> : vector<2x384xf32>
    %234 = tpu.matmul %232, %233, %cst_91 {dimension_numbers = #tpu.dot_dimension_numbers<[1], [0], [0], [1], [0, 0, 1, 1], [], []>} : vector<2x32xbf16>, vector<32x384xbf16>, vector<2x384xf32> -> vector<2x384xf32>
    %c0_92 = arith.constant 0 : index
    %c0_93 = arith.constant 0 : index
    %235 = vector.load %arg6[%c0_92, %c0_93] : memref<1x384xf32, #tpu.memory_space<vmem>>, vector<1x384xf32>
    %236 = vector.broadcast %235 : vector<1x384xf32> to vector<2x384xf32>
    %237 = arith.addf %234, %236 : vector<2x384xf32>
    %238 = arith.truncf %224 : vector<2x128xf32> to vector<2x128xbf16>
    %c0_94 = arith.constant 0 : index
    %c0_95 = arith.constant 0 : index
    %239 = vector.load %arg5[%c0_94, %c0_95] : memref<128x384xbf16, #tpu.memory_space<vmem>>, vector<128x384xbf16>
    %cst_96 = arith.constant dense<0.000000e+00> : vector<2x384xf32>
    %240 = tpu.matmul %238, %239, %cst_96 {dimension_numbers = #tpu.dot_dimension_numbers<[1], [0], [0], [1], [0, 0, 1, 1], [], []>} : vector<2x128xbf16>, vector<128x384xbf16>, vector<2x384xf32> -> vector<2x384xf32>
    %241 = vector.extract_strided_slice %237 {offsets = [0, 0], sizes = [2, 128], strides = [1, 1]} : vector<2x384xf32> to vector<2x128xf32>
    %242 = vector.extract_strided_slice %240 {offsets = [0, 0], sizes = [2, 128], strides = [1, 1]} : vector<2x384xf32> to vector<2x128xf32>
    %243 = arith.addf %241, %242 : vector<2x128xf32>
    %244 = arith.negf %243 : vector<2x128xf32>
    %245 = math.exp %244 : vector<2x128xf32>
    %cst_97 = arith.constant 1.000000e+00 : f32
    %246 = vector.broadcast %cst_97 : f32 to vector<2x128xf32>
    %247 = arith.addf %246, %245 : vector<2x128xf32>
    %248 = arith.divf %246, %247 : vector<2x128xf32>
    %249 = vector.extract_strided_slice %237 {offsets = [0, 128], sizes = [2, 128], strides = [1, 1]} : vector<2x384xf32> to vector<2x128xf32>
    %250 = vector.extract_strided_slice %240 {offsets = [0, 128], sizes = [2, 128], strides = [1, 1]} : vector<2x384xf32> to vector<2x128xf32>
    %251 = arith.addf %249, %250 : vector<2x128xf32>
    %252 = arith.negf %251 : vector<2x128xf32>
    %253 = math.exp %252 : vector<2x128xf32>
    %cst_98 = arith.constant 1.000000e+00 : f32
    %254 = vector.broadcast %cst_98 : f32 to vector<2x128xf32>
    %255 = arith.addf %254, %253 : vector<2x128xf32>
    %256 = arith.divf %254, %255 : vector<2x128xf32>
    %257 = vector.extract_strided_slice %237 {offsets = [0, 256], sizes = [2, 128], strides = [1, 1]} : vector<2x384xf32> to vector<2x128xf32>
    %258 = vector.extract_strided_slice %240 {offsets = [0, 256], sizes = [2, 128], strides = [1, 1]} : vector<2x384xf32> to vector<2x128xf32>
    %c0_99 = arith.constant 0 : index
    %c0_100 = arith.constant 0 : index
    %259 = vector.load %arg7[%c0_99, %c0_100] : memref<1x128xf32, #tpu.memory_space<vmem>>, vector<1x128xf32>
    %260 = vector.broadcast %259 : vector<1x128xf32> to vector<2x128xf32>
    %261 = arith.addf %258, %260 : vector<2x128xf32>
    %262 = arith.mulf %248, %261 : vector<2x128xf32>
    %263 = arith.addf %257, %262 : vector<2x128xf32>
    %264 = math.tanh %263 : vector<2x128xf32>
    %cst_101 = arith.constant 1.000000e+00 : f32
    %265 = vector.broadcast %cst_101 : f32 to vector<2x128xf32>
    %266 = arith.subf %265, %256 : vector<2x128xf32>
    %267 = arith.mulf %266, %264 : vector<2x128xf32>
    %268 = arith.mulf %256, %224 : vector<2x128xf32>
    %269 = arith.addf %267, %268 : vector<2x128xf32>
    %270 = arith.index_cast %c5_i32 : i32 to index
    %c0_102 = arith.constant 0 : index
    %c0_103 = arith.constant 0 : index
    %271 = vector.load %arg8[%270, %c0_102, %c0_103] : memref<8x2x128xf32, #tpu.memory_space<vmem>>, vector<1x2x128xf32>
    %272 = vector.shape_cast %271 : vector<1x2x128xf32> to vector<2x128xf32>
    %273 = vector.shape_cast %269 : vector<2x128xf32> to vector<1x2x128xf32>
    tpu.vector_store %arg8[%270, %c0_102, %c0_103], %273 {strides = array<i32>} : memref<8x2x128xf32, #tpu.memory_space<vmem>>, vector<1x2x128xf32>,
    %c6_i32 = arith.constant 6 : i32
    %274 = arith.index_cast %c6_i32 : i32 to index
    %c0_104 = arith.constant 0 : index
    %c0_105 = arith.constant 0 : index
    %275 = vector.load %arg2[%274, %c0_104, %c0_105] : memref<8x2x32xf32, #tpu.memory_space<vmem>>, vector<1x2x32xf32>
    %276 = vector.shape_cast %275 : vector<1x2x32xf32> to vector<2x32xf32>
    %277 = arith.truncf %276 : vector<2x32xf32> to vector<2x32xbf16>
    %c0_106 = arith.constant 0 : index
    %c0_107 = arith.constant 0 : index
    %278 = vector.load %arg4[%c0_106, %c0_107] : memref<32x384xbf16, #tpu.memory_space<vmem>>, vector<32x384xbf16>
    %cst_108 = arith.constant dense<0.000000e+00> : vector<2x384xf32>
    %279 = tpu.matmul %277, %278, %cst_108 {dimension_numbers = #tpu.dot_dimension_numbers<[1], [0], [0], [1], [0, 0, 1, 1], [], []>} : vector<2x32xbf16>, vector<32x384xbf16>, vector<2x384xf32> -> vector<2x384xf32>
    %c0_109 = arith.constant 0 : index
    %c0_110 = arith.constant 0 : index
    %280 = vector.load %arg6[%c0_109, %c0_110] : memref<1x384xf32, #tpu.memory_space<vmem>>, vector<1x384xf32>
    %281 = vector.broadcast %280 : vector<1x384xf32> to vector<2x384xf32>
    %282 = arith.addf %279, %281 : vector<2x384xf32>
    %283 = arith.truncf %269 : vector<2x128xf32> to vector<2x128xbf16>
    %c0_111 = arith.constant 0 : index
    %c0_112 = arith.constant 0 : index
    %284 = vector.load %arg5[%c0_111, %c0_112] : memref<128x384xbf16, #tpu.memory_space<vmem>>, vector<128x384xbf16>
    %cst_113 = arith.constant dense<0.000000e+00> : vector<2x384xf32>
    %285 = tpu.matmul %283, %284, %cst_113 {dimension_numbers = #tpu.dot_dimension_numbers<[1], [0], [0], [1], [0, 0, 1, 1], [], []>} : vector<2x128xbf16>, vector<128x384xbf16>, vector<2x384xf32> -> vector<2x384xf32>
    %286 = vector.extract_strided_slice %282 {offsets = [0, 0], sizes = [2, 128], strides = [1, 1]} : vector<2x384xf32> to vector<2x128xf32>
    %287 = vector.extract_strided_slice %285 {offsets = [0, 0], sizes = [2, 128], strides = [1, 1]} : vector<2x384xf32> to vector<2x128xf32>
    %288 = arith.addf %286, %287 : vector<2x128xf32>
    %289 = arith.negf %288 : vector<2x128xf32>
    %290 = math.exp %289 : vector<2x128xf32>
    %cst_114 = arith.constant 1.000000e+00 : f32
    %291 = vector.broadcast %cst_114 : f32 to vector<2x128xf32>
    %292 = arith.addf %291, %290 : vector<2x128xf32>
    %293 = arith.divf %291, %292 : vector<2x128xf32>
    %294 = vector.extract_strided_slice %282 {offsets = [0, 128], sizes = [2, 128], strides = [1, 1]} : vector<2x384xf32> to vector<2x128xf32>
    %295 = vector.extract_strided_slice %285 {offsets = [0, 128], sizes = [2, 128], strides = [1, 1]} : vector<2x384xf32> to vector<2x128xf32>
    %296 = arith.addf %294, %295 : vector<2x128xf32>
    %297 = arith.negf %296 : vector<2x128xf32>
    %298 = math.exp %297 : vector<2x128xf32>
    %cst_115 = arith.constant 1.000000e+00 : f32
    %299 = vector.broadcast %cst_115 : f32 to vector<2x128xf32>
    %300 = arith.addf %299, %298 : vector<2x128xf32>
    %301 = arith.divf %299, %300 : vector<2x128xf32>
    %302 = vector.extract_strided_slice %282 {offsets = [0, 256], sizes = [2, 128], strides = [1, 1]} : vector<2x384xf32> to vector<2x128xf32>
    %303 = vector.extract_strided_slice %285 {offsets = [0, 256], sizes = [2, 128], strides = [1, 1]} : vector<2x384xf32> to vector<2x128xf32>
    %c0_116 = arith.constant 0 : index
    %c0_117 = arith.constant 0 : index
    %304 = vector.load %arg7[%c0_116, %c0_117] : memref<1x128xf32, #tpu.memory_space<vmem>>, vector<1x128xf32>
    %305 = vector.broadcast %304 : vector<1x128xf32> to vector<2x128xf32>
    %306 = arith.addf %303, %305 : vector<2x128xf32>
    %307 = arith.mulf %293, %306 : vector<2x128xf32>
    %308 = arith.addf %302, %307 : vector<2x128xf32>
    %309 = math.tanh %308 : vector<2x128xf32>
    %cst_118 = arith.constant 1.000000e+00 : f32
    %310 = vector.broadcast %cst_118 : f32 to vector<2x128xf32>
    %311 = arith.subf %310, %301 : vector<2x128xf32>
    %312 = arith.mulf %311, %309 : vector<2x128xf32>
    %313 = arith.mulf %301, %269 : vector<2x128xf32>
    %314 = arith.addf %312, %313 : vector<2x128xf32>
    %315 = arith.index_cast %c6_i32 : i32 to index
    %c0_119 = arith.constant 0 : index
    %c0_120 = arith.constant 0 : index
    %316 = vector.load %arg8[%315, %c0_119, %c0_120] : memref<8x2x128xf32, #tpu.memory_space<vmem>>, vector<1x2x128xf32>
    %317 = vector.shape_cast %316 : vector<1x2x128xf32> to vector<2x128xf32>
    %318 = vector.shape_cast %314 : vector<2x128xf32> to vector<1x2x128xf32>
    tpu.vector_store %arg8[%315, %c0_119, %c0_120], %318 {strides = array<i32>} : memref<8x2x128xf32, #tpu.memory_space<vmem>>, vector<1x2x128xf32>,
    %c7_i32 = arith.constant 7 : i32
    %319 = arith.index_cast %c7_i32 : i32 to index
    %c0_121 = arith.constant 0 : index
    %c0_122 = arith.constant 0 : index
    %320 = vector.load %arg2[%319, %c0_121, %c0_122] : memref<8x2x32xf32, #tpu.memory_space<vmem>>, vector<1x2x32xf32>
    %321 = vector.shape_cast %320 : vector<1x2x32xf32> to vector<2x32xf32>
    %322 = arith.truncf %321 : vector<2x32xf32> to vector<2x32xbf16>
    %c0_123 = arith.constant 0 : index
    %c0_124 = arith.constant 0 : index
    %323 = vector.load %arg4[%c0_123, %c0_124] : memref<32x384xbf16, #tpu.memory_space<vmem>>, vector<32x384xbf16>
    %cst_125 = arith.constant dense<0.000000e+00> : vector<2x384xf32>
    %324 = tpu.matmul %322, %323, %cst_125 {dimension_numbers = #tpu.dot_dimension_numbers<[1], [0], [0], [1], [0, 0, 1, 1], [], []>} : vector<2x32xbf16>, vector<32x384xbf16>, vector<2x384xf32> -> vector<2x384xf32>
    %c0_126 = arith.constant 0 : index
    %c0_127 = arith.constant 0 : index
    %325 = vector.load %arg6[%c0_126, %c0_127] : memref<1x384xf32, #tpu.memory_space<vmem>>, vector<1x384xf32>
    %326 = vector.broadcast %325 : vector<1x384xf32> to vector<2x384xf32>
    %327 = arith.addf %324, %326 : vector<2x384xf32>
    %328 = arith.truncf %314 : vector<2x128xf32> to vector<2x128xbf16>
    %c0_128 = arith.constant 0 : index
    %c0_129 = arith.constant 0 : index
    %329 = vector.load %arg5[%c0_128, %c0_129] : memref<128x384xbf16, #tpu.memory_space<vmem>>, vector<128x384xbf16>
    %cst_130 = arith.constant dense<0.000000e+00> : vector<2x384xf32>
    %330 = tpu.matmul %328, %329, %cst_130 {dimension_numbers = #tpu.dot_dimension_numbers<[1], [0], [0], [1], [0, 0, 1, 1], [], []>} : vector<2x128xbf16>, vector<128x384xbf16>, vector<2x384xf32> -> vector<2x384xf32>
    %331 = vector.extract_strided_slice %327 {offsets = [0, 0], sizes = [2, 128], strides = [1, 1]} : vector<2x384xf32> to vector<2x128xf32>
    %332 = vector.extract_strided_slice %330 {offsets = [0, 0], sizes = [2, 128], strides = [1, 1]} : vector<2x384xf32> to vector<2x128xf32>
    %333 = arith.addf %331, %332 : vector<2x128xf32>
    %334 = arith.negf %333 : vector<2x128xf32>
    %335 = math.exp %334 : vector<2x128xf32>
    %cst_131 = arith.constant 1.000000e+00 : f32
    %336 = vector.broadcast %cst_131 : f32 to vector<2x128xf32>
    %337 = arith.addf %336, %335 : vector<2x128xf32>
    %338 = arith.divf %336, %337 : vector<2x128xf32>
    %339 = vector.extract_strided_slice %327 {offsets = [0, 128], sizes = [2, 128], strides = [1, 1]} : vector<2x384xf32> to vector<2x128xf32>
    %340 = vector.extract_strided_slice %330 {offsets = [0, 128], sizes = [2, 128], strides = [1, 1]} : vector<2x384xf32> to vector<2x128xf32>
    %341 = arith.addf %339, %340 : vector<2x128xf32>
    %342 = arith.negf %341 : vector<2x128xf32>
    %343 = math.exp %342 : vector<2x128xf32>
    %cst_132 = arith.constant 1.000000e+00 : f32
    %344 = vector.broadcast %cst_132 : f32 to vector<2x128xf32>
    %345 = arith.addf %344, %343 : vector<2x128xf32>
    %346 = arith.divf %344, %345 : vector<2x128xf32>
    %347 = vector.extract_strided_slice %327 {offsets = [0, 256], sizes = [2, 128], strides = [1, 1]} : vector<2x384xf32> to vector<2x128xf32>
    %348 = vector.extract_strided_slice %330 {offsets = [0, 256], sizes = [2, 128], strides = [1, 1]} : vector<2x384xf32> to vector<2x128xf32>
    %c0_133 = arith.constant 0 : index
    %c0_134 = arith.constant 0 : index
    %349 = vector.load %arg7[%c0_133, %c0_134] : memref<1x128xf32, #tpu.memory_space<vmem>>, vector<1x128xf32>
    %350 = vector.broadcast %349 : vector<1x128xf32> to vector<2x128xf32>
    %351 = arith.addf %348, %350 : vector<2x128xf32>
    %352 = arith.mulf %338, %351 : vector<2x128xf32>
    %353 = arith.addf %347, %352 : vector<2x128xf32>
    %354 = math.tanh %353 : vector<2x128xf32>
    %cst_135 = arith.constant 1.000000e+00 : f32
    %355 = vector.broadcast %cst_135 : f32 to vector<2x128xf32>
    %356 = arith.subf %355, %346 : vector<2x128xf32>
    %357 = arith.mulf %356, %354 : vector<2x128xf32>
    %358 = arith.mulf %346, %314 : vector<2x128xf32>
    %359 = arith.addf %357, %358 : vector<2x128xf32>
    %360 = arith.index_cast %c7_i32 : i32 to index
    %c0_136 = arith.constant 0 : index
    %c0_137 = arith.constant 0 : index
    %361 = vector.load %arg8[%360, %c0_136, %c0_137] : memref<8x2x128xf32, #tpu.memory_space<vmem>>, vector<1x2x128xf32>
    %362 = vector.shape_cast %361 : vector<1x2x128xf32> to vector<2x128xf32>
    %363 = vector.shape_cast %359 : vector<2x128xf32> to vector<1x2x128xf32>
    tpu.vector_store %arg8[%360, %c0_136, %c0_137], %363 {strides = array<i32>} : memref<8x2x128xf32, #tpu.memory_space<vmem>>, vector<1x2x128xf32>,
    %c8_i32 = arith.constant 8 : i32
    %c0_138 = arith.constant 0 : index
    %c0_139 = arith.constant 0 : index
    %364 = vector.load %arg10[%c0_138, %c0_139] : memref<2x128xf32, #tpu.memory_space<vmem>>, vector<2x128xf32>
    tpu.vector_store %arg10[%c0_138, %c0_139], %359 {strides = array<i32>} : memref<2x128xf32, #tpu.memory_space<vmem>>, vector<2x128xf32>,
    %c0_i32_140 = arith.constant 0 : i32
    %365 = arith.cmpi eq, %arg1, %c0_i32_140 : i32
    %366 = arith.extui %365 : i1 to i32
    %c0_i32_141 = arith.constant 0 : i32
    %367 = arith.cmpi ne, %366, %c0_i32_141 : i32
    scf.if %367 {
      %c0_142 = arith.constant 0 : index
      %c0_143 = arith.constant 0 : index
      %368 = vector.load %arg9[%c0_142, %c0_143] : memref<2x128xf32, #tpu.memory_space<vmem>>, vector<2x128xf32>
      tpu.vector_store %arg9[%c0_142, %c0_143], %359 {strides = array<i32>} : memref<2x128xf32, #tpu.memory_space<vmem>>, vector<2x128xf32>,
    } else {
    }
    return
  }
  func.func @transform_0(%arg0: i32, %arg1: i32) -> (i32, i32, i32) {
    %c0_i32 = arith.constant 0 : i32
    %c0_i32_0 = arith.constant 0 : i32
    return %arg1, %arg0, %c0_i32 : i32, i32, i32
  }
  func.func @transform_1(%arg0: i32, %arg1: i32) -> (i32, i32) {
    %c0_i32 = arith.constant 0 : i32
    %c0_i32_0 = arith.constant 0 : i32
    return %arg0, %c0_i32 : i32, i32
  }
  func.func @transform_2(%arg0: i32, %arg1: i32) -> (i32, i32) {
    %c0_i32 = arith.constant 0 : i32
    %c0_i32_0 = arith.constant 0 : i32
    %c0_i32_1 = arith.constant 0 : i32
    return %c0_i32, %c0_i32_0 : i32, i32
  }
  func.func @transform_3(%arg0: i32, %arg1: i32) -> (i32, i32) {
    %c0_i32 = arith.constant 0 : i32
    %c0_i32_0 = arith.constant 0 : i32
    %c0_i32_1 = arith.constant 0 : i32
    return %c0_i32, %c0_i32_0 : i32, i32
  }
  func.func @transform_4(%arg0: i32, %arg1: i32) -> (i32, i32) {
    %c0_i32 = arith.constant 0 : i32
    %c0_i32_0 = arith.constant 0 : i32
    %c0_i32_1 = arith.constant 0 : i32
    return %c0_i32, %c0_i32_0 : i32, i32
  }
  func.func @transform_5(%arg0: i32, %arg1: i32) -> (i32, i32) {
    %c0_i32 = arith.constant 0 : i32
    %c0_i32_0 = arith.constant 0 : i32
    %c0_i32_1 = arith.constant 0 : i32
    return %c0_i32, %c0_i32_0 : i32, i32
  }
  func.func @transform_6(%arg0: i32, %arg1: i32) -> (i32, i32, i32) {
    %c0_i32 = arith.constant 0 : i32
    %c0_i32_0 = arith.constant 0 : i32
    return %arg1, %arg0, %c0_i32 : i32, i32, i32
  }
  func.func @transform_7(%arg0: i32, %arg1: i32) -> (i32, i32) {
    %c0_i32 = arith.constant 0 : i32
    %c0_i32_0 = arith.constant 0 : i32
    return %arg0, %c0_i32 : i32, i32
  }
}

module attributes {stable_mosaic.version = 11 : i64} {
  func.func @_gru_layer_kernel(%arg0: i32, %arg1: i32, %arg2: memref<8x2x128xf32, #tpu.memory_space<vmem>>, %arg3: memref<2x128xf32, #tpu.memory_space<vmem>>, %arg4: memref<128x384xbf16, #tpu.memory_space<vmem>>, %arg5: memref<128x384xbf16, #tpu.memory_space<vmem>>, %arg6: memref<1x384xf32, #tpu.memory_space<vmem>>, %arg7: memref<1x128xf32, #tpu.memory_space<vmem>>, %arg8: memref<8x2x128xf32, #tpu.memory_space<vmem>>, %arg9: memref<2x128xf32, #tpu.memory_space<vmem>>, %arg10: memref<2x128xf32, #tpu.memory_space<vmem>>) attributes {dimension_semantics = [#tpu.dimension_semantics<parallel>, #tpu.dimension_semantics<arbitrary>], iteration_bounds = array<i64: 1, 1>, scalar_prefetch = 0 : i64, scratch_operands = 1 : i64, tpu.core_type = #tpu.core_type<tc>, window_params = [{transform_indices = @transform_0, window_bounds = array<i64: 8, 2, 128>}, {transform_indices = @transform_1, window_bounds = array<i64: 2, 128>}, {pipeline_mode = #tpu.pipeline_mode<synchronous>, transform_indices = @transform_2, window_bounds = array<i64: 128, 384>}, {pipeline_mode = #tpu.pipeline_mode<synchronous>, transform_indices = @transform_3, window_bounds = array<i64: 128, 384>}, {pipeline_mode = #tpu.pipeline_mode<synchronous>, transform_indices = @transform_4, window_bounds = array<i64: 1, 384>}, {pipeline_mode = #tpu.pipeline_mode<synchronous>, transform_indices = @transform_5, window_bounds = array<i64: 1, 128>}, {transform_indices = @transform_6, window_bounds = array<i64: 8, 2, 128>}, {transform_indices = @transform_7, window_bounds = array<i64: 2, 128>}]} {
    %c0_i32 = arith.constant 0 : i32
    %0 = arith.cmpi eq, %arg1, %c0_i32 : i32
    %1 = arith.extui %0 : i1 to i32
    %c0_i32_0 = arith.constant 0 : i32
    %2 = arith.cmpi ne, %1, %c0_i32_0 : i32
    scf.if %2 {
      %c0_142 = arith.constant 0 : index
      %c0_143 = arith.constant 0 : index
      %368 = vector.load %arg3[%c0_142, %c0_143] : memref<2x128xf32, #tpu.memory_space<vmem>>, vector<2x128xf32>
      %c0_144 = arith.constant 0 : index
      %c0_145 = arith.constant 0 : index
      %369 = vector.load %arg10[%c0_144, %c0_145] : memref<2x128xf32, #tpu.memory_space<vmem>>, vector<2x128xf32>
      tpu.vector_store %arg10[%c0_144, %c0_145], %368 {strides = array<i32>} : memref<2x128xf32, #tpu.memory_space<vmem>>, vector<2x128xf32>,
    } else {
    }
    %c0 = arith.constant 0 : index
    %c0_1 = arith.constant 0 : index
    %3 = vector.load %arg10[%c0, %c0_1] : memref<2x128xf32, #tpu.memory_space<vmem>>, vector<2x128xf32>
    %c0_i32_2 = arith.constant 0 : i32
    %4 = arith.index_cast %c0_i32_2 : i32 to index
    %c0_3 = arith.constant 0 : index
    %c0_4 = arith.constant 0 : index
    %5 = vector.load %arg2[%4, %c0_3, %c0_4] : memref<8x2x128xf32, #tpu.memory_space<vmem>>, vector<1x2x128xf32>
    %6 = vector.shape_cast %5 : vector<1x2x128xf32> to vector<2x128xf32>
    %7 = arith.truncf %6 : vector<2x128xf32> to vector<2x128xbf16>
    %c0_5 = arith.constant 0 : index
    %c0_6 = arith.constant 0 : index
    %8 = vector.load %arg4[%c0_5, %c0_6] : memref<128x384xbf16, #tpu.memory_space<vmem>>, vector<128x384xbf16>
    %cst = arith.constant dense<0.000000e+00> : vector<2x384xf32>
    %9 = tpu.matmul %7, %8, %cst {dimension_numbers = #tpu.dot_dimension_numbers<[1], [0], [0], [1], [0, 0, 1, 1], [], []>} : vector<2x128xbf16>, vector<128x384xbf16>, vector<2x384xf32> -> vector<2x384xf32>
    %c0_7 = arith.constant 0 : index
    %c0_8 = arith.constant 0 : index
    %10 = vector.load %arg6[%c0_7, %c0_8] : memref<1x384xf32, #tpu.memory_space<vmem>>, vector<1x384xf32>
    %11 = vector.broadcast %10 : vector<1x384xf32> to vector<2x384xf32>
    %12 = arith.addf %9, %11 : vector<2x384xf32>
    %13 = arith.truncf %3 : vector<2x128xf32> to vector<2x128xbf16>
    %c0_9 = arith.constant 0 : index
    %c0_10 = arith.constant 0 : index
    %14 = vector.load %arg5[%c0_9, %c0_10] : memref<128x384xbf16, #tpu.memory_space<vmem>>, vector<128x384xbf16>
    %cst_11 = arith.constant dense<0.000000e+00> : vector<2x384xf32>
    %15 = tpu.matmul %13, %14, %cst_11 {dimension_numbers = #tpu.dot_dimension_numbers<[1], [0], [0], [1], [0, 0, 1, 1], [], []>} : vector<2x128xbf16>, vector<128x384xbf16>, vector<2x384xf32> -> vector<2x384xf32>
    %16 = vector.extract_strided_slice %12 {offsets = [0, 0], sizes = [2, 128], strides = [1, 1]} : vector<2x384xf32> to vector<2x128xf32>
    %17 = vector.extract_strided_slice %15 {offsets = [0, 0], sizes = [2, 128], strides = [1, 1]} : vector<2x384xf32> to vector<2x128xf32>
    %18 = arith.addf %16, %17 : vector<2x128xf32>
    %19 = arith.negf %18 : vector<2x128xf32>
    %20 = math.exp %19 : vector<2x128xf32>
    %cst_12 = arith.constant 1.000000e+00 : f32
    %21 = vector.broadcast %cst_12 : f32 to vector<2x128xf32>
    %22 = arith.addf %21, %20 : vector<2x128xf32>
    %23 = arith.divf %21, %22 : vector<2x128xf32>
    %24 = vector.extract_strided_slice %12 {offsets = [0, 128], sizes = [2, 128], strides = [1, 1]} : vector<2x384xf32> to vector<2x128xf32>
    %25 = vector.extract_strided_slice %15 {offsets = [0, 128], sizes = [2, 128], strides = [1, 1]} : vector<2x384xf32> to vector<2x128xf32>
    %26 = arith.addf %24, %25 : vector<2x128xf32>
    %27 = arith.negf %26 : vector<2x128xf32>
    %28 = math.exp %27 : vector<2x128xf32>
    %cst_13 = arith.constant 1.000000e+00 : f32
    %29 = vector.broadcast %cst_13 : f32 to vector<2x128xf32>
    %30 = arith.addf %29, %28 : vector<2x128xf32>
    %31 = arith.divf %29, %30 : vector<2x128xf32>
    %32 = vector.extract_strided_slice %12 {offsets = [0, 256], sizes = [2, 128], strides = [1, 1]} : vector<2x384xf32> to vector<2x128xf32>
    %33 = vector.extract_strided_slice %15 {offsets = [0, 256], sizes = [2, 128], strides = [1, 1]} : vector<2x384xf32> to vector<2x128xf32>
    %c0_14 = arith.constant 0 : index
    %c0_15 = arith.constant 0 : index
    %34 = vector.load %arg7[%c0_14, %c0_15] : memref<1x128xf32, #tpu.memory_space<vmem>>, vector<1x128xf32>
    %35 = vector.broadcast %34 : vector<1x128xf32> to vector<2x128xf32>
    %36 = arith.addf %33, %35 : vector<2x128xf32>
    %37 = arith.mulf %23, %36 : vector<2x128xf32>
    %38 = arith.addf %32, %37 : vector<2x128xf32>
    %39 = math.tanh %38 : vector<2x128xf32>
    %cst_16 = arith.constant 1.000000e+00 : f32
    %40 = vector.broadcast %cst_16 : f32 to vector<2x128xf32>
    %41 = arith.subf %40, %31 : vector<2x128xf32>
    %42 = arith.mulf %41, %39 : vector<2x128xf32>
    %43 = arith.mulf %31, %3 : vector<2x128xf32>
    %44 = arith.addf %42, %43 : vector<2x128xf32>
    %45 = arith.index_cast %c0_i32_2 : i32 to index
    %c0_17 = arith.constant 0 : index
    %c0_18 = arith.constant 0 : index
    %46 = vector.load %arg8[%45, %c0_17, %c0_18] : memref<8x2x128xf32, #tpu.memory_space<vmem>>, vector<1x2x128xf32>
    %47 = vector.shape_cast %46 : vector<1x2x128xf32> to vector<2x128xf32>
    %48 = vector.shape_cast %44 : vector<2x128xf32> to vector<1x2x128xf32>
    tpu.vector_store %arg8[%45, %c0_17, %c0_18], %48 {strides = array<i32>} : memref<8x2x128xf32, #tpu.memory_space<vmem>>, vector<1x2x128xf32>,
    %c1_i32 = arith.constant 1 : i32
    %49 = arith.index_cast %c1_i32 : i32 to index
    %c0_19 = arith.constant 0 : index
    %c0_20 = arith.constant 0 : index
    %50 = vector.load %arg2[%49, %c0_19, %c0_20] : memref<8x2x128xf32, #tpu.memory_space<vmem>>, vector<1x2x128xf32>
    %51 = vector.shape_cast %50 : vector<1x2x128xf32> to vector<2x128xf32>
    %52 = arith.truncf %51 : vector<2x128xf32> to vector<2x128xbf16>
    %c0_21 = arith.constant 0 : index
    %c0_22 = arith.constant 0 : index
    %53 = vector.load %arg4[%c0_21, %c0_22] : memref<128x384xbf16, #tpu.memory_space<vmem>>, vector<128x384xbf16>
    %cst_23 = arith.constant dense<0.000000e+00> : vector<2x384xf32>
    %54 = tpu.matmul %52, %53, %cst_23 {dimension_numbers = #tpu.dot_dimension_numbers<[1], [0], [0], [1], [0, 0, 1, 1], [], []>} : vector<2x128xbf16>, vector<128x384xbf16>, vector<2x384xf32> -> vector<2x384xf32>
    %c0_24 = arith.constant 0 : index
    %c0_25 = arith.constant 0 : index
    %55 = vector.load %arg6[%c0_24, %c0_25] : memref<1x384xf32, #tpu.memory_space<vmem>>, vector<1x384xf32>
    %56 = vector.broadcast %55 : vector<1x384xf32> to vector<2x384xf32>
    %57 = arith.addf %54, %56 : vector<2x384xf32>
    %58 = arith.truncf %44 : vector<2x128xf32> to vector<2x128xbf16>
    %c0_26 = arith.constant 0 : index
    %c0_27 = arith.constant 0 : index
    %59 = vector.load %arg5[%c0_26, %c0_27] : memref<128x384xbf16, #tpu.memory_space<vmem>>, vector<128x384xbf16>
    %cst_28 = arith.constant dense<0.000000e+00> : vector<2x384xf32>
    %60 = tpu.matmul %58, %59, %cst_28 {dimension_numbers = #tpu.dot_dimension_numbers<[1], [0], [0], [1], [0, 0, 1, 1], [], []>} : vector<2x128xbf16>, vector<128x384xbf16>, vector<2x384xf32> -> vector<2x384xf32>
    %61 = vector.extract_strided_slice %57 {offsets = [0, 0], sizes = [2, 128], strides = [1, 1]} : vector<2x384xf32> to vector<2x128xf32>
    %62 = vector.extract_strided_slice %60 {offsets = [0, 0], sizes = [2, 128], strides = [1, 1]} : vector<2x384xf32> to vector<2x128xf32>
    %63 = arith.addf %61, %62 : vector<2x128xf32>
    %64 = arith.negf %63 : vector<2x128xf32>
    %65 = math.exp %64 : vector<2x128xf32>
    %cst_29 = arith.constant 1.000000e+00 : f32
    %66 = vector.broadcast %cst_29 : f32 to vector<2x128xf32>
    %67 = arith.addf %66, %65 : vector<2x128xf32>
    %68 = arith.divf %66, %67 : vector<2x128xf32>
    %69 = vector.extract_strided_slice %57 {offsets = [0, 128], sizes = [2, 128], strides = [1, 1]} : vector<2x384xf32> to vector<2x128xf32>
    %70 = vector.extract_strided_slice %60 {offsets = [0, 128], sizes = [2, 128], strides = [1, 1]} : vector<2x384xf32> to vector<2x128xf32>
    %71 = arith.addf %69, %70 : vector<2x128xf32>
    %72 = arith.negf %71 : vector<2x128xf32>
    %73 = math.exp %72 : vector<2x128xf32>
    %cst_30 = arith.constant 1.000000e+00 : f32
    %74 = vector.broadcast %cst_30 : f32 to vector<2x128xf32>
    %75 = arith.addf %74, %73 : vector<2x128xf32>
    %76 = arith.divf %74, %75 : vector<2x128xf32>
    %77 = vector.extract_strided_slice %57 {offsets = [0, 256], sizes = [2, 128], strides = [1, 1]} : vector<2x384xf32> to vector<2x128xf32>
    %78 = vector.extract_strided_slice %60 {offsets = [0, 256], sizes = [2, 128], strides = [1, 1]} : vector<2x384xf32> to vector<2x128xf32>
    %c0_31 = arith.constant 0 : index
    %c0_32 = arith.constant 0 : index
    %79 = vector.load %arg7[%c0_31, %c0_32] : memref<1x128xf32, #tpu.memory_space<vmem>>, vector<1x128xf32>
    %80 = vector.broadcast %79 : vector<1x128xf32> to vector<2x128xf32>
    %81 = arith.addf %78, %80 : vector<2x128xf32>
    %82 = arith.mulf %68, %81 : vector<2x128xf32>
    %83 = arith.addf %77, %82 : vector<2x128xf32>
    %84 = math.tanh %83 : vector<2x128xf32>
    %cst_33 = arith.constant 1.000000e+00 : f32
    %85 = vector.broadcast %cst_33 : f32 to vector<2x128xf32>
    %86 = arith.subf %85, %76 : vector<2x128xf32>
    %87 = arith.mulf %86, %84 : vector<2x128xf32>
    %88 = arith.mulf %76, %44 : vector<2x128xf32>
    %89 = arith.addf %87, %88 : vector<2x128xf32>
    %90 = arith.index_cast %c1_i32 : i32 to index
    %c0_34 = arith.constant 0 : index
    %c0_35 = arith.constant 0 : index
    %91 = vector.load %arg8[%90, %c0_34, %c0_35] : memref<8x2x128xf32, #tpu.memory_space<vmem>>, vector<1x2x128xf32>
    %92 = vector.shape_cast %91 : vector<1x2x128xf32> to vector<2x128xf32>
    %93 = vector.shape_cast %89 : vector<2x128xf32> to vector<1x2x128xf32>
    tpu.vector_store %arg8[%90, %c0_34, %c0_35], %93 {strides = array<i32>} : memref<8x2x128xf32, #tpu.memory_space<vmem>>, vector<1x2x128xf32>,
    %c2_i32 = arith.constant 2 : i32
    %94 = arith.index_cast %c2_i32 : i32 to index
    %c0_36 = arith.constant 0 : index
    %c0_37 = arith.constant 0 : index
    %95 = vector.load %arg2[%94, %c0_36, %c0_37] : memref<8x2x128xf32, #tpu.memory_space<vmem>>, vector<1x2x128xf32>
    %96 = vector.shape_cast %95 : vector<1x2x128xf32> to vector<2x128xf32>
    %97 = arith.truncf %96 : vector<2x128xf32> to vector<2x128xbf16>
    %c0_38 = arith.constant 0 : index
    %c0_39 = arith.constant 0 : index
    %98 = vector.load %arg4[%c0_38, %c0_39] : memref<128x384xbf16, #tpu.memory_space<vmem>>, vector<128x384xbf16>
    %cst_40 = arith.constant dense<0.000000e+00> : vector<2x384xf32>
    %99 = tpu.matmul %97, %98, %cst_40 {dimension_numbers = #tpu.dot_dimension_numbers<[1], [0], [0], [1], [0, 0, 1, 1], [], []>} : vector<2x128xbf16>, vector<128x384xbf16>, vector<2x384xf32> -> vector<2x384xf32>
    %c0_41 = arith.constant 0 : index
    %c0_42 = arith.constant 0 : index
    %100 = vector.load %arg6[%c0_41, %c0_42] : memref<1x384xf32, #tpu.memory_space<vmem>>, vector<1x384xf32>
    %101 = vector.broadcast %100 : vector<1x384xf32> to vector<2x384xf32>
    %102 = arith.addf %99, %101 : vector<2x384xf32>
    %103 = arith.truncf %89 : vector<2x128xf32> to vector<2x128xbf16>
    %c0_43 = arith.constant 0 : index
    %c0_44 = arith.constant 0 : index
    %104 = vector.load %arg5[%c0_43, %c0_44] : memref<128x384xbf16, #tpu.memory_space<vmem>>, vector<128x384xbf16>
    %cst_45 = arith.constant dense<0.000000e+00> : vector<2x384xf32>
    %105 = tpu.matmul %103, %104, %cst_45 {dimension_numbers = #tpu.dot_dimension_numbers<[1], [0], [0], [1], [0, 0, 1, 1], [], []>} : vector<2x128xbf16>, vector<128x384xbf16>, vector<2x384xf32> -> vector<2x384xf32>
    %106 = vector.extract_strided_slice %102 {offsets = [0, 0], sizes = [2, 128], strides = [1, 1]} : vector<2x384xf32> to vector<2x128xf32>
    %107 = vector.extract_strided_slice %105 {offsets = [0, 0], sizes = [2, 128], strides = [1, 1]} : vector<2x384xf32> to vector<2x128xf32>
    %108 = arith.addf %106, %107 : vector<2x128xf32>
    %109 = arith.negf %108 : vector<2x128xf32>
    %110 = math.exp %109 : vector<2x128xf32>
    %cst_46 = arith.constant 1.000000e+00 : f32
    %111 = vector.broadcast %cst_46 : f32 to vector<2x128xf32>
    %112 = arith.addf %111, %110 : vector<2x128xf32>
    %113 = arith.divf %111, %112 : vector<2x128xf32>
    %114 = vector.extract_strided_slice %102 {offsets = [0, 128], sizes = [2, 128], strides = [1, 1]} : vector<2x384xf32> to vector<2x128xf32>
    %115 = vector.extract_strided_slice %105 {offsets = [0, 128], sizes = [2, 128], strides = [1, 1]} : vector<2x384xf32> to vector<2x128xf32>
    %116 = arith.addf %114, %115 : vector<2x128xf32>
    %117 = arith.negf %116 : vector<2x128xf32>
    %118 = math.exp %117 : vector<2x128xf32>
    %cst_47 = arith.constant 1.000000e+00 : f32
    %119 = vector.broadcast %cst_47 : f32 to vector<2x128xf32>
    %120 = arith.addf %119, %118 : vector<2x128xf32>
    %121 = arith.divf %119, %120 : vector<2x128xf32>
    %122 = vector.extract_strided_slice %102 {offsets = [0, 256], sizes = [2, 128], strides = [1, 1]} : vector<2x384xf32> to vector<2x128xf32>
    %123 = vector.extract_strided_slice %105 {offsets = [0, 256], sizes = [2, 128], strides = [1, 1]} : vector<2x384xf32> to vector<2x128xf32>
    %c0_48 = arith.constant 0 : index
    %c0_49 = arith.constant 0 : index
    %124 = vector.load %arg7[%c0_48, %c0_49] : memref<1x128xf32, #tpu.memory_space<vmem>>, vector<1x128xf32>
    %125 = vector.broadcast %124 : vector<1x128xf32> to vector<2x128xf32>
    %126 = arith.addf %123, %125 : vector<2x128xf32>
    %127 = arith.mulf %113, %126 : vector<2x128xf32>
    %128 = arith.addf %122, %127 : vector<2x128xf32>
    %129 = math.tanh %128 : vector<2x128xf32>
    %cst_50 = arith.constant 1.000000e+00 : f32
    %130 = vector.broadcast %cst_50 : f32 to vector<2x128xf32>
    %131 = arith.subf %130, %121 : vector<2x128xf32>
    %132 = arith.mulf %131, %129 : vector<2x128xf32>
    %133 = arith.mulf %121, %89 : vector<2x128xf32>
    %134 = arith.addf %132, %133 : vector<2x128xf32>
    %135 = arith.index_cast %c2_i32 : i32 to index
    %c0_51 = arith.constant 0 : index
    %c0_52 = arith.constant 0 : index
    %136 = vector.load %arg8[%135, %c0_51, %c0_52] : memref<8x2x128xf32, #tpu.memory_space<vmem>>, vector<1x2x128xf32>
    %137 = vector.shape_cast %136 : vector<1x2x128xf32> to vector<2x128xf32>
    %138 = vector.shape_cast %134 : vector<2x128xf32> to vector<1x2x128xf32>
    tpu.vector_store %arg8[%135, %c0_51, %c0_52], %138 {strides = array<i32>} : memref<8x2x128xf32, #tpu.memory_space<vmem>>, vector<1x2x128xf32>,
    %c3_i32 = arith.constant 3 : i32
    %139 = arith.index_cast %c3_i32 : i32 to index
    %c0_53 = arith.constant 0 : index
    %c0_54 = arith.constant 0 : index
    %140 = vector.load %arg2[%139, %c0_53, %c0_54] : memref<8x2x128xf32, #tpu.memory_space<vmem>>, vector<1x2x128xf32>
    %141 = vector.shape_cast %140 : vector<1x2x128xf32> to vector<2x128xf32>
    %142 = arith.truncf %141 : vector<2x128xf32> to vector<2x128xbf16>
    %c0_55 = arith.constant 0 : index
    %c0_56 = arith.constant 0 : index
    %143 = vector.load %arg4[%c0_55, %c0_56] : memref<128x384xbf16, #tpu.memory_space<vmem>>, vector<128x384xbf16>
    %cst_57 = arith.constant dense<0.000000e+00> : vector<2x384xf32>
    %144 = tpu.matmul %142, %143, %cst_57 {dimension_numbers = #tpu.dot_dimension_numbers<[1], [0], [0], [1], [0, 0, 1, 1], [], []>} : vector<2x128xbf16>, vector<128x384xbf16>, vector<2x384xf32> -> vector<2x384xf32>
    %c0_58 = arith.constant 0 : index
    %c0_59 = arith.constant 0 : index
    %145 = vector.load %arg6[%c0_58, %c0_59] : memref<1x384xf32, #tpu.memory_space<vmem>>, vector<1x384xf32>
    %146 = vector.broadcast %145 : vector<1x384xf32> to vector<2x384xf32>
    %147 = arith.addf %144, %146 : vector<2x384xf32>
    %148 = arith.truncf %134 : vector<2x128xf32> to vector<2x128xbf16>
    %c0_60 = arith.constant 0 : index
    %c0_61 = arith.constant 0 : index
    %149 = vector.load %arg5[%c0_60, %c0_61] : memref<128x384xbf16, #tpu.memory_space<vmem>>, vector<128x384xbf16>
    %cst_62 = arith.constant dense<0.000000e+00> : vector<2x384xf32>
    %150 = tpu.matmul %148, %149, %cst_62 {dimension_numbers = #tpu.dot_dimension_numbers<[1], [0], [0], [1], [0, 0, 1, 1], [], []>} : vector<2x128xbf16>, vector<128x384xbf16>, vector<2x384xf32> -> vector<2x384xf32>
    %151 = vector.extract_strided_slice %147 {offsets = [0, 0], sizes = [2, 128], strides = [1, 1]} : vector<2x384xf32> to vector<2x128xf32>
    %152 = vector.extract_strided_slice %150 {offsets = [0, 0], sizes = [2, 128], strides = [1, 1]} : vector<2x384xf32> to vector<2x128xf32>
    %153 = arith.addf %151, %152 : vector<2x128xf32>
    %154 = arith.negf %153 : vector<2x128xf32>
    %155 = math.exp %154 : vector<2x128xf32>
    %cst_63 = arith.constant 1.000000e+00 : f32
    %156 = vector.broadcast %cst_63 : f32 to vector<2x128xf32>
    %157 = arith.addf %156, %155 : vector<2x128xf32>
    %158 = arith.divf %156, %157 : vector<2x128xf32>
    %159 = vector.extract_strided_slice %147 {offsets = [0, 128], sizes = [2, 128], strides = [1, 1]} : vector<2x384xf32> to vector<2x128xf32>
    %160 = vector.extract_strided_slice %150 {offsets = [0, 128], sizes = [2, 128], strides = [1, 1]} : vector<2x384xf32> to vector<2x128xf32>
    %161 = arith.addf %159, %160 : vector<2x128xf32>
    %162 = arith.negf %161 : vector<2x128xf32>
    %163 = math.exp %162 : vector<2x128xf32>
    %cst_64 = arith.constant 1.000000e+00 : f32
    %164 = vector.broadcast %cst_64 : f32 to vector<2x128xf32>
    %165 = arith.addf %164, %163 : vector<2x128xf32>
    %166 = arith.divf %164, %165 : vector<2x128xf32>
    %167 = vector.extract_strided_slice %147 {offsets = [0, 256], sizes = [2, 128], strides = [1, 1]} : vector<2x384xf32> to vector<2x128xf32>
    %168 = vector.extract_strided_slice %150 {offsets = [0, 256], sizes = [2, 128], strides = [1, 1]} : vector<2x384xf32> to vector<2x128xf32>
    %c0_65 = arith.constant 0 : index
    %c0_66 = arith.constant 0 : index
    %169 = vector.load %arg7[%c0_65, %c0_66] : memref<1x128xf32, #tpu.memory_space<vmem>>, vector<1x128xf32>
    %170 = vector.broadcast %169 : vector<1x128xf32> to vector<2x128xf32>
    %171 = arith.addf %168, %170 : vector<2x128xf32>
    %172 = arith.mulf %158, %171 : vector<2x128xf32>
    %173 = arith.addf %167, %172 : vector<2x128xf32>
    %174 = math.tanh %173 : vector<2x128xf32>
    %cst_67 = arith.constant 1.000000e+00 : f32
    %175 = vector.broadcast %cst_67 : f32 to vector<2x128xf32>
    %176 = arith.subf %175, %166 : vector<2x128xf32>
    %177 = arith.mulf %176, %174 : vector<2x128xf32>
    %178 = arith.mulf %166, %134 : vector<2x128xf32>
    %179 = arith.addf %177, %178 : vector<2x128xf32>
    %180 = arith.index_cast %c3_i32 : i32 to index
    %c0_68 = arith.constant 0 : index
    %c0_69 = arith.constant 0 : index
    %181 = vector.load %arg8[%180, %c0_68, %c0_69] : memref<8x2x128xf32, #tpu.memory_space<vmem>>, vector<1x2x128xf32>
    %182 = vector.shape_cast %181 : vector<1x2x128xf32> to vector<2x128xf32>
    %183 = vector.shape_cast %179 : vector<2x128xf32> to vector<1x2x128xf32>
    tpu.vector_store %arg8[%180, %c0_68, %c0_69], %183 {strides = array<i32>} : memref<8x2x128xf32, #tpu.memory_space<vmem>>, vector<1x2x128xf32>,
    %c4_i32 = arith.constant 4 : i32
    %184 = arith.index_cast %c4_i32 : i32 to index
    %c0_70 = arith.constant 0 : index
    %c0_71 = arith.constant 0 : index
    %185 = vector.load %arg2[%184, %c0_70, %c0_71] : memref<8x2x128xf32, #tpu.memory_space<vmem>>, vector<1x2x128xf32>
    %186 = vector.shape_cast %185 : vector<1x2x128xf32> to vector<2x128xf32>
    %187 = arith.truncf %186 : vector<2x128xf32> to vector<2x128xbf16>
    %c0_72 = arith.constant 0 : index
    %c0_73 = arith.constant 0 : index
    %188 = vector.load %arg4[%c0_72, %c0_73] : memref<128x384xbf16, #tpu.memory_space<vmem>>, vector<128x384xbf16>
    %cst_74 = arith.constant dense<0.000000e+00> : vector<2x384xf32>
    %189 = tpu.matmul %187, %188, %cst_74 {dimension_numbers = #tpu.dot_dimension_numbers<[1], [0], [0], [1], [0, 0, 1, 1], [], []>} : vector<2x128xbf16>, vector<128x384xbf16>, vector<2x384xf32> -> vector<2x384xf32>
    %c0_75 = arith.constant 0 : index
    %c0_76 = arith.constant 0 : index
    %190 = vector.load %arg6[%c0_75, %c0_76] : memref<1x384xf32, #tpu.memory_space<vmem>>, vector<1x384xf32>
    %191 = vector.broadcast %190 : vector<1x384xf32> to vector<2x384xf32>
    %192 = arith.addf %189, %191 : vector<2x384xf32>
    %193 = arith.truncf %179 : vector<2x128xf32> to vector<2x128xbf16>
    %c0_77 = arith.constant 0 : index
    %c0_78 = arith.constant 0 : index
    %194 = vector.load %arg5[%c0_77, %c0_78] : memref<128x384xbf16, #tpu.memory_space<vmem>>, vector<128x384xbf16>
    %cst_79 = arith.constant dense<0.000000e+00> : vector<2x384xf32>
    %195 = tpu.matmul %193, %194, %cst_79 {dimension_numbers = #tpu.dot_dimension_numbers<[1], [0], [0], [1], [0, 0, 1, 1], [], []>} : vector<2x128xbf16>, vector<128x384xbf16>, vector<2x384xf32> -> vector<2x384xf32>
    %196 = vector.extract_strided_slice %192 {offsets = [0, 0], sizes = [2, 128], strides = [1, 1]} : vector<2x384xf32> to vector<2x128xf32>
    %197 = vector.extract_strided_slice %195 {offsets = [0, 0], sizes = [2, 128], strides = [1, 1]} : vector<2x384xf32> to vector<2x128xf32>
    %198 = arith.addf %196, %197 : vector<2x128xf32>
    %199 = arith.negf %198 : vector<2x128xf32>
    %200 = math.exp %199 : vector<2x128xf32>
    %cst_80 = arith.constant 1.000000e+00 : f32
    %201 = vector.broadcast %cst_80 : f32 to vector<2x128xf32>
    %202 = arith.addf %201, %200 : vector<2x128xf32>
    %203 = arith.divf %201, %202 : vector<2x128xf32>
    %204 = vector.extract_strided_slice %192 {offsets = [0, 128], sizes = [2, 128], strides = [1, 1]} : vector<2x384xf32> to vector<2x128xf32>
    %205 = vector.extract_strided_slice %195 {offsets = [0, 128], sizes = [2, 128], strides = [1, 1]} : vector<2x384xf32> to vector<2x128xf32>
    %206 = arith.addf %204, %205 : vector<2x128xf32>
    %207 = arith.negf %206 : vector<2x128xf32>
    %208 = math.exp %207 : vector<2x128xf32>
    %cst_81 = arith.constant 1.000000e+00 : f32
    %209 = vector.broadcast %cst_81 : f32 to vector<2x128xf32>
    %210 = arith.addf %209, %208 : vector<2x128xf32>
    %211 = arith.divf %209, %210 : vector<2x128xf32>
    %212 = vector.extract_strided_slice %192 {offsets = [0, 256], sizes = [2, 128], strides = [1, 1]} : vector<2x384xf32> to vector<2x128xf32>
    %213 = vector.extract_strided_slice %195 {offsets = [0, 256], sizes = [2, 128], strides = [1, 1]} : vector<2x384xf32> to vector<2x128xf32>
    %c0_82 = arith.constant 0 : index
    %c0_83 = arith.constant 0 : index
    %214 = vector.load %arg7[%c0_82, %c0_83] : memref<1x128xf32, #tpu.memory_space<vmem>>, vector<1x128xf32>
    %215 = vector.broadcast %214 : vector<1x128xf32> to vector<2x128xf32>
    %216 = arith.addf %213, %215 : vector<2x128xf32>
    %217 = arith.mulf %203, %216 : vector<2x128xf32>
    %218 = arith.addf %212, %217 : vector<2x128xf32>
    %219 = math.tanh %218 : vector<2x128xf32>
    %cst_84 = arith.constant 1.000000e+00 : f32
    %220 = vector.broadcast %cst_84 : f32 to vector<2x128xf32>
    %221 = arith.subf %220, %211 : vector<2x128xf32>
    %222 = arith.mulf %221, %219 : vector<2x128xf32>
    %223 = arith.mulf %211, %179 : vector<2x128xf32>
    %224 = arith.addf %222, %223 : vector<2x128xf32>
    %225 = arith.index_cast %c4_i32 : i32 to index
    %c0_85 = arith.constant 0 : index
    %c0_86 = arith.constant 0 : index
    %226 = vector.load %arg8[%225, %c0_85, %c0_86] : memref<8x2x128xf32, #tpu.memory_space<vmem>>, vector<1x2x128xf32>
    %227 = vector.shape_cast %226 : vector<1x2x128xf32> to vector<2x128xf32>
    %228 = vector.shape_cast %224 : vector<2x128xf32> to vector<1x2x128xf32>
    tpu.vector_store %arg8[%225, %c0_85, %c0_86], %228 {strides = array<i32>} : memref<8x2x128xf32, #tpu.memory_space<vmem>>, vector<1x2x128xf32>,
    %c5_i32 = arith.constant 5 : i32
    %229 = arith.index_cast %c5_i32 : i32 to index
    %c0_87 = arith.constant 0 : index
    %c0_88 = arith.constant 0 : index
    %230 = vector.load %arg2[%229, %c0_87, %c0_88] : memref<8x2x128xf32, #tpu.memory_space<vmem>>, vector<1x2x128xf32>
    %231 = vector.shape_cast %230 : vector<1x2x128xf32> to vector<2x128xf32>
    %232 = arith.truncf %231 : vector<2x128xf32> to vector<2x128xbf16>
    %c0_89 = arith.constant 0 : index
    %c0_90 = arith.constant 0 : index
    %233 = vector.load %arg4[%c0_89, %c0_90] : memref<128x384xbf16, #tpu.memory_space<vmem>>, vector<128x384xbf16>
    %cst_91 = arith.constant dense<0.000000e+00> : vector<2x384xf32>
    %234 = tpu.matmul %232, %233, %cst_91 {dimension_numbers = #tpu.dot_dimension_numbers<[1], [0], [0], [1], [0, 0, 1, 1], [], []>} : vector<2x128xbf16>, vector<128x384xbf16>, vector<2x384xf32> -> vector<2x384xf32>
    %c0_92 = arith.constant 0 : index
    %c0_93 = arith.constant 0 : index
    %235 = vector.load %arg6[%c0_92, %c0_93] : memref<1x384xf32, #tpu.memory_space<vmem>>, vector<1x384xf32>
    %236 = vector.broadcast %235 : vector<1x384xf32> to vector<2x384xf32>
    %237 = arith.addf %234, %236 : vector<2x384xf32>
    %238 = arith.truncf %224 : vector<2x128xf32> to vector<2x128xbf16>
    %c0_94 = arith.constant 0 : index
    %c0_95 = arith.constant 0 : index
    %239 = vector.load %arg5[%c0_94, %c0_95] : memref<128x384xbf16, #tpu.memory_space<vmem>>, vector<128x384xbf16>
    %cst_96 = arith.constant dense<0.000000e+00> : vector<2x384xf32>
    %240 = tpu.matmul %238, %239, %cst_96 {dimension_numbers = #tpu.dot_dimension_numbers<[1], [0], [0], [1], [0, 0, 1, 1], [], []>} : vector<2x128xbf16>, vector<128x384xbf16>, vector<2x384xf32> -> vector<2x384xf32>
    %241 = vector.extract_strided_slice %237 {offsets = [0, 0], sizes = [2, 128], strides = [1, 1]} : vector<2x384xf32> to vector<2x128xf32>
    %242 = vector.extract_strided_slice %240 {offsets = [0, 0], sizes = [2, 128], strides = [1, 1]} : vector<2x384xf32> to vector<2x128xf32>
    %243 = arith.addf %241, %242 : vector<2x128xf32>
    %244 = arith.negf %243 : vector<2x128xf32>
    %245 = math.exp %244 : vector<2x128xf32>
    %cst_97 = arith.constant 1.000000e+00 : f32
    %246 = vector.broadcast %cst_97 : f32 to vector<2x128xf32>
    %247 = arith.addf %246, %245 : vector<2x128xf32>
    %248 = arith.divf %246, %247 : vector<2x128xf32>
    %249 = vector.extract_strided_slice %237 {offsets = [0, 128], sizes = [2, 128], strides = [1, 1]} : vector<2x384xf32> to vector<2x128xf32>
    %250 = vector.extract_strided_slice %240 {offsets = [0, 128], sizes = [2, 128], strides = [1, 1]} : vector<2x384xf32> to vector<2x128xf32>
    %251 = arith.addf %249, %250 : vector<2x128xf32>
    %252 = arith.negf %251 : vector<2x128xf32>
    %253 = math.exp %252 : vector<2x128xf32>
    %cst_98 = arith.constant 1.000000e+00 : f32
    %254 = vector.broadcast %cst_98 : f32 to vector<2x128xf32>
    %255 = arith.addf %254, %253 : vector<2x128xf32>
    %256 = arith.divf %254, %255 : vector<2x128xf32>
    %257 = vector.extract_strided_slice %237 {offsets = [0, 256], sizes = [2, 128], strides = [1, 1]} : vector<2x384xf32> to vector<2x128xf32>
    %258 = vector.extract_strided_slice %240 {offsets = [0, 256], sizes = [2, 128], strides = [1, 1]} : vector<2x384xf32> to vector<2x128xf32>
    %c0_99 = arith.constant 0 : index
    %c0_100 = arith.constant 0 : index
    %259 = vector.load %arg7[%c0_99, %c0_100] : memref<1x128xf32, #tpu.memory_space<vmem>>, vector<1x128xf32>
    %260 = vector.broadcast %259 : vector<1x128xf32> to vector<2x128xf32>
    %261 = arith.addf %258, %260 : vector<2x128xf32>
    %262 = arith.mulf %248, %261 : vector<2x128xf32>
    %263 = arith.addf %257, %262 : vector<2x128xf32>
    %264 = math.tanh %263 : vector<2x128xf32>
    %cst_101 = arith.constant 1.000000e+00 : f32
    %265 = vector.broadcast %cst_101 : f32 to vector<2x128xf32>
    %266 = arith.subf %265, %256 : vector<2x128xf32>
    %267 = arith.mulf %266, %264 : vector<2x128xf32>
    %268 = arith.mulf %256, %224 : vector<2x128xf32>
    %269 = arith.addf %267, %268 : vector<2x128xf32>
    %270 = arith.index_cast %c5_i32 : i32 to index
    %c0_102 = arith.constant 0 : index
    %c0_103 = arith.constant 0 : index
    %271 = vector.load %arg8[%270, %c0_102, %c0_103] : memref<8x2x128xf32, #tpu.memory_space<vmem>>, vector<1x2x128xf32>
    %272 = vector.shape_cast %271 : vector<1x2x128xf32> to vector<2x128xf32>
    %273 = vector.shape_cast %269 : vector<2x128xf32> to vector<1x2x128xf32>
    tpu.vector_store %arg8[%270, %c0_102, %c0_103], %273 {strides = array<i32>} : memref<8x2x128xf32, #tpu.memory_space<vmem>>, vector<1x2x128xf32>,
    %c6_i32 = arith.constant 6 : i32
    %274 = arith.index_cast %c6_i32 : i32 to index
    %c0_104 = arith.constant 0 : index
    %c0_105 = arith.constant 0 : index
    %275 = vector.load %arg2[%274, %c0_104, %c0_105] : memref<8x2x128xf32, #tpu.memory_space<vmem>>, vector<1x2x128xf32>
    %276 = vector.shape_cast %275 : vector<1x2x128xf32> to vector<2x128xf32>
    %277 = arith.truncf %276 : vector<2x128xf32> to vector<2x128xbf16>
    %c0_106 = arith.constant 0 : index
    %c0_107 = arith.constant 0 : index
    %278 = vector.load %arg4[%c0_106, %c0_107] : memref<128x384xbf16, #tpu.memory_space<vmem>>, vector<128x384xbf16>
    %cst_108 = arith.constant dense<0.000000e+00> : vector<2x384xf32>
    %279 = tpu.matmul %277, %278, %cst_108 {dimension_numbers = #tpu.dot_dimension_numbers<[1], [0], [0], [1], [0, 0, 1, 1], [], []>} : vector<2x128xbf16>, vector<128x384xbf16>, vector<2x384xf32> -> vector<2x384xf32>
    %c0_109 = arith.constant 0 : index
    %c0_110 = arith.constant 0 : index
    %280 = vector.load %arg6[%c0_109, %c0_110] : memref<1x384xf32, #tpu.memory_space<vmem>>, vector<1x384xf32>
    %281 = vector.broadcast %280 : vector<1x384xf32> to vector<2x384xf32>
    %282 = arith.addf %279, %281 : vector<2x384xf32>
    %283 = arith.truncf %269 : vector<2x128xf32> to vector<2x128xbf16>
    %c0_111 = arith.constant 0 : index
    %c0_112 = arith.constant 0 : index
    %284 = vector.load %arg5[%c0_111, %c0_112] : memref<128x384xbf16, #tpu.memory_space<vmem>>, vector<128x384xbf16>
    %cst_113 = arith.constant dense<0.000000e+00> : vector<2x384xf32>
    %285 = tpu.matmul %283, %284, %cst_113 {dimension_numbers = #tpu.dot_dimension_numbers<[1], [0], [0], [1], [0, 0, 1, 1], [], []>} : vector<2x128xbf16>, vector<128x384xbf16>, vector<2x384xf32> -> vector<2x384xf32>
    %286 = vector.extract_strided_slice %282 {offsets = [0, 0], sizes = [2, 128], strides = [1, 1]} : vector<2x384xf32> to vector<2x128xf32>
    %287 = vector.extract_strided_slice %285 {offsets = [0, 0], sizes = [2, 128], strides = [1, 1]} : vector<2x384xf32> to vector<2x128xf32>
    %288 = arith.addf %286, %287 : vector<2x128xf32>
    %289 = arith.negf %288 : vector<2x128xf32>
    %290 = math.exp %289 : vector<2x128xf32>
    %cst_114 = arith.constant 1.000000e+00 : f32
    %291 = vector.broadcast %cst_114 : f32 to vector<2x128xf32>
    %292 = arith.addf %291, %290 : vector<2x128xf32>
    %293 = arith.divf %291, %292 : vector<2x128xf32>
    %294 = vector.extract_strided_slice %282 {offsets = [0, 128], sizes = [2, 128], strides = [1, 1]} : vector<2x384xf32> to vector<2x128xf32>
    %295 = vector.extract_strided_slice %285 {offsets = [0, 128], sizes = [2, 128], strides = [1, 1]} : vector<2x384xf32> to vector<2x128xf32>
    %296 = arith.addf %294, %295 : vector<2x128xf32>
    %297 = arith.negf %296 : vector<2x128xf32>
    %298 = math.exp %297 : vector<2x128xf32>
    %cst_115 = arith.constant 1.000000e+00 : f32
    %299 = vector.broadcast %cst_115 : f32 to vector<2x128xf32>
    %300 = arith.addf %299, %298 : vector<2x128xf32>
    %301 = arith.divf %299, %300 : vector<2x128xf32>
    %302 = vector.extract_strided_slice %282 {offsets = [0, 256], sizes = [2, 128], strides = [1, 1]} : vector<2x384xf32> to vector<2x128xf32>
    %303 = vector.extract_strided_slice %285 {offsets = [0, 256], sizes = [2, 128], strides = [1, 1]} : vector<2x384xf32> to vector<2x128xf32>
    %c0_116 = arith.constant 0 : index
    %c0_117 = arith.constant 0 : index
    %304 = vector.load %arg7[%c0_116, %c0_117] : memref<1x128xf32, #tpu.memory_space<vmem>>, vector<1x128xf32>
    %305 = vector.broadcast %304 : vector<1x128xf32> to vector<2x128xf32>
    %306 = arith.addf %303, %305 : vector<2x128xf32>
    %307 = arith.mulf %293, %306 : vector<2x128xf32>
    %308 = arith.addf %302, %307 : vector<2x128xf32>
    %309 = math.tanh %308 : vector<2x128xf32>
    %cst_118 = arith.constant 1.000000e+00 : f32
    %310 = vector.broadcast %cst_118 : f32 to vector<2x128xf32>
    %311 = arith.subf %310, %301 : vector<2x128xf32>
    %312 = arith.mulf %311, %309 : vector<2x128xf32>
    %313 = arith.mulf %301, %269 : vector<2x128xf32>
    %314 = arith.addf %312, %313 : vector<2x128xf32>
    %315 = arith.index_cast %c6_i32 : i32 to index
    %c0_119 = arith.constant 0 : index
    %c0_120 = arith.constant 0 : index
    %316 = vector.load %arg8[%315, %c0_119, %c0_120] : memref<8x2x128xf32, #tpu.memory_space<vmem>>, vector<1x2x128xf32>
    %317 = vector.shape_cast %316 : vector<1x2x128xf32> to vector<2x128xf32>
    %318 = vector.shape_cast %314 : vector<2x128xf32> to vector<1x2x128xf32>
    tpu.vector_store %arg8[%315, %c0_119, %c0_120], %318 {strides = array<i32>} : memref<8x2x128xf32, #tpu.memory_space<vmem>>, vector<1x2x128xf32>,
    %c7_i32 = arith.constant 7 : i32
    %319 = arith.index_cast %c7_i32 : i32 to index
    %c0_121 = arith.constant 0 : index
    %c0_122 = arith.constant 0 : index
    %320 = vector.load %arg2[%319, %c0_121, %c0_122] : memref<8x2x128xf32, #tpu.memory_space<vmem>>, vector<1x2x128xf32>
    %321 = vector.shape_cast %320 : vector<1x2x128xf32> to vector<2x128xf32>
    %322 = arith.truncf %321 : vector<2x128xf32> to vector<2x128xbf16>
    %c0_123 = arith.constant 0 : index
    %c0_124 = arith.constant 0 : index
    %323 = vector.load %arg4[%c0_123, %c0_124] : memref<128x384xbf16, #tpu.memory_space<vmem>>, vector<128x384xbf16>
    %cst_125 = arith.constant dense<0.000000e+00> : vector<2x384xf32>
    %324 = tpu.matmul %322, %323, %cst_125 {dimension_numbers = #tpu.dot_dimension_numbers<[1], [0], [0], [1], [0, 0, 1, 1], [], []>} : vector<2x128xbf16>, vector<128x384xbf16>, vector<2x384xf32> -> vector<2x384xf32>
    %c0_126 = arith.constant 0 : index
    %c0_127 = arith.constant 0 : index
    %325 = vector.load %arg6[%c0_126, %c0_127] : memref<1x384xf32, #tpu.memory_space<vmem>>, vector<1x384xf32>
    %326 = vector.broadcast %325 : vector<1x384xf32> to vector<2x384xf32>
    %327 = arith.addf %324, %326 : vector<2x384xf32>
    %328 = arith.truncf %314 : vector<2x128xf32> to vector<2x128xbf16>
    %c0_128 = arith.constant 0 : index
    %c0_129 = arith.constant 0 : index
    %329 = vector.load %arg5[%c0_128, %c0_129] : memref<128x384xbf16, #tpu.memory_space<vmem>>, vector<128x384xbf16>
    %cst_130 = arith.constant dense<0.000000e+00> : vector<2x384xf32>
    %330 = tpu.matmul %328, %329, %cst_130 {dimension_numbers = #tpu.dot_dimension_numbers<[1], [0], [0], [1], [0, 0, 1, 1], [], []>} : vector<2x128xbf16>, vector<128x384xbf16>, vector<2x384xf32> -> vector<2x384xf32>
    %331 = vector.extract_strided_slice %327 {offsets = [0, 0], sizes = [2, 128], strides = [1, 1]} : vector<2x384xf32> to vector<2x128xf32>
    %332 = vector.extract_strided_slice %330 {offsets = [0, 0], sizes = [2, 128], strides = [1, 1]} : vector<2x384xf32> to vector<2x128xf32>
    %333 = arith.addf %331, %332 : vector<2x128xf32>
    %334 = arith.negf %333 : vector<2x128xf32>
    %335 = math.exp %334 : vector<2x128xf32>
    %cst_131 = arith.constant 1.000000e+00 : f32
    %336 = vector.broadcast %cst_131 : f32 to vector<2x128xf32>
    %337 = arith.addf %336, %335 : vector<2x128xf32>
    %338 = arith.divf %336, %337 : vector<2x128xf32>
    %339 = vector.extract_strided_slice %327 {offsets = [0, 128], sizes = [2, 128], strides = [1, 1]} : vector<2x384xf32> to vector<2x128xf32>
    %340 = vector.extract_strided_slice %330 {offsets = [0, 128], sizes = [2, 128], strides = [1, 1]} : vector<2x384xf32> to vector<2x128xf32>
    %341 = arith.addf %339, %340 : vector<2x128xf32>
    %342 = arith.negf %341 : vector<2x128xf32>
    %343 = math.exp %342 : vector<2x128xf32>
    %cst_132 = arith.constant 1.000000e+00 : f32
    %344 = vector.broadcast %cst_132 : f32 to vector<2x128xf32>
    %345 = arith.addf %344, %343 : vector<2x128xf32>
    %346 = arith.divf %344, %345 : vector<2x128xf32>
    %347 = vector.extract_strided_slice %327 {offsets = [0, 256], sizes = [2, 128], strides = [1, 1]} : vector<2x384xf32> to vector<2x128xf32>
    %348 = vector.extract_strided_slice %330 {offsets = [0, 256], sizes = [2, 128], strides = [1, 1]} : vector<2x384xf32> to vector<2x128xf32>
    %c0_133 = arith.constant 0 : index
    %c0_134 = arith.constant 0 : index
    %349 = vector.load %arg7[%c0_133, %c0_134] : memref<1x128xf32, #tpu.memory_space<vmem>>, vector<1x128xf32>
    %350 = vector.broadcast %349 : vector<1x128xf32> to vector<2x128xf32>
    %351 = arith.addf %348, %350 : vector<2x128xf32>
    %352 = arith.mulf %338, %351 : vector<2x128xf32>
    %353 = arith.addf %347, %352 : vector<2x128xf32>
    %354 = math.tanh %353 : vector<2x128xf32>
    %cst_135 = arith.constant 1.000000e+00 : f32
    %355 = vector.broadcast %cst_135 : f32 to vector<2x128xf32>
    %356 = arith.subf %355, %346 : vector<2x128xf32>
    %357 = arith.mulf %356, %354 : vector<2x128xf32>
    %358 = arith.mulf %346, %314 : vector<2x128xf32>
    %359 = arith.addf %357, %358 : vector<2x128xf32>
    %360 = arith.index_cast %c7_i32 : i32 to index
    %c0_136 = arith.constant 0 : index
    %c0_137 = arith.constant 0 : index
    %361 = vector.load %arg8[%360, %c0_136, %c0_137] : memref<8x2x128xf32, #tpu.memory_space<vmem>>, vector<1x2x128xf32>
    %362 = vector.shape_cast %361 : vector<1x2x128xf32> to vector<2x128xf32>
    %363 = vector.shape_cast %359 : vector<2x128xf32> to vector<1x2x128xf32>
    tpu.vector_store %arg8[%360, %c0_136, %c0_137], %363 {strides = array<i32>} : memref<8x2x128xf32, #tpu.memory_space<vmem>>, vector<1x2x128xf32>,
    %c8_i32 = arith.constant 8 : i32
    %c0_138 = arith.constant 0 : index
    %c0_139 = arith.constant 0 : index
    %364 = vector.load %arg10[%c0_138, %c0_139] : memref<2x128xf32, #tpu.memory_space<vmem>>, vector<2x128xf32>
    tpu.vector_store %arg10[%c0_138, %c0_139], %359 {strides = array<i32>} : memref<2x128xf32, #tpu.memory_space<vmem>>, vector<2x128xf32>,
    %c0_i32_140 = arith.constant 0 : i32
    %365 = arith.cmpi eq, %arg1, %c0_i32_140 : i32
    %366 = arith.extui %365 : i1 to i32
    %c0_i32_141 = arith.constant 0 : i32
    %367 = arith.cmpi ne, %366, %c0_i32_141 : i32
    scf.if %367 {
      %c0_142 = arith.constant 0 : index
      %c0_143 = arith.constant 0 : index
      %368 = vector.load %arg9[%c0_142, %c0_143] : memref<2x128xf32, #tpu.memory_space<vmem>>, vector<2x128xf32>
      tpu.vector_store %arg9[%c0_142, %c0_143], %359 {strides = array<i32>} : memref<2x128xf32, #tpu.memory_space<vmem>>, vector<2x128xf32>,
    } else {
    }
    return
  }
  func.func @transform_0(%arg0: i32, %arg1: i32) -> (i32, i32, i32) {
    %c0_i32 = arith.constant 0 : i32
    %c0_i32_0 = arith.constant 0 : i32
    return %arg1, %arg0, %c0_i32 : i32, i32, i32
  }
  func.func @transform_1(%arg0: i32, %arg1: i32) -> (i32, i32) {
    %c0_i32 = arith.constant 0 : i32
    %c0_i32_0 = arith.constant 0 : i32
    return %arg0, %c0_i32 : i32, i32
  }
  func.func @transform_2(%arg0: i32, %arg1: i32) -> (i32, i32) {
    %c0_i32 = arith.constant 0 : i32
    %c0_i32_0 = arith.constant 0 : i32
    %c0_i32_1 = arith.constant 0 : i32
    return %c0_i32, %c0_i32_0 : i32, i32
  }
  func.func @transform_3(%arg0: i32, %arg1: i32) -> (i32, i32) {
    %c0_i32 = arith.constant 0 : i32
    %c0_i32_0 = arith.constant 0 : i32
    %c0_i32_1 = arith.constant 0 : i32
    return %c0_i32, %c0_i32_0 : i32, i32
  }
  func.func @transform_4(%arg0: i32, %arg1: i32) -> (i32, i32) {
    %c0_i32 = arith.constant 0 : i32
    %c0_i32_0 = arith.constant 0 : i32
    %c0_i32_1 = arith.constant 0 : i32
    return %c0_i32, %c0_i32_0 : i32, i32
  }
  func.func @transform_5(%arg0: i32, %arg1: i32) -> (i32, i32) {
    %c0_i32 = arith.constant 0 : i32
    %c0_i32_0 = arith.constant 0 : i32
    %c0_i32_1 = arith.constant 0 : i32
    return %c0_i32, %c0_i32_0 : i32, i32
  }
  func.func @transform_6(%arg0: i32, %arg1: i32) -> (i32, i32, i32) {
    %c0_i32 = arith.constant 0 : i32
    %c0_i32_0 = arith.constant 0 : i32
    return %arg1, %arg0, %c0_i32 : i32, i32, i32
  }
  func.func @transform_7(%arg0: i32, %arg1: i32) -> (i32, i32) {
    %c0_i32 = arith.constant 0 : i32
    %c0_i32_0 = arith.constant 0 : i32
    return %arg0, %c0_i32 : i32, i32
  }
}

</mosaic_0001>

<llo_original>
// kernel: my_classifier_forward.7
$region0: #{my_classifier_forward.7}
  #allocation0 [shape = 'u32[]', space=smem, size = 0x4, offset = 0x4, fixed_abs, tag = 'smem constant byte address 0x4 - core index']
  #allocation1 [shape = 'u32[144,128]{1,0:T(1,128)}', space=vmem, size = 0x12000, scoped, tag = 'internal scratch']
  #allocation2 [shape = 'f32[16,128]{1,0:T(8,128)}', space=vmem, size = 0x2000, scoped, tag = 'scratch operand']
  %s0 = inlined_call_operand.vmem [shape: f32[16,128], index: 0, kind: input, shape index: {}]
  %s1 = inlined_call_operand.vmem [shape: bf16[128,128], index: 1, kind: input, shape index: {}]
  %s2 = inlined_call_operand.vmem [shape: f32[16,128], index: 2, kind: output, shape index: {}]
  %s3 = sld [smem:[#allocation0]]
  $region26: #{my_classifier_forward.7} parent=0
    _
  %s5 = ssub.s32 1, %s3
  %s6 = scalar_select 0, %s5, %s3
  // Predicated region
  $region2: #{my_classifier_forward.7} parent=0 // pred_check
    _
  $region3: #{my_classifier_forward.7} parent=0 // pred_check_branch
    %8 = sbr.rel (0) target = $region5
  $region4: #{my_classifier_forward.7} parent=0 // pred_region
    _
  $region5: #{my_classifier_forward.7} parent=0 // pred_fallthru
    _
  // Predicated region
  $region6: #{my_classifier_forward.7} parent=0 // pred_check
    _
  $region7: #{my_classifier_forward.7} parent=0 // pred_check_branch
    %10 = sbr.rel (0) target = $region9
  $region8: #{my_classifier_forward.7} parent=0 // pred_region
    _
  $region9: #{my_classifier_forward.7} parent=0 // pred_fallthru
    _
  %p12 = scmp.eq.s32.totalorder 0, 0
  // Predicated region
  $region10: #{my_classifier_forward.7} parent=0 // pred_check
    %p13 = pneg %p12
  $region11: #{my_classifier_forward.7} parent=0 // pred_check_branch
    %15 = sbr.rel (%p13) target = $region13
  $region12: #{my_classifier_forward.7} parent=0 // pred_region
    %16 = vst [vmem:[#allocation2] sm:$0xff] 0.0
    %17 = vst [vmem:[#allocation2 + $0x8] sm:$0xff] 0.0
  $region13: #{my_classifier_forward.7} parent=0 // pred_fallthru
    _
  %v18 = vld [vmem:[#allocation2] sm:$0xff]
  %v19 = vld [vmem:[#allocation2 + $0x8] sm:$0xff]
  %v20 = vld [vmem:[%s0] sm:$0xff]
  %v21 = vld [vmem:[%s0 + $0x8] sm:$0xff]
  %v22 = vpack.c.bf16 %v21, %v20
  %v23 = vld [vmem:[%s1] sm:$0xf]
  %v24 = vld [vmem:[%s1 + $0x4] sm:$0xf]
  %v25 = vld [vmem:[%s1 + $0x8] sm:$0xf]
  %v26 = vld [vmem:[%s1 + $0xc] sm:$0xf]
  %v27 = vld [vmem:[%s1 + $0x10] sm:$0xf]
  %v28 = vld [vmem:[%s1 + $0x14] sm:$0xf]
  %v29 = vld [vmem:[%s1 + $0x18] sm:$0xf]
  %v30 = vld [vmem:[%s1 + $0x1c] sm:$0xf]
  %v31 = vld [vmem:[%s1 + $0x20] sm:$0xf]
  %v32 = vld [vmem:[%s1 + $0x24] sm:$0xf]
  %v33 = vld [vmem:[%s1 + $0x28] sm:$0xf]
  %v34 = vld [vmem:[%s1 + $0x2c] sm:$0xf]
  %v35 = vld [vmem:[%s1 + $0x30] sm:$0xf]
  %v36 = vld [vmem:[%s1 + $0x34] sm:$0xf]
  %v37 = vld [vmem:[%s1 + $0x38] sm:$0xf]
  %v38 = vld [vmem:[%s1 + $0x3c] sm:$0xf]
  %v55 = vunpack.c.l.b16 %v23
  %v56 = vunpack.c.l.b16 %v24
  %v57 = vunpack.c.l.b16 %v25
  %v58 = vunpack.c.l.b16 %v26
  %v59 = vunpack.c.l.b16 %v27
  %v60 = vunpack.c.l.b16 %v28
  %v61 = vunpack.c.l.b16 %v29
  %v62 = vunpack.c.l.b16 %v30
  %v63 = vunpack.c.l.b16 %v31
  %v64 = vunpack.c.l.b16 %v32
  %v65 = vunpack.c.l.b16 %v33
  %v66 = vunpack.c.l.b16 %v34
  %v67 = vunpack.c.l.b16 %v35
  %v68 = vunpack.c.l.b16 %v36
  %v69 = vunpack.c.l.b16 %v37
  %v70 = vunpack.c.l.b16 %v38
  %v71 = vpack.c.b16 %v56, %v55
  %v72 = vpack.c.b16 %v58, %v57
  %v73 = vpack.c.b16 %v60, %v59
  %v74 = vpack.c.b16 %v62, %v61
  %v75 = vpack.c.b16 %v64, %v63
  %v76 = vpack.c.b16 %v66, %v65
  %v77 = vpack.c.b16 %v68, %v67
  %v78 = vpack.c.b16 %v70, %v69
  %87 = vmatprep.subr.bf16.mxu0 0
  %88 = vmatpush1.bf16.msra.mxu0 %v78
  %89 = vmatprep.subr.bf16.mxu0 0
  %90 = vmatpush1.bf16.msra.mxu0 %v77
  %91 = vmatprep.subr.bf16.mxu0 0
  %92 = vmatpush1.bf16.msra.mxu0 %v76
  %93 = vmatprep.subr.bf16.mxu0 0
  %94 = vmatpush1.bf16.msra.mxu0 %v75
  %95 = vmatprep.subr.bf16.mxu0 0
  %96 = vmatpush1.bf16.msra.mxu0 %v74
  %97 = vmatprep.subr.bf16.mxu0 0
  %98 = vmatpush1.bf16.msra.mxu0 %v73
  %99 = vmatprep.subr.bf16.mxu0 0
  %100 = vmatpush1.bf16.msra.mxu0 %v72
  %101 = vmatprep.subr.bf16.mxu0 0
  %102 = vmatpush1.bf16.msra.mxu0 %v71
  %103 = vmatprep.subr.bf16.mxu0 0
  %104 = vmatpush2.bf16.msra.mxu0 0
  %105 = vmatprep.subr.bf16.mxu0 0
  %106 = vmatpush2.bf16.msra.mxu0 0
  %107 = vmatprep.subr.bf16.mxu0 0
  %108 = vmatpush2.bf16.msra.mxu0 0
  %109 = vmatprep.subr.bf16.mxu0 0
  %110 = vmatpush2.bf16.msra.mxu0 0
  %111 = vmatprep.subr.bf16.mxu0 0
  %112 = vmatpush2.bf16.msra.mxu0 0
  %113 = vmatprep.subr.bf16.mxu0 0
  %114 = vmatpush2.bf16.msra.mxu0 0
  %115 = vmatprep.subr.bf16.mxu0 0
  %116 = vmatpush2.bf16.msra.mxu0 0
  %117 = vmatprep.subr.bf16.mxu0 0
  %118 = vmatpush2.bf16.msra.mxu0 0
  %119 = vmatprep.mubr.bf16.mxu0 0
  %120 = vmatmul.mubr.bf16.gmra.mxu0 %v22
  %v121 = vpop.f32.mrf.mxu0
  %v122 = vadd.f32 0.0, %v121
  %v123 = vpop.f32.mrf.mxu0
  %v124 = vpop.f32.mrf.mxu0
  %v125 = vadd.f32 0.0, %v124
  %v126 = vpop.f32.mrf.mxu0
  %127 = vdwg.mxu0
  %v128 = vadd.f32 %v18, %v122
  %v129 = vadd.f32 %v19, %v125
  %130 = vst [vmem:[#allocation2] sm:$0xff] %v128
  %131 = vst [vmem:[#allocation2 + $0x8] sm:$0xff] %v129
  // Predicated region
  $region14: #{my_classifier_forward.7} parent=0 // pred_check
    %p132 = pneg %p12
  $region15: #{my_classifier_forward.7} parent=0 // pred_check_branch
    %134 = sbr.rel (%p132) target = $region17
  $region16: #{my_classifier_forward.7} parent=0 // pred_region
    %v135 = vld [vmem:[#allocation2] sm:$0xff]
    %v136 = vld [vmem:[#allocation2 + $0x8] sm:$0xff]
    %137 = vst [vmem:[%s2] sm:$0xff] %v135
    %138 = vst [vmem:[%s2 + $0x8] sm:$0xff] %v136
  $region17: #{my_classifier_forward.7} parent=0 // pred_fallthru
    _
  // Predicated region
  $region18: #{my_classifier_forward.7} parent=0 // pred_check
    _
  $region19: #{my_classifier_forward.7} parent=0 // pred_check_branch
    %140 = sbr.rel (0) target = $region21
  $region20: #{my_classifier_forward.7} parent=0 // pred_region
    _
  $region21: #{my_classifier_forward.7} parent=0 // pred_fallthru
    _
  // Predicated region
  $region22: #{my_classifier_forward.7} parent=0 // pred_check
    _
  $region23: #{my_classifier_forward.7} parent=0 // pred_check_branch
    %142 = sbr.rel (0) target = $region25
  $region24: #{my_classifier_forward.7} parent=0 // pred_region
    _
  $region25: #{my_classifier_forward.7} parent=0 // pred_fallthru
    _

// kernel: my_classifier_forward.4
$region0: #{my_classifier_forward.4}
  #allocation0 [shape = 'u32[]', space=smem, size = 0x4, offset = 0x4, fixed_abs, tag = 'smem constant byte address 0x4 - core index']
  #allocation1 [shape = 'u32[144,128]{1,0:T(1,128)}', space=vmem, size = 0x12000, scoped, tag = 'internal scratch']
  #allocation2 [shape = 's32[1]{0}', space=sflag, size = 0x4, scoped, tag = 'scoped memory for my_classifier_forward.4']
  #allocation3 [shape = 'u8[512]{0}', space=smem, size = 0x200, scoped, tag = 'prefetched SMEM operand 0']
  %s0 = inlined_call_operand.vmem [shape: s32[48], index: 0, kind: input, shape index: {}]
  %s1 = inlined_call_operand.vmem [shape: f32[64,1,32], index: 1, kind: input, shape index: {}]
  %s2 = inlined_call_operand.vmem [shape: f32[16,1,32], index: 2, kind: output, shape index: {}]
  %s3 = sld [smem:[#allocation0]]
  $region14: #{my_classifier_forward.4} parent=0
    _
  %s5 = ssub.s32 1, %s3
  %s6 = scalar_select 0, %s5, %s3
  %s7 = sshll.u32 %s0, 4
  %s8 = int_to_ptr.vmem [resolvable:$true] %s7
  %10 = dma.vmem_to_smem %s8, 16, [#allocation3], [#allocation2]
  %11 = dma.done [#allocation2], 16
  %12 = sfence
  // Predicated region
  $region2: #{my_classifier_forward.4} parent=0 // pred_check
    _
  $region3: #{my_classifier_forward.4} parent=0 // pred_check_branch
    %14 = sbr.rel (0) target = $region5
  $region4: #{my_classifier_forward.4} parent=0 // pred_region
    _
  $region5: #{my_classifier_forward.4} parent=0 // pred_fallthru
    _
  %s15 = smul.u32 0, 48
  %s16 = sld [smem:[#allocation3 + %s15]]
  %s17 = scalar_lea.vmem %s1, %s16
  %v18 = vld [vmem:[%s17] sm:$0x1]
  %s19 = sadd.s32 %s15, 1
  %s20 = sld [smem:[#allocation3 + %s19]]
  %s21 = scalar_lea.vmem %s1, %s20
  %v22 = vld [vmem:[%s21] sm:$0x1]
  %v23 = vadd.f32 %v18, %v22
  %s24 = sadd.s32 %s15, 2
  %s25 = sld [smem:[#allocation3 + %s24]]
  %s26 = scalar_lea.vmem %s1, %s25
  %v27 = vld [vmem:[%s26] sm:$0x1]
  %v28 = vadd.f32 %v23, %v27
  %vm29 = vcmask 253952
  %30 = vst.msk [vmem:[%s2] sm:$0x1] %vm29, %v28
  %s31 = sadd.s32 %s15, 3
  %s32 = sld [smem:[#allocation3 + %s31]]
  %s33 = scalar_lea.vmem %s1, %s32
  %v34 = vld [vmem:[%s33] sm:$0x1]
  %s35 = sadd.s32 %s15, 4
  %s36 = sld [smem:[#allocation3 + %s35]]
  %s37 = scalar_lea.vmem %s1, %s36
  %v38 = vld [vmem:[%s37] sm:$0x1]
  %v39 = vadd.f32 %v34, %v38
  %s40 = sadd.s32 %s15, 5
  %s41 = sld [smem:[#allocation3 + %s40]]
  %s42 = scalar_lea.vmem %s1, %s41
  %v43 = vld [vmem:[%s42] sm:$0x1]
  %v44 = vadd.f32 %v39, %v43
  %s45 = scalar_lea.vmem %s2, 1
  %46 = vst.msk [vmem:[%s45] sm:$0x1] %vm29, %v44
  %s47 = sadd.s32 %s15, 6
  %s48 = sld [smem:[#allocation3 + %s47]]
  %s49 = scalar_lea.vmem %s1, %s48
  %v50 = vld [vmem:[%s49] sm:$0x1]
  %s51 = sadd.s32 %s15, 7
  %s52 = sld [smem:[#allocation3 + %s51]]
  %s53 = scalar_lea.vmem %s1, %s52
  %v54 = vld [vmem:[%s53] sm:$0x1]
  %v55 = vadd.f32 %v50, %v54
  %s56 = sadd.s32 %s15, 8
  %s57 = sld [smem:[#allocation3 + %s56]]
  %s58 = scalar_lea.vmem %s1, %s57
  %v59 = vld [vmem:[%s58] sm:$0x1]
  %v60 = vadd.f32 %v55, %v59
  %s61 = scalar_lea.vmem %s2, 2
  %62 = vst.msk [vmem:[%s61] sm:$0x1] %vm29, %v60
  %s63 = sadd.s32 %s15, 9
  %s64 = sld [smem:[#allocation3 + %s63]]
  %s65 = scalar_lea.vmem %s1, %s64
  %v66 = vld [vmem:[%s65] sm:$0x1]
  %s67 = sadd.s32 %s15, 10
  %s68 = sld [smem:[#allocation3 + %s67]]
  %s69 = scalar_lea.vmem %s1, %s68
  %v70 = vld [vmem:[%s69] sm:$0x1]
  %v71 = vadd.f32 %v66, %v70
  %s72 = sadd.s32 %s15, 11
  %s73 = sld [smem:[#allocation3 + %s72]]
  %s74 = scalar_lea.vmem %s1, %s73
  %v75 = vld [vmem:[%s74] sm:$0x1]
  %v76 = vadd.f32 %v71, %v75
  %s77 = scalar_lea.vmem %s2, 3
  %78 = vst.msk [vmem:[%s77] sm:$0x1] %vm29, %v76
  %s79 = sadd.s32 %s15, 12
  %s80 = sld [smem:[#allocation3 + %s79]]
  %s81 = scalar_lea.vmem %s1, %s80
  %v82 = vld [vmem:[%s81] sm:$0x1]
  %s83 = sadd.s32 %s15, 13
  %s84 = sld [smem:[#allocation3 + %s83]]
  %s85 = scalar_lea.vmem %s1, %s84
  %v86 = vld [vmem:[%s85] sm:$0x1]
  %v87 = vadd.f32 %v82, %v86
  %s88 = sadd.s32 %s15, 14
  %s89 = sld [smem:[#allocation3 + %s88]]
  %s90 = scalar_lea.vmem %s1, %s89
  %v91 = vld [vmem:[%s90] sm:$0x1]
  %v92 = vadd.f32 %v87, %v91
  %s93 = scalar_lea.vmem %s2, 4
  %94 = vst.msk [vmem:[%s93] sm:$0x1] %vm29, %v92
  %s95 = sadd.s32 %s15, 15
  %s96 = sld [smem:[#allocation3 + %s95]]
  %s97 = scalar_lea.vmem %s1, %s96
  %v98 = vld [vmem:[%s97] sm:$0x1]
  %s99 = sadd.s32 %s15, 16
  %s100 = sld [smem:[#allocation3 + %s99]]
  %s101 = scalar_lea.vmem %s1, %s100
  %v102 = vld [vmem:[%s101] sm:$0x1]
  %v103 = vadd.f32 %v98, %v102
  %s104 = sadd.s32 %s15, 17
  %s105 = sld [smem:[#allocation3 + %s104]]
  %s106 = scalar_lea.vmem %s1, %s105
  %v107 = vld [vmem:[%s106] sm:$0x1]
  %v108 = vadd.f32 %v103, %v107
  %s109 = scalar_lea.vmem %s2, 5
  %110 = vst.msk [vmem:[%s109] sm:$0x1] %vm29, %v108
  %s111 = sadd.s32 %s15, 18
  %s112 = sld [smem:[#allocation3 + %s111]]
  %s113 = scalar_lea.vmem %s1, %s112
  %v114 = vld [vmem:[%s113] sm:$0x1]
  %s115 = sadd.s32 %s15, 19
  %s116 = sld [smem:[#allocation3 + %s115]]
  %s117 = scalar_lea.vmem %s1, %s116
  %v118 = vld [vmem:[%s117] sm:$0x1]
  %v119 = vadd.f32 %v114, %v118
  %s120 = sadd.s32 %s15, 20
  %s121 = sld [smem:[#allocation3 + %s120]]
  %s122 = scalar_lea.vmem %s1, %s121
  %v123 = vld [vmem:[%s122] sm:$0x1]
  %v124 = vadd.f32 %v119, %v123
  %s125 = scalar_lea.vmem %s2, 6
  %126 = vst.msk [vmem:[%s125] sm:$0x1] %vm29, %v124
  %s127 = sadd.s32 %s15, 21
  %s128 = sld [smem:[#allocation3 + %s127]]
  %s129 = scalar_lea.vmem %s1, %s128
  %v130 = vld [vmem:[%s129] sm:$0x1]
  %s131 = sadd.s32 %s15, 22
  %s132 = sld [smem:[#allocation3 + %s131]]
  %s133 = scalar_lea.vmem %s1, %s132
  %v134 = vld [vmem:[%s133] sm:$0x1]
  %v135 = vadd.f32 %v130, %v134
  %s136 = sadd.s32 %s15, 23
  %s137 = sld [smem:[#allocation3 + %s136]]
  %s138 = scalar_lea.vmem %s1, %s137
  %v139 = vld [vmem:[%s138] sm:$0x1]
  %v140 = vadd.f32 %v135, %v139
  %s141 = scalar_lea.vmem %s2, 7
  %142 = vst.msk [vmem:[%s141] sm:$0x1] %vm29, %v140
  %s143 = sadd.s32 %s15, 24
  %s144 = sld [smem:[#allocation3 + %s143]]
  %s145 = scalar_lea.vmem %s1, %s144
  %v146 = vld [vmem:[%s145] sm:$0x1]
  %s147 = sadd.s32 %s15, 25
  %s148 = sld [smem:[#allocation3 + %s147]]
  %s149 = scalar_lea.vmem %s1, %s148
  %v150 = vld [vmem:[%s149] sm:$0x1]
  %v151 = vadd.f32 %v146, %v150
  %s152 = sadd.s32 %s15, 26
  %s153 = sld [smem:[#allocation3 + %s152]]
  %s154 = scalar_lea.vmem %s1, %s153
  %v155 = vld [vmem:[%s154] sm:$0x1]
  %v156 = vadd.f32 %v151, %v155
  %s157 = scalar_lea.vmem %s2, 8
  %158 = vst.msk [vmem:[%s157] sm:$0x1] %vm29, %v156
  %s159 = sadd.s32 %s15, 27
  %s160 = sld [smem:[#allocation3 + %s159]]
  %s161 = scalar_lea.vmem %s1, %s160
  %v162 = vld [vmem:[%s161] sm:$0x1]
  %s163 = sadd.s32 %s15, 28
  %s164 = sld [smem:[#allocation3 + %s163]]
  %s165 = scalar_lea.vmem %s1, %s164
  %v166 = vld [vmem:[%s165] sm:$0x1]
  %v167 = vadd.f32 %v162, %v166
  %s168 = sadd.s32 %s15, 29
  %s169 = sld [smem:[#allocation3 + %s168]]
  %s170 = scalar_lea.vmem %s1, %s169
  %v171 = vld [vmem:[%s170] sm:$0x1]
  %v172 = vadd.f32 %v167, %v171
  %s173 = scalar_lea.vmem %s2, 9
  %174 = vst.msk [vmem:[%s173] sm:$0x1] %vm29, %v172
  %s175 = sadd.s32 %s15, 30
  %s176 = sld [smem:[#allocation3 + %s175]]
  %s177 = scalar_lea.vmem %s1, %s176
  %v178 = vld [vmem:[%s177] sm:$0x1]
  %s179 = sadd.s32 %s15, 31
  %s180 = sld [smem:[#allocation3 + %s179]]
  %s181 = scalar_lea.vmem %s1, %s180
  %v182 = vld [vmem:[%s181] sm:$0x1]
  %v183 = vadd.f32 %v178, %v182
  %s184 = sadd.s32 %s15, 32
  %s185 = sld [smem:[#allocation3 + %s184]]
  %s186 = scalar_lea.vmem %s1, %s185
  %v187 = vld [vmem:[%s186] sm:$0x1]
  %v188 = vadd.f32 %v183, %v187
  %s189 = scalar_lea.vmem %s2, 10
  %190 = vst.msk [vmem:[%s189] sm:$0x1] %vm29, %v188
  %s191 = sadd.s32 %s15, 33
  %s192 = sld [smem:[#allocation3 + %s191]]
  %s193 = scalar_lea.vmem %s1, %s192
  %v194 = vld [vmem:[%s193] sm:$0x1]
  %s195 = sadd.s32 %s15, 34
  %s196 = sld [smem:[#allocation3 + %s195]]
  %s197 = scalar_lea.vmem %s1, %s196
  %v198 = vld [vmem:[%s197] sm:$0x1]
  %v199 = vadd.f32 %v194, %v198
  %s200 = sadd.s32 %s15, 35
  %s201 = sld [smem:[#allocation3 + %s200]]
  %s202 = scalar_lea.vmem %s1, %s201
  %v203 = vld [vmem:[%s202] sm:$0x1]
  %v204 = vadd.f32 %v199, %v203
  %s205 = scalar_lea.vmem %s2, 11
  %206 = vst.msk [vmem:[%s205] sm:$0x1] %vm29, %v204
  %s207 = sadd.s32 %s15, 36
  %s208 = sld [smem:[#allocation3 + %s207]]
  %s209 = scalar_lea.vmem %s1, %s208
  %v210 = vld [vmem:[%s209] sm:$0x1]
  %s211 = sadd.s32 %s15, 37
  %s212 = sld [smem:[#allocation3 + %s211]]
  %s213 = scalar_lea.vmem %s1, %s212
  %v214 = vld [vmem:[%s213] sm:$0x1]
  %v215 = vadd.f32 %v210, %v214
  %s216 = sadd.s32 %s15, 38
  %s217 = sld [smem:[#allocation3 + %s216]]
  %s218 = scalar_lea.vmem %s1, %s217
  %v219 = vld [vmem:[%s218] sm:$0x1]
  %v220 = vadd.f32 %v215, %v219
  %s221 = scalar_lea.vmem %s2, 12
  %222 = vst.msk [vmem:[%s221] sm:$0x1] %vm29, %v220
  %s223 = sadd.s32 %s15, 39
  %s224 = sld [smem:[#allocation3 + %s223]]
  %s225 = scalar_lea.vmem %s1, %s224
  %v226 = vld [vmem:[%s225] sm:$0x1]
  %s227 = sadd.s32 %s15, 40
  %s228 = sld [smem:[#allocation3 + %s227]]
  %s229 = scalar_lea.vmem %s1, %s228
  %v230 = vld [vmem:[%s229] sm:$0x1]
  %v231 = vadd.f32 %v226, %v230
  %s232 = sadd.s32 %s15, 41
  %s233 = sld [smem:[#allocation3 + %s232]]
  %s234 = scalar_lea.vmem %s1, %s233
  %v235 = vld [vmem:[%s234] sm:$0x1]
  %v236 = vadd.f32 %v231, %v235
  %s237 = scalar_lea.vmem %s2, 13
  %238 = vst.msk [vmem:[%s237] sm:$0x1] %vm29, %v236
  %s239 = sadd.s32 %s15, 42
  %s240 = sld [smem:[#allocation3 + %s239]]
  %s241 = scalar_lea.vmem %s1, %s240
  %v242 = vld [vmem:[%s241] sm:$0x1]
  %s243 = sadd.s32 %s15, 43
  %s244 = sld [smem:[#allocation3 + %s243]]
  %s245 = scalar_lea.vmem %s1, %s244
  %v246 = vld [vmem:[%s245] sm:$0x1]
  %v247 = vadd.f32 %v242, %v246
  %s248 = sadd.s32 %s15, 44
  %s249 = sld [smem:[#allocation3 + %s248]]
  %s250 = scalar_lea.vmem %s1, %s249
  %v251 = vld [vmem:[%s250] sm:$0x1]
  %v252 = vadd.f32 %v247, %v251
  %s253 = scalar_lea.vmem %s2, 14
  %254 = vst.msk [vmem:[%s253] sm:$0x1] %vm29, %v252
  %s255 = sadd.s32 %s15, 45
  %s256 = sld [smem:[#allocation3 + %s255]]
  %s257 = scalar_lea.vmem %s1, %s256
  %v258 = vld [vmem:[%s257] sm:$0x1]
  %s259 = sadd.s32 %s15, 46
  %s260 = sld [smem:[#allocation3 + %s259]]
  %s261 = scalar_lea.vmem %s1, %s260
  %v262 = vld [vmem:[%s261] sm:$0x1]
  %v263 = vadd.f32 %v258, %v262
  %s264 = sadd.s32 %s15, 47
  %s265 = sld [smem:[#allocation3 + %s264]]
  %s266 = scalar_lea.vmem %s1, %s265
  %v267 = vld [vmem:[%s266] sm:$0x1]
  %v268 = vadd.f32 %v263, %v267
  %s269 = scalar_lea.vmem %s2, 15
  %270 = vst.msk [vmem:[%s269] sm:$0x1] %vm29, %v268
  // Predicated region
  $region6: #{my_classifier_forward.4} parent=0 // pred_check
    _
  $region7: #{my_classifier_forward.4} parent=0 // pred_check_branch
    %272 = sbr.rel (0) target = $region9
  $region8: #{my_classifier_forward.4} parent=0 // pred_region
    _
  $region9: #{my_classifier_forward.4} parent=0 // pred_fallthru
    _
  // Predicated region
  $region10: #{my_classifier_forward.4} parent=0 // pred_check
    _
  $region11: #{my_classifier_forward.4} parent=0 // pred_check_branch
    %274 = sbr.rel (0) target = $region13
  $region12: #{my_classifier_forward.4} parent=0 // pred_region
    _
  $region13: #{my_classifier_forward.4} parent=0 // pred_fallthru
    _

// kernel: my_classifier_forward.5
$region0: #{my_classifier_forward.5}
  #allocation0 [shape = 'u32[]', space=smem, size = 0x4, offset = 0x4, fixed_abs, tag = 'smem constant byte address 0x4 - core index']
  #allocation1 [shape = 'u32[144,128]{1,0:T(1,128)}', space=vmem, size = 0x12000, scoped, tag = 'internal scratch']
  #allocation2 [shape = 'f32[2,128]{1,0:T(2,128)}', space=vmem, size = 0x400, scoped, tag = 'scratch operand']
  %s0 = inlined_call_operand.vmem [shape: f32[8,2,32], index: 0, kind: input, shape index: {}]
  %s1 = inlined_call_operand.vmem [shape: f32[2,128], index: 1, kind: input, shape index: {}]
  %s2 = inlined_call_operand.vmem [shape: bf16[32,384], index: 2, kind: input, shape index: {}]
  %s3 = inlined_call_operand.hbm [shape: bf16[128,384], index: 3, kind: input, shape index: {}]
  %s4 = inlined_call_operand.vmem [shape: f32[1,384], index: 4, kind: input, shape index: {}]
  %s5 = inlined_call_operand.vmem [shape: f32[1,128], index: 5, kind: input, shape index: {}]
  %s6 = inlined_call_operand.vmem [shape: f32[8,2,128], index: 6, kind: output, shape index: {0}]
  %s7 = inlined_call_operand.vmem [shape: f32[2,128], index: 7, kind: output, shape index: {1}]
  %8 = xla_tuple %s6, %s7
  %s9 = sld [smem:[#allocation0]]
  $region54: #{my_classifier_forward.5} parent=0
    _
  %s11 = ssub.s32 1, %s9
  %s12 = scalar_select 0, %s11, %s9
  $region1: #{my_classifier_forward.5} parent=0
    #allocation3 [shape = 'u8[98304]{0}', space=vmem, size = 0x18000, scoped, tag = 'input window, operand 3, single buffered']
    #allocation4 [shape = 's32[1]{0}', space=sflag, size = 0x4, scoped, tag = 'scoped memory for my_classifier_forward.5']
    %13 = vsyncpa [#allocation4], 0
    // Predicated region
    $region2: #{my_classifier_forward.5} parent=1 // pred_check
      _
    $region3: #{my_classifier_forward.5} parent=1 // pred_check_branch
      %15 = sbr.rel (0) target = $region5
    $region4: #{my_classifier_forward.5} parent=1 // pred_region
      _
    $region5: #{my_classifier_forward.5} parent=1 // pred_fallthru
      _
    // Predicated region
    $region6: #{my_classifier_forward.5} parent=1 // pred_check
      _
    $region7: #{my_classifier_forward.5} parent=1 // pred_check_branch
      %17 = sbr.rel (0) target = $region9
    $region8: #{my_classifier_forward.5} parent=1 // pred_region
      _
    $region9: #{my_classifier_forward.5} parent=1 // pred_fallthru
      _
    // Predicated region
    $region10: #{my_classifier_forward.5} parent=1 // pred_check
      _
    $region11: #{my_classifier_forward.5} parent=1 // pred_check_branch
      %19 = sbr.rel (0) target = $region13
    $region12: #{my_classifier_forward.5} parent=1 // pred_region
      _
    $region13: #{my_classifier_forward.5} parent=1 // pred_fallthru
      _
    // Predicated region
    $region14: #{my_classifier_forward.5} parent=1 // pred_check
      _
    $region15: #{my_classifier_forward.5} parent=1 // pred_check_branch
      %21 = sbr.rel (0) target = $region17
    $region16: #{my_classifier_forward.5} parent=1 // pred_region
      %s23 = ssub.s32 3072, 3072
      %24 = vsyncadd [#allocation4], %s23
      %s25 = sshll.u32 [#allocation3], 4
      %s26 = int_to_ptr.vmem [resolvable:$true] %s25
      %31 = dma.hbm_to_vmem [thread:$0]  %s3, 3072, %s26, [#allocation4], 192, 192, 12
    $region17: #{my_classifier_forward.5} parent=1 // pred_fallthru
      _
    // Predicated region
    $region18: #{my_classifier_forward.5} parent=1 // pred_check
      _
    $region19: #{my_classifier_forward.5} parent=1 // pred_check_branch
      %33 = sbr.rel (0) target = $region21
    $region20: #{my_classifier_forward.5} parent=1 // pred_region
      _
    $region21: #{my_classifier_forward.5} parent=1 // pred_fallthru
      _
    // Predicated region
    $region22: #{my_classifier_forward.5} parent=1 // pred_check
      _
    $region23: #{my_classifier_forward.5} parent=1 // pred_check_branch
      %35 = sbr.rel (0) target = $region25
    $region24: #{my_classifier_forward.5} parent=1 // pred_region
      _
    $region25: #{my_classifier_forward.5} parent=1 // pred_fallthru
      _
    // Predicated region
    $region26: #{my_classifier_forward.5} parent=1 // pred_check
      _
    $region27: #{my_classifier_forward.5} parent=1 // pred_check_branch
      %37 = sbr.rel (0) target = $region29
    $region28: #{my_classifier_forward.5} parent=1 // pred_region
      %38 = dma.done [#allocation4], 3072
    $region29: #{my_classifier_forward.5} parent=1 // pred_fallthru
      _
    %p40 = scmp.eq.s32.totalorder 0, 0
    // Predicated region
    $region30: #{my_classifier_forward.5} parent=1 // pred_check
      %p41 = pneg %p40
    $region31: #{my_classifier_forward.5} parent=1 // pred_check_branch
      %43 = sbr.rel (%p41) target = $region33
    $region32: #{my_classifier_forward.5} parent=1 // pred_region
      %v44 = vld [vmem:[%s1] sm:$0x3]
      %45 = vst [vmem:[#allocation2] sm:$0x3] %v44
    $region33: #{my_classifier_forward.5} parent=1 // pred_fallthru
      _
    %v46 = vld [vmem:[#allocation2] sm:$0x3]
    %v47 = vld [vmem:[%s0] sm:$0x3]
    %v48 = vpack.c.bf16 %v47, %v47
    %v49 = vld [vmem:[%s2] sm:$0xff]
    %v50 = vld [vmem:[%s2 + $0x8] sm:$0xf]
    %v51 = vld [vmem:[%s2 + $0xc] sm:$0xff]
    %v52 = vld [vmem:[%s2 + $0x14] sm:$0xf]
    %v53 = vld [vmem:[%s2 + $0x18] sm:$0xff]
    %v54 = vld [vmem:[%s2 + $0x20] sm:$0xf]
    %v55 = vld [vmem:[%s2 + $0x24] sm:$0xff]
    %v56 = vld [vmem:[%s2 + $0x2c] sm:$0xf]
    %v57 = vld [vmem:[%s4] sm:$0x7]
    %v59 = vlaneseq
    %v60 = vshrl.u32 %v59, 7
    %v61 = vsub.s32 0, %v60
    %v62 = vrot.slane %v57, %v61
    %v63 = vlaneseq
    %v64 = vshrl.u32 %v63, 7
    %v65 = vsub.s32 1, %v64
    %v66 = vrot.slane %v57, %v65
    %v67 = vlaneseq
    %v68 = vshrl.u32 %v67, 7
    %v69 = vsub.s32 2, %v68
    %v70 = vrot.slane %v57, %v69
    %v82 = vunpack.c.l.b16 %v49
    %v83 = vunpack.c.h.b16 %v49
    %v84 = vunpack.c.l.b16 %v50
    %v85 = vunpack.c.l.b16 %v51
    %v86 = vunpack.c.h.b16 %v51
    %v87 = vunpack.c.l.b16 %v52
    %v88 = vunpack.c.l.b16 %v53
    %v89 = vunpack.c.h.b16 %v53
    %v90 = vunpack.c.l.b16 %v54
    %v91 = vunpack.c.l.b16 %v55
    %v92 = vunpack.c.h.b16 %v55
    %v93 = vunpack.c.l.b16 %v56
    %v94 = vpack.c.b16 %v85, %v82
    %v95 = vpack.c.b16 %v86, %v83
    %v96 = vpack.c.b16 %v87, %v84
    %v97 = vpack.c.b16 %v91, %v88
    %v98 = vpack.c.b16 %v92, %v89
    %v99 = vpack.c.b16 %v93, %v90
    %vm106 = vcmask 261120
    %v108 = vsel %vm106, %v48, 0
    %110 = vmatprep.subr.bf16.mxu0 0
    %111 = vmatpush1.bf16.msra.mxu0 0
    %112 = vmatprep.subr.bf16.mxu0 0
    %113 = vmatpush1.bf16.msra.mxu0 0
    %114 = vmatprep.subr.bf16.mxu0 0
    %115 = vmatpush1.bf16.msra.mxu0 0
    %116 = vmatprep.subr.bf16.mxu0 0
    %117 = vmatpush1.bf16.msra.mxu0 0
    %118 = vmatprep.subr.bf16.mxu0 0
    %119 = vmatpush1.bf16.msra.mxu0 0
    %120 = vmatprep.subr.bf16.mxu0 0
    %121 = vmatpush1.bf16.msra.mxu0 0
    %122 = vmatprep.subr.bf16.mxu0 %v98
    %123 = vmatpush1.bf16.msra.mxu0 %v97
    %124 = vmatprep.subr.bf16.mxu0 %v95
    %125 = vmatpush1.bf16.msra.mxu0 %v94
    %126 = vmatprep.subr.bf16.mxu0 0
    %127 = vmatpush2.bf16.msra.mxu0 0
    %128 = vmatprep.subr.bf16.mxu0 0
    %129 = vmatpush2.bf16.msra.mxu0 0
    %130 = vmatprep.subr.bf16.mxu0 0
    %131 = vmatpush2.bf16.msra.mxu0 0
    %132 = vmatprep.subr.bf16.mxu0 0
    %133 = vmatpush2.bf16.msra.mxu0 0
    %134 = vmatprep.subr.bf16.mxu0 0
    %135 = vmatpush2.bf16.msra.mxu0 0
    %136 = vmatprep.subr.bf16.mxu0 0
    %137 = vmatpush2.bf16.msra.mxu0 0
    %138 = vmatprep.subr.bf16.mxu0 0
    %139 = vmatpush2.bf16.msra.mxu0 0
    %140 = vmatprep.subr.bf16.mxu0 0
    %141 = vmatpush2.bf16.msra.mxu0 0
    %142 = vmatprep.mubr.bf16.mxu0 0
    %143 = vmatmul.mubr.bf16.gmra.mxu0 %v108
    %v144 = vpop.f32.mrf.mxu0
    %v145 = vadd.f32 %v62, %v144
    %v146 = vpop.f32.mrf.mxu0
    %v147 = vadd.f32 %v66, %v146
    %v148 = vpop.f32.mrf.mxu0
    %v149 = vpop.f32.mrf.mxu0
    %150 = vdwg.mxu0
    %151 = vmatprep.subr.bf16.mxu0 0
    %152 = vmatpush1.bf16.msra.mxu0 0
    %153 = vmatprep.subr.bf16.mxu0 0
    %154 = vmatpush1.bf16.msra.mxu0 0
    %155 = vmatprep.subr.bf16.mxu0 0
    %156 = vmatpush1.bf16.msra.mxu0 0
    %157 = vmatprep.subr.bf16.mxu0 0
    %158 = vmatpush1.bf16.msra.mxu0 0
    %159 = vmatprep.subr.bf16.mxu0 0
    %160 = vmatpush1.bf16.msra.mxu0 0
    %161 = vmatprep.subr.bf16.mxu0 0
    %162 = vmatpush1.bf16.msra.mxu0 0
    %163 = vmatprep.subr.bf16.mxu0 0
    %164 = vmatpush1.bf16.msra.mxu0 %v99
    %165 = vmatprep.subr.bf16.mxu0 0
    %166 = vmatpush1.bf16.msra.mxu0 %v96
    %167 = vmatprep.subr.bf16.mxu0 0
    %168 = vmatpush2.bf16.msra.mxu0 0
    %169 = vmatprep.subr.bf16.mxu0 0
    %170 = vmatpush2.bf16.msra.mxu0 0
    %171 = vmatprep.subr.bf16.mxu0 0
    %172 = vmatpush2.bf16.msra.mxu0 0
    %173 = vmatprep.subr.bf16.mxu0 0
    %174 = vmatpush2.bf16.msra.mxu0 0
    %175 = vmatprep.subr.bf16.mxu0 0
    %176 = vmatpush2.bf16.msra.mxu0 0
    %177 = vmatprep.subr.bf16.mxu0 0
    %178 = vmatpush2.bf16.msra.mxu0 0
    %179 = vmatprep.subr.bf16.mxu0 0
    %180 = vmatpush2.bf16.msra.mxu0 0
    %181 = vmatprep.subr.bf16.mxu0 0
    %182 = vmatpush2.bf16.msra.mxu0 0
    %183 = vmatprep.mubr.bf16.mxu0 0
    %184 = vmatmul.mubr.bf16.gmra.mxu0 %v108
    %v185 = vpop.f32.mrf.mxu0
    %v186 = vadd.f32 %v70, %v185
    %v187 = vpop.f32.mrf.mxu0
    %v188 = vpop.f32.mrf.mxu0
    %v189 = vpop.f32.mrf.mxu0
    %190 = vdwg.mxu0
    %v191 = vpack.c.bf16 %v46, %v46
    %v192 = vld [vmem:[#allocation3] sm:$0xff]
    %v193 = vld [vmem:[#allocation3 + $0x8] sm:$0xf]
    %v194 = vld [vmem:[#allocation3 + $0xc] sm:$0xff]
    %v195 = vld [vmem:[#allocation3 + $0x14] sm:$0xf]
    %v196 = vld [vmem:[#allocation3 + $0x18] sm:$0xff]
    %v197 = vld [vmem:[#allocation3 + $0x20] sm:$0xf]
    %v198 = vld [vmem:[#allocation3 + $0x24] sm:$0xff]
    %v199 = vld [vmem:[#allocation3 + $0x2c] sm:$0xf]
    %v200 = vld [vmem:[#allocation3 + $0x30] sm:$0xff]
    %v201 = vld [vmem:[#allocation3 + $0x38] sm:$0xf]
    %v202 = vld [vmem:[#allocation3 + $0x3c] sm:$0xff]
    %v203 = vld [vmem:[#allocation3 + $0x44] sm:$0xf]
    %v204 = vld [vmem:[#allocation3 + $0x48] sm:$0xff]
    %v205 = vld [vmem:[#allocation3 + $0x50] sm:$0xf]
    %v206 = vld [vmem:[#allocation3 + $0x54] sm:$0xff]
    %v207 = vld [vmem:[#allocation3 + $0x5c] sm:$0xf]
    %v208 = vld [vmem:[#allocation3 + $0x60] sm:$0xff]
    %v209 = vld [vmem:[#allocation3 + $0x68] sm:$0xf]
    %v210 = vld [vmem:[#allocation3 + $0x6c] sm:$0xff]
    %v211 = vld [vmem:[#allocation3 + $0x74] sm:$0xf]
    %v212 = vld [vmem:[#allocation3 + $0x78] sm:$0xff]
    %v213 = vld [vmem:[#allocation3 + $0x80] sm:$0xf]
    %v214 = vld [vmem:[#allocation3 + $0x84] sm:$0xff]
    %v215 = vld [vmem:[#allocation3 + $0x8c] sm:$0xf]
    %v216 = vld [vmem:[#allocation3 + $0x90] sm:$0xff]
    %v217 = vld [vmem:[#allocation3 + $0x98] sm:$0xf]
    %v218 = vld [vmem:[#allocation3 + $0x9c] sm:$0xff]
    %v219 = vld [vmem:[#allocation3 + $0xa4] sm:$0xf]
    %v220 = vld [vmem:[#allocation3 + $0xa8] sm:$0xff]
    %v221 = vld [vmem:[#allocation3 + $0xb0] sm:$0xf]
    %v222 = vld [vmem:[#allocation3 + $0xb4] sm:$0xff]
    %v223 = vld [vmem:[#allocation3 + $0xbc] sm:$0xf]
    %v256 = vunpack.c.l.b16 %v192
    %v257 = vunpack.c.h.b16 %v192
    %v258 = vunpack.c.l.b16 %v193
    %v259 = vunpack.c.l.b16 %v194
    %v260 = vunpack.c.h.b16 %v194
    %v261 = vunpack.c.l.b16 %v195
    %v262 = vunpack.c.l.b16 %v196
    %v263 = vunpack.c.h.b16 %v196
    %v264 = vunpack.c.l.b16 %v197
    %v265 = vunpack.c.l.b16 %v198
    %v266 = vunpack.c.h.b16 %v198
    %v267 = vunpack.c.l.b16 %v199
    %v268 = vunpack.c.l.b16 %v200
    %v269 = vunpack.c.h.b16 %v200
    %v270 = vunpack.c.l.b16 %v201
    %v271 = vunpack.c.l.b16 %v202
    %v272 = vunpack.c.h.b16 %v202
    %v273 = vunpack.c.l.b16 %v203
    %v274 = vunpack.c.l.b16 %v204
    %v275 = vunpack.c.h.b16 %v204
    %v276 = vunpack.c.l.b16 %v205
    %v277 = vunpack.c.l.b16 %v206
    %v278 = vunpack.c.h.b16 %v206
    %v279 = vunpack.c.l.b16 %v207
    %v280 = vunpack.c.l.b16 %v208
    %v281 = vunpack.c.h.b16 %v208
    %v282 = vunpack.c.l.b16 %v209
    %v283 = vunpack.c.l.b16 %v210
    %v284 = vunpack.c.h.b16 %v210
    %v285 = vunpack.c.l.b16 %v211
    %v286 = vunpack.c.l.b16 %v212
    %v287 = vunpack.c.h.b16 %v212
    %v288 = vunpack.c.l.b16 %v213
    %v289 = vunpack.c.l.b16 %v214
    %v290 = vunpack.c.h.b16 %v214
    %v291 = vunpack.c.l.b16 %v215
    %v292 = vunpack.c.l.b16 %v216
    %v293 = vunpack.c.h.b16 %v216
    %v294 = vunpack.c.l.b16 %v217
    %v295 = vunpack.c.l.b16 %v218
    %v296 = vunpack.c.h.b16 %v218
    %v297 = vunpack.c.l.b16 %v219
    %v298 = vunpack.c.l.b16 %v220
    %v299 = vunpack.c.h.b16 %v220
    %v300 = vunpack.c.l.b16 %v221
    %v301 = vunpack.c.l.b16 %v222
    %v302 = vunpack.c.h.b16 %v222
    %v303 = vunpack.c.l.b16 %v223
    %v304 = vpack.c.b16 %v259, %v256
    %v305 = vpack.c.b16 %v260, %v257
    %v306 = vpack.c.b16 %v261, %v258
    %v307 = vpack.c.b16 %v265, %v262
    %v308 = vpack.c.b16 %v266, %v263
    %v309 = vpack.c.b16 %v267, %v264
    %v310 = vpack.c.b16 %v271, %v268
    %v311 = vpack.c.b16 %v272, %v269
    %v312 = vpack.c.b16 %v273, %v270
    %v313 = vpack.c.b16 %v277, %v274
    %v314 = vpack.c.b16 %v278, %v275
    %v315 = vpack.c.b16 %v279, %v276
    %v316 = vpack.c.b16 %v283, %v280
    %v317 = vpack.c.b16 %v284, %v281
    %v318 = vpack.c.b16 %v285, %v282
    %v319 = vpack.c.b16 %v289, %v286
    %v320 = vpack.c.b16 %v290, %v287
    %v321 = vpack.c.b16 %v291, %v288
    %v322 = vpack.c.b16 %v295, %v292
    %v323 = vpack.c.b16 %v296, %v293
    %v324 = vpack.c.b16 %v297, %v294
    %v325 = vpack.c.b16 %v301, %v298
    %v326 = vpack.c.b16 %v302, %v299
    %v327 = vpack.c.b16 %v303, %v300
    %352 = vmatprep.subr.bf16.mxu0 %v326
    %353 = vmatpush1.bf16.msra.mxu0 %v325
    %354 = vmatprep.subr.bf16.mxu0 %v323
    %355 = vmatpush1.bf16.msra.mxu0 %v322
    %356 = vmatprep.subr.bf16.mxu0 %v320
    %357 = vmatpush1.bf16.msra.mxu0 %v319
    %358 = vmatprep.subr.bf16.mxu0 %v317
    %359 = vmatpush1.bf16.msra.mxu0 %v316
    %360 = vmatprep.subr.bf16.mxu0 %v314
    %361 = vmatpush1.bf16.msra.mxu0 %v313
    %362 = vmatprep.subr.bf16.mxu0 %v311
    %363 = vmatpush1.bf16.msra.mxu0 %v310
    %364 = vmatprep.subr.bf16.mxu0 %v308
    %365 = vmatpush1.bf16.msra.mxu0 %v307
    %366 = vmatprep.subr.bf16.mxu0 %v305
    %367 = vmatpush1.bf16.msra.mxu0 %v304
    %368 = vmatprep.subr.bf16.mxu0 0
    %369 = vmatpush2.bf16.msra.mxu0 0
    %370 = vmatprep.subr.bf16.mxu0 0
    %371 = vmatpush2.bf16.msra.mxu0 0
    %372 = vmatprep.subr.bf16.mxu0 0
    %373 = vmatpush2.bf16.msra.mxu0 0
    %374 = vmatprep.subr.bf16.mxu0 0
    %375 = vmatpush2.bf16.msra.mxu0 0
    %376 = vmatprep.subr.bf16.mxu0 0
    %377 = vmatpush2.bf16.msra.mxu0 0
    %378 = vmatprep.subr.bf16.mxu0 0
    %379 = vmatpush2.bf16.msra.mxu0 0
    %380 = vmatprep.subr.bf16.mxu0 0
    %381 = vmatpush2.bf16.msra.mxu0 0
    %382 = vmatprep.subr.bf16.mxu0 0
    %383 = vmatpush2.bf16.msra.mxu0 0
    %384 = vmatprep.mubr.bf16.mxu0 0
    %385 = vmatmul.mubr.bf16.gmra.mxu0 %v191
    %v386 = vpop.f32.mrf.mxu0
    %v387 = vadd.f32 0.0, %v386
    %v388 = vpop.f32.mrf.mxu0
    %v389 = vadd.f32 0.0, %v388
    %v390 = vpop.f32.mrf.mxu0
    %v391 = vpop.f32.mrf.mxu0
    %392 = vdwg.mxu0
    %393 = vmatprep.subr.bf16.mxu0 0
    %394 = vmatpush1.bf16.msra.mxu0 %v327
    %395 = vmatprep.subr.bf16.mxu0 0
    %396 = vmatpush1.bf16.msra.mxu0 %v324
    %397 = vmatprep.subr.bf16.mxu0 0
    %398 = vmatpush1.bf16.msra.mxu0 %v321
    %399 = vmatprep.subr.bf16.mxu0 0
    %400 = vmatpush1.bf16.msra.mxu0 %v318
    %401 = vmatprep.subr.bf16.mxu0 0
    %402 = vmatpush1.bf16.msra.mxu0 %v315
    %403 = vmatprep.subr.bf16.mxu0 0
    %404 = vmatpush1.bf16.msra.mxu0 %v312
    %405 = vmatprep.subr.bf16.mxu0 0
    %406 = vmatpush1.bf16.msra.mxu0 %v309
    %407 = vmatprep.subr.bf16.mxu0 0
    %408 = vmatpush1.bf16.msra.mxu0 %v306
    %409 = vmatprep.subr.bf16.mxu0 0
    %410 = vmatpush2.bf16.msra.mxu0 0
    %411 = vmatprep.subr.bf16.mxu0 0
    %412 = vmatpush2.bf16.msra.mxu0 0
    %413 = vmatprep.subr.bf16.mxu0 0
    %414 = vmatpush2.bf16.msra.mxu0 0
    %415 = vmatprep.subr.bf16.mxu0 0
    %416 = vmatpush2.bf16.msra.mxu0 0
    %417 = vmatprep.subr.bf16.mxu0 0
    %418 = vmatpush2.bf16.msra.mxu0 0
    %419 = vmatprep.subr.bf16.mxu0 0
    %420 = vmatpush2.bf16.msra.mxu0 0
    %421 = vmatprep.subr.bf16.mxu0 0
    %422 = vmatpush2.bf16.msra.mxu0 0
    %423 = vmatprep.subr.bf16.mxu0 0
    %424 = vmatpush2.bf16.msra.mxu0 0
    %425 = vmatprep.mubr.bf16.mxu0 0
    %426 = vmatmul.mubr.bf16.gmra.mxu0 %v191
    %v427 = vpop.f32.mrf.mxu0
    %v428 = vadd.f32 0.0, %v427
    %v429 = vpop.f32.mrf.mxu0
    %v430 = vpop.f32.mrf.mxu0
    %v431 = vpop.f32.mrf.mxu0
    %432 = vdwg.mxu0
    %v433 = vadd.f32 %v145, %v387
    %v434 = vxor.u32 %v433, 2147483648
    %v435 = vmul.f32 %v434, 1.442695
    %v436 = vpow.pop %v435
    %v437 = vadd.f32 %v436, 1.0
    %v438 = vrcp.pop %v437
    %v439 = vmul.f32 1.0, %v438
    %v440 = vadd.f32 %v147, %v389
    %v441 = vxor.u32 %v440, 2147483648
    %v442 = vmul.f32 %v441, 1.442695
    %v443 = vpow.pop %v442
    %v444 = vadd.f32 %v443, 1.0
    %v445 = vrcp.pop %v444
    %v446 = vmul.f32 1.0, %v445
    %v447 = vld [vmem:[%s5] sm:$0x1]
    %v449 = vlaneseq
    %v450 = vshrl.u32 %v449, 7
    %v451 = vsub.s32 0, %v450
    %v452 = vrot.slane %v447, %v451
    %v454 = vadd.f32 %v428, %v452
    %v455 = vmul.f32 %v439, %v454
    %v456 = vadd.f32 %v186, %v455
    %v457 = vtanh.pop %v456
    %v458 = vsub.f32 1.0, %v446
    %v459 = vmul.f32 %v458, %v457
    %v460 = vmul.f32 %v446, %v46
    %v461 = vadd.f32 %v459, %v460
    %462 = vst [vmem:[%s6] sm:$0x3] %v461
    %s463 = scalar_lea.vmem %s0, 2
    %v464 = vld [vmem:[%s463] sm:$0x3]
    %v465 = vpack.c.bf16 %v464, %v464
    %v466 = vld [vmem:[%s2] sm:$0xff]
    %v467 = vld [vmem:[%s2 + $0x8] sm:$0xf]
    %v468 = vld [vmem:[%s2 + $0xc] sm:$0xff]
    %v469 = vld [vmem:[%s2 + $0x14] sm:$0xf]
    %v470 = vld [vmem:[%s2 + $0x18] sm:$0xff]
    %v471 = vld [vmem:[%s2 + $0x20] sm:$0xf]
    %v472 = vld [vmem:[%s2 + $0x24] sm:$0xff]
    %v473 = vld [vmem:[%s2 + $0x2c] sm:$0xf]
    %v474 = vld [vmem:[%s4] sm:$0x7]
    %v476 = vlaneseq
    %v477 = vshrl.u32 %v476, 7
    %v478 = vsub.s32 0, %v477
    %v479 = vrot.slane %v474, %v478
    %v480 = vlaneseq
    %v481 = vshrl.u32 %v480, 7
    %v482 = vsub.s32 1, %v481
    %v483 = vrot.slane %v474, %v482
    %v484 = vlaneseq
    %v485 = vshrl.u32 %v484, 7
    %v486 = vsub.s32 2, %v485
    %v487 = vrot.slane %v474, %v486
    %v499 = vunpack.c.l.b16 %v466
    %v500 = vunpack.c.h.b16 %v466
    %v501 = vunpack.c.l.b16 %v467
    %v502 = vunpack.c.l.b16 %v468
    %v503 = vunpack.c.h.b16 %v468
    %v504 = vunpack.c.l.b16 %v469
    %v505 = vunpack.c.l.b16 %v470
    %v506 = vunpack.c.h.b16 %v470
    %v507 = vunpack.c.l.b16 %v471
    %v508 = vunpack.c.l.b16 %v472
    %v509 = vunpack.c.h.b16 %v472
    %v510 = vunpack.c.l.b16 %v473
    %v511 = vpack.c.b16 %v502, %v499
    %v512 = vpack.c.b16 %v503, %v500
    %v513 = vpack.c.b16 %v504, %v501
    %v514 = vpack.c.b16 %v508, %v505
    %v515 = vpack.c.b16 %v509, %v506
    %v516 = vpack.c.b16 %v510, %v507
    %v524 = vsel %vm106, %v465, 0
    %526 = vmatprep.subr.bf16.mxu0 0
    %527 = vmatpush1.bf16.msra.mxu0 0
    %528 = vmatprep.subr.bf16.mxu0 0
    %529 = vmatpush1.bf16.msra.mxu0 0
    %530 = vmatprep.subr.bf16.mxu0 0
    %531 = vmatpush1.bf16.msra.mxu0 0
    %532 = vmatprep.subr.bf16.mxu0 0
    %533 = vmatpush1.bf16.msra.mxu0 0
    %534 = vmatprep.subr.bf16.mxu0 0
    %535 = vmatpush1.bf16.msra.mxu0 0
    %536 = vmatprep.subr.bf16.mxu0 0
    %537 = vmatpush1.bf16.msra.mxu0 0
    %538 = vmatprep.subr.bf16.mxu0 %v515
    %539 = vmatpush1.bf16.msra.mxu0 %v514
    %540 = vmatprep.subr.bf16.mxu0 %v512
    %541 = vmatpush1.bf16.msra.mxu0 %v511
    %542 = vmatprep.subr.bf16.mxu0 0
    %543 = vmatpush2.bf16.msra.mxu0 0
    %544 = vmatprep.subr.bf16.mxu0 0
    %545 = vmatpush2.bf16.msra.mxu0 0
    %546 = vmatprep.subr.bf16.mxu0 0
    %547 = vmatpush2.bf16.msra.mxu0 0
    %548 = vmatprep.subr.bf16.mxu0 0
    %549 = vmatpush2.bf16.msra.mxu0 0
    %550 = vmatprep.subr.bf16.mxu0 0
    %551 = vmatpush2.bf16.msra.mxu0 0
    %552 = vmatprep.subr.bf16.mxu0 0
    %553 = vmatpush2.bf16.msra.mxu0 0
    %554 = vmatprep.subr.bf16.mxu0 0
    %555 = vmatpush2.bf16.msra.mxu0 0
    %556 = vmatprep.subr.bf16.mxu0 0
    %557 = vmatpush2.bf16.msra.mxu0 0
    %558 = vmatprep.mubr.bf16.mxu0 0
    %559 = vmatmul.mubr.bf16.gmra.mxu0 %v524
    %v560 = vpop.f32.mrf.mxu0
    %v561 = vadd.f32 %v479, %v560
    %v562 = vpop.f32.mrf.mxu0
    %v563 = vadd.f32 %v483, %v562
    %v564 = vpop.f32.mrf.mxu0
    %v565 = vpop.f32.mrf.mxu0
    %566 = vdwg.mxu0
    %567 = vmatprep.subr.bf16.mxu0 0
    %568 = vmatpush1.bf16.msra.mxu0 0
    %569 = vmatprep.subr.bf16.mxu0 0
    %570 = vmatpush1.bf16.msra.mxu0 0
    %571 = vmatprep.subr.bf16.mxu0 0
    %572 = vmatpush1.bf16.msra.mxu0 0
    %573 = vmatprep.subr.bf16.mxu0 0
    %574 = vmatpush1.bf16.msra.mxu0 0
    %575 = vmatprep.subr.bf16.mxu0 0
    %576 = vmatpush1.bf16.msra.mxu0 0
    %577 = vmatprep.subr.bf16.mxu0 0
    %578 = vmatpush1.bf16.msra.mxu0 0
    %579 = vmatprep.subr.bf16.mxu0 0
    %580 = vmatpush1.bf16.msra.mxu0 %v516
    %581 = vmatprep.subr.bf16.mxu0 0
    %582 = vmatpush1.bf16.msra.mxu0 %v513
    %583 = vmatprep.subr.bf16.mxu0 0
    %584 = vmatpush2.bf16.msra.mxu0 0
    %585 = vmatprep.subr.bf16.mxu0 0
    %586 = vmatpush2.bf16.msra.mxu0 0
    %587 = vmatprep.subr.bf16.mxu0 0
    %588 = vmatpush2.bf16.msra.mxu0 0
    %589 = vmatprep.subr.bf16.mxu0 0
    %590 = vmatpush2.bf16.msra.mxu0 0
    %591 = vmatprep.subr.bf16.mxu0 0
    %592 = vmatpush2.bf16.msra.mxu0 0
    %593 = vmatprep.subr.bf16.mxu0 0
    %594 = vmatpush2.bf16.msra.mxu0 0
    %595 = vmatprep.subr.bf16.mxu0 0
    %596 = vmatpush2.bf16.msra.mxu0 0
    %597 = vmatprep.subr.bf16.mxu0 0
    %598 = vmatpush2.bf16.msra.mxu0 0
    %599 = vmatprep.mubr.bf16.mxu0 0
    %600 = vmatmul.mubr.bf16.gmra.mxu0 %v524
    %v601 = vpop.f32.mrf.mxu0
    %v602 = vadd.f32 %v487, %v601
    %v603 = vpop.f32.mrf.mxu0
    %v604 = vpop.f32.mrf.mxu0
    %v605 = vpop.f32.mrf.mxu0
    %606 = vdwg.mxu0
    %v607 = vpack.c.bf16 %v461, %v461
    %v608 = vld [vmem:[#allocation3] sm:$0xff]
    %v609 = vld [vmem:[#allocation3 + $0x8] sm:$0xf]
    %v610 = vld [vmem:[#allocation3 + $0xc] sm:$0xff]
    %v611 = vld [vmem:[#allocation3 + $0x14] sm:$0xf]
    %v612 = vld [vmem:[#allocation3 + $0x18] sm:$0xff]
    %v613 = vld [vmem:[#allocation3 + $0x20] sm:$0xf]
    %v614 = vld [vmem:[#allocation3 + $0x24] sm:$0xff]
    %v615 = vld [vmem:[#allocation3 + $0x2c] sm:$0xf]
    %v616 = vld [vmem:[#allocation3 + $0x30] sm:$0xff]
    %v617 = vld [vmem:[#allocation3 + $0x38] sm:$0xf]
    %v618 = vld [vmem:[#allocation3 + $0x3c] sm:$0xff]
    %v619 = vld [vmem:[#allocation3 + $0x44] sm:$0xf]
    %v620 = vld [vmem:[#allocation3 + $0x48] sm:$0xff]
    %v621 = vld [vmem:[#allocation3 + $0x50] sm:$0xf]
    %v622 = vld [vmem:[#allocation3 + $0x54] sm:$0xff]
    %v623 = vld [vmem:[#allocation3 + $0x5c] sm:$0xf]
    %v624 = vld [vmem:[#allocation3 + $0x60] sm:$0xff]
    %v625 = vld [vmem:[#allocation3 + $0x68] sm:$0xf]
    %v626 = vld [vmem:[#allocation3 + $0x6c] sm:$0xff]
    %v627 = vld [vmem:[#allocation3 + $0x74] sm:$0xf]
    %v628 = vld [vmem:[#allocation3 + $0x78] sm:$0xff]
    %v629 = vld [vmem:[#allocation3 + $0x80] sm:$0xf]
    %v630 = vld [vmem:[#allocation3 + $0x84] sm:$0xff]
    %v631 = vld [vmem:[#allocation3 + $0x8c] sm:$0xf]
    %v632 = vld [vmem:[#allocation3 + $0x90] sm:$0xff]
    %v633 = vld [vmem:[#allocation3 + $0x98] sm:$0xf]
    %v634 = vld [vmem:[#allocation3 + $0x9c] sm:$0xff]
    %v635 = vld [vmem:[#allocation3 + $0xa4] sm:$0xf]
    %v636 = vld [vmem:[#allocation3 + $0xa8] sm:$0xff]
    %v637 = vld [vmem:[#allocation3 + $0xb0] sm:$0xf]
    %v638 = vld [vmem:[#allocation3 + $0xb4] sm:$0xff]
    %v639 = vld [vmem:[#allocation3 + $0xbc] sm:$0xf]
    %v672 = vunpack.c.l.b16 %v608
    %v673 = vunpack.c.h.b16 %v608
    %v674 = vunpack.c.l.b16 %v609
    %v675 = vunpack.c.l.b16 %v610
    %v676 = vunpack.c.h.b16 %v610
    %v677 = vunpack.c.l.b16 %v611
    %v678 = vunpack.c.l.b16 %v612
    %v679 = vunpack.c.h.b16 %v612
    %v680 = vunpack.c.l.b16 %v613
    %v681 = vunpack.c.l.b16 %v614
    %v682 = vunpack.c.h.b16 %v614
    %v683 = vunpack.c.l.b16 %v615
    %v684 = vunpack.c.l.b16 %v616
    %v685 = vunpack.c.h.b16 %v616
    %v686 = vunpack.c.l.b16 %v617
    %v687 = vunpack.c.l.b16 %v618
    %v688 = vunpack.c.h.b16 %v618
    %v689 = vunpack.c.l.b16 %v619
    %v690 = vunpack.c.l.b16 %v620
    %v691 = vunpack.c.h.b16 %v620
    %v692 = vunpack.c.l.b16 %v621
    %v693 = vunpack.c.l.b16 %v622
    %v694 = vunpack.c.h.b16 %v622
    %v695 = vunpack.c.l.b16 %v623
    %v696 = vunpack.c.l.b16 %v624
    %v697 = vunpack.c.h.b16 %v624
    %v698 = vunpack.c.l.b16 %v625
    %v699 = vunpack.c.l.b16 %v626
    %v700 = vunpack.c.h.b16 %v626
    %v701 = vunpack.c.l.b16 %v627
    %v702 = vunpack.c.l.b16 %v628
    %v703 = vunpack.c.h.b16 %v628
    %v704 = vunpack.c.l.b16 %v629
    %v705 = vunpack.c.l.b16 %v630
    %v706 = vunpack.c.h.b16 %v630
    %v707 = vunpack.c.l.b16 %v631
    %v708 = vunpack.c.l.b16 %v632
    %v709 = vunpack.c.h.b16 %v632
    %v710 = vunpack.c.l.b16 %v633
    %v711 = vunpack.c.l.b16 %v634
    %v712 = vunpack.c.h.b16 %v634
    %v713 = vunpack.c.l.b16 %v635
    %v714 = vunpack.c.l.b16 %v636
    %v715 = vunpack.c.h.b16 %v636
    %v716 = vunpack.c.l.b16 %v637
    %v717 = vunpack.c.l.b16 %v638
    %v718 = vunpack.c.h.b16 %v638
    %v719 = vunpack.c.l.b16 %v639
    %v720 = vpack.c.b16 %v675, %v672
    %v721 = vpack.c.b16 %v676, %v673
    %v722 = vpack.c.b16 %v677, %v674
    %v723 = vpack.c.b16 %v681, %v678
    %v724 = vpack.c.b16 %v682, %v679
    %v725 = vpack.c.b16 %v683, %v680
    %v726 = vpack.c.b16 %v687, %v684
    %v727 = vpack.c.b16 %v688, %v685
    %v728 = vpack.c.b16 %v689, %v686
    %v729 = vpack.c.b16 %v693, %v690
    %v730 = vpack.c.b16 %v694, %v691
    %v731 = vpack.c.b16 %v695, %v692
    %v732 = vpack.c.b16 %v699, %v696
    %v733 = vpack.c.b16 %v700, %v697
    %v734 = vpack.c.b16 %v701, %v698
    %v735 = vpack.c.b16 %v705, %v702
    %v736 = vpack.c.b16 %v706, %v703
    %v737 = vpack.c.b16 %v707, %v704
    %v738 = vpack.c.b16 %v711, %v708
    %v739 = vpack.c.b16 %v712, %v709
    %v740 = vpack.c.b16 %v713, %v710
    %v741 = vpack.c.b16 %v717, %v714
    %v742 = vpack.c.b16 %v718, %v715
    %v743 = vpack.c.b16 %v719, %v716
    %768 = vmatprep.subr.bf16.mxu0 %v742
    %769 = vmatpush1.bf16.msra.mxu0 %v741
    %770 = vmatprep.subr.bf16.mxu0 %v739
    %771 = vmatpush1.bf16.msra.mxu0 %v738
    %772 = vmatprep.subr.bf16.mxu0 %v736
    %773 = vmatpush1.bf16.msra.mxu0 %v735
    %774 = vmatprep.subr.bf16.mxu0 %v733
    %775 = vmatpush1.bf16.msra.mxu0 %v732
    %776 = vmatprep.subr.bf16.mxu0 %v730
    %777 = vmatpush1.bf16.msra.mxu0 %v729
    %778 = vmatprep.subr.bf16.mxu0 %v727
    %779 = vmatpush1.bf16.msra.mxu0 %v726
    %780 = vmatprep.subr.bf16.mxu0 %v724
    %781 = vmatpush1.bf16.msra.mxu0 %v723
    %782 = vmatprep.subr.bf16.mxu0 %v721
    %783 = vmatpush1.bf16.msra.mxu0 %v720
    %784 = vmatprep.subr.bf16.mxu0 0
    %785 = vmatpush2.bf16.msra.mxu0 0
    %786 = vmatprep.subr.bf16.mxu0 0
    %787 = vmatpush2.bf16.msra.mxu0 0
    %788 = vmatprep.subr.bf16.mxu0 0
    %789 = vmatpush2.bf16.msra.mxu0 0
    %790 = vmatprep.subr.bf16.mxu0 0
    %791 = vmatpush2.bf16.msra.mxu0 0
    %792 = vmatprep.subr.bf16.mxu0 0
    %793 = vmatpush2.bf16.msra.mxu0 0
    %794 = vmatprep.subr.bf16.mxu0 0
    %795 = vmatpush2.bf16.msra.mxu0 0
    %796 = vmatprep.subr.bf16.mxu0 0
    %797 = vmatpush2.bf16.msra.mxu0 0
    %798 = vmatprep.subr.bf16.mxu0 0
    %799 = vmatpush2.bf16.msra.mxu0 0
    %800 = vmatprep.mubr.bf16.mxu0 0
    %801 = vmatmul.mubr.bf16.gmra.mxu0 %v607
    %v802 = vpop.f32.mrf.mxu0
    %v803 = vadd.f32 0.0, %v802
    %v804 = vpop.f32.mrf.mxu0
    %v805 = vadd.f32 0.0, %v804
    %v806 = vpop.f32.mrf.mxu0
    %v807 = vpop.f32.mrf.mxu0
    %808 = vdwg.mxu0
    %809 = vmatprep.subr.bf16.mxu0 0
    %810 = vmatpush1.bf16.msra.mxu0 %v743
    %811 = vmatprep.subr.bf16.mxu0 0
    %812 = vmatpush1.bf16.msra.mxu0 %v740
    %813 = vmatprep.subr.bf16.mxu0 0
    %814 = vmatpush1.bf16.msra.mxu0 %v737
    %815 = vmatprep.subr.bf16.mxu0 0
    %816 = vmatpush1.bf16.msra.mxu0 %v734
    %817 = vmatprep.subr.bf16.mxu0 0
    %818 = vmatpush1.bf16.msra.mxu0 %v731
    %819 = vmatprep.subr.bf16.mxu0 0
    %820 = vmatpush1.bf16.msra.mxu0 %v728
    %821 = vmatprep.subr.bf16.mxu0 0
    %822 = vmatpush1.bf16.msra.mxu0 %v725
    %823 = vmatprep.subr.bf16.mxu0 0
    %824 = vmatpush1.bf16.msra.mxu0 %v722
    %825 = vmatprep.subr.bf16.mxu0 0
    %826 = vmatpush2.bf16.msra.mxu0 0
    %827 = vmatprep.subr.bf16.mxu0 0
    %828 = vmatpush2.bf16.msra.mxu0 0
    %829 = vmatprep.subr.bf16.mxu0 0
    %830 = vmatpush2.bf16.msra.mxu0 0
    %831 = vmatprep.subr.bf16.mxu0 0
    %832 = vmatpush2.bf16.msra.mxu0 0
    %833 = vmatprep.subr.bf16.mxu0 0
    %834 = vmatpush2.bf16.msra.mxu0 0
    %835 = vmatprep.subr.bf16.mxu0 0
    %836 = vmatpush2.bf16.msra.mxu0 0
    %837 = vmatprep.subr.bf16.mxu0 0
    %838 = vmatpush2.bf16.msra.mxu0 0
    %839 = vmatprep.subr.bf16.mxu0 0
    %840 = vmatpush2.bf16.msra.mxu0 0
    %841 = vmatprep.mubr.bf16.mxu0 0
    %842 = vmatmul.mubr.bf16.gmra.mxu0 %v607
    %v843 = vpop.f32.mrf.mxu0
    %v844 = vadd.f32 0.0, %v843
    %v845 = vpop.f32.mrf.mxu0
    %v846 = vpop.f32.mrf.mxu0
    %v847 = vpop.f32.mrf.mxu0
    %848 = vdwg.mxu0
    %v849 = vadd.f32 %v561, %v803
    %v850 = vxor.u32 %v849, 2147483648
    %v851 = vmul.f32 %v850, 1.442695
    %v852 = vpow.pop %v851
    %v853 = vadd.f32 %v852, 1.0
    %v854 = vrcp.pop %v853
    %v855 = vmul.f32 1.0, %v854
    %v856 = vadd.f32 %v563, %v805
    %v857 = vxor.u32 %v856, 2147483648
    %v858 = vmul.f32 %v857, 1.442695
    %v859 = vpow.pop %v858
    %v860 = vadd.f32 %v859, 1.0
    %v861 = vrcp.pop %v860
    %v862 = vmul.f32 1.0, %v861
    %v863 = vld [vmem:[%s5] sm:$0x1]
    %v865 = vlaneseq
    %v866 = vshrl.u32 %v865, 7
    %v867 = vsub.s32 0, %v866
    %v868 = vrot.slane %v863, %v867
    %v870 = vadd.f32 %v844, %v868
    %v871 = vmul.f32 %v855, %v870
    %v872 = vadd.f32 %v602, %v871
    %v873 = vtanh.pop %v872
    %v874 = vsub.f32 1.0, %v862
    %v875 = vmul.f32 %v874, %v873
    %v876 = vmul.f32 %v862, %v461
    %v877 = vadd.f32 %v875, %v876
    %s878 = scalar_lea.vmem %s6, 2
    %879 = vst [vmem:[%s878] sm:$0x3] %v877
    %s880 = scalar_lea.vmem %s0, 4
    %v881 = vld [vmem:[%s880] sm:$0x3]
    %v882 = vpack.c.bf16 %v881, %v881
    %v883 = vld [vmem:[%s2] sm:$0xff]
    %v884 = vld [vmem:[%s2 + $0x8] sm:$0xf]
    %v885 = vld [vmem:[%s2 + $0xc] sm:$0xff]
    %v886 = vld [vmem:[%s2 + $0x14] sm:$0xf]
    %v887 = vld [vmem:[%s2 + $0x18] sm:$0xff]
    %v888 = vld [vmem:[%s2 + $0x20] sm:$0xf]
    %v889 = vld [vmem:[%s2 + $0x24] sm:$0xff]
    %v890 = vld [vmem:[%s2 + $0x2c] sm:$0xf]
    %v891 = vld [vmem:[%s4] sm:$0x7]
    %v893 = vlaneseq
    %v894 = vshrl.u32 %v893, 7
    %v895 = vsub.s32 0, %v894
    %v896 = vrot.slane %v891, %v895
    %v897 = vlaneseq
    %v898 = vshrl.u32 %v897, 7
    %v899 = vsub.s32 1, %v898
    %v900 = vrot.slane %v891, %v899
    %v901 = vlaneseq
    %v902 = vshrl.u32 %v901, 7
    %v903 = vsub.s32 2, %v902
    %v904 = vrot.slane %v891, %v903
    %v916 = vunpack.c.l.b16 %v883
    %v917 = vunpack.c.h.b16 %v883
    %v918 = vunpack.c.l.b16 %v884
    %v919 = vunpack.c.l.b16 %v885
    %v920 = vunpack.c.h.b16 %v885
    %v921 = vunpack.c.l.b16 %v886
    %v922 = vunpack.c.l.b16 %v887
    %v923 = vunpack.c.h.b16 %v887
    %v924 = vunpack.c.l.b16 %v888
    %v925 = vunpack.c.l.b16 %v889
    %v926 = vunpack.c.h.b16 %v889
    %v927 = vunpack.c.l.b16 %v890
    %v928 = vpack.c.b16 %v919, %v916
    %v929 = vpack.c.b16 %v920, %v917
    %v930 = vpack.c.b16 %v921, %v918
    %v931 = vpack.c.b16 %v925, %v922
    %v932 = vpack.c.b16 %v926, %v923
    %v933 = vpack.c.b16 %v927, %v924
    %v941 = vsel %vm106, %v882, 0
    %943 = vmatprep.subr.bf16.mxu0 0
    %944 = vmatpush1.bf16.msra.mxu0 0
    %945 = vmatprep.subr.bf16.mxu0 0
    %946 = vmatpush1.bf16.msra.mxu0 0
    %947 = vmatprep.subr.bf16.mxu0 0
    %948 = vmatpush1.bf16.msra.mxu0 0
    %949 = vmatprep.subr.bf16.mxu0 0
    %950 = vmatpush1.bf16.msra.mxu0 0
    %951 = vmatprep.subr.bf16.mxu0 0
    %952 = vmatpush1.bf16.msra.mxu0 0
    %953 = vmatprep.subr.bf16.mxu0 0
    %954 = vmatpush1.bf16.msra.mxu0 0
    %955 = vmatprep.subr.bf16.mxu0 %v932
    %956 = vmatpush1.bf16.msra.mxu0 %v931
    %957 = vmatprep.subr.bf16.mxu0 %v929
    %958 = vmatpush1.bf16.msra.mxu0 %v928
    %959 = vmatprep.subr.bf16.mxu0 0
    %960 = vmatpush2.bf16.msra.mxu0 0
    %961 = vmatprep.subr.bf16.mxu0 0
    %962 = vmatpush2.bf16.msra.mxu0 0
    %963 = vmatprep.subr.bf16.mxu0 0
    %964 = vmatpush2.bf16.msra.mxu0 0
    %965 = vmatprep.subr.bf16.mxu0 0
    %966 = vmatpush2.bf16.msra.mxu0 0
    %967 = vmatprep.subr.bf16.mxu0 0
    %968 = vmatpush2.bf16.msra.mxu0 0
    %969 = vmatprep.subr.bf16.mxu0 0
    %970 = vmatpush2.bf16.msra.mxu0 0
    %971 = vmatprep.subr.bf16.mxu0 0
    %972 = vmatpush2.bf16.msra.mxu0 0
    %973 = vmatprep.subr.bf16.mxu0 0
    %974 = vmatpush2.bf16.msra.mxu0 0
    %975 = vmatprep.mubr.bf16.mxu0 0
    %976 = vmatmul.mubr.bf16.gmra.mxu0 %v941
    %v977 = vpop.f32.mrf.mxu0
    %v978 = vadd.f32 %v896, %v977
    %v979 = vpop.f32.mrf.mxu0
    %v980 = vadd.f32 %v900, %v979
    %v981 = vpop.f32.mrf.mxu0
    %v982 = vpop.f32.mrf.mxu0
    %983 = vdwg.mxu0
    %984 = vmatprep.subr.bf16.mxu0 0
    %985 = vmatpush1.bf16.msra.mxu0 0
    %986 = vmatprep.subr.bf16.mxu0 0
    %987 = vmatpush1.bf16.msra.mxu0 0
    %988 = vmatprep.subr.bf16.mxu0 0
    %989 = vmatpush1.bf16.msra.mxu0 0
    %990 = vmatprep.subr.bf16.mxu0 0
    %991 = vmatpush1.bf16.msra.mxu0 0
    %992 = vmatprep.subr.bf16.mxu0 0
    %993 = vmatpush1.bf16.msra.mxu0 0
    %994 = vmatprep.subr.bf16.mxu0 0
    %995 = vmatpush1.bf16.msra.mxu0 0
    %996 = vmatprep.subr.bf16.mxu0 0
    %997 = vmatpush1.bf16.msra.mxu0 %v933
    %998 = vmatprep.subr.bf16.mxu0 0
    %999 = vmatpush1.bf16.msra.mxu0 %v930
    %1000 = vmatprep.subr.bf16.mxu0 0
    %1001 = vmatpush2.bf16.msra.mxu0 0
    %1002 = vmatprep.subr.bf16.mxu0 0
    %1003 = vmatpush2.bf16.msra.mxu0 0
    %1004 = vmatprep.subr.bf16.mxu0 0
    %1005 = vmatpush2.bf16.msra.mxu0 0
    %1006 = vmatprep.subr.bf16.mxu0 0
    %1007 = vmatpush2.bf16.msra.mxu0 0
    %1008 = vmatprep.subr.bf16.mxu0 0
    %1009 = vmatpush2.bf16.msra.mxu0 0
    %1010 = vmatprep.subr.bf16.mxu0 0
    %1011 = vmatpush2.bf16.msra.mxu0 0
    %1012 = vmatprep.subr.bf16.mxu0 0
    %1013 = vmatpush2.bf16.msra.mxu0 0
    %1014 = vmatprep.subr.bf16.mxu0 0
    %1015 = vmatpush2.bf16.msra.mxu0 0
    %1016 = vmatprep.mubr.bf16.mxu0 0
    %1017 = vmatmul.mubr.bf16.gmra.mxu0 %v941
    %v1018 = vpop.f32.mrf.mxu0
    %v1019 = vadd.f32 %v904, %v1018
    %v1020 = vpop.f32.mrf.mxu0
    %v1021 = vpop.f32.mrf.mxu0
    %v1022 = vpop.f32.mrf.mxu0
    %1023 = vdwg.mxu0
    %v1024 = vpack.c.bf16 %v877, %v877
    %v1025 = vld [vmem:[#allocation3] sm:$0xff]
    %v1026 = vld [vmem:[#allocation3 + $0x8] sm:$0xf]
    %v1027 = vld [vmem:[#allocation3 + $0xc] sm:$0xff]
    %v1028 = vld [vmem:[#allocation3 + $0x14] sm:$0xf]
    %v1029 = vld [vmem:[#allocation3 + $0x18] sm:$0xff]
    %v1030 = vld [vmem:[#allocation3 + $0x20] sm:$0xf]
    %v1031 = vld [vmem:[#allocation3 + $0x24] sm:$0xff]
    %v1032 = vld [vmem:[#allocation3 + $0x2c] sm:$0xf]
    %v1033 = vld [vmem:[#allocation3 + $0x30] sm:$0xff]
    %v1034 = vld [vmem:[#allocation3 + $0x38] sm:$0xf]
    %v1035 = vld [vmem:[#allocation3 + $0x3c] sm:$0xff]
    %v1036 = vld [vmem:[#allocation3 + $0x44] sm:$0xf]
    %v1037 = vld [vmem:[#allocation3 + $0x48] sm:$0xff]
    %v1038 = vld [vmem:[#allocation3 + $0x50] sm:$0xf]
    %v1039 = vld [vmem:[#allocation3 + $0x54] sm:$0xff]
    %v1040 = vld [vmem:[#allocation3 + $0x5c] sm:$0xf]
    %v1041 = vld [vmem:[#allocation3 + $0x60] sm:$0xff]
    %v1042 = vld [vmem:[#allocation3 + $0x68] sm:$0xf]
    %v1043 = vld [vmem:[#allocation3 + $0x6c] sm:$0xff]
    %v1044 = vld [vmem:[#allocation3 + $0x74] sm:$0xf]
    %v1045 = vld [vmem:[#allocation3 + $0x78] sm:$0xff]
    %v1046 = vld [vmem:[#allocation3 + $0x80] sm:$0xf]
    %v1047 = vld [vmem:[#allocation3 + $0x84] sm:$0xff]
    %v1048 = vld [vmem:[#allocation3 + $0x8c] sm:$0xf]
    %v1049 = vld [vmem:[#allocation3 + $0x90] sm:$0xff]
    %v1050 = vld [vmem:[#allocation3 + $0x98] sm:$0xf]
    %v1051 = vld [vmem:[#allocation3 + $0x9c] sm:$0xff]
    %v1052 = vld [vmem:[#allocation3 + $0xa4] sm:$0xf]
    %v1053 = vld [vmem:[#allocation3 + $0xa8] sm:$0xff]
    %v1054 = vld [vmem:[#allocation3 + $0xb0] sm:$0xf]
    %v1055 = vld [vmem:[#allocation3 + $0xb4] sm:$0xff]
    %v1056 = vld [vmem:[#allocation3 + $0xbc] sm:$0xf]
    %v1089 = vunpack.c.l.b16 %v1025
    %v1090 = vunpack.c.h.b16 %v1025
    %v1091 = vunpack.c.l.b16 %v1026
    %v1092 = vunpack.c.l.b16 %v1027
    %v1093 = vunpack.c.h.b16 %v1027
    %v1094 = vunpack.c.l.b16 %v1028
    %v1095 = vunpack.c.l.b16 %v1029
    %v1096 = vunpack.c.h.b16 %v1029
    %v1097 = vunpack.c.l.b16 %v1030
    %v1098 = vunpack.c.l.b16 %v1031
    %v1099 = vunpack.c.h.b16 %v1031
    %v1100 = vunpack.c.l.b16 %v1032
    %v1101 = vunpack.c.l.b16 %v1033
    %v1102 = vunpack.c.h.b16 %v1033
    %v1103 = vunpack.c.l.b16 %v1034
    %v1104 = vunpack.c.l.b16 %v1035
    %v1105 = vunpack.c.h.b16 %v1035
    %v1106 = vunpack.c.l.b16 %v1036
    %v1107 = vunpack.c.l.b16 %v1037
    %v1108 = vunpack.c.h.b16 %v1037
    %v1109 = vunpack.c.l.b16 %v1038
    %v1110 = vunpack.c.l.b16 %v1039
    %v1111 = vunpack.c.h.b16 %v1039
    %v1112 = vunpack.c.l.b16 %v1040
    %v1113 = vunpack.c.l.b16 %v1041
    %v1114 = vunpack.c.h.b16 %v1041
    %v1115 = vunpack.c.l.b16 %v1042
    %v1116 = vunpack.c.l.b16 %v1043
    %v1117 = vunpack.c.h.b16 %v1043
    %v1118 = vunpack.c.l.b16 %v1044
    %v1119 = vunpack.c.l.b16 %v1045
    %v1120 = vunpack.c.h.b16 %v1045
    %v1121 = vunpack.c.l.b16 %v1046
    %v1122 = vunpack.c.l.b16 %v1047
    %v1123 = vunpack.c.h.b16 %v1047
    %v1124 = vunpack.c.l.b16 %v1048
    %v1125 = vunpack.c.l.b16 %v1049
    %v1126 = vunpack.c.h.b16 %v1049
    %v1127 = vunpack.c.l.b16 %v1050
    %v1128 = vunpack.c.l.b16 %v1051
    %v1129 = vunpack.c.h.b16 %v1051
    %v1130 = vunpack.c.l.b16 %v1052
    %v1131 = vunpack.c.l.b16 %v1053
    %v1132 = vunpack.c.h.b16 %v1053
    %v1133 = vunpack.c.l.b16 %v1054
    %v1134 = vunpack.c.l.b16 %v1055
    %v1135 = vunpack.c.h.b16 %v1055
    %v1136 = vunpack.c.l.b16 %v1056
    %v1137 = vpack.c.b16 %v1092, %v1089
    %v1138 = vpack.c.b16 %v1093, %v1090
    %v1139 = vpack.c.b16 %v1094, %v1091
    %v1140 = vpack.c.b16 %v1098, %v1095
    %v1141 = vpack.c.b16 %v1099, %v1096
    %v1142 = vpack.c.b16 %v1100, %v1097
    %v1143 = vpack.c.b16 %v1104, %v1101
    %v1144 = vpack.c.b16 %v1105, %v1102
    %v1145 = vpack.c.b16 %v1106, %v1103
    %v1146 = vpack.c.b16 %v1110, %v1107
    %v1147 = vpack.c.b16 %v1111, %v1108
    %v1148 = vpack.c.b16 %v1112, %v1109
    %v1149 = vpack.c.b16 %v1116, %v1113
    %v1150 = vpack.c.b16 %v1117, %v1114
    %v1151 = vpack.c.b16 %v1118, %v1115
    %v1152 = vpack.c.b16 %v1122, %v1119
    %v1153 = vpack.c.b16 %v1123, %v1120
    %v1154 = vpack.c.b16 %v1124, %v1121
    %v1155 = vpack.c.b16 %v1128, %v1125
    %v1156 = vpack.c.b16 %v1129, %v1126
    %v1157 = vpack.c.b16 %v1130, %v1127
    %v1158 = vpack.c.b16 %v1134, %v1131
    %v1159 = vpack.c.b16 %v1135, %v1132
    %v1160 = vpack.c.b16 %v1136, %v1133
    %1185 = vmatprep.subr.bf16.mxu0 %v1159
    %1186 = vmatpush1.bf16.msra.mxu0 %v1158
    %1187 = vmatprep.subr.bf16.mxu0 %v1156
    %1188 = vmatpush1.bf16.msra.mxu0 %v1155
    %1189 = vmatprep.subr.bf16.mxu0 %v1153
    %1190 = vmatpush1.bf16.msra.mxu0 %v1152
    %1191 = vmatprep.subr.bf16.mxu0 %v1150
    %1192 = vmatpush1.bf16.msra.mxu0 %v1149
    %1193 = vmatprep.subr.bf16.mxu0 %v1147
    %1194 = vmatpush1.bf16.msra.mxu0 %v1146
    %1195 = vmatprep.subr.bf16.mxu0 %v1144
    %1196 = vmatpush1.bf16.msra.mxu0 %v1143
    %1197 = vmatprep.subr.bf16.mxu0 %v1141
    %1198 = vmatpush1.bf16.msra.mxu0 %v1140
    %1199 = vmatprep.subr.bf16.mxu0 %v1138
    %1200 = vmatpush1.bf16.msra.mxu0 %v1137
    %1201 = vmatprep.subr.bf16.mxu0 0
    %1202 = vmatpush2.bf16.msra.mxu0 0
    %1203 = vmatprep.subr.bf16.mxu0 0
    %1204 = vmatpush2.bf16.msra.mxu0 0
    %1205 = vmatprep.subr.bf16.mxu0 0
    %1206 = vmatpush2.bf16.msra.mxu0 0
    %1207 = vmatprep.subr.bf16.mxu0 0
    %1208 = vmatpush2.bf16.msra.mxu0 0
    %1209 = vmatprep.subr.bf16.mxu0 0
    %1210 = vmatpush2.bf16.msra.mxu0 0
    %1211 = vmatprep.subr.bf16.mxu0 0
    %1212 = vmatpush2.bf16.msra.mxu0 0
    %1213 = vmatprep.subr.bf16.mxu0 0
    %1214 = vmatpush2.bf16.msra.mxu0 0
    %1215 = vmatprep.subr.bf16.mxu0 0
    %1216 = vmatpush2.bf16.msra.mxu0 0
    %1217 = vmatprep.mubr.bf16.mxu0 0
    %1218 = vmatmul.mubr.bf16.gmra.mxu0 %v1024
    %v1219 = vpop.f32.mrf.mxu0
    %v1220 = vadd.f32 0.0, %v1219
    %v1221 = vpop.f32.mrf.mxu0
    %v1222 = vadd.f32 0.0, %v1221
    %v1223 = vpop.f32.mrf.mxu0
    %v1224 = vpop.f32.mrf.mxu0
    %1225 = vdwg.mxu0
    %1226 = vmatprep.subr.bf16.mxu0 0
    %1227 = vmatpush1.bf16.msra.mxu0 %v1160
    %1228 = vmatprep.subr.bf16.mxu0 0
    %1229 = vmatpush1.bf16.msra.mxu0 %v1157
    %1230 = vmatprep.subr.bf16.mxu0 0
    %1231 = vmatpush1.bf16.msra.mxu0 %v1154
    %1232 = vmatprep.subr.bf16.mxu0 0
    %1233 = vmatpush1.bf16.msra.mxu0 %v1151
    %1234 = vmatprep.subr.bf16.mxu0 0
    %1235 = vmatpush1.bf16.msra.mxu0 %v1148
    %1236 = vmatprep.subr.bf16.mxu0 0
    %1237 = vmatpush1.bf16.msra.mxu0 %v1145
    %1238 = vmatprep.subr.bf16.mxu0 0
    %1239 = vmatpush1.bf16.msra.mxu0 %v1142
    %1240 = vmatprep.subr.bf16.mxu0 0
    %1241 = vmatpush1.bf16.msra.mxu0 %v1139
    %1242 = vmatprep.subr.bf16.mxu0 0
    %1243 = vmatpush2.bf16.msra.mxu0 0
    %1244 = vmatprep.subr.bf16.mxu0 0
    %1245 = vmatpush2.bf16.msra.mxu0 0
    %1246 = vmatprep.subr.bf16.mxu0 0
    %1247 = vmatpush2.bf16.msra.mxu0 0
    %1248 = vmatprep.subr.bf16.mxu0 0
    %1249 = vmatpush2.bf16.msra.mxu0 0
    %1250 = vmatprep.subr.bf16.mxu0 0
    %1251 = vmatpush2.bf16.msra.mxu0 0
    %1252 = vmatprep.subr.bf16.mxu0 0
    %1253 = vmatpush2.bf16.msra.mxu0 0
    %1254 = vmatprep.subr.bf16.mxu0 0
    %1255 = vmatpush2.bf16.msra.mxu0 0
    %1256 = vmatprep.subr.bf16.mxu0 0
    %1257 = vmatpush2.bf16.msra.mxu0 0
    %1258 = vmatprep.mubr.bf16.mxu0 0
    %1259 = vmatmul.mubr.bf16.gmra.mxu0 %v1024
    %v1260 = vpop.f32.mrf.mxu0
    %v1261 = vadd.f32 0.0, %v1260
    %v1262 = vpop.f32.mrf.mxu0
    %v1263 = vpop.f32.mrf.mxu0
    %v1264 = vpop.f32.mrf.mxu0
    %1265 = vdwg.mxu0
    %v1266 = vadd.f32 %v978, %v1220
    %v1267 = vxor.u32 %v1266, 2147483648
    %v1268 = vmul.f32 %v1267, 1.442695
    %v1269 = vpow.pop %v1268
    %v1270 = vadd.f32 %v1269, 1.0
    %v1271 = vrcp.pop %v1270
    %v1272 = vmul.f32 1.0, %v1271
    %v1273 = vadd.f32 %v980, %v1222
    %v1274 = vxor.u32 %v1273, 2147483648
    %v1275 = vmul.f32 %v1274, 1.442695
    %v1276 = vpow.pop %v1275
    %v1277 = vadd.f32 %v1276, 1.0
    %v1278 = vrcp.pop %v1277
    %v1279 = vmul.f32 1.0, %v1278
    %v1280 = vld [vmem:[%s5] sm:$0x1]
    %v1282 = vlaneseq
    %v1283 = vshrl.u32 %v1282, 7
    %v1284 = vsub.s32 0, %v1283
    %v1285 = vrot.slane %v1280, %v1284
    %v1287 = vadd.f32 %v1261, %v1285
    %v1288 = vmul.f32 %v1272, %v1287
    %v1289 = vadd.f32 %v1019, %v1288
    %v1290 = vtanh.pop %v1289
    %v1291 = vsub.f32 1.0, %v1279
    %v1292 = vmul.f32 %v1291, %v1290
    %v1293 = vmul.f32 %v1279, %v877
    %v1294 = vadd.f32 %v1292, %v1293
    %s1295 = scalar_lea.vmem %s6, 4
    %1296 = vst [vmem:[%s1295] sm:$0x3] %v1294
    %s1297 = scalar_lea.vmem %s0, 6
    %v1298 = vld [vmem:[%s1297] sm:$0x3]
    %v1299 = vpack.c.bf16 %v1298, %v1298
    %v1300 = vld [vmem:[%s2] sm:$0xff]
    %v1301 = vld [vmem:[%s2 + $0x8] sm:$0xf]
    %v1302 = vld [vmem:[%s2 + $0xc] sm:$0xff]
    %v1303 = vld [vmem:[%s2 + $0x14] sm:$0xf]
    %v1304 = vld [vmem:[%s2 + $0x18] sm:$0xff]
    %v1305 = vld [vmem:[%s2 + $0x20] sm:$0xf]
    %v1306 = vld [vmem:[%s2 + $0x24] sm:$0xff]
    %v1307 = vld [vmem:[%s2 + $0x2c] sm:$0xf]
    %v1308 = vld [vmem:[%s4] sm:$0x7]
    %v1310 = vlaneseq
    %v1311 = vshrl.u32 %v1310, 7
    %v1312 = vsub.s32 0, %v1311
    %v1313 = vrot.slane %v1308, %v1312
    %v1314 = vlaneseq
    %v1315 = vshrl.u32 %v1314, 7
    %v1316 = vsub.s32 1, %v1315
    %v1317 = vrot.slane %v1308, %v1316
    %v1318 = vlaneseq
    %v1319 = vshrl.u32 %v1318, 7
    %v1320 = vsub.s32 2, %v1319
    %v1321 = vrot.slane %v1308, %v1320
    %v1333 = vunpack.c.l.b16 %v1300
    %v1334 = vunpack.c.h.b16 %v1300
    %v1335 = vunpack.c.l.b16 %v1301
    %v1336 = vunpack.c.l.b16 %v1302
    %v1337 = vunpack.c.h.b16 %v1302
    %v1338 = vunpack.c.l.b16 %v1303
    %v1339 = vunpack.c.l.b16 %v1304
    %v1340 = vunpack.c.h.b16 %v1304
    %v1341 = vunpack.c.l.b16 %v1305
    %v1342 = vunpack.c.l.b16 %v1306
    %v1343 = vunpack.c.h.b16 %v1306
    %v1344 = vunpack.c.l.b16 %v1307
    %v1345 = vpack.c.b16 %v1336, %v1333
    %v1346 = vpack.c.b16 %v1337, %v1334
    %v1347 = vpack.c.b16 %v1338, %v1335
    %v1348 = vpack.c.b16 %v1342, %v1339
    %v1349 = vpack.c.b16 %v1343, %v1340
    %v1350 = vpack.c.b16 %v1344, %v1341
    %v1358 = vsel %vm106, %v1299, 0
    %1360 = vmatprep.subr.bf16.mxu0 0
    %1361 = vmatpush1.bf16.msra.mxu0 0
    %1362 = vmatprep.subr.bf16.mxu0 0
    %1363 = vmatpush1.bf16.msra.mxu0 0
    %1364 = vmatprep.subr.bf16.mxu0 0
    %1365 = vmatpush1.bf16.msra.mxu0 0
    %1366 = vmatprep.subr.bf16.mxu0 0
    %1367 = vmatpush1.bf16.msra.mxu0 0
    %1368 = vmatprep.subr.bf16.mxu0 0
    %1369 = vmatpush1.bf16.msra.mxu0 0
    %1370 = vmatprep.subr.bf16.mxu0 0
    %1371 = vmatpush1.bf16.msra.mxu0 0
    %1372 = vmatprep.subr.bf16.mxu0 %v1349
    %1373 = vmatpush1.bf16.msra.mxu0 %v1348
    %1374 = vmatprep.subr.bf16.mxu0 %v1346
    %1375 = vmatpush1.bf16.msra.mxu0 %v1345
    %1376 = vmatprep.subr.bf16.mxu0 0
    %1377 = vmatpush2.bf16.msra.mxu0 0
    %1378 = vmatprep.subr.bf16.mxu0 0
    %1379 = vmatpush2.bf16.msra.mxu0 0
    %1380 = vmatprep.subr.bf16.mxu0 0
    %1381 = vmatpush2.bf16.msra.mxu0 0
    %1382 = vmatprep.subr.bf16.mxu0 0
    %1383 = vmatpush2.bf16.msra.mxu0 0
    %1384 = vmatprep.subr.bf16.mxu0 0
    %1385 = vmatpush2.bf16.msra.mxu0 0
    %1386 = vmatprep.subr.bf16.mxu0 0
    %1387 = vmatpush2.bf16.msra.mxu0 0
    %1388 = vmatprep.subr.bf16.mxu0 0
    %1389 = vmatpush2.bf16.msra.mxu0 0
    %1390 = vmatprep.subr.bf16.mxu0 0
    %1391 = vmatpush2.bf16.msra.mxu0 0
    %1392 = vmatprep.mubr.bf16.mxu0 0
    %1393 = vmatmul.mubr.bf16.gmra.mxu0 %v1358
    %v1394 = vpop.f32.mrf.mxu0
    %v1395 = vadd.f32 %v1313, %v1394
    %v1396 = vpop.f32.mrf.mxu0
    %v1397 = vadd.f32 %v1317, %v1396
    %v1398 = vpop.f32.mrf.mxu0
    %v1399 = vpop.f32.mrf.mxu0
    %1400 = vdwg.mxu0
    %1401 = vmatprep.subr.bf16.mxu0 0
    %1402 = vmatpush1.bf16.msra.mxu0 0
    %1403 = vmatprep.subr.bf16.mxu0 0
    %1404 = vmatpush1.bf16.msra.mxu0 0
    %1405 = vmatprep.subr.bf16.mxu0 0
    %1406 = vmatpush1.bf16.msra.mxu0 0
    %1407 = vmatprep.subr.bf16.mxu0 0
    %1408 = vmatpush1.bf16.msra.mxu0 0
    %1409 = vmatprep.subr.bf16.mxu0 0
    %1410 = vmatpush1.bf16.msra.mxu0 0
    %1411 = vmatprep.subr.bf16.mxu0 0
    %1412 = vmatpush1.bf16.msra.mxu0 0
    %1413 = vmatprep.subr.bf16.mxu0 0
    %1414 = vmatpush1.bf16.msra.mxu0 %v1350
    %1415 = vmatprep.subr.bf16.mxu0 0
    %1416 = vmatpush1.bf16.msra.mxu0 %v1347
    %1417 = vmatprep.subr.bf16.mxu0 0
    %1418 = vmatpush2.bf16.msra.mxu0 0
    %1419 = vmatprep.subr.bf16.mxu0 0
    %1420 = vmatpush2.bf16.msra.mxu0 0
    %1421 = vmatprep.subr.bf16.mxu0 0
    %1422 = vmatpush2.bf16.msra.mxu0 0
    %1423 = vmatprep.subr.bf16.mxu0 0
    %1424 = vmatpush2.bf16.msra.mxu0 0
    %1425 = vmatprep.subr.bf16.mxu0 0
    %1426 = vmatpush2.bf16.msra.mxu0 0
    %1427 = vmatprep.subr.bf16.mxu0 0
    %1428 = vmatpush2.bf16.msra.mxu0 0
    %1429 = vmatprep.subr.bf16.mxu0 0
    %1430 = vmatpush2.bf16.msra.mxu0 0
    %1431 = vmatprep.subr.bf16.mxu0 0
    %1432 = vmatpush2.bf16.msra.mxu0 0
    %1433 = vmatprep.mubr.bf16.mxu0 0
    %1434 = vmatmul.mubr.bf16.gmra.mxu0 %v1358
    %v1435 = vpop.f32.mrf.mxu0
    %v1436 = vadd.f32 %v1321, %v1435
    %v1437 = vpop.f32.mrf.mxu0
    %v1438 = vpop.f32.mrf.mxu0
    %v1439 = vpop.f32.mrf.mxu0
    %1440 = vdwg.mxu0
    %v1441 = vpack.c.bf16 %v1294, %v1294
    %v1442 = vld [vmem:[#allocation3] sm:$0xff]
    %v1443 = vld [vmem:[#allocation3 + $0x8] sm:$0xf]
    %v1444 = vld [vmem:[#allocation3 + $0xc] sm:$0xff]
    %v1445 = vld [vmem:[#allocation3 + $0x14] sm:$0xf]
    %v1446 = vld [vmem:[#allocation3 + $0x18] sm:$0xff]
    %v1447 = vld [vmem:[#allocation3 + $0x20] sm:$0xf]
    %v1448 = vld [vmem:[#allocation3 + $0x24] sm:$0xff]
    %v1449 = vld [vmem:[#allocation3 + $0x2c] sm:$0xf]
    %v1450 = vld [vmem:[#allocation3 + $0x30] sm:$0xff]
    %v1451 = vld [vmem:[#allocation3 + $0x38] sm:$0xf]
    %v1452 = vld [vmem:[#allocation3 + $0x3c] sm:$0xff]
    %v1453 = vld [vmem:[#allocation3 + $0x44] sm:$0xf]
    %v1454 = vld [vmem:[#allocation3 + $0x48] sm:$0xff]
    %v1455 = vld [vmem:[#allocation3 + $0x50] sm:$0xf]
    %v1456 = vld [vmem:[#allocation3 + $0x54] sm:$0xff]
    %v1457 = vld [vmem:[#allocation3 + $0x5c] sm:$0xf]
    %v1458 = vld [vmem:[#allocation3 + $0x60] sm:$0xff]
    %v1459 = vld [vmem:[#allocation3 + $0x68] sm:$0xf]
    %v1460 = vld [vmem:[#allocation3 + $0x6c] sm:$0xff]
    %v1461 = vld [vmem:[#allocation3 + $0x74] sm:$0xf]
    %v1462 = vld [vmem:[#allocation3 + $0x78] sm:$0xff]
    %v1463 = vld [vmem:[#allocation3 + $0x80] sm:$0xf]
    %v1464 = vld [vmem:[#allocation3 + $0x84] sm:$0xff]
    %v1465 = vld [vmem:[#allocation3 + $0x8c] sm:$0xf]
    %v1466 = vld [vmem:[#allocation3 + $0x90] sm:$0xff]
    %v1467 = vld [vmem:[#allocation3 + $0x98] sm:$0xf]
    %v1468 = vld [vmem:[#allocation3 + $0x9c] sm:$0xff]
    %v1469 = vld [vmem:[#allocation3 + $0xa4] sm:$0xf]
    %v1470 = vld [vmem:[#allocation3 + $0xa8] sm:$0xff]
    %v1471 = vld [vmem:[#allocation3 + $0xb0] sm:$0xf]
    %v1472 = vld [vmem:[#allocation3 + $0xb4] sm:$0xff]
    %v1473 = vld [vmem:[#allocation3 + $0xbc] sm:$0xf]
    %v1506 = vunpack.c.l.b16 %v1442
    %v1507 = vunpack.c.h.b16 %v1442
    %v1508 = vunpack.c.l.b16 %v1443
    %v1509 = vunpack.c.l.b16 %v1444
    %v1510 = vunpack.c.h.b16 %v1444
    %v1511 = vunpack.c.l.b16 %v1445
    %v1512 = vunpack.c.l.b16 %v1446
    %v1513 = vunpack.c.h.b16 %v1446
    %v1514 = vunpack.c.l.b16 %v1447
    %v1515 = vunpack.c.l.b16 %v1448
    %v1516 = vunpack.c.h.b16 %v1448
    %v1517 = vunpack.c.l.b16 %v1449
    %v1518 = vunpack.c.l.b16 %v1450
    %v1519 = vunpack.c.h.b16 %v1450
    %v1520 = vunpack.c.l.b16 %v1451
    %v1521 = vunpack.c.l.b16 %v1452
    %v1522 = vunpack.c.h.b16 %v1452
    %v1523 = vunpack.c.l.b16 %v1453
    %v1524 = vunpack.c.l.b16 %v1454
    %v1525 = vunpack.c.h.b16 %v1454
    %v1526 = vunpack.c.l.b16 %v1455
    %v1527 = vunpack.c.l.b16 %v1456
    %v1528 = vunpack.c.h.b16 %v1456
    %v1529 = vunpack.c.l.b16 %v1457
    %v1530 = vunpack.c.l.b16 %v1458
    %v1531 = vunpack.c.h.b16 %v1458
    %v1532 = vunpack.c.l.b16 %v1459
    %v1533 = vunpack.c.l.b16 %v1460
    %v1534 = vunpack.c.h.b16 %v1460
    %v1535 = vunpack.c.l.b16 %v1461
    %v1536 = vunpack.c.l.b16 %v1462
    %v1537 = vunpack.c.h.b16 %v1462
    %v1538 = vunpack.c.l.b16 %v1463
    %v1539 = vunpack.c.l.b16 %v1464
    %v1540 = vunpack.c.h.b16 %v1464
    %v1541 = vunpack.c.l.b16 %v1465
    %v1542 = vunpack.c.l.b16 %v1466
    %v1543 = vunpack.c.h.b16 %v1466
    %v1544 = vunpack.c.l.b16 %v1467
    %v1545 = vunpack.c.l.b16 %v1468
    %v1546 = vunpack.c.h.b16 %v1468
    %v1547 = vunpack.c.l.b16 %v1469
    %v1548 = vunpack.c.l.b16 %v1470
    %v1549 = vunpack.c.h.b16 %v1470
    %v1550 = vunpack.c.l.b16 %v1471
    %v1551 = vunpack.c.l.b16 %v1472
    %v1552 = vunpack.c.h.b16 %v1472
    %v1553 = vunpack.c.l.b16 %v1473
    %v1554 = vpack.c.b16 %v1509, %v1506
    %v1555 = vpack.c.b16 %v1510, %v1507
    %v1556 = vpack.c.b16 %v1511, %v1508
    %v1557 = vpack.c.b16 %v1515, %v1512
    %v1558 = vpack.c.b16 %v1516, %v1513
    %v1559 = vpack.c.b16 %v1517, %v1514
    %v1560 = vpack.c.b16 %v1521, %v1518
    %v1561 = vpack.c.b16 %v1522, %v1519
    %v1562 = vpack.c.b16 %v1523, %v1520
    %v1563 = vpack.c.b16 %v1527, %v1524
    %v1564 = vpack.c.b16 %v1528, %v1525
    %v1565 = vpack.c.b16 %v1529, %v1526
    %v1566 = vpack.c.b16 %v1533, %v1530
    %v1567 = vpack.c.b16 %v1534, %v1531
    %v1568 = vpack.c.b16 %v1535, %v1532
    %v1569 = vpack.c.b16 %v1539, %v1536
    %v1570 = vpack.c.b16 %v1540, %v1537
    %v1571 = vpack.c.b16 %v1541, %v1538
    %v1572 = vpack.c.b16 %v1545, %v1542
    %v1573 = vpack.c.b16 %v1546, %v1543
    %v1574 = vpack.c.b16 %v1547, %v1544
    %v1575 = vpack.c.b16 %v1551, %v1548
    %v1576 = vpack.c.b16 %v1552, %v1549
    %v1577 = vpack.c.b16 %v1553, %v1550
    %1602 = vmatprep.subr.bf16.mxu0 %v1576
    %1603 = vmatpush1.bf16.msra.mxu0 %v1575
    %1604 = vmatprep.subr.bf16.mxu0 %v1573
    %1605 = vmatpush1.bf16.msra.mxu0 %v1572
    %1606 = vmatprep.subr.bf16.mxu0 %v1570
    %1607 = vmatpush1.bf16.msra.mxu0 %v1569
    %1608 = vmatprep.subr.bf16.mxu0 %v1567
    %1609 = vmatpush1.bf16.msra.mxu0 %v1566
    %1610 = vmatprep.subr.bf16.mxu0 %v1564
    %1611 = vmatpush1.bf16.msra.mxu0 %v1563
    %1612 = vmatprep.subr.bf16.mxu0 %v1561
    %1613 = vmatpush1.bf16.msra.mxu0 %v1560
    %1614 = vmatprep.subr.bf16.mxu0 %v1558
    %1615 = vmatpush1.bf16.msra.mxu0 %v1557
    %1616 = vmatprep.subr.bf16.mxu0 %v1555
    %1617 = vmatpush1.bf16.msra.mxu0 %v1554
    %1618 = vmatprep.subr.bf16.mxu0 0
    %1619 = vmatpush2.bf16.msra.mxu0 0
    %1620 = vmatprep.subr.bf16.mxu0 0
    %1621 = vmatpush2.bf16.msra.mxu0 0
    %1622 = vmatprep.subr.bf16.mxu0 0
    %1623 = vmatpush2.bf16.msra.mxu0 0
    %1624 = vmatprep.subr.bf16.mxu0 0
    %1625 = vmatpush2.bf16.msra.mxu0 0
    %1626 = vmatprep.subr.bf16.mxu0 0
    %1627 = vmatpush2.bf16.msra.mxu0 0
    %1628 = vmatprep.subr.bf16.mxu0 0
    %1629 = vmatpush2.bf16.msra.mxu0 0
    %1630 = vmatprep.subr.bf16.mxu0 0
    %1631 = vmatpush2.bf16.msra.mxu0 0
    %1632 = vmatprep.subr.bf16.mxu0 0
    %1633 = vmatpush2.bf16.msra.mxu0 0
    %1634 = vmatprep.mubr.bf16.mxu0 0
    %1635 = vmatmul.mubr.bf16.gmra.mxu0 %v1441
    %v1636 = vpop.f32.mrf.mxu0
    %v1637 = vadd.f32 0.0, %v1636
    %v1638 = vpop.f32.mrf.mxu0
    %v1639 = vadd.f32 0.0, %v1638
    %v1640 = vpop.f32.mrf.mxu0
    %v1641 = vpop.f32.mrf.mxu0
    %1642 = vdwg.mxu0
    %1643 = vmatprep.subr.bf16.mxu0 0
    %1644 = vmatpush1.bf16.msra.mxu0 %v1577
    %1645 = vmatprep.subr.bf16.mxu0 0
    %1646 = vmatpush1.bf16.msra.mxu0 %v1574
    %1647 = vmatprep.subr.bf16.mxu0 0
    %1648 = vmatpush1.bf16.msra.mxu0 %v1571
    %1649 = vmatprep.subr.bf16.mxu0 0
    %1650 = vmatpush1.bf16.msra.mxu0 %v1568
    %1651 = vmatprep.subr.bf16.mxu0 0
    %1652 = vmatpush1.bf16.msra.mxu0 %v1565
    %1653 = vmatprep.subr.bf16.mxu0 0
    %1654 = vmatpush1.bf16.msra.mxu0 %v1562
    %1655 = vmatprep.subr.bf16.mxu0 0
    %1656 = vmatpush1.bf16.msra.mxu0 %v1559
    %1657 = vmatprep.subr.bf16.mxu0 0
    %1658 = vmatpush1.bf16.msra.mxu0 %v1556
    %1659 = vmatprep.subr.bf16.mxu0 0
    %1660 = vmatpush2.bf16.msra.mxu0 0
    %1661 = vmatprep.subr.bf16.mxu0 0
    %1662 = vmatpush2.bf16.msra.mxu0 0
    %1663 = vmatprep.subr.bf16.mxu0 0
    %1664 = vmatpush2.bf16.msra.mxu0 0
    %1665 = vmatprep.subr.bf16.mxu0 0
    %1666 = vmatpush2.bf16.msra.mxu0 0
    %1667 = vmatprep.subr.bf16.mxu0 0
    %1668 = vmatpush2.bf16.msra.mxu0 0
    %1669 = vmatprep.subr.bf16.mxu0 0
    %1670 = vmatpush2.bf16.msra.mxu0 0
    %1671 = vmatprep.subr.bf16.mxu0 0
    %1672 = vmatpush2.bf16.msra.mxu0 0
    %1673 = vmatprep.subr.bf16.mxu0 0
    %1674 = vmatpush2.bf16.msra.mxu0 0
    %1675 = vmatprep.mubr.bf16.mxu0 0
    %1676 = vmatmul.mubr.bf16.gmra.mxu0 %v1441
    %v1677 = vpop.f32.mrf.mxu0
    %v1678 = vadd.f32 0.0, %v1677
    %v1679 = vpop.f32.mrf.mxu0
    %v1680 = vpop.f32.mrf.mxu0
    %v1681 = vpop.f32.mrf.mxu0
    %1682 = vdwg.mxu0
    %v1683 = vadd.f32 %v1395, %v1637
    %v1684 = vxor.u32 %v1683, 2147483648
    %v1685 = vmul.f32 %v1684, 1.442695
    %v1686 = vpow.pop %v1685
    %v1687 = vadd.f32 %v1686, 1.0
    %v1688 = vrcp.pop %v1687
    %v1689 = vmul.f32 1.0, %v1688
    %v1690 = vadd.f32 %v1397, %v1639
    %v1691 = vxor.u32 %v1690, 2147483648
    %v1692 = vmul.f32 %v1691, 1.442695
    %v1693 = vpow.pop %v1692
    %v1694 = vadd.f32 %v1693, 1.0
    %v1695 = vrcp.pop %v1694
    %v1696 = vmul.f32 1.0, %v1695
    %v1697 = vld [vmem:[%s5] sm:$0x1]
    %v1699 = vlaneseq
    %v1700 = vshrl.u32 %v1699, 7
    %v1701 = vsub.s32 0, %v1700
    %v1702 = vrot.slane %v1697, %v1701
    %v1704 = vadd.f32 %v1678, %v1702
    %v1705 = vmul.f32 %v1689, %v1704
    %v1706 = vadd.f32 %v1436, %v1705
    %v1707 = vtanh.pop %v1706
    %v1708 = vsub.f32 1.0, %v1696
    %v1709 = vmul.f32 %v1708, %v1707
    %v1710 = vmul.f32 %v1696, %v1294
    %v1711 = vadd.f32 %v1709, %v1710
    %s1712 = scalar_lea.vmem %s6, 6
    %1713 = vst [vmem:[%s1712] sm:$0x3] %v1711
    %s1714 = scalar_lea.vmem %s0, 8
    %v1715 = vld [vmem:[%s1714] sm:$0x3]
    %v1716 = vpack.c.bf16 %v1715, %v1715
    %v1717 = vld [vmem:[%s2] sm:$0xff]
    %v1718 = vld [vmem:[%s2 + $0x8] sm:$0xf]
    %v1719 = vld [vmem:[%s2 + $0xc] sm:$0xff]
    %v1720 = vld [vmem:[%s2 + $0x14] sm:$0xf]
    %v1721 = vld [vmem:[%s2 + $0x18] sm:$0xff]
    %v1722 = vld [vmem:[%s2 + $0x20] sm:$0xf]
    %v1723 = vld [vmem:[%s2 + $0x24] sm:$0xff]
    %v1724 = vld [vmem:[%s2 + $0x2c] sm:$0xf]
    %v1725 = vld [vmem:[%s4] sm:$0x7]
    %v1727 = vlaneseq
    %v1728 = vshrl.u32 %v1727, 7
    %v1729 = vsub.s32 0, %v1728
    %v1730 = vrot.slane %v1725, %v1729
    %v1731 = vlaneseq
    %v1732 = vshrl.u32 %v1731, 7
    %v1733 = vsub.s32 1, %v1732
    %v1734 = vrot.slane %v1725, %v1733
    %v1735 = vlaneseq
    %v1736 = vshrl.u32 %v1735, 7
    %v1737 = vsub.s32 2, %v1736
    %v1738 = vrot.slane %v1725, %v1737
    %v1750 = vunpack.c.l.b16 %v1717
    %v1751 = vunpack.c.h.b16 %v1717
    %v1752 = vunpack.c.l.b16 %v1718
    %v1753 = vunpack.c.l.b16 %v1719
    %v1754 = vunpack.c.h.b16 %v1719
    %v1755 = vunpack.c.l.b16 %v1720
    %v1756 = vunpack.c.l.b16 %v1721
    %v1757 = vunpack.c.h.b16 %v1721
    %v1758 = vunpack.c.l.b16 %v1722
    %v1759 = vunpack.c.l.b16 %v1723
    %v1760 = vunpack.c.h.b16 %v1723
    %v1761 = vunpack.c.l.b16 %v1724
    %v1762 = vpack.c.b16 %v1753, %v1750
    %v1763 = vpack.c.b16 %v1754, %v1751
    %v1764 = vpack.c.b16 %v1755, %v1752
    %v1765 = vpack.c.b16 %v1759, %v1756
    %v1766 = vpack.c.b16 %v1760, %v1757
    %v1767 = vpack.c.b16 %v1761, %v1758
    %v1775 = vsel %vm106, %v1716, 0
    %1777 = vmatprep.subr.bf16.mxu0 0
    %1778 = vmatpush1.bf16.msra.mxu0 0
    %1779 = vmatprep.subr.bf16.mxu0 0
    %1780 = vmatpush1.bf16.msra.mxu0 0
    %1781 = vmatprep.subr.bf16.mxu0 0
    %1782 = vmatpush1.bf16.msra.mxu0 0
    %1783 = vmatprep.subr.bf16.mxu0 0
    %1784 = vmatpush1.bf16.msra.mxu0 0
    %1785 = vmatprep.subr.bf16.mxu0 0
    %1786 = vmatpush1.bf16.msra.mxu0 0
    %1787 = vmatprep.subr.bf16.mxu0 0
    %1788 = vmatpush1.bf16.msra.mxu0 0
    %1789 = vmatprep.subr.bf16.mxu0 %v1766
    %1790 = vmatpush1.bf16.msra.mxu0 %v1765
    %1791 = vmatprep.subr.bf16.mxu0 %v1763
    %1792 = vmatpush1.bf16.msra.mxu0 %v1762
    %1793 = vmatprep.subr.bf16.mxu0 0
    %1794 = vmatpush2.bf16.msra.mxu0 0
    %1795 = vmatprep.subr.bf16.mxu0 0
    %1796 = vmatpush2.bf16.msra.mxu0 0
    %1797 = vmatprep.subr.bf16.mxu0 0
    %1798 = vmatpush2.bf16.msra.mxu0 0
    %1799 = vmatprep.subr.bf16.mxu0 0
    %1800 = vmatpush2.bf16.msra.mxu0 0
    %1801 = vmatprep.subr.bf16.mxu0 0
    %1802 = vmatpush2.bf16.msra.mxu0 0
    %1803 = vmatprep.subr.bf16.mxu0 0
    %1804 = vmatpush2.bf16.msra.mxu0 0
    %1805 = vmatprep.subr.bf16.mxu0 0
    %1806 = vmatpush2.bf16.msra.mxu0 0
    %1807 = vmatprep.subr.bf16.mxu0 0
    %1808 = vmatpush2.bf16.msra.mxu0 0
    %1809 = vmatprep.mubr.bf16.mxu0 0
    %1810 = vmatmul.mubr.bf16.gmra.mxu0 %v1775
    %v1811 = vpop.f32.mrf.mxu0
    %v1812 = vadd.f32 %v1730, %v1811
    %v1813 = vpop.f32.mrf.mxu0
    %v1814 = vadd.f32 %v1734, %v1813
    %v1815 = vpop.f32.mrf.mxu0
    %v1816 = vpop.f32.mrf.mxu0
    %1817 = vdwg.mxu0
    %1818 = vmatprep.subr.bf16.mxu0 0
    %1819 = vmatpush1.bf16.msra.mxu0 0
    %1820 = vmatprep.subr.bf16.mxu0 0
    %1821 = vmatpush1.bf16.msra.mxu0 0
    %1822 = vmatprep.subr.bf16.mxu0 0
    %1823 = vmatpush1.bf16.msra.mxu0 0
    %1824 = vmatprep.subr.bf16.mxu0 0
    %1825 = vmatpush1.bf16.msra.mxu0 0
    %1826 = vmatprep.subr.bf16.mxu0 0
    %1827 = vmatpush1.bf16.msra.mxu0 0
    %1828 = vmatprep.subr.bf16.mxu0 0
    %1829 = vmatpush1.bf16.msra.mxu0 0
    %1830 = vmatprep.subr.bf16.mxu0 0
    %1831 = vmatpush1.bf16.msra.mxu0 %v1767
    %1832 = vmatprep.subr.bf16.mxu0 0
    %1833 = vmatpush1.bf16.msra.mxu0 %v1764
    %1834 = vmatprep.subr.bf16.mxu0 0
    %1835 = vmatpush2.bf16.msra.mxu0 0
    %1836 = vmatprep.subr.bf16.mxu0 0
    %1837 = vmatpush2.bf16.msra.mxu0 0
    %1838 = vmatprep.subr.bf16.mxu0 0
    %1839 = vmatpush2.bf16.msra.mxu0 0
    %1840 = vmatprep.subr.bf16.mxu0 0
    %1841 = vmatpush2.bf16.msra.mxu0 0
    %1842 = vmatprep.subr.bf16.mxu0 0
    %1843 = vmatpush2.bf16.msra.mxu0 0
    %1844 = vmatprep.subr.bf16.mxu0 0
    %1845 = vmatpush2.bf16.msra.mxu0 0
    %1846 = vmatprep.subr.bf16.mxu0 0
    %1847 = vmatpush2.bf16.msra.mxu0 0
    %1848 = vmatprep.subr.bf16.mxu0 0
    %1849 = vmatpush2.bf16.msra.mxu0 0
    %1850 = vmatprep.mubr.bf16.mxu0 0
    %1851 = vmatmul.mubr.bf16.gmra.mxu0 %v1775
    %v1852 = vpop.f32.mrf.mxu0
    %v1853 = vadd.f32 %v1738, %v1852
    %v1854 = vpop.f32.mrf.mxu0
    %v1855 = vpop.f32.mrf.mxu0
    %v1856 = vpop.f32.mrf.mxu0
    %1857 = vdwg.mxu0
    %v1858 = vpack.c.bf16 %v1711, %v1711
    %v1859 = vld [vmem:[#allocation3] sm:$0xff]
    %v1860 = vld [vmem:[#allocation3 + $0x8] sm:$0xf]
    %v1861 = vld [vmem:[#allocation3 + $0xc] sm:$0xff]
    %v1862 = vld [vmem:[#allocation3 + $0x14] sm:$0xf]
    %v1863 = vld [vmem:[#allocation3 + $0x18] sm:$0xff]
    %v1864 = vld [vmem:[#allocation3 + $0x20] sm:$0xf]
    %v1865 = vld [vmem:[#allocation3 + $0x24] sm:$0xff]
    %v1866 = vld [vmem:[#allocation3 + $0x2c] sm:$0xf]
    %v1867 = vld [vmem:[#allocation3 + $0x30] sm:$0xff]
    %v1868 = vld [vmem:[#allocation3 + $0x38] sm:$0xf]
    %v1869 = vld [vmem:[#allocation3 + $0x3c] sm:$0xff]
    %v1870 = vld [vmem:[#allocation3 + $0x44] sm:$0xf]
    %v1871 = vld [vmem:[#allocation3 + $0x48] sm:$0xff]
    %v1872 = vld [vmem:[#allocation3 + $0x50] sm:$0xf]
    %v1873 = vld [vmem:[#allocation3 + $0x54] sm:$0xff]
    %v1874 = vld [vmem:[#allocation3 + $0x5c] sm:$0xf]
    %v1875 = vld [vmem:[#allocation3 + $0x60] sm:$0xff]
    %v1876 = vld [vmem:[#allocation3 + $0x68] sm:$0xf]
    %v1877 = vld [vmem:[#allocation3 + $0x6c] sm:$0xff]
    %v1878 = vld [vmem:[#allocation3 + $0x74] sm:$0xf]
    %v1879 = vld [vmem:[#allocation3 + $0x78] sm:$0xff]
    %v1880 = vld [vmem:[#allocation3 + $0x80] sm:$0xf]
    %v1881 = vld [vmem:[#allocation3 + $0x84] sm:$0xff]
    %v1882 = vld [vmem:[#allocation3 + $0x8c] sm:$0xf]
    %v1883 = vld [vmem:[#allocation3 + $0x90] sm:$0xff]
    %v1884 = vld [vmem:[#allocation3 + $0x98] sm:$0xf]
    %v1885 = vld [vmem:[#allocation3 + $0x9c] sm:$0xff]
    %v1886 = vld [vmem:[#allocation3 + $0xa4] sm:$0xf]
    %v1887 = vld [vmem:[#allocation3 + $0xa8] sm:$0xff]
    %v1888 = vld [vmem:[#allocation3 + $0xb0] sm:$0xf]
    %v1889 = vld [vmem:[#allocation3 + $0xb4] sm:$0xff]
    %v1890 = vld [vmem:[#allocation3 + $0xbc] sm:$0xf]
    %v1923 = vunpack.c.l.b16 %v1859
    %v1924 = vunpack.c.h.b16 %v1859
    %v1925 = vunpack.c.l.b16 %v1860
    %v1926 = vunpack.c.l.b16 %v1861
    %v1927 = vunpack.c.h.b16 %v1861
    %v1928 = vunpack.c.l.b16 %v1862
    %v1929 = vunpack.c.l.b16 %v1863
    %v1930 = vunpack.c.h.b16 %v1863
    %v1931 = vunpack.c.l.b16 %v1864
    %v1932 = vunpack.c.l.b16 %v1865
    %v1933 = vunpack.c.h.b16 %v1865
    %v1934 = vunpack.c.l.b16 %v1866
    %v1935 = vunpack.c.l.b16 %v1867
    %v1936 = vunpack.c.h.b16 %v1867
    %v1937 = vunpack.c.l.b16 %v1868
    %v1938 = vunpack.c.l.b16 %v1869
    %v1939 = vunpack.c.h.b16 %v1869
    %v1940 = vunpack.c.l.b16 %v1870
    %v1941 = vunpack.c.l.b16 %v1871
    %v1942 = vunpack.c.h.b16 %v1871
    %v1943 = vunpack.c.l.b16 %v1872
    %v1944 = vunpack.c.l.b16 %v1873
    %v1945 = vunpack.c.h.b16 %v1873
    %v1946 = vunpack.c.l.b16 %v1874
    %v1947 = vunpack.c.l.b16 %v1875
    %v1948 = vunpack.c.h.b16 %v1875
    %v1949 = vunpack.c.l.b16 %v1876
    %v1950 = vunpack.c.l.b16 %v1877
    %v1951 = vunpack.c.h.b16 %v1877
    %v1952 = vunpack.c.l.b16 %v1878
    %v1953 = vunpack.c.l.b16 %v1879
    %v1954 = vunpack.c.h.b16 %v1879
    %v1955 = vunpack.c.l.b16 %v1880
    %v1956 = vunpack.c.l.b16 %v1881
    %v1957 = vunpack.c.h.b16 %v1881
    %v1958 = vunpack.c.l.b16 %v1882
    %v1959 = vunpack.c.l.b16 %v1883
    %v1960 = vunpack.c.h.b16 %v1883
    %v1961 = vunpack.c.l.b16 %v1884
    %v1962 = vunpack.c.l.b16 %v1885
    %v1963 = vunpack.c.h.b16 %v1885
    %v1964 = vunpack.c.l.b16 %v1886
    %v1965 = vunpack.c.l.b16 %v1887
    %v1966 = vunpack.c.h.b16 %v1887
    %v1967 = vunpack.c.l.b16 %v1888
    %v1968 = vunpack.c.l.b16 %v1889
    %v1969 = vunpack.c.h.b16 %v1889
    %v1970 = vunpack.c.l.b16 %v1890
    %v1971 = vpack.c.b16 %v1926, %v1923
    %v1972 = vpack.c.b16 %v1927, %v1924
    %v1973 = vpack.c.b16 %v1928, %v1925
    %v1974 = vpack.c.b16 %v1932, %v1929
    %v1975 = vpack.c.b16 %v1933, %v1930
    %v1976 = vpack.c.b16 %v1934, %v1931
    %v1977 = vpack.c.b16 %v1938, %v1935
    %v1978 = vpack.c.b16 %v1939, %v1936
    %v1979 = vpack.c.b16 %v1940, %v1937
    %v1980 = vpack.c.b16 %v1944, %v1941
    %v1981 = vpack.c.b16 %v1945, %v1942
    %v1982 = vpack.c.b16 %v1946, %v1943
    %v1983 = vpack.c.b16 %v1950, %v1947
    %v1984 = vpack.c.b16 %v1951, %v1948
    %v1985 = vpack.c.b16 %v1952, %v1949
    %v1986 = vpack.c.b16 %v1956, %v1953
    %v1987 = vpack.c.b16 %v1957, %v1954
    %v1988 = vpack.c.b16 %v1958, %v1955
    %v1989 = vpack.c.b16 %v1962, %v1959
    %v1990 = vpack.c.b16 %v1963, %v1960
    %v1991 = vpack.c.b16 %v1964, %v1961
    %v1992 = vpack.c.b16 %v1968, %v1965
    %v1993 = vpack.c.b16 %v1969, %v1966
    %v1994 = vpack.c.b16 %v1970, %v1967
    %2019 = vmatprep.subr.bf16.mxu0 %v1993
    %2020 = vmatpush1.bf16.msra.mxu0 %v1992
    %2021 = vmatprep.subr.bf16.mxu0 %v1990
    %2022 = vmatpush1.bf16.msra.mxu0 %v1989
    %2023 = vmatprep.subr.bf16.mxu0 %v1987
    %2024 = vmatpush1.bf16.msra.mxu0 %v1986
    %2025 = vmatprep.subr.bf16.mxu0 %v1984
    %2026 = vmatpush1.bf16.msra.mxu0 %v1983
    %2027 = vmatprep.subr.bf16.mxu0 %v1981
    %2028 = vmatpush1.bf16.msra.mxu0 %v1980
    %2029 = vmatprep.subr.bf16.mxu0 %v1978
    %2030 = vmatpush1.bf16.msra.mxu0 %v1977
    %2031 = vmatprep.subr.bf16.mxu0 %v1975
    %2032 = vmatpush1.bf16.msra.mxu0 %v1974
    %2033 = vmatprep.subr.bf16.mxu0 %v1972
    %2034 = vmatpush1.bf16.msra.mxu0 %v1971
    %2035 = vmatprep.subr.bf16.mxu0 0
    %2036 = vmatpush2.bf16.msra.mxu0 0
    %2037 = vmatprep.subr.bf16.mxu0 0
    %2038 = vmatpush2.bf16.msra.mxu0 0
    %2039 = vmatprep.subr.bf16.mxu0 0
    %2040 = vmatpush2.bf16.msra.mxu0 0
    %2041 = vmatprep.subr.bf16.mxu0 0
    %2042 = vmatpush2.bf16.msra.mxu0 0
    %2043 = vmatprep.subr.bf16.mxu0 0
    %2044 = vmatpush2.bf16.msra.mxu0 0
    %2045 = vmatprep.subr.bf16.mxu0 0
    %2046 = vmatpush2.bf16.msra.mxu0 0
    %2047 = vmatprep.subr.bf16.mxu0 0
    %2048 = vmatpush2.bf16.msra.mxu0 0
    %2049 = vmatprep.subr.bf16.mxu0 0
    %2050 = vmatpush2.bf16.msra.mxu0 0
    %2051 = vmatprep.mubr.bf16.mxu0 0
    %2052 = vmatmul.mubr.bf16.gmra.mxu0 %v1858
    %v2053 = vpop.f32.mrf.mxu0
    %v2054 = vadd.f32 0.0, %v2053
    %v2055 = vpop.f32.mrf.mxu0
    %v2056 = vadd.f32 0.0, %v2055
    %v2057 = vpop.f32.mrf.mxu0
    %v2058 = vpop.f32.mrf.mxu0
    %2059 = vdwg.mxu0
    %2060 = vmatprep.subr.bf16.mxu0 0
    %2061 = vmatpush1.bf16.msra.mxu0 %v1994
    %2062 = vmatprep.subr.bf16.mxu0 0
    %2063 = vmatpush1.bf16.msra.mxu0 %v1991
    %2064 = vmatprep.subr.bf16.mxu0 0
    %2065 = vmatpush1.bf16.msra.mxu0 %v1988
    %2066 = vmatprep.subr.bf16.mxu0 0
    %2067 = vmatpush1.bf16.msra.mxu0 %v1985
    %2068 = vmatprep.subr.bf16.mxu0 0
    %2069 = vmatpush1.bf16.msra.mxu0 %v1982
    %2070 = vmatprep.subr.bf16.mxu0 0
    %2071 = vmatpush1.bf16.msra.mxu0 %v1979
    %2072 = vmatprep.subr.bf16.mxu0 0
    %2073 = vmatpush1.bf16.msra.mxu0 %v1976
    %2074 = vmatprep.subr.bf16.mxu0 0
    %2075 = vmatpush1.bf16.msra.mxu0 %v1973
    %2076 = vmatprep.subr.bf16.mxu0 0
    %2077 = vmatpush2.bf16.msra.mxu0 0
    %2078 = vmatprep.subr.bf16.mxu0 0
    %2079 = vmatpush2.bf16.msra.mxu0 0
    %2080 = vmatprep.subr.bf16.mxu0 0
    %2081 = vmatpush2.bf16.msra.mxu0 0
    %2082 = vmatprep.subr.bf16.mxu0 0
    %2083 = vmatpush2.bf16.msra.mxu0 0
    %2084 = vmatprep.subr.bf16.mxu0 0
    %2085 = vmatpush2.bf16.msra.mxu0 0
    %2086 = vmatprep.subr.bf16.mxu0 0
    %2087 = vmatpush2.bf16.msra.mxu0 0
    %2088 = vmatprep.subr.bf16.mxu0 0
    %2089 = vmatpush2.bf16.msra.mxu0 0
    %2090 = vmatprep.subr.bf16.mxu0 0
    %2091 = vmatpush2.bf16.msra.mxu0 0
    %2092 = vmatprep.mubr.bf16.mxu0 0
    %2093 = vmatmul.mubr.bf16.gmra.mxu0 %v1858
    %v2094 = vpop.f32.mrf.mxu0
    %v2095 = vadd.f32 0.0, %v2094
    %v2096 = vpop.f32.mrf.mxu0
    %v2097 = vpop.f32.mrf.mxu0
    %v2098 = vpop.f32.mrf.mxu0
    %2099 = vdwg.mxu0
    %v2100 = vadd.f32 %v1812, %v2054
    %v2101 = vxor.u32 %v2100, 2147483648
    %v2102 = vmul.f32 %v2101, 1.442695
    %v2103 = vpow.pop %v2102
    %v2104 = vadd.f32 %v2103, 1.0
    %v2105 = vrcp.pop %v2104
    %v2106 = vmul.f32 1.0, %v2105
    %v2107 = vadd.f32 %v1814, %v2056
    %v2108 = vxor.u32 %v2107, 2147483648
    %v2109 = vmul.f32 %v2108, 1.442695
    %v2110 = vpow.pop %v2109
    %v2111 = vadd.f32 %v2110, 1.0
    %v2112 = vrcp.pop %v2111
    %v2113 = vmul.f32 1.0, %v2112
    %v2114 = vld [vmem:[%s5] sm:$0x1]
    %v2116 = vlaneseq
    %v2117 = vshrl.u32 %v2116, 7
    %v2118 = vsub.s32 0, %v2117
    %v2119 = vrot.slane %v2114, %v2118
    %v2121 = vadd.f32 %v2095, %v2119
    %v2122 = vmul.f32 %v2106, %v2121
    %v2123 = vadd.f32 %v1853, %v2122
    %v2124 = vtanh.pop %v2123
    %v2125 = vsub.f32 1.0, %v2113
    %v2126 = vmul.f32 %v2125, %v2124
    %v2127 = vmul.f32 %v2113, %v1711
    %v2128 = vadd.f32 %v2126, %v2127
    %s2129 = scalar_lea.vmem %s6, 8
    %2130 = vst [vmem:[%s2129] sm:$0x3] %v2128
    %s2131 = scalar_lea.vmem %s0, 10
    %v2132 = vld [vmem:[%s2131] sm:$0x3]
    %v2133 = vpack.c.bf16 %v2132, %v2132
    %v2134 = vld [vmem:[%s2] sm:$0xff]
    %v2135 = vld [vmem:[%s2 + $0x8] sm:$0xf]
    %v2136 = vld [vmem:[%s2 + $0xc] sm:$0xff]
    %v2137 = vld [vmem:[%s2 + $0x14] sm:$0xf]
    %v2138 = vld [vmem:[%s2 + $0x18] sm:$0xff]
    %v2139 = vld [vmem:[%s2 + $0x20] sm:$0xf]
    %v2140 = vld [vmem:[%s2 + $0x24] sm:$0xff]
    %v2141 = vld [vmem:[%s2 + $0x2c] sm:$0xf]
    %v2142 = vld [vmem:[%s4] sm:$0x7]
    %v2144 = vlaneseq
    %v2145 = vshrl.u32 %v2144, 7
    %v2146 = vsub.s32 0, %v2145
    %v2147 = vrot.slane %v2142, %v2146
    %v2148 = vlaneseq
    %v2149 = vshrl.u32 %v2148, 7
    %v2150 = vsub.s32 1, %v2149
    %v2151 = vrot.slane %v2142, %v2150
    %v2152 = vlaneseq
    %v2153 = vshrl.u32 %v2152, 7
    %v2154 = vsub.s32 2, %v2153
    %v2155 = vrot.slane %v2142, %v2154
    %v2167 = vunpack.c.l.b16 %v2134
    %v2168 = vunpack.c.h.b16 %v2134
    %v2169 = vunpack.c.l.b16 %v2135
    %v2170 = vunpack.c.l.b16 %v2136
    %v2171 = vunpack.c.h.b16 %v2136
    %v2172 = vunpack.c.l.b16 %v2137
    %v2173 = vunpack.c.l.b16 %v2138
    %v2174 = vunpack.c.h.b16 %v2138
    %v2175 = vunpack.c.l.b16 %v2139
    %v2176 = vunpack.c.l.b16 %v2140
    %v2177 = vunpack.c.h.b16 %v2140
    %v2178 = vunpack.c.l.b16 %v2141
    %v2179 = vpack.c.b16 %v2170, %v2167
    %v2180 = vpack.c.b16 %v2171, %v2168
    %v2181 = vpack.c.b16 %v2172, %v2169
    %v2182 = vpack.c.b16 %v2176, %v2173
    %v2183 = vpack.c.b16 %v2177, %v2174
    %v2184 = vpack.c.b16 %v2178, %v2175
    %v2192 = vsel %vm106, %v2133, 0
    %2194 = vmatprep.subr.bf16.mxu0 0
    %2195 = vmatpush1.bf16.msra.mxu0 0
    %2196 = vmatprep.subr.bf16.mxu0 0
    %2197 = vmatpush1.bf16.msra.mxu0 0
    %2198 = vmatprep.subr.bf16.mxu0 0
    %2199 = vmatpush1.bf16.msra.mxu0 0
    %2200 = vmatprep.subr.bf16.mxu0 0
    %2201 = vmatpush1.bf16.msra.mxu0 0
    %2202 = vmatprep.subr.bf16.mxu0 0
    %2203 = vmatpush1.bf16.msra.mxu0 0
    %2204 = vmatprep.subr.bf16.mxu0 0
    %2205 = vmatpush1.bf16.msra.mxu0 0
    %2206 = vmatprep.subr.bf16.mxu0 %v2183
    %2207 = vmatpush1.bf16.msra.mxu0 %v2182
    %2208 = vmatprep.subr.bf16.mxu0 %v2180
    %2209 = vmatpush1.bf16.msra.mxu0 %v2179
    %2210 = vmatprep.subr.bf16.mxu0 0
    %2211 = vmatpush2.bf16.msra.mxu0 0
    %2212 = vmatprep.subr.bf16.mxu0 0
    %2213 = vmatpush2.bf16.msra.mxu0 0
    %2214 = vmatprep.subr.bf16.mxu0 0
    %2215 = vmatpush2.bf16.msra.mxu0 0
    %2216 = vmatprep.subr.bf16.mxu0 0
    %2217 = vmatpush2.bf16.msra.mxu0 0
    %2218 = vmatprep.subr.bf16.mxu0 0
    %2219 = vmatpush2.bf16.msra.mxu0 0
    %2220 = vmatprep.subr.bf16.mxu0 0
    %2221 = vmatpush2.bf16.msra.mxu0 0
    %2222 = vmatprep.subr.bf16.mxu0 0
    %2223 = vmatpush2.bf16.msra.mxu0 0
    %2224 = vmatprep.subr.bf16.mxu0 0
    %2225 = vmatpush2.bf16.msra.mxu0 0
    %2226 = vmatprep.mubr.bf16.mxu0 0
    %2227 = vmatmul.mubr.bf16.gmra.mxu0 %v2192
    %v2228 = vpop.f32.mrf.mxu0
    %v2229 = vadd.f32 %v2147, %v2228
    %v2230 = vpop.f32.mrf.mxu0
    %v2231 = vadd.f32 %v2151, %v2230
    %v2232 = vpop.f32.mrf.mxu0
    %v2233 = vpop.f32.mrf.mxu0
    %2234 = vdwg.mxu0
    %2235 = vmatprep.subr.bf16.mxu0 0
    %2236 = vmatpush1.bf16.msra.mxu0 0
    %2237 = vmatprep.subr.bf16.mxu0 0
    %2238 = vmatpush1.bf16.msra.mxu0 0
    %2239 = vmatprep.subr.bf16.mxu0 0
    %2240 = vmatpush1.bf16.msra.mxu0 0
    %2241 = vmatprep.subr.bf16.mxu0 0
    %2242 = vmatpush1.bf16.msra.mxu0 0
    %2243 = vmatprep.subr.bf16.mxu0 0
    %2244 = vmatpush1.bf16.msra.mxu0 0
    %2245 = vmatprep.subr.bf16.mxu0 0
    %2246 = vmatpush1.bf16.msra.mxu0 0
    %2247 = vmatprep.subr.bf16.mxu0 0
    %2248 = vmatpush1.bf16.msra.mxu0 %v2184
    %2249 = vmatprep.subr.bf16.mxu0 0
    %2250 = vmatpush1.bf16.msra.mxu0 %v2181
    %2251 = vmatprep.subr.bf16.mxu0 0
    %2252 = vmatpush2.bf16.msra.mxu0 0
    %2253 = vmatprep.subr.bf16.mxu0 0
    %2254 = vmatpush2.bf16.msra.mxu0 0
    %2255 = vmatprep.subr.bf16.mxu0 0
    %2256 = vmatpush2.bf16.msra.mxu0 0
    %2257 = vmatprep.subr.bf16.mxu0 0
    %2258 = vmatpush2.bf16.msra.mxu0 0
    %2259 = vmatprep.subr.bf16.mxu0 0
    %2260 = vmatpush2.bf16.msra.mxu0 0
    %2261 = vmatprep.subr.bf16.mxu0 0
    %2262 = vmatpush2.bf16.msra.mxu0 0
    %2263 = vmatprep.subr.bf16.mxu0 0
    %2264 = vmatpush2.bf16.msra.mxu0 0
    %2265 = vmatprep.subr.bf16.mxu0 0
    %2266 = vmatpush2.bf16.msra.mxu0 0
    %2267 = vmatprep.mubr.bf16.mxu0 0
    %2268 = vmatmul.mubr.bf16.gmra.mxu0 %v2192
    %v2269 = vpop.f32.mrf.mxu0
    %v2270 = vadd.f32 %v2155, %v2269
    %v2271 = vpop.f32.mrf.mxu0
    %v2272 = vpop.f32.mrf.mxu0
    %v2273 = vpop.f32.mrf.mxu0
    %2274 = vdwg.mxu0
    %v2275 = vpack.c.bf16 %v2128, %v2128
    %v2276 = vld [vmem:[#allocation3] sm:$0xff]
    %v2277 = vld [vmem:[#allocation3 + $0x8] sm:$0xf]
    %v2278 = vld [vmem:[#allocation3 + $0xc] sm:$0xff]
    %v2279 = vld [vmem:[#allocation3 + $0x14] sm:$0xf]
    %v2280 = vld [vmem:[#allocation3 + $0x18] sm:$0xff]
    %v2281 = vld [vmem:[#allocation3 + $0x20] sm:$0xf]
    %v2282 = vld [vmem:[#allocation3 + $0x24] sm:$0xff]
    %v2283 = vld [vmem:[#allocation3 + $0x2c] sm:$0xf]
    %v2284 = vld [vmem:[#allocation3 + $0x30] sm:$0xff]
    %v2285 = vld [vmem:[#allocation3 + $0x38] sm:$0xf]
    %v2286 = vld [vmem:[#allocation3 + $0x3c] sm:$0xff]
    %v2287 = vld [vmem:[#allocation3 + $0x44] sm:$0xf]
    %v2288 = vld [vmem:[#allocation3 + $0x48] sm:$0xff]
    %v2289 = vld [vmem:[#allocation3 + $0x50] sm:$0xf]
    %v2290 = vld [vmem:[#allocation3 + $0x54] sm:$0xff]
    %v2291 = vld [vmem:[#allocation3 + $0x5c] sm:$0xf]
    %v2292 = vld [vmem:[#allocation3 + $0x60] sm:$0xff]
    %v2293 = vld [vmem:[#allocation3 + $0x68] sm:$0xf]
    %v2294 = vld [vmem:[#allocation3 + $0x6c] sm:$0xff]
    %v2295 = vld [vmem:[#allocation3 + $0x74] sm:$0xf]
    %v2296 = vld [vmem:[#allocation3 + $0x78] sm:$0xff]
    %v2297 = vld [vmem:[#allocation3 + $0x80] sm:$0xf]
    %v2298 = vld [vmem:[#allocation3 + $0x84] sm:$0xff]
    %v2299 = vld [vmem:[#allocation3 + $0x8c] sm:$0xf]
    %v2300 = vld [vmem:[#allocation3 + $0x90] sm:$0xff]
    %v2301 = vld [vmem:[#allocation3 + $0x98] sm:$0xf]
    %v2302 = vld [vmem:[#allocation3 + $0x9c] sm:$0xff]
    %v2303 = vld [vmem:[#allocation3 + $0xa4] sm:$0xf]
    %v2304 = vld [vmem:[#allocation3 + $0xa8] sm:$0xff]
    %v2305 = vld [vmem:[#allocation3 + $0xb0] sm:$0xf]
    %v2306 = vld [vmem:[#allocation3 + $0xb4] sm:$0xff]
    %v2307 = vld [vmem:[#allocation3 + $0xbc] sm:$0xf]
    %v2340 = vunpack.c.l.b16 %v2276
    %v2341 = vunpack.c.h.b16 %v2276
    %v2342 = vunpack.c.l.b16 %v2277
    %v2343 = vunpack.c.l.b16 %v2278
    %v2344 = vunpack.c.h.b16 %v2278
    %v2345 = vunpack.c.l.b16 %v2279
    %v2346 = vunpack.c.l.b16 %v2280
    %v2347 = vunpack.c.h.b16 %v2280
    %v2348 = vunpack.c.l.b16 %v2281
    %v2349 = vunpack.c.l.b16 %v2282
    %v2350 = vunpack.c.h.b16 %v2282
    %v2351 = vunpack.c.l.b16 %v2283
    %v2352 = vunpack.c.l.b16 %v2284
    %v2353 = vunpack.c.h.b16 %v2284
    %v2354 = vunpack.c.l.b16 %v2285
    %v2355 = vunpack.c.l.b16 %v2286
    %v2356 = vunpack.c.h.b16 %v2286
    %v2357 = vunpack.c.l.b16 %v2287
    %v2358 = vunpack.c.l.b16 %v2288
    %v2359 = vunpack.c.h.b16 %v2288
    %v2360 = vunpack.c.l.b16 %v2289
    %v2361 = vunpack.c.l.b16 %v2290
    %v2362 = vunpack.c.h.b16 %v2290
    %v2363 = vunpack.c.l.b16 %v2291
    %v2364 = vunpack.c.l.b16 %v2292
    %v2365 = vunpack.c.h.b16 %v2292
    %v2366 = vunpack.c.l.b16 %v2293
    %v2367 = vunpack.c.l.b16 %v2294
    %v2368 = vunpack.c.h.b16 %v2294
    %v2369 = vunpack.c.l.b16 %v2295
    %v2370 = vunpack.c.l.b16 %v2296
    %v2371 = vunpack.c.h.b16 %v2296
    %v2372 = vunpack.c.l.b16 %v2297
    %v2373 = vunpack.c.l.b16 %v2298
    %v2374 = vunpack.c.h.b16 %v2298
    %v2375 = vunpack.c.l.b16 %v2299
    %v2376 = vunpack.c.l.b16 %v2300
    %v2377 = vunpack.c.h.b16 %v2300
    %v2378 = vunpack.c.l.b16 %v2301
    %v2379 = vunpack.c.l.b16 %v2302
    %v2380 = vunpack.c.h.b16 %v2302
    %v2381 = vunpack.c.l.b16 %v2303
    %v2382 = vunpack.c.l.b16 %v2304
    %v2383 = vunpack.c.h.b16 %v2304
    %v2384 = vunpack.c.l.b16 %v2305
    %v2385 = vunpack.c.l.b16 %v2306
    %v2386 = vunpack.c.h.b16 %v2306
    %v2387 = vunpack.c.l.b16 %v2307
    %v2388 = vpack.c.b16 %v2343, %v2340
    %v2389 = vpack.c.b16 %v2344, %v2341
    %v2390 = vpack.c.b16 %v2345, %v2342
    %v2391 = vpack.c.b16 %v2349, %v2346
    %v2392 = vpack.c.b16 %v2350, %v2347
    %v2393 = vpack.c.b16 %v2351, %v2348
    %v2394 = vpack.c.b16 %v2355, %v2352
    %v2395 = vpack.c.b16 %v2356, %v2353
    %v2396 = vpack.c.b16 %v2357, %v2354
    %v2397 = vpack.c.b16 %v2361, %v2358
    %v2398 = vpack.c.b16 %v2362, %v2359
    %v2399 = vpack.c.b16 %v2363, %v2360
    %v2400 = vpack.c.b16 %v2367, %v2364
    %v2401 = vpack.c.b16 %v2368, %v2365
    %v2402 = vpack.c.b16 %v2369, %v2366
    %v2403 = vpack.c.b16 %v2373, %v2370
    %v2404 = vpack.c.b16 %v2374, %v2371
    %v2405 = vpack.c.b16 %v2375, %v2372
    %v2406 = vpack.c.b16 %v2379, %v2376
    %v2407 = vpack.c.b16 %v2380, %v2377
    %v2408 = vpack.c.b16 %v2381, %v2378
    %v2409 = vpack.c.b16 %v2385, %v2382
    %v2410 = vpack.c.b16 %v2386, %v2383
    %v2411 = vpack.c.b16 %v2387, %v2384
    %2436 = vmatprep.subr.bf16.mxu0 %v2410
    %2437 = vmatpush1.bf16.msra.mxu0 %v2409
    %2438 = vmatprep.subr.bf16.mxu0 %v2407
    %2439 = vmatpush1.bf16.msra.mxu0 %v2406
    %2440 = vmatprep.subr.bf16.mxu0 %v2404
    %2441 = vmatpush1.bf16.msra.mxu0 %v2403
    %2442 = vmatprep.subr.bf16.mxu0 %v2401
    %2443 = vmatpush1.bf16.msra.mxu0 %v2400
    %2444 = vmatprep.subr.bf16.mxu0 %v2398
    %2445 = vmatpush1.bf16.msra.mxu0 %v2397
    %2446 = vmatprep.subr.bf16.mxu0 %v2395
    %2447 = vmatpush1.bf16.msra.mxu0 %v2394
    %2448 = vmatprep.subr.bf16.mxu0 %v2392
    %2449 = vmatpush1.bf16.msra.mxu0 %v2391
    %2450 = vmatprep.subr.bf16.mxu0 %v2389
    %2451 = vmatpush1.bf16.msra.mxu0 %v2388
    %2452 = vmatprep.subr.bf16.mxu0 0
    %2453 = vmatpush2.bf16.msra.mxu0 0
    %2454 = vmatprep.subr.bf16.mxu0 0
    %2455 = vmatpush2.bf16.msra.mxu0 0
    %2456 = vmatprep.subr.bf16.mxu0 0
    %2457 = vmatpush2.bf16.msra.mxu0 0
    %2458 = vmatprep.subr.bf16.mxu0 0
    %2459 = vmatpush2.bf16.msra.mxu0 0
    %2460 = vmatprep.subr.bf16.mxu0 0
    %2461 = vmatpush2.bf16.msra.mxu0 0
    %2462 = vmatprep.subr.bf16.mxu0 0
    %2463 = vmatpush2.bf16.msra.mxu0 0
    %2464 = vmatprep.subr.bf16.mxu0 0
    %2465 = vmatpush2.bf16.msra.mxu0 0
    %2466 = vmatprep.subr.bf16.mxu0 0
    %2467 = vmatpush2.bf16.msra.mxu0 0
    %2468 = vmatprep.mubr.bf16.mxu0 0
    %2469 = vmatmul.mubr.bf16.gmra.mxu0 %v2275
    %v2470 = vpop.f32.mrf.mxu0
    %v2471 = vadd.f32 0.0, %v2470
    %v2472 = vpop.f32.mrf.mxu0
    %v2473 = vadd.f32 0.0, %v2472
    %v2474 = vpop.f32.mrf.mxu0
    %v2475 = vpop.f32.mrf.mxu0
    %2476 = vdwg.mxu0
    %2477 = vmatprep.subr.bf16.mxu0 0
    %2478 = vmatpush1.bf16.msra.mxu0 %v2411
    %2479 = vmatprep.subr.bf16.mxu0 0
    %2480 = vmatpush1.bf16.msra.mxu0 %v2408
    %2481 = vmatprep.subr.bf16.mxu0 0
    %2482 = vmatpush1.bf16.msra.mxu0 %v2405
    %2483 = vmatprep.subr.bf16.mxu0 0
    %2484 = vmatpush1.bf16.msra.mxu0 %v2402
    %2485 = vmatprep.subr.bf16.mxu0 0
    %2486 = vmatpush1.bf16.msra.mxu0 %v2399
    %2487 = vmatprep.subr.bf16.mxu0 0
    %2488 = vmatpush1.bf16.msra.mxu0 %v2396
    %2489 = vmatprep.subr.bf16.mxu0 0
    %2490 = vmatpush1.bf16.msra.mxu0 %v2393
    %2491 = vmatprep.subr.bf16.mxu0 0
    %2492 = vmatpush1.bf16.msra.mxu0 %v2390
    %2493 = vmatprep.subr.bf16.mxu0 0
    %2494 = vmatpush2.bf16.msra.mxu0 0
    %2495 = vmatprep.subr.bf16.mxu0 0
    %2496 = vmatpush2.bf16.msra.mxu0 0
    %2497 = vmatprep.subr.bf16.mxu0 0
    %2498 = vmatpush2.bf16.msra.mxu0 0
    %2499 = vmatprep.subr.bf16.mxu0 0
    %2500 = vmatpush2.bf16.msra.mxu0 0
    %2501 = vmatprep.subr.bf16.mxu0 0
    %2502 = vmatpush2.bf16.msra.mxu0 0
    %2503 = vmatprep.subr.bf16.mxu0 0
    %2504 = vmatpush2.bf16.msra.mxu0 0
    %2505 = vmatprep.subr.bf16.mxu0 0
    %2506 = vmatpush2.bf16.msra.mxu0 0
    %2507 = vmatprep.subr.bf16.mxu0 0
    %2508 = vmatpush2.bf16.msra.mxu0 0
    %2509 = vmatprep.mubr.bf16.mxu0 0
    %2510 = vmatmul.mubr.bf16.gmra.mxu0 %v2275
    %v2511 = vpop.f32.mrf.mxu0
    %v2512 = vadd.f32 0.0, %v2511
    %v2513 = vpop.f32.mrf.mxu0
    %v2514 = vpop.f32.mrf.mxu0
    %v2515 = vpop.f32.mrf.mxu0
    %2516 = vdwg.mxu0
    %v2517 = vadd.f32 %v2229, %v2471
    %v2518 = vxor.u32 %v2517, 2147483648
    %v2519 = vmul.f32 %v2518, 1.442695
    %v2520 = vpow.pop %v2519
    %v2521 = vadd.f32 %v2520, 1.0
    %v2522 = vrcp.pop %v2521
    %v2523 = vmul.f32 1.0, %v2522
    %v2524 = vadd.f32 %v2231, %v2473
    %v2525 = vxor.u32 %v2524, 2147483648
    %v2526 = vmul.f32 %v2525, 1.442695
    %v2527 = vpow.pop %v2526
    %v2528 = vadd.f32 %v2527, 1.0
    %v2529 = vrcp.pop %v2528
    %v2530 = vmul.f32 1.0, %v2529
    %v2531 = vld [vmem:[%s5] sm:$0x1]
    %v2533 = vlaneseq
    %v2534 = vshrl.u32 %v2533, 7
    %v2535 = vsub.s32 0, %v2534
    %v2536 = vrot.slane %v2531, %v2535
    %v2538 = vadd.f32 %v2512, %v2536
    %v2539 = vmul.f32 %v2523, %v2538
    %v2540 = vadd.f32 %v2270, %v2539
    %v2541 = vtanh.pop %v2540
    %v2542 = vsub.f32 1.0, %v2530
    %v2543 = vmul.f32 %v2542, %v2541
    %v2544 = vmul.f32 %v2530, %v2128
    %v2545 = vadd.f32 %v2543, %v2544
    %s2546 = scalar_lea.vmem %s6, 10
    %2547 = vst [vmem:[%s2546] sm:$0x3] %v2545
    %s2548 = scalar_lea.vmem %s0, 12
    %v2549 = vld [vmem:[%s2548] sm:$0x3]
    %v2550 = vpack.c.bf16 %v2549, %v2549
    %v2551 = vld [vmem:[%s2] sm:$0xff]
    %v2552 = vld [vmem:[%s2 + $0x8] sm:$0xf]
    %v2553 = vld [vmem:[%s2 + $0xc] sm:$0xff]
    %v2554 = vld [vmem:[%s2 + $0x14] sm:$0xf]
    %v2555 = vld [vmem:[%s2 + $0x18] sm:$0xff]
    %v2556 = vld [vmem:[%s2 + $0x20] sm:$0xf]
    %v2557 = vld [vmem:[%s2 + $0x24] sm:$0xff]
    %v2558 = vld [vmem:[%s2 + $0x2c] sm:$0xf]
    %v2559 = vld [vmem:[%s4] sm:$0x7]
    %v2561 = vlaneseq
    %v2562 = vshrl.u32 %v2561, 7
    %v2563 = vsub.s32 0, %v2562
    %v2564 = vrot.slane %v2559, %v2563
    %v2565 = vlaneseq
    %v2566 = vshrl.u32 %v2565, 7
    %v2567 = vsub.s32 1, %v2566
    %v2568 = vrot.slane %v2559, %v2567
    %v2569 = vlaneseq
    %v2570 = vshrl.u32 %v2569, 7
    %v2571 = vsub.s32 2, %v2570
    %v2572 = vrot.slane %v2559, %v2571
    %v2584 = vunpack.c.l.b16 %v2551
    %v2585 = vunpack.c.h.b16 %v2551
    %v2586 = vunpack.c.l.b16 %v2552
    %v2587 = vunpack.c.l.b16 %v2553
    %v2588 = vunpack.c.h.b16 %v2553
    %v2589 = vunpack.c.l.b16 %v2554
    %v2590 = vunpack.c.l.b16 %v2555
    %v2591 = vunpack.c.h.b16 %v2555
    %v2592 = vunpack.c.l.b16 %v2556
    %v2593 = vunpack.c.l.b16 %v2557
    %v2594 = vunpack.c.h.b16 %v2557
    %v2595 = vunpack.c.l.b16 %v2558
    %v2596 = vpack.c.b16 %v2587, %v2584
    %v2597 = vpack.c.b16 %v2588, %v2585
    %v2598 = vpack.c.b16 %v2589, %v2586
    %v2599 = vpack.c.b16 %v2593, %v2590
    %v2600 = vpack.c.b16 %v2594, %v2591
    %v2601 = vpack.c.b16 %v2595, %v2592
    %v2609 = vsel %vm106, %v2550, 0
    %2611 = vmatprep.subr.bf16.mxu0 0
    %2612 = vmatpush1.bf16.msra.mxu0 0
    %2613 = vmatprep.subr.bf16.mxu0 0
    %2614 = vmatpush1.bf16.msra.mxu0 0
    %2615 = vmatprep.subr.bf16.mxu0 0
    %2616 = vmatpush1.bf16.msra.mxu0 0
    %2617 = vmatprep.subr.bf16.mxu0 0
    %2618 = vmatpush1.bf16.msra.mxu0 0
    %2619 = vmatprep.subr.bf16.mxu0 0
    %2620 = vmatpush1.bf16.msra.mxu0 0
    %2621 = vmatprep.subr.bf16.mxu0 0
    %2622 = vmatpush1.bf16.msra.mxu0 0
    %2623 = vmatprep.subr.bf16.mxu0 %v2600
    %2624 = vmatpush1.bf16.msra.mxu0 %v2599
    %2625 = vmatprep.subr.bf16.mxu0 %v2597
    %2626 = vmatpush1.bf16.msra.mxu0 %v2596
    %2627 = vmatprep.subr.bf16.mxu0 0
    %2628 = vmatpush2.bf16.msra.mxu0 0
    %2629 = vmatprep.subr.bf16.mxu0 0
    %2630 = vmatpush2.bf16.msra.mxu0 0
    %2631 = vmatprep.subr.bf16.mxu0 0
    %2632 = vmatpush2.bf16.msra.mxu0 0
    %2633 = vmatprep.subr.bf16.mxu0 0
    %2634 = vmatpush2.bf16.msra.mxu0 0
    %2635 = vmatprep.subr.bf16.mxu0 0
    %2636 = vmatpush2.bf16.msra.mxu0 0
    %2637 = vmatprep.subr.bf16.mxu0 0
    %2638 = vmatpush2.bf16.msra.mxu0 0
    %2639 = vmatprep.subr.bf16.mxu0 0
    %2640 = vmatpush2.bf16.msra.mxu0 0
    %2641 = vmatprep.subr.bf16.mxu0 0
    %2642 = vmatpush2.bf16.msra.mxu0 0
    %2643 = vmatprep.mubr.bf16.mxu0 0
    %2644 = vmatmul.mubr.bf16.gmra.mxu0 %v2609
    %v2645 = vpop.f32.mrf.mxu0
    %v2646 = vadd.f32 %v2564, %v2645
    %v2647 = vpop.f32.mrf.mxu0
    %v2648 = vadd.f32 %v2568, %v2647
    %v2649 = vpop.f32.mrf.mxu0
    %v2650 = vpop.f32.mrf.mxu0
    %2651 = vdwg.mxu0
    %2652 = vmatprep.subr.bf16.mxu0 0
    %2653 = vmatpush1.bf16.msra.mxu0 0
    %2654 = vmatprep.subr.bf16.mxu0 0
    %2655 = vmatpush1.bf16.msra.mxu0 0
    %2656 = vmatprep.subr.bf16.mxu0 0
    %2657 = vmatpush1.bf16.msra.mxu0 0
    %2658 = vmatprep.subr.bf16.mxu0 0
    %2659 = vmatpush1.bf16.msra.mxu0 0
    %2660 = vmatprep.subr.bf16.mxu0 0
    %2661 = vmatpush1.bf16.msra.mxu0 0
    %2662 = vmatprep.subr.bf16.mxu0 0
    %2663 = vmatpush1.bf16.msra.mxu0 0
    %2664 = vmatprep.subr.bf16.mxu0 0
    %2665 = vmatpush1.bf16.msra.mxu0 %v2601
    %2666 = vmatprep.subr.bf16.mxu0 0
    %2667 = vmatpush1.bf16.msra.mxu0 %v2598
    %2668 = vmatprep.subr.bf16.mxu0 0
    %2669 = vmatpush2.bf16.msra.mxu0 0
    %2670 = vmatprep.subr.bf16.mxu0 0
    %2671 = vmatpush2.bf16.msra.mxu0 0
    %2672 = vmatprep.subr.bf16.mxu0 0
    %2673 = vmatpush2.bf16.msra.mxu0 0
    %2674 = vmatprep.subr.bf16.mxu0 0
    %2675 = vmatpush2.bf16.msra.mxu0 0
    %2676 = vmatprep.subr.bf16.mxu0 0
    %2677 = vmatpush2.bf16.msra.mxu0 0
    %2678 = vmatprep.subr.bf16.mxu0 0
    %2679 = vmatpush2.bf16.msra.mxu0 0
    %2680 = vmatprep.subr.bf16.mxu0 0
    %2681 = vmatpush2.bf16.msra.mxu0 0
    %2682 = vmatprep.subr.bf16.mxu0 0
    %2683 = vmatpush2.bf16.msra.mxu0 0
    %2684 = vmatprep.mubr.bf16.mxu0 0
    %2685 = vmatmul.mubr.bf16.gmra.mxu0 %v2609
    %v2686 = vpop.f32.mrf.mxu0
    %v2687 = vadd.f32 %v2572, %v2686
    %v2688 = vpop.f32.mrf.mxu0
    %v2689 = vpop.f32.mrf.mxu0
    %v2690 = vpop.f32.mrf.mxu0
    %2691 = vdwg.mxu0
    %v2692 = vpack.c.bf16 %v2545, %v2545
    %v2693 = vld [vmem:[#allocation3] sm:$0xff]
    %v2694 = vld [vmem:[#allocation3 + $0x8] sm:$0xf]
    %v2695 = vld [vmem:[#allocation3 + $0xc] sm:$0xff]
    %v2696 = vld [vmem:[#allocation3 + $0x14] sm:$0xf]
    %v2697 = vld [vmem:[#allocation3 + $0x18] sm:$0xff]
    %v2698 = vld [vmem:[#allocation3 + $0x20] sm:$0xf]
    %v2699 = vld [vmem:[#allocation3 + $0x24] sm:$0xff]
    %v2700 = vld [vmem:[#allocation3 + $0x2c] sm:$0xf]
    %v2701 = vld [vmem:[#allocation3 + $0x30] sm:$0xff]
    %v2702 = vld [vmem:[#allocation3 + $0x38] sm:$0xf]
    %v2703 = vld [vmem:[#allocation3 + $0x3c] sm:$0xff]
    %v2704 = vld [vmem:[#allocation3 + $0x44] sm:$0xf]
    %v2705 = vld [vmem:[#allocation3 + $0x48] sm:$0xff]
    %v2706 = vld [vmem:[#allocation3 + $0x50] sm:$0xf]
    %v2707 = vld [vmem:[#allocation3 + $0x54] sm:$0xff]
    %v2708 = vld [vmem:[#allocation3 + $0x5c] sm:$0xf]
    %v2709 = vld [vmem:[#allocation3 + $0x60] sm:$0xff]
    %v2710 = vld [vmem:[#allocation3 + $0x68] sm:$0xf]
    %v2711 = vld [vmem:[#allocation3 + $0x6c] sm:$0xff]
    %v2712 = vld [vmem:[#allocation3 + $0x74] sm:$0xf]
    %v2713 = vld [vmem:[#allocation3 + $0x78] sm:$0xff]
    %v2714 = vld [vmem:[#allocation3 + $0x80] sm:$0xf]
    %v2715 = vld [vmem:[#allocation3 + $0x84] sm:$0xff]
    %v2716 = vld [vmem:[#allocation3 + $0x8c] sm:$0xf]
    %v2717 = vld [vmem:[#allocation3 + $0x90] sm:$0xff]
    %v2718 = vld [vmem:[#allocation3 + $0x98] sm:$0xf]
    %v2719 = vld [vmem:[#allocation3 + $0x9c] sm:$0xff]
    %v2720 = vld [vmem:[#allocation3 + $0xa4] sm:$0xf]
    %v2721 = vld [vmem:[#allocation3 + $0xa8] sm:$0xff]
    %v2722 = vld [vmem:[#allocation3 + $0xb0] sm:$0xf]
    %v2723 = vld [vmem:[#allocation3 + $0xb4] sm:$0xff]
    %v2724 = vld [vmem:[#allocation3 + $0xbc] sm:$0xf]
    %v2757 = vunpack.c.l.b16 %v2693
    %v2758 = vunpack.c.h.b16 %v2693
    %v2759 = vunpack.c.l.b16 %v2694
    %v2760 = vunpack.c.l.b16 %v2695
    %v2761 = vunpack.c.h.b16 %v2695
    %v2762 = vunpack.c.l.b16 %v2696
    %v2763 = vunpack.c.l.b16 %v2697
    %v2764 = vunpack.c.h.b16 %v2697
    %v2765 = vunpack.c.l.b16 %v2698
    %v2766 = vunpack.c.l.b16 %v2699
    %v2767 = vunpack.c.h.b16 %v2699
    %v2768 = vunpack.c.l.b16 %v2700
    %v2769 = vunpack.c.l.b16 %v2701
    %v2770 = vunpack.c.h.b16 %v2701
    %v2771 = vunpack.c.l.b16 %v2702
    %v2772 = vunpack.c.l.b16 %v2703
    %v2773 = vunpack.c.h.b16 %v2703
    %v2774 = vunpack.c.l.b16 %v2704
    %v2775 = vunpack.c.l.b16 %v2705
    %v2776 = vunpack.c.h.b16 %v2705
    %v2777 = vunpack.c.l.b16 %v2706
    %v2778 = vunpack.c.l.b16 %v2707
    %v2779 = vunpack.c.h.b16 %v2707
    %v2780 = vunpack.c.l.b16 %v2708
    %v2781 = vunpack.c.l.b16 %v2709
    %v2782 = vunpack.c.h.b16 %v2709
    %v2783 = vunpack.c.l.b16 %v2710
    %v2784 = vunpack.c.l.b16 %v2711
    %v2785 = vunpack.c.h.b16 %v2711
    %v2786 = vunpack.c.l.b16 %v2712
    %v2787 = vunpack.c.l.b16 %v2713
    %v2788 = vunpack.c.h.b16 %v2713
    %v2789 = vunpack.c.l.b16 %v2714
    %v2790 = vunpack.c.l.b16 %v2715
    %v2791 = vunpack.c.h.b16 %v2715
    %v2792 = vunpack.c.l.b16 %v2716
    %v2793 = vunpack.c.l.b16 %v2717
    %v2794 = vunpack.c.h.b16 %v2717
    %v2795 = vunpack.c.l.b16 %v2718
    %v2796 = vunpack.c.l.b16 %v2719
    %v2797 = vunpack.c.h.b16 %v2719
    %v2798 = vunpack.c.l.b16 %v2720
    %v2799 = vunpack.c.l.b16 %v2721
    %v2800 = vunpack.c.h.b16 %v2721
    %v2801 = vunpack.c.l.b16 %v2722
    %v2802 = vunpack.c.l.b16 %v2723
    %v2803 = vunpack.c.h.b16 %v2723
    %v2804 = vunpack.c.l.b16 %v2724
    %v2805 = vpack.c.b16 %v2760, %v2757
    %v2806 = vpack.c.b16 %v2761, %v2758
    %v2807 = vpack.c.b16 %v2762, %v2759
    %v2808 = vpack.c.b16 %v2766, %v2763
    %v2809 = vpack.c.b16 %v2767, %v2764
    %v2810 = vpack.c.b16 %v2768, %v2765
    %v2811 = vpack.c.b16 %v2772, %v2769
    %v2812 = vpack.c.b16 %v2773, %v2770
    %v2813 = vpack.c.b16 %v2774, %v2771
    %v2814 = vpack.c.b16 %v2778, %v2775
    %v2815 = vpack.c.b16 %v2779, %v2776
    %v2816 = vpack.c.b16 %v2780, %v2777
    %v2817 = vpack.c.b16 %v2784, %v2781
    %v2818 = vpack.c.b16 %v2785, %v2782
    %v2819 = vpack.c.b16 %v2786, %v2783
    %v2820 = vpack.c.b16 %v2790, %v2787
    %v2821 = vpack.c.b16 %v2791, %v2788
    %v2822 = vpack.c.b16 %v2792, %v2789
    %v2823 = vpack.c.b16 %v2796, %v2793
    %v2824 = vpack.c.b16 %v2797, %v2794
    %v2825 = vpack.c.b16 %v2798, %v2795
    %v2826 = vpack.c.b16 %v2802, %v2799
    %v2827 = vpack.c.b16 %v2803, %v2800
    %v2828 = vpack.c.b16 %v2804, %v2801
    %2853 = vmatprep.subr.bf16.mxu0 %v2827
    %2854 = vmatpush1.bf16.msra.mxu0 %v2826
    %2855 = vmatprep.subr.bf16.mxu0 %v2824
    %2856 = vmatpush1.bf16.msra.mxu0 %v2823
    %2857 = vmatprep.subr.bf16.mxu0 %v2821
    %2858 = vmatpush1.bf16.msra.mxu0 %v2820
    %2859 = vmatprep.subr.bf16.mxu0 %v2818
    %2860 = vmatpush1.bf16.msra.mxu0 %v2817
    %2861 = vmatprep.subr.bf16.mxu0 %v2815
    %2862 = vmatpush1.bf16.msra.mxu0 %v2814
    %2863 = vmatprep.subr.bf16.mxu0 %v2812
    %2864 = vmatpush1.bf16.msra.mxu0 %v2811
    %2865 = vmatprep.subr.bf16.mxu0 %v2809
    %2866 = vmatpush1.bf16.msra.mxu0 %v2808
    %2867 = vmatprep.subr.bf16.mxu0 %v2806
    %2868 = vmatpush1.bf16.msra.mxu0 %v2805
    %2869 = vmatprep.subr.bf16.mxu0 0
    %2870 = vmatpush2.bf16.msra.mxu0 0
    %2871 = vmatprep.subr.bf16.mxu0 0
    %2872 = vmatpush2.bf16.msra.mxu0 0
    %2873 = vmatprep.subr.bf16.mxu0 0
    %2874 = vmatpush2.bf16.msra.mxu0 0
    %2875 = vmatprep.subr.bf16.mxu0 0
    %2876 = vmatpush2.bf16.msra.mxu0 0
    %2877 = vmatprep.subr.bf16.mxu0 0
    %2878 = vmatpush2.bf16.msra.mxu0 0
    %2879 = vmatprep.subr.bf16.mxu0 0
    %2880 = vmatpush2.bf16.msra.mxu0 0
    %2881 = vmatprep.subr.bf16.mxu0 0
    %2882 = vmatpush2.bf16.msra.mxu0 0
    %2883 = vmatprep.subr.bf16.mxu0 0
    %2884 = vmatpush2.bf16.msra.mxu0 0
    %2885 = vmatprep.mubr.bf16.mxu0 0
    %2886 = vmatmul.mubr.bf16.gmra.mxu0 %v2692
    %v2887 = vpop.f32.mrf.mxu0
    %v2888 = vadd.f32 0.0, %v2887
    %v2889 = vpop.f32.mrf.mxu0
    %v2890 = vadd.f32 0.0, %v2889
    %v2891 = vpop.f32.mrf.mxu0
    %v2892 = vpop.f32.mrf.mxu0
    %2893 = vdwg.mxu0
    %2894 = vmatprep.subr.bf16.mxu0 0
    %2895 = vmatpush1.bf16.msra.mxu0 %v2828
    %2896 = vmatprep.subr.bf16.mxu0 0
    %2897 = vmatpush1.bf16.msra.mxu0 %v2825
    %2898 = vmatprep.subr.bf16.mxu0 0
    %2899 = vmatpush1.bf16.msra.mxu0 %v2822
    %2900 = vmatprep.subr.bf16.mxu0 0
    %2901 = vmatpush1.bf16.msra.mxu0 %v2819
    %2902 = vmatprep.subr.bf16.mxu0 0
    %2903 = vmatpush1.bf16.msra.mxu0 %v2816
    %2904 = vmatprep.subr.bf16.mxu0 0
    %2905 = vmatpush1.bf16.msra.mxu0 %v2813
    %2906 = vmatprep.subr.bf16.mxu0 0
    %2907 = vmatpush1.bf16.msra.mxu0 %v2810
    %2908 = vmatprep.subr.bf16.mxu0 0
    %2909 = vmatpush1.bf16.msra.mxu0 %v2807
    %2910 = vmatprep.subr.bf16.mxu0 0
    %2911 = vmatpush2.bf16.msra.mxu0 0
    %2912 = vmatprep.subr.bf16.mxu0 0
    %2913 = vmatpush2.bf16.msra.mxu0 0
    %2914 = vmatprep.subr.bf16.mxu0 0
    %2915 = vmatpush2.bf16.msra.mxu0 0
    %2916 = vmatprep.subr.bf16.mxu0 0
    %2917 = vmatpush2.bf16.msra.mxu0 0
    %2918 = vmatprep.subr.bf16.mxu0 0
    %2919 = vmatpush2.bf16.msra.mxu0 0
    %2920 = vmatprep.subr.bf16.mxu0 0
    %2921 = vmatpush2.bf16.msra.mxu0 0
    %2922 = vmatprep.subr.bf16.mxu0 0
    %2923 = vmatpush2.bf16.msra.mxu0 0
    %2924 = vmatprep.subr.bf16.mxu0 0
    %2925 = vmatpush2.bf16.msra.mxu0 0
    %2926 = vmatprep.mubr.bf16.mxu0 0
    %2927 = vmatmul.mubr.bf16.gmra.mxu0 %v2692
    %v2928 = vpop.f32.mrf.mxu0
    %v2929 = vadd.f32 0.0, %v2928
    %v2930 = vpop.f32.mrf.mxu0
    %v2931 = vpop.f32.mrf.mxu0
    %v2932 = vpop.f32.mrf.mxu0
    %2933 = vdwg.mxu0
    %v2934 = vadd.f32 %v2646, %v2888
    %v2935 = vxor.u32 %v2934, 2147483648
    %v2936 = vmul.f32 %v2935, 1.442695
    %v2937 = vpow.pop %v2936
    %v2938 = vadd.f32 %v2937, 1.0
    %v2939 = vrcp.pop %v2938
    %v2940 = vmul.f32 1.0, %v2939
    %v2941 = vadd.f32 %v2648, %v2890
    %v2942 = vxor.u32 %v2941, 2147483648
    %v2943 = vmul.f32 %v2942, 1.442695
    %v2944 = vpow.pop %v2943
    %v2945 = vadd.f32 %v2944, 1.0
    %v2946 = vrcp.pop %v2945
    %v2947 = vmul.f32 1.0, %v2946
    %v2948 = vld [vmem:[%s5] sm:$0x1]
    %v2950 = vlaneseq
    %v2951 = vshrl.u32 %v2950, 7
    %v2952 = vsub.s32 0, %v2951
    %v2953 = vrot.slane %v2948, %v2952
    %v2955 = vadd.f32 %v2929, %v2953
    %v2956 = vmul.f32 %v2940, %v2955
    %v2957 = vadd.f32 %v2687, %v2956
    %v2958 = vtanh.pop %v2957
    %v2959 = vsub.f32 1.0, %v2947
    %v2960 = vmul.f32 %v2959, %v2958
    %v2961 = vmul.f32 %v2947, %v2545
    %v2962 = vadd.f32 %v2960, %v2961
    %s2963 = scalar_lea.vmem %s6, 12
    %2964 = vst [vmem:[%s2963] sm:$0x3] %v2962
    %s2965 = scalar_lea.vmem %s0, 14
    %v2966 = vld [vmem:[%s2965] sm:$0x3]
    %v2967 = vpack.c.bf16 %v2966, %v2966
    %v2968 = vld [vmem:[%s2] sm:$0xff]
    %v2969 = vld [vmem:[%s2 + $0x8] sm:$0xf]
    %v2970 = vld [vmem:[%s2 + $0xc] sm:$0xff]
    %v2971 = vld [vmem:[%s2 + $0x14] sm:$0xf]
    %v2972 = vld [vmem:[%s2 + $0x18] sm:$0xff]
    %v2973 = vld [vmem:[%s2 + $0x20] sm:$0xf]
    %v2974 = vld [vmem:[%s2 + $0x24] sm:$0xff]
    %v2975 = vld [vmem:[%s2 + $0x2c] sm:$0xf]
    %v2976 = vld [vmem:[%s4] sm:$0x7]
    %v2978 = vlaneseq
    %v2979 = vshrl.u32 %v2978, 7
    %v2980 = vsub.s32 0, %v2979
    %v2981 = vrot.slane %v2976, %v2980
    %v2982 = vlaneseq
    %v2983 = vshrl.u32 %v2982, 7
    %v2984 = vsub.s32 1, %v2983
    %v2985 = vrot.slane %v2976, %v2984
    %v2986 = vlaneseq
    %v2987 = vshrl.u32 %v2986, 7
    %v2988 = vsub.s32 2, %v2987
    %v2989 = vrot.slane %v2976, %v2988
    %v3001 = vunpack.c.l.b16 %v2968
    %v3002 = vunpack.c.h.b16 %v2968
    %v3003 = vunpack.c.l.b16 %v2969
    %v3004 = vunpack.c.l.b16 %v2970
    %v3005 = vunpack.c.h.b16 %v2970
    %v3006 = vunpack.c.l.b16 %v2971
    %v3007 = vunpack.c.l.b16 %v2972
    %v3008 = vunpack.c.h.b16 %v2972
    %v3009 = vunpack.c.l.b16 %v2973
    %v3010 = vunpack.c.l.b16 %v2974
    %v3011 = vunpack.c.h.b16 %v2974
    %v3012 = vunpack.c.l.b16 %v2975
    %v3013 = vpack.c.b16 %v3004, %v3001
    %v3014 = vpack.c.b16 %v3005, %v3002
    %v3015 = vpack.c.b16 %v3006, %v3003
    %v3016 = vpack.c.b16 %v3010, %v3007
    %v3017 = vpack.c.b16 %v3011, %v3008
    %v3018 = vpack.c.b16 %v3012, %v3009
    %v3026 = vsel %vm106, %v2967, 0
    %3028 = vmatprep.subr.bf16.mxu0 0
    %3029 = vmatpush1.bf16.msra.mxu0 0
    %3030 = vmatprep.subr.bf16.mxu0 0
    %3031 = vmatpush1.bf16.msra.mxu0 0
    %3032 = vmatprep.subr.bf16.mxu0 0
    %3033 = vmatpush1.bf16.msra.mxu0 0
    %3034 = vmatprep.subr.bf16.mxu0 0
    %3035 = vmatpush1.bf16.msra.mxu0 0
    %3036 = vmatprep.subr.bf16.mxu0 0
    %3037 = vmatpush1.bf16.msra.mxu0 0
    %3038 = vmatprep.subr.bf16.mxu0 0
    %3039 = vmatpush1.bf16.msra.mxu0 0
    %3040 = vmatprep.subr.bf16.mxu0 %v3017
    %3041 = vmatpush1.bf16.msra.mxu0 %v3016
    %3042 = vmatprep.subr.bf16.mxu0 %v3014
    %3043 = vmatpush1.bf16.msra.mxu0 %v3013
    %3044 = vmatprep.subr.bf16.mxu0 0
    %3045 = vmatpush2.bf16.msra.mxu0 0
    %3046 = vmatprep.subr.bf16.mxu0 0
    %3047 = vmatpush2.bf16.msra.mxu0 0
    %3048 = vmatprep.subr.bf16.mxu0 0
    %3049 = vmatpush2.bf16.msra.mxu0 0
    %3050 = vmatprep.subr.bf16.mxu0 0
    %3051 = vmatpush2.bf16.msra.mxu0 0
    %3052 = vmatprep.subr.bf16.mxu0 0
    %3053 = vmatpush2.bf16.msra.mxu0 0
    %3054 = vmatprep.subr.bf16.mxu0 0
    %3055 = vmatpush2.bf16.msra.mxu0 0
    %3056 = vmatprep.subr.bf16.mxu0 0
    %3057 = vmatpush2.bf16.msra.mxu0 0
    %3058 = vmatprep.subr.bf16.mxu0 0
    %3059 = vmatpush2.bf16.msra.mxu0 0
    %3060 = vmatprep.mubr.bf16.mxu0 0
    %3061 = vmatmul.mubr.bf16.gmra.mxu0 %v3026
    %v3062 = vpop.f32.mrf.mxu0
    %v3063 = vadd.f32 %v2981, %v3062
    %v3064 = vpop.f32.mrf.mxu0
    %v3065 = vadd.f32 %v2985, %v3064
    %v3066 = vpop.f32.mrf.mxu0
    %v3067 = vpop.f32.mrf.mxu0
    %3068 = vdwg.mxu0
    %3069 = vmatprep.subr.bf16.mxu0 0
    %3070 = vmatpush1.bf16.msra.mxu0 0
    %3071 = vmatprep.subr.bf16.mxu0 0
    %3072 = vmatpush1.bf16.msra.mxu0 0
    %3073 = vmatprep.subr.bf16.mxu0 0
    %3074 = vmatpush1.bf16.msra.mxu0 0
    %3075 = vmatprep.subr.bf16.mxu0 0
    %3076 = vmatpush1.bf16.msra.mxu0 0
    %3077 = vmatprep.subr.bf16.mxu0 0
    %3078 = vmatpush1.bf16.msra.mxu0 0
    %3079 = vmatprep.subr.bf16.mxu0 0
    %3080 = vmatpush1.bf16.msra.mxu0 0
    %3081 = vmatprep.subr.bf16.mxu0 0
    %3082 = vmatpush1.bf16.msra.mxu0 %v3018
    %3083 = vmatprep.subr.bf16.mxu0 0
    %3084 = vmatpush1.bf16.msra.mxu0 %v3015
    %3085 = vmatprep.subr.bf16.mxu0 0
    %3086 = vmatpush2.bf16.msra.mxu0 0
    %3087 = vmatprep.subr.bf16.mxu0 0
    %3088 = vmatpush2.bf16.msra.mxu0 0
    %3089 = vmatprep.subr.bf16.mxu0 0
    %3090 = vmatpush2.bf16.msra.mxu0 0
    %3091 = vmatprep.subr.bf16.mxu0 0
    %3092 = vmatpush2.bf16.msra.mxu0 0
    %3093 = vmatprep.subr.bf16.mxu0 0
    %3094 = vmatpush2.bf16.msra.mxu0 0
    %3095 = vmatprep.subr.bf16.mxu0 0
    %3096 = vmatpush2.bf16.msra.mxu0 0
    %3097 = vmatprep.subr.bf16.mxu0 0
    %3098 = vmatpush2.bf16.msra.mxu0 0
    %3099 = vmatprep.subr.bf16.mxu0 0
    %3100 = vmatpush2.bf16.msra.mxu0 0
    %3101 = vmatprep.mubr.bf16.mxu0 0
    %3102 = vmatmul.mubr.bf16.gmra.mxu0 %v3026
    %v3103 = vpop.f32.mrf.mxu0
    %v3104 = vadd.f32 %v2989, %v3103
    %v3105 = vpop.f32.mrf.mxu0
    %v3106 = vpop.f32.mrf.mxu0
    %v3107 = vpop.f32.mrf.mxu0
    %3108 = vdwg.mxu0
    %v3109 = vpack.c.bf16 %v2962, %v2962
    %v3110 = vld [vmem:[#allocation3] sm:$0xff]
    %v3111 = vld [vmem:[#allocation3 + $0x8] sm:$0xf]
    %v3112 = vld [vmem:[#allocation3 + $0xc] sm:$0xff]
    %v3113 = vld [vmem:[#allocation3 + $0x14] sm:$0xf]
    %v3114 = vld [vmem:[#allocation3 + $0x18] sm:$0xff]
    %v3115 = vld [vmem:[#allocation3 + $0x20] sm:$0xf]
    %v3116 = vld [vmem:[#allocation3 + $0x24] sm:$0xff]
    %v3117 = vld [vmem:[#allocation3 + $0x2c] sm:$0xf]
    %v3118 = vld [vmem:[#allocation3 + $0x30] sm:$0xff]
    %v3119 = vld [vmem:[#allocation3 + $0x38] sm:$0xf]
    %v3120 = vld [vmem:[#allocation3 + $0x3c] sm:$0xff]
    %v3121 = vld [vmem:[#allocation3 + $0x44] sm:$0xf]
    %v3122 = vld [vmem:[#allocation3 + $0x48] sm:$0xff]
    %v3123 = vld [vmem:[#allocation3 + $0x50] sm:$0xf]
    %v3124 = vld [vmem:[#allocation3 + $0x54] sm:$0xff]
    %v3125 = vld [vmem:[#allocation3 + $0x5c] sm:$0xf]
    %v3126 = vld [vmem:[#allocation3 + $0x60] sm:$0xff]
    %v3127 = vld [vmem:[#allocation3 + $0x68] sm:$0xf]
    %v3128 = vld [vmem:[#allocation3 + $0x6c] sm:$0xff]
    %v3129 = vld [vmem:[#allocation3 + $0x74] sm:$0xf]
    %v3130 = vld [vmem:[#allocation3 + $0x78] sm:$0xff]
    %v3131 = vld [vmem:[#allocation3 + $0x80] sm:$0xf]
    %v3132 = vld [vmem:[#allocation3 + $0x84] sm:$0xff]
    %v3133 = vld [vmem:[#allocation3 + $0x8c] sm:$0xf]
    %v3134 = vld [vmem:[#allocation3 + $0x90] sm:$0xff]
    %v3135 = vld [vmem:[#allocation3 + $0x98] sm:$0xf]
    %v3136 = vld [vmem:[#allocation3 + $0x9c] sm:$0xff]
    %v3137 = vld [vmem:[#allocation3 + $0xa4] sm:$0xf]
    %v3138 = vld [vmem:[#allocation3 + $0xa8] sm:$0xff]
    %v3139 = vld [vmem:[#allocation3 + $0xb0] sm:$0xf]
    %v3140 = vld [vmem:[#allocation3 + $0xb4] sm:$0xff]
    %v3141 = vld [vmem:[#allocation3 + $0xbc] sm:$0xf]
    %v3174 = vunpack.c.l.b16 %v3110
    %v3175 = vunpack.c.h.b16 %v3110
    %v3176 = vunpack.c.l.b16 %v3111
    %v3177 = vunpack.c.l.b16 %v3112
    %v3178 = vunpack.c.h.b16 %v3112
    %v3179 = vunpack.c.l.b16 %v3113
    %v3180 = vunpack.c.l.b16 %v3114
    %v3181 = vunpack.c.h.b16 %v3114
    %v3182 = vunpack.c.l.b16 %v3115
    %v3183 = vunpack.c.l.b16 %v3116
    %v3184 = vunpack.c.h.b16 %v3116
    %v3185 = vunpack.c.l.b16 %v3117
    %v3186 = vunpack.c.l.b16 %v3118
    %v3187 = vunpack.c.h.b16 %v3118
    %v3188 = vunpack.c.l.b16 %v3119
    %v3189 = vunpack.c.l.b16 %v3120
    %v3190 = vunpack.c.h.b16 %v3120
    %v3191 = vunpack.c.l.b16 %v3121
    %v3192 = vunpack.c.l.b16 %v3122
    %v3193 = vunpack.c.h.b16 %v3122
    %v3194 = vunpack.c.l.b16 %v3123
    %v3195 = vunpack.c.l.b16 %v3124
    %v3196 = vunpack.c.h.b16 %v3124
    %v3197 = vunpack.c.l.b16 %v3125
    %v3198 = vunpack.c.l.b16 %v3126
    %v3199 = vunpack.c.h.b16 %v3126
    %v3200 = vunpack.c.l.b16 %v3127
    %v3201 = vunpack.c.l.b16 %v3128
    %v3202 = vunpack.c.h.b16 %v3128
    %v3203 = vunpack.c.l.b16 %v3129
    %v3204 = vunpack.c.l.b16 %v3130
    %v3205 = vunpack.c.h.b16 %v3130
    %v3206 = vunpack.c.l.b16 %v3131
    %v3207 = vunpack.c.l.b16 %v3132
    %v3208 = vunpack.c.h.b16 %v3132
    %v3209 = vunpack.c.l.b16 %v3133
    %v3210 = vunpack.c.l.b16 %v3134
    %v3211 = vunpack.c.h.b16 %v3134
    %v3212 = vunpack.c.l.b16 %v3135
    %v3213 = vunpack.c.l.b16 %v3136
    %v3214 = vunpack.c.h.b16 %v3136
    %v3215 = vunpack.c.l.b16 %v3137
    %v3216 = vunpack.c.l.b16 %v3138
    %v3217 = vunpack.c.h.b16 %v3138
    %v3218 = vunpack.c.l.b16 %v3139
    %v3219 = vunpack.c.l.b16 %v3140
    %v3220 = vunpack.c.h.b16 %v3140
    %v3221 = vunpack.c.l.b16 %v3141
    %v3222 = vpack.c.b16 %v3177, %v3174
    %v3223 = vpack.c.b16 %v3178, %v3175
    %v3224 = vpack.c.b16 %v3179, %v3176
    %v3225 = vpack.c.b16 %v3183, %v3180
    %v3226 = vpack.c.b16 %v3184, %v3181
    %v3227 = vpack.c.b16 %v3185, %v3182
    %v3228 = vpack.c.b16 %v3189, %v3186
    %v3229 = vpack.c.b16 %v3190, %v3187
    %v3230 = vpack.c.b16 %v3191, %v3188
    %v3231 = vpack.c.b16 %v3195, %v3192
    %v3232 = vpack.c.b16 %v3196, %v3193
    %v3233 = vpack.c.b16 %v3197, %v3194
    %v3234 = vpack.c.b16 %v3201, %v3198
    %v3235 = vpack.c.b16 %v3202, %v3199
    %v3236 = vpack.c.b16 %v3203, %v3200
    %v3237 = vpack.c.b16 %v3207, %v3204
    %v3238 = vpack.c.b16 %v3208, %v3205
    %v3239 = vpack.c.b16 %v3209, %v3206
    %v3240 = vpack.c.b16 %v3213, %v3210
    %v3241 = vpack.c.b16 %v3214, %v3211
    %v3242 = vpack.c.b16 %v3215, %v3212
    %v3243 = vpack.c.b16 %v3219, %v3216
    %v3244 = vpack.c.b16 %v3220, %v3217
    %v3245 = vpack.c.b16 %v3221, %v3218
    %3270 = vmatprep.subr.bf16.mxu0 %v3244
    %3271 = vmatpush1.bf16.msra.mxu0 %v3243
    %3272 = vmatprep.subr.bf16.mxu0 %v3241
    %3273 = vmatpush1.bf16.msra.mxu0 %v3240
    %3274 = vmatprep.subr.bf16.mxu0 %v3238
    %3275 = vmatpush1.bf16.msra.mxu0 %v3237
    %3276 = vmatprep.subr.bf16.mxu0 %v3235
    %3277 = vmatpush1.bf16.msra.mxu0 %v3234
    %3278 = vmatprep.subr.bf16.mxu0 %v3232
    %3279 = vmatpush1.bf16.msra.mxu0 %v3231
    %3280 = vmatprep.subr.bf16.mxu0 %v3229
    %3281 = vmatpush1.bf16.msra.mxu0 %v3228
    %3282 = vmatprep.subr.bf16.mxu0 %v3226
    %3283 = vmatpush1.bf16.msra.mxu0 %v3225
    %3284 = vmatprep.subr.bf16.mxu0 %v3223
    %3285 = vmatpush1.bf16.msra.mxu0 %v3222
    %3286 = vmatprep.subr.bf16.mxu0 0
    %3287 = vmatpush2.bf16.msra.mxu0 0
    %3288 = vmatprep.subr.bf16.mxu0 0
    %3289 = vmatpush2.bf16.msra.mxu0 0
    %3290 = vmatprep.subr.bf16.mxu0 0
    %3291 = vmatpush2.bf16.msra.mxu0 0
    %3292 = vmatprep.subr.bf16.mxu0 0
    %3293 = vmatpush2.bf16.msra.mxu0 0
    %3294 = vmatprep.subr.bf16.mxu0 0
    %3295 = vmatpush2.bf16.msra.mxu0 0
    %3296 = vmatprep.subr.bf16.mxu0 0
    %3297 = vmatpush2.bf16.msra.mxu0 0
    %3298 = vmatprep.subr.bf16.mxu0 0
    %3299 = vmatpush2.bf16.msra.mxu0 0
    %3300 = vmatprep.subr.bf16.mxu0 0
    %3301 = vmatpush2.bf16.msra.mxu0 0
    %3302 = vmatprep.mubr.bf16.mxu0 0
    %3303 = vmatmul.mubr.bf16.gmra.mxu0 %v3109
    %v3304 = vpop.f32.mrf.mxu0
    %v3305 = vadd.f32 0.0, %v3304
    %v3306 = vpop.f32.mrf.mxu0
    %v3307 = vadd.f32 0.0, %v3306
    %v3308 = vpop.f32.mrf.mxu0
    %v3309 = vpop.f32.mrf.mxu0
    %3310 = vdwg.mxu0
    %3311 = vmatprep.subr.bf16.mxu0 0
    %3312 = vmatpush1.bf16.msra.mxu0 %v3245
    %3313 = vmatprep.subr.bf16.mxu0 0
    %3314 = vmatpush1.bf16.msra.mxu0 %v3242
    %3315 = vmatprep.subr.bf16.mxu0 0
    %3316 = vmatpush1.bf16.msra.mxu0 %v3239
    %3317 = vmatprep.subr.bf16.mxu0 0
    %3318 = vmatpush1.bf16.msra.mxu0 %v3236
    %3319 = vmatprep.subr.bf16.mxu0 0
    %3320 = vmatpush1.bf16.msra.mxu0 %v3233
    %3321 = vmatprep.subr.bf16.mxu0 0
    %3322 = vmatpush1.bf16.msra.mxu0 %v3230
    %3323 = vmatprep.subr.bf16.mxu0 0
    %3324 = vmatpush1.bf16.msra.mxu0 %v3227
    %3325 = vmatprep.subr.bf16.mxu0 0
    %3326 = vmatpush1.bf16.msra.mxu0 %v3224
    %3327 = vmatprep.subr.bf16.mxu0 0
    %3328 = vmatpush2.bf16.msra.mxu0 0
    %3329 = vmatprep.subr.bf16.mxu0 0
    %3330 = vmatpush2.bf16.msra.mxu0 0
    %3331 = vmatprep.subr.bf16.mxu0 0
    %3332 = vmatpush2.bf16.msra.mxu0 0
    %3333 = vmatprep.subr.bf16.mxu0 0
    %3334 = vmatpush2.bf16.msra.mxu0 0
    %3335 = vmatprep.subr.bf16.mxu0 0
    %3336 = vmatpush2.bf16.msra.mxu0 0
    %3337 = vmatprep.subr.bf16.mxu0 0
    %3338 = vmatpush2.bf16.msra.mxu0 0
    %3339 = vmatprep.subr.bf16.mxu0 0
    %3340 = vmatpush2.bf16.msra.mxu0 0
    %3341 = vmatprep.subr.bf16.mxu0 0
    %3342 = vmatpush2.bf16.msra.mxu0 0
    %3343 = vmatprep.mubr.bf16.mxu0 0
    %3344 = vmatmul.mubr.bf16.gmra.mxu0 %v3109
    %v3345 = vpop.f32.mrf.mxu0
    %v3346 = vadd.f32 0.0, %v3345
    %v3347 = vpop.f32.mrf.mxu0
    %v3348 = vpop.f32.mrf.mxu0
    %v3349 = vpop.f32.mrf.mxu0
    %3350 = vdwg.mxu0
    %v3351 = vadd.f32 %v3063, %v3305
    %v3352 = vxor.u32 %v3351, 2147483648
    %v3353 = vmul.f32 %v3352, 1.442695
    %v3354 = vpow.pop %v3353
    %v3355 = vadd.f32 %v3354, 1.0
    %v3356 = vrcp.pop %v3355
    %v3357 = vmul.f32 1.0, %v3356
    %v3358 = vadd.f32 %v3065, %v3307
    %v3359 = vxor.u32 %v3358, 2147483648
    %v3360 = vmul.f32 %v3359, 1.442695
    %v3361 = vpow.pop %v3360
    %v3362 = vadd.f32 %v3361, 1.0
    %v3363 = vrcp.pop %v3362
    %v3364 = vmul.f32 1.0, %v3363
    %v3365 = vld [vmem:[%s5] sm:$0x1]
    %v3367 = vlaneseq
    %v3368 = vshrl.u32 %v3367, 7
    %v3369 = vsub.s32 0, %v3368
    %v3370 = vrot.slane %v3365, %v3369
    %v3372 = vadd.f32 %v3346, %v3370
    %v3373 = vmul.f32 %v3357, %v3372
    %v3374 = vadd.f32 %v3104, %v3373
    %v3375 = vtanh.pop %v3374
    %v3376 = vsub.f32 1.0, %v3364
    %v3377 = vmul.f32 %v3376, %v3375
    %v3378 = vmul.f32 %v3364, %v2962
    %v3379 = vadd.f32 %v3377, %v3378
    %s3380 = scalar_lea.vmem %s6, 14
    %3381 = vst [vmem:[%s3380] sm:$0x3] %v3379
    %3382 = vst [vmem:[#allocation2] sm:$0x3] %v3379
    // Predicated region
    $region34: #{my_classifier_forward.5} parent=1 // pred_check
      %p3383 = pneg %p40
    $region35: #{my_classifier_forward.5} parent=1 // pred_check_branch
      %3385 = sbr.rel (%p3383) target = $region37
    $region36: #{my_classifier_forward.5} parent=1 // pred_region
      %3386 = vst [vmem:[%s7] sm:$0x3] %v3379
    $region37: #{my_classifier_forward.5} parent=1 // pred_fallthru
      _
    // Predicated region
    $region38: #{my_classifier_forward.5} parent=1 // pred_check
      _
    $region39: #{my_classifier_forward.5} parent=1 // pred_check_branch
      %3388 = sbr.rel (0) target = $region41
    $region40: #{my_classifier_forward.5} parent=1 // pred_region
      _
    $region41: #{my_classifier_forward.5} parent=1 // pred_fallthru
      _
    // Predicated region
    $region42: #{my_classifier_forward.5} parent=1 // pred_check
      _
    $region43: #{my_classifier_forward.5} parent=1 // pred_check_branch
      %3390 = sbr.rel (0) target = $region45
    $region44: #{my_classifier_forward.5} parent=1 // pred_region
      _
    $region45: #{my_classifier_forward.5} parent=1 // pred_fallthru
      _
    // Predicated region
    $region46: #{my_classifier_forward.5} parent=1 // pred_check
      _
    $region47: #{my_classifier_forward.5} parent=1 // pred_check_branch
      %3392 = sbr.rel (0) target = $region49
    $region48: #{my_classifier_forward.5} parent=1 // pred_region
      _
    $region49: #{my_classifier_forward.5} parent=1 // pred_fallthru
      _
    // Predicated region
    $region50: #{my_classifier_forward.5} parent=1 // pred_check
      _
    $region51: #{my_classifier_forward.5} parent=1 // pred_check_branch
      %3394 = sbr.rel (0) target = $region53
    $region52: #{my_classifier_forward.5} parent=1 // pred_region
      _
    $region53: #{my_classifier_forward.5} parent=1 // pred_fallthru
      _
    %3395 = vsyncpa [#allocation4], 1

// kernel: my_classifier_forward.6
$region0: #{my_classifier_forward.6}
  #allocation0 [shape = 'u32[]', space=smem, size = 0x4, offset = 0x4, fixed_abs, tag = 'smem constant byte address 0x4 - core index']
  #allocation1 [shape = 'u32[144,128]{1,0:T(1,128)}', space=vmem, size = 0x12000, scoped, tag = 'internal scratch']
  #allocation2 [shape = 'f32[2,128]{1,0:T(2,128)}', space=vmem, size = 0x400, scoped, tag = 'scratch operand']
  %s0 = inlined_call_operand.vmem [shape: f32[8,2,128], index: 0, kind: input, shape index: {}]
  %s1 = inlined_call_operand.vmem [shape: f32[2,128], index: 1, kind: input, shape index: {}]
  %s2 = inlined_call_operand.vmem [shape: bf16[128,384], index: 2, kind: input, shape index: {}]
  %s3 = inlined_call_operand.vmem [shape: bf16[128,384], index: 3, kind: input, shape index: {}]
  %s4 = inlined_call_operand.vmem [shape: f32[1,384], index: 4, kind: input, shape index: {}]
  %s5 = inlined_call_operand.vmem [shape: f32[1,128], index: 5, kind: input, shape index: {}]
  %s6 = inlined_call_operand.vmem [shape: f32[8,2,128], index: 6, kind: output, shape index: {0}]
  %s7 = inlined_call_operand.vmem [shape: f32[2,128], index: 7, kind: output, shape index: {1}]
  %8 = xla_tuple %s6, %s7
  %s9 = sld [smem:[#allocation0]]
  $region50: #{my_classifier_forward.6} parent=0
    _
  %s11 = ssub.s32 1, %s9
  %s12 = scalar_select 0, %s11, %s9
  // Predicated region
  $region2: #{my_classifier_forward.6} parent=0 // pred_check
    _
  $region3: #{my_classifier_forward.6} parent=0 // pred_check_branch
    %14 = sbr.rel (0) target = $region5
  $region4: #{my_classifier_forward.6} parent=0 // pred_region
    _
  $region5: #{my_classifier_forward.6} parent=0 // pred_fallthru
    _
  // Predicated region
  $region6: #{my_classifier_forward.6} parent=0 // pred_check
    _
  $region7: #{my_classifier_forward.6} parent=0 // pred_check_branch
    %16 = sbr.rel (0) target = $region9
  $region8: #{my_classifier_forward.6} parent=0 // pred_region
    _
  $region9: #{my_classifier_forward.6} parent=0 // pred_fallthru
    _
  // Predicated region
  $region10: #{my_classifier_forward.6} parent=0 // pred_check
    _
  $region11: #{my_classifier_forward.6} parent=0 // pred_check_branch
    %18 = sbr.rel (0) target = $region13
  $region12: #{my_classifier_forward.6} parent=0 // pred_region
    _
  $region13: #{my_classifier_forward.6} parent=0 // pred_fallthru
    _
  // Predicated region
  $region14: #{my_classifier_forward.6} parent=0 // pred_check
    _
  $region15: #{my_classifier_forward.6} parent=0 // pred_check_branch
    %20 = sbr.rel (0) target = $region17
  $region16: #{my_classifier_forward.6} parent=0 // pred_region
    _
  $region17: #{my_classifier_forward.6} parent=0 // pred_fallthru
    _
  // Predicated region
  $region18: #{my_classifier_forward.6} parent=0 // pred_check
    _
  $region19: #{my_classifier_forward.6} parent=0 // pred_check_branch
    %22 = sbr.rel (0) target = $region21
  $region20: #{my_classifier_forward.6} parent=0 // pred_region
    _
  $region21: #{my_classifier_forward.6} parent=0 // pred_fallthru
    _
  // Predicated region
  $region22: #{my_classifier_forward.6} parent=0 // pred_check
    _
  $region23: #{my_classifier_forward.6} parent=0 // pred_check_branch
    %24 = sbr.rel (0) target = $region25
  $region24: #{my_classifier_forward.6} parent=0 // pred_region
    _
  $region25: #{my_classifier_forward.6} parent=0 // pred_fallthru
    _
  %p26 = scmp.eq.s32.totalorder 0, 0
  // Predicated region
  $region26: #{my_classifier_forward.6} parent=0 // pred_check
    %p27 = pneg %p26
  $region27: #{my_classifier_forward.6} parent=0 // pred_check_branch
    %29 = sbr.rel (%p27) target = $region29
  $region28: #{my_classifier_forward.6} parent=0 // pred_region
    %v30 = vld [vmem:[%s1] sm:$0x3]
    %31 = vst [vmem:[#allocation2] sm:$0x3] %v30
  $region29: #{my_classifier_forward.6} parent=0 // pred_fallthru
    _
  %v32 = vld [vmem:[#allocation2] sm:$0x3]
  %v33 = vld [vmem:[%s0] sm:$0x3]
  %v34 = vpack.c.bf16 %v33, %v33
  %v35 = vld [vmem:[%s2] sm:$0xff]
  %v36 = vld [vmem:[%s2 + $0x8] sm:$0xf]
  %v37 = vld [vmem:[%s2 + $0xc] sm:$0xff]
  %v38 = vld [vmem:[%s2 + $0x14] sm:$0xf]
  %v39 = vld [vmem:[%s2 + $0x18] sm:$0xff]
  %v40 = vld [vmem:[%s2 + $0x20] sm:$0xf]
  %v41 = vld [vmem:[%s2 + $0x24] sm:$0xff]
  %v42 = vld [vmem:[%s2 + $0x2c] sm:$0xf]
  %v43 = vld [vmem:[%s2 + $0x30] sm:$0xff]
  %v44 = vld [vmem:[%s2 + $0x38] sm:$0xf]
  %v45 = vld [vmem:[%s2 + $0x3c] sm:$0xff]
  %v46 = vld [vmem:[%s2 + $0x44] sm:$0xf]
  %v47 = vld [vmem:[%s2 + $0x48] sm:$0xff]
  %v48 = vld [vmem:[%s2 + $0x50] sm:$0xf]
  %v49 = vld [vmem:[%s2 + $0x54] sm:$0xff]
  %v50 = vld [vmem:[%s2 + $0x5c] sm:$0xf]
  %v51 = vld [vmem:[%s2 + $0x60] sm:$0xff]
  %v52 = vld [vmem:[%s2 + $0x68] sm:$0xf]
  %v53 = vld [vmem:[%s2 + $0x6c] sm:$0xff]
  %v54 = vld [vmem:[%s2 + $0x74] sm:$0xf]
  %v55 = vld [vmem:[%s2 + $0x78] sm:$0xff]
  %v56 = vld [vmem:[%s2 + $0x80] sm:$0xf]
  %v57 = vld [vmem:[%s2 + $0x84] sm:$0xff]
  %v58 = vld [vmem:[%s2 + $0x8c] sm:$0xf]
  %v59 = vld [vmem:[%s2 + $0x90] sm:$0xff]
  %v60 = vld [vmem:[%s2 + $0x98] sm:$0xf]
  %v61 = vld [vmem:[%s2 + $0x9c] sm:$0xff]
  %v62 = vld [vmem:[%s2 + $0xa4] sm:$0xf]
  %v63 = vld [vmem:[%s2 + $0xa8] sm:$0xff]
  %v64 = vld [vmem:[%s2 + $0xb0] sm:$0xf]
  %v65 = vld [vmem:[%s2 + $0xb4] sm:$0xff]
  %v66 = vld [vmem:[%s2 + $0xbc] sm:$0xf]
  %v67 = vld [vmem:[%s4] sm:$0x7]
  %v69 = vlaneseq
  %v70 = vshrl.u32 %v69, 7
  %v71 = vsub.s32 0, %v70
  %v72 = vrot.slane %v67, %v71
  %v73 = vlaneseq
  %v74 = vshrl.u32 %v73, 7
  %v75 = vsub.s32 1, %v74
  %v76 = vrot.slane %v67, %v75
  %v77 = vlaneseq
  %v78 = vshrl.u32 %v77, 7
  %v79 = vsub.s32 2, %v78
  %v80 = vrot.slane %v67, %v79
  %v116 = vunpack.c.l.b16 %v35
  %v117 = vunpack.c.h.b16 %v35
  %v118 = vunpack.c.l.b16 %v36
  %v119 = vunpack.c.l.b16 %v37
  %v120 = vunpack.c.h.b16 %v37
  %v121 = vunpack.c.l.b16 %v38
  %v122 = vunpack.c.l.b16 %v39
  %v123 = vunpack.c.h.b16 %v39
  %v124 = vunpack.c.l.b16 %v40
  %v125 = vunpack.c.l.b16 %v41
  %v126 = vunpack.c.h.b16 %v41
  %v127 = vunpack.c.l.b16 %v42
  %v128 = vunpack.c.l.b16 %v43
  %v129 = vunpack.c.h.b16 %v43
  %v130 = vunpack.c.l.b16 %v44
  %v131 = vunpack.c.l.b16 %v45
  %v132 = vunpack.c.h.b16 %v45
  %v133 = vunpack.c.l.b16 %v46
  %v134 = vunpack.c.l.b16 %v47
  %v135 = vunpack.c.h.b16 %v47
  %v136 = vunpack.c.l.b16 %v48
  %v137 = vunpack.c.l.b16 %v49
  %v138 = vunpack.c.h.b16 %v49
  %v139 = vunpack.c.l.b16 %v50
  %v140 = vunpack.c.l.b16 %v51
  %v141 = vunpack.c.h.b16 %v51
  %v142 = vunpack.c.l.b16 %v52
  %v143 = vunpack.c.l.b16 %v53
  %v144 = vunpack.c.h.b16 %v53
  %v145 = vunpack.c.l.b16 %v54
  %v146 = vunpack.c.l.b16 %v55
  %v147 = vunpack.c.h.b16 %v55
  %v148 = vunpack.c.l.b16 %v56
  %v149 = vunpack.c.l.b16 %v57
  %v150 = vunpack.c.h.b16 %v57
  %v151 = vunpack.c.l.b16 %v58
  %v152 = vunpack.c.l.b16 %v59
  %v153 = vunpack.c.h.b16 %v59
  %v154 = vunpack.c.l.b16 %v60
  %v155 = vunpack.c.l.b16 %v61
  %v156 = vunpack.c.h.b16 %v61
  %v157 = vunpack.c.l.b16 %v62
  %v158 = vunpack.c.l.b16 %v63
  %v159 = vunpack.c.h.b16 %v63
  %v160 = vunpack.c.l.b16 %v64
  %v161 = vunpack.c.l.b16 %v65
  %v162 = vunpack.c.h.b16 %v65
  %v163 = vunpack.c.l.b16 %v66
  %v164 = vpack.c.b16 %v119, %v116
  %v165 = vpack.c.b16 %v120, %v117
  %v166 = vpack.c.b16 %v121, %v118
  %v167 = vpack.c.b16 %v125, %v122
  %v168 = vpack.c.b16 %v126, %v123
  %v169 = vpack.c.b16 %v127, %v124
  %v170 = vpack.c.b16 %v131, %v128
  %v171 = vpack.c.b16 %v132, %v129
  %v172 = vpack.c.b16 %v133, %v130
  %v173 = vpack.c.b16 %v137, %v134
  %v174 = vpack.c.b16 %v138, %v135
  %v175 = vpack.c.b16 %v139, %v136
  %v176 = vpack.c.b16 %v143, %v140
  %v177 = vpack.c.b16 %v144, %v141
  %v178 = vpack.c.b16 %v145, %v142
  %v179 = vpack.c.b16 %v149, %v146
  %v180 = vpack.c.b16 %v150, %v147
  %v181 = vpack.c.b16 %v151, %v148
  %v182 = vpack.c.b16 %v155, %v152
  %v183 = vpack.c.b16 %v156, %v153
  %v184 = vpack.c.b16 %v157, %v154
  %v185 = vpack.c.b16 %v161, %v158
  %v186 = vpack.c.b16 %v162, %v159
  %v187 = vpack.c.b16 %v163, %v160
  %212 = vmatprep.subr.bf16.mxu0 %v186
  %213 = vmatpush1.bf16.msra.mxu0 %v185
  %214 = vmatprep.subr.bf16.mxu0 %v183
  %215 = vmatpush1.bf16.msra.mxu0 %v182
  %216 = vmatprep.subr.bf16.mxu0 %v180
  %217 = vmatpush1.bf16.msra.mxu0 %v179
  %218 = vmatprep.subr.bf16.mxu0 %v177
  %219 = vmatpush1.bf16.msra.mxu0 %v176
  %220 = vmatprep.subr.bf16.mxu0 %v174
  %221 = vmatpush1.bf16.msra.mxu0 %v173
  %222 = vmatprep.subr.bf16.mxu0 %v171
  %223 = vmatpush1.bf16.msra.mxu0 %v170
  %224 = vmatprep.subr.bf16.mxu0 %v168
  %225 = vmatpush1.bf16.msra.mxu0 %v167
  %226 = vmatprep.subr.bf16.mxu0 %v165
  %227 = vmatpush1.bf16.msra.mxu0 %v164
  %228 = vmatprep.subr.bf16.mxu0 0
  %229 = vmatpush2.bf16.msra.mxu0 0
  %230 = vmatprep.subr.bf16.mxu0 0
  %231 = vmatpush2.bf16.msra.mxu0 0
  %232 = vmatprep.subr.bf16.mxu0 0
  %233 = vmatpush2.bf16.msra.mxu0 0
  %234 = vmatprep.subr.bf16.mxu0 0
  %235 = vmatpush2.bf16.msra.mxu0 0
  %236 = vmatprep.subr.bf16.mxu0 0
  %237 = vmatpush2.bf16.msra.mxu0 0
  %238 = vmatprep.subr.bf16.mxu0 0
  %239 = vmatpush2.bf16.msra.mxu0 0
  %240 = vmatprep.subr.bf16.mxu0 0
  %241 = vmatpush2.bf16.msra.mxu0 0
  %242 = vmatprep.subr.bf16.mxu0 0
  %243 = vmatpush2.bf16.msra.mxu0 0
  %244 = vmatprep.mubr.bf16.mxu0 0
  %245 = vmatmul.mubr.bf16.gmra.mxu0 %v34
  %v246 = vpop.f32.mrf.mxu0
  %v247 = vadd.f32 %v72, %v246
  %v248 = vpop.f32.mrf.mxu0
  %v249 = vadd.f32 %v76, %v248
  %v250 = vpop.f32.mrf.mxu0
  %v251 = vpop.f32.mrf.mxu0
  %252 = vdwg.mxu0
  %253 = vmatprep.subr.bf16.mxu0 0
  %254 = vmatpush1.bf16.msra.mxu0 %v187
  %255 = vmatprep.subr.bf16.mxu0 0
  %256 = vmatpush1.bf16.msra.mxu0 %v184
  %257 = vmatprep.subr.bf16.mxu0 0
  %258 = vmatpush1.bf16.msra.mxu0 %v181
  %259 = vmatprep.subr.bf16.mxu0 0
  %260 = vmatpush1.bf16.msra.mxu0 %v178
  %261 = vmatprep.subr.bf16.mxu0 0
  %262 = vmatpush1.bf16.msra.mxu0 %v175
  %263 = vmatprep.subr.bf16.mxu0 0
  %264 = vmatpush1.bf16.msra.mxu0 %v172
  %265 = vmatprep.subr.bf16.mxu0 0
  %266 = vmatpush1.bf16.msra.mxu0 %v169
  %267 = vmatprep.subr.bf16.mxu0 0
  %268 = vmatpush1.bf16.msra.mxu0 %v166
  %269 = vmatprep.subr.bf16.mxu0 0
  %270 = vmatpush2.bf16.msra.mxu0 0
  %271 = vmatprep.subr.bf16.mxu0 0
  %272 = vmatpush2.bf16.msra.mxu0 0
  %273 = vmatprep.subr.bf16.mxu0 0
  %274 = vmatpush2.bf16.msra.mxu0 0
  %275 = vmatprep.subr.bf16.mxu0 0
  %276 = vmatpush2.bf16.msra.mxu0 0
  %277 = vmatprep.subr.bf16.mxu0 0
  %278 = vmatpush2.bf16.msra.mxu0 0
  %279 = vmatprep.subr.bf16.mxu0 0
  %280 = vmatpush2.bf16.msra.mxu0 0
  %281 = vmatprep.subr.bf16.mxu0 0
  %282 = vmatpush2.bf16.msra.mxu0 0
  %283 = vmatprep.subr.bf16.mxu0 0
  %284 = vmatpush2.bf16.msra.mxu0 0
  %285 = vmatprep.mubr.bf16.mxu0 0
  %286 = vmatmul.mubr.bf16.gmra.mxu0 %v34
  %v287 = vpop.f32.mrf.mxu0
  %v288 = vadd.f32 %v80, %v287
  %v289 = vpop.f32.mrf.mxu0
  %v290 = vpop.f32.mrf.mxu0
  %v291 = vpop.f32.mrf.mxu0
  %292 = vdwg.mxu0
  %v293 = vpack.c.bf16 %v32, %v32
  %v294 = vld [vmem:[%s3] sm:$0xff]
  %v295 = vld [vmem:[%s3 + $0x8] sm:$0xf]
  %v296 = vld [vmem:[%s3 + $0xc] sm:$0xff]
  %v297 = vld [vmem:[%s3 + $0x14] sm:$0xf]
  %v298 = vld [vmem:[%s3 + $0x18] sm:$0xff]
  %v299 = vld [vmem:[%s3 + $0x20] sm:$0xf]
  %v300 = vld [vmem:[%s3 + $0x24] sm:$0xff]
  %v301 = vld [vmem:[%s3 + $0x2c] sm:$0xf]
  %v302 = vld [vmem:[%s3 + $0x30] sm:$0xff]
  %v303 = vld [vmem:[%s3 + $0x38] sm:$0xf]
  %v304 = vld [vmem:[%s3 + $0x3c] sm:$0xff]
  %v305 = vld [vmem:[%s3 + $0x44] sm:$0xf]
  %v306 = vld [vmem:[%s3 + $0x48] sm:$0xff]
  %v307 = vld [vmem:[%s3 + $0x50] sm:$0xf]
  %v308 = vld [vmem:[%s3 + $0x54] sm:$0xff]
  %v309 = vld [vmem:[%s3 + $0x5c] sm:$0xf]
  %v310 = vld [vmem:[%s3 + $0x60] sm:$0xff]
  %v311 = vld [vmem:[%s3 + $0x68] sm:$0xf]
  %v312 = vld [vmem:[%s3 + $0x6c] sm:$0xff]
  %v313 = vld [vmem:[%s3 + $0x74] sm:$0xf]
  %v314 = vld [vmem:[%s3 + $0x78] sm:$0xff]
  %v315 = vld [vmem:[%s3 + $0x80] sm:$0xf]
  %v316 = vld [vmem:[%s3 + $0x84] sm:$0xff]
  %v317 = vld [vmem:[%s3 + $0x8c] sm:$0xf]
  %v318 = vld [vmem:[%s3 + $0x90] sm:$0xff]
  %v319 = vld [vmem:[%s3 + $0x98] sm:$0xf]
  %v320 = vld [vmem:[%s3 + $0x9c] sm:$0xff]
  %v321 = vld [vmem:[%s3 + $0xa4] sm:$0xf]
  %v322 = vld [vmem:[%s3 + $0xa8] sm:$0xff]
  %v323 = vld [vmem:[%s3 + $0xb0] sm:$0xf]
  %v324 = vld [vmem:[%s3 + $0xb4] sm:$0xff]
  %v325 = vld [vmem:[%s3 + $0xbc] sm:$0xf]
  %v358 = vunpack.c.l.b16 %v294
  %v359 = vunpack.c.h.b16 %v294
  %v360 = vunpack.c.l.b16 %v295
  %v361 = vunpack.c.l.b16 %v296
  %v362 = vunpack.c.h.b16 %v296
  %v363 = vunpack.c.l.b16 %v297
  %v364 = vunpack.c.l.b16 %v298
  %v365 = vunpack.c.h.b16 %v298
  %v366 = vunpack.c.l.b16 %v299
  %v367 = vunpack.c.l.b16 %v300
  %v368 = vunpack.c.h.b16 %v300
  %v369 = vunpack.c.l.b16 %v301
  %v370 = vunpack.c.l.b16 %v302
  %v371 = vunpack.c.h.b16 %v302
  %v372 = vunpack.c.l.b16 %v303
  %v373 = vunpack.c.l.b16 %v304
  %v374 = vunpack.c.h.b16 %v304
  %v375 = vunpack.c.l.b16 %v305
  %v376 = vunpack.c.l.b16 %v306
  %v377 = vunpack.c.h.b16 %v306
  %v378 = vunpack.c.l.b16 %v307
  %v379 = vunpack.c.l.b16 %v308
  %v380 = vunpack.c.h.b16 %v308
  %v381 = vunpack.c.l.b16 %v309
  %v382 = vunpack.c.l.b16 %v310
  %v383 = vunpack.c.h.b16 %v310
  %v384 = vunpack.c.l.b16 %v311
  %v385 = vunpack.c.l.b16 %v312
  %v386 = vunpack.c.h.b16 %v312
  %v387 = vunpack.c.l.b16 %v313
  %v388 = vunpack.c.l.b16 %v314
  %v389 = vunpack.c.h.b16 %v314
  %v390 = vunpack.c.l.b16 %v315
  %v391 = vunpack.c.l.b16 %v316
  %v392 = vunpack.c.h.b16 %v316
  %v393 = vunpack.c.l.b16 %v317
  %v394 = vunpack.c.l.b16 %v318
  %v395 = vunpack.c.h.b16 %v318
  %v396 = vunpack.c.l.b16 %v319
  %v397 = vunpack.c.l.b16 %v320
  %v398 = vunpack.c.h.b16 %v320
  %v399 = vunpack.c.l.b16 %v321
  %v400 = vunpack.c.l.b16 %v322
  %v401 = vunpack.c.h.b16 %v322
  %v402 = vunpack.c.l.b16 %v323
  %v403 = vunpack.c.l.b16 %v324
  %v404 = vunpack.c.h.b16 %v324
  %v405 = vunpack.c.l.b16 %v325
  %v406 = vpack.c.b16 %v361, %v358
  %v407 = vpack.c.b16 %v362, %v359
  %v408 = vpack.c.b16 %v363, %v360
  %v409 = vpack.c.b16 %v367, %v364
  %v410 = vpack.c.b16 %v368, %v365
  %v411 = vpack.c.b16 %v369, %v366
  %v412 = vpack.c.b16 %v373, %v370
  %v413 = vpack.c.b16 %v374, %v371
  %v414 = vpack.c.b16 %v375, %v372
  %v415 = vpack.c.b16 %v379, %v376
  %v416 = vpack.c.b16 %v380, %v377
  %v417 = vpack.c.b16 %v381, %v378
  %v418 = vpack.c.b16 %v385, %v382
  %v419 = vpack.c.b16 %v386, %v383
  %v420 = vpack.c.b16 %v387, %v384
  %v421 = vpack.c.b16 %v391, %v388
  %v422 = vpack.c.b16 %v392, %v389
  %v423 = vpack.c.b16 %v393, %v390
  %v424 = vpack.c.b16 %v397, %v394
  %v425 = vpack.c.b16 %v398, %v395
  %v426 = vpack.c.b16 %v399, %v396
  %v427 = vpack.c.b16 %v403, %v400
  %v428 = vpack.c.b16 %v404, %v401
  %v429 = vpack.c.b16 %v405, %v402
  %454 = vmatprep.subr.bf16.mxu0 %v428
  %455 = vmatpush1.bf16.msra.mxu0 %v427
  %456 = vmatprep.subr.bf16.mxu0 %v425
  %457 = vmatpush1.bf16.msra.mxu0 %v424
  %458 = vmatprep.subr.bf16.mxu0 %v422
  %459 = vmatpush1.bf16.msra.mxu0 %v421
  %460 = vmatprep.subr.bf16.mxu0 %v419
  %461 = vmatpush1.bf16.msra.mxu0 %v418
  %462 = vmatprep.subr.bf16.mxu0 %v416
  %463 = vmatpush1.bf16.msra.mxu0 %v415
  %464 = vmatprep.subr.bf16.mxu0 %v413
  %465 = vmatpush1.bf16.msra.mxu0 %v412
  %466 = vmatprep.subr.bf16.mxu0 %v410
  %467 = vmatpush1.bf16.msra.mxu0 %v409
  %468 = vmatprep.subr.bf16.mxu0 %v407
  %469 = vmatpush1.bf16.msra.mxu0 %v406
  %470 = vmatprep.subr.bf16.mxu0 0
  %471 = vmatpush2.bf16.msra.mxu0 0
  %472 = vmatprep.subr.bf16.mxu0 0
  %473 = vmatpush2.bf16.msra.mxu0 0
  %474 = vmatprep.subr.bf16.mxu0 0
  %475 = vmatpush2.bf16.msra.mxu0 0
  %476 = vmatprep.subr.bf16.mxu0 0
  %477 = vmatpush2.bf16.msra.mxu0 0
  %478 = vmatprep.subr.bf16.mxu0 0
  %479 = vmatpush2.bf16.msra.mxu0 0
  %480 = vmatprep.subr.bf16.mxu0 0
  %481 = vmatpush2.bf16.msra.mxu0 0
  %482 = vmatprep.subr.bf16.mxu0 0
  %483 = vmatpush2.bf16.msra.mxu0 0
  %484 = vmatprep.subr.bf16.mxu0 0
  %485 = vmatpush2.bf16.msra.mxu0 0
  %486 = vmatprep.mubr.bf16.mxu0 0
  %487 = vmatmul.mubr.bf16.gmra.mxu0 %v293
  %v488 = vpop.f32.mrf.mxu0
  %v489 = vadd.f32 0.0, %v488
  %v490 = vpop.f32.mrf.mxu0
  %v491 = vadd.f32 0.0, %v490
  %v492 = vpop.f32.mrf.mxu0
  %v493 = vpop.f32.mrf.mxu0
  %494 = vdwg.mxu0
  %495 = vmatprep.subr.bf16.mxu0 0
  %496 = vmatpush1.bf16.msra.mxu0 %v429
  %497 = vmatprep.subr.bf16.mxu0 0
  %498 = vmatpush1.bf16.msra.mxu0 %v426
  %499 = vmatprep.subr.bf16.mxu0 0
  %500 = vmatpush1.bf16.msra.mxu0 %v423
  %501 = vmatprep.subr.bf16.mxu0 0
  %502 = vmatpush1.bf16.msra.mxu0 %v420
  %503 = vmatprep.subr.bf16.mxu0 0
  %504 = vmatpush1.bf16.msra.mxu0 %v417
  %505 = vmatprep.subr.bf16.mxu0 0
  %506 = vmatpush1.bf16.msra.mxu0 %v414
  %507 = vmatprep.subr.bf16.mxu0 0
  %508 = vmatpush1.bf16.msra.mxu0 %v411
  %509 = vmatprep.subr.bf16.mxu0 0
  %510 = vmatpush1.bf16.msra.mxu0 %v408
  %511 = vmatprep.subr.bf16.mxu0 0
  %512 = vmatpush2.bf16.msra.mxu0 0
  %513 = vmatprep.subr.bf16.mxu0 0
  %514 = vmatpush2.bf16.msra.mxu0 0
  %515 = vmatprep.subr.bf16.mxu0 0
  %516 = vmatpush2.bf16.msra.mxu0 0
  %517 = vmatprep.subr.bf16.mxu0 0
  %518 = vmatpush2.bf16.msra.mxu0 0
  %519 = vmatprep.subr.bf16.mxu0 0
  %520 = vmatpush2.bf16.msra.mxu0 0
  %521 = vmatprep.subr.bf16.mxu0 0
  %522 = vmatpush2.bf16.msra.mxu0 0
  %523 = vmatprep.subr.bf16.mxu0 0
  %524 = vmatpush2.bf16.msra.mxu0 0
  %525 = vmatprep.subr.bf16.mxu0 0
  %526 = vmatpush2.bf16.msra.mxu0 0
  %527 = vmatprep.mubr.bf16.mxu0 0
  %528 = vmatmul.mubr.bf16.gmra.mxu0 %v293
  %v529 = vpop.f32.mrf.mxu0
  %v530 = vadd.f32 0.0, %v529
  %v531 = vpop.f32.mrf.mxu0
  %v532 = vpop.f32.mrf.mxu0
  %v533 = vpop.f32.mrf.mxu0
  %534 = vdwg.mxu0
  %v535 = vadd.f32 %v247, %v489
  %v536 = vxor.u32 %v535, 2147483648
  %v537 = vmul.f32 %v536, 1.442695
  %v538 = vpow.pop %v537
  %v539 = vadd.f32 %v538, 1.0
  %v540 = vrcp.pop %v539
  %v541 = vmul.f32 1.0, %v540
  %v542 = vadd.f32 %v249, %v491
  %v543 = vxor.u32 %v542, 2147483648
  %v544 = vmul.f32 %v543, 1.442695
  %v545 = vpow.pop %v544
  %v546 = vadd.f32 %v545, 1.0
  %v547 = vrcp.pop %v546
  %v548 = vmul.f32 1.0, %v547
  %v549 = vld [vmem:[%s5] sm:$0x1]
  %v551 = vlaneseq
  %v552 = vshrl.u32 %v551, 7
  %v553 = vsub.s32 0, %v552
  %v554 = vrot.slane %v549, %v553
  %v556 = vadd.f32 %v530, %v554
  %v557 = vmul.f32 %v541, %v556
  %v558 = vadd.f32 %v288, %v557
  %v559 = vtanh.pop %v558
  %v560 = vsub.f32 1.0, %v548
  %v561 = vmul.f32 %v560, %v559
  %v562 = vmul.f32 %v548, %v32
  %v563 = vadd.f32 %v561, %v562
  %564 = vst [vmem:[%s6] sm:$0x3] %v563
  %s565 = scalar_lea.vmem %s0, 2
  %v566 = vld [vmem:[%s565] sm:$0x3]
  %v567 = vpack.c.bf16 %v566, %v566
  %v568 = vld [vmem:[%s2] sm:$0xff]
  %v569 = vld [vmem:[%s2 + $0x8] sm:$0xf]
  %v570 = vld [vmem:[%s2 + $0xc] sm:$0xff]
  %v571 = vld [vmem:[%s2 + $0x14] sm:$0xf]
  %v572 = vld [vmem:[%s2 + $0x18] sm:$0xff]
  %v573 = vld [vmem:[%s2 + $0x20] sm:$0xf]
  %v574 = vld [vmem:[%s2 + $0x24] sm:$0xff]
  %v575 = vld [vmem:[%s2 + $0x2c] sm:$0xf]
  %v576 = vld [vmem:[%s2 + $0x30] sm:$0xff]
  %v577 = vld [vmem:[%s2 + $0x38] sm:$0xf]
  %v578 = vld [vmem:[%s2 + $0x3c] sm:$0xff]
  %v579 = vld [vmem:[%s2 + $0x44] sm:$0xf]
  %v580 = vld [vmem:[%s2 + $0x48] sm:$0xff]
  %v581 = vld [vmem:[%s2 + $0x50] sm:$0xf]
  %v582 = vld [vmem:[%s2 + $0x54] sm:$0xff]
  %v583 = vld [vmem:[%s2 + $0x5c] sm:$0xf]
  %v584 = vld [vmem:[%s2 + $0x60] sm:$0xff]
  %v585 = vld [vmem:[%s2 + $0x68] sm:$0xf]
  %v586 = vld [vmem:[%s2 + $0x6c] sm:$0xff]
  %v587 = vld [vmem:[%s2 + $0x74] sm:$0xf]
  %v588 = vld [vmem:[%s2 + $0x78] sm:$0xff]
  %v589 = vld [vmem:[%s2 + $0x80] sm:$0xf]
  %v590 = vld [vmem:[%s2 + $0x84] sm:$0xff]
  %v591 = vld [vmem:[%s2 + $0x8c] sm:$0xf]
  %v592 = vld [vmem:[%s2 + $0x90] sm:$0xff]
  %v593 = vld [vmem:[%s2 + $0x98] sm:$0xf]
  %v594 = vld [vmem:[%s2 + $0x9c] sm:$0xff]
  %v595 = vld [vmem:[%s2 + $0xa4] sm:$0xf]
  %v596 = vld [vmem:[%s2 + $0xa8] sm:$0xff]
  %v597 = vld [vmem:[%s2 + $0xb0] sm:$0xf]
  %v598 = vld [vmem:[%s2 + $0xb4] sm:$0xff]
  %v599 = vld [vmem:[%s2 + $0xbc] sm:$0xf]
  %v600 = vld [vmem:[%s4] sm:$0x7]
  %v602 = vlaneseq
  %v603 = vshrl.u32 %v602, 7
  %v604 = vsub.s32 0, %v603
  %v605 = vrot.slane %v600, %v604
  %v606 = vlaneseq
  %v607 = vshrl.u32 %v606, 7
  %v608 = vsub.s32 1, %v607
  %v609 = vrot.slane %v600, %v608
  %v610 = vlaneseq
  %v611 = vshrl.u32 %v610, 7
  %v612 = vsub.s32 2, %v611
  %v613 = vrot.slane %v600, %v612
  %v649 = vunpack.c.l.b16 %v568
  %v650 = vunpack.c.h.b16 %v568
  %v651 = vunpack.c.l.b16 %v569
  %v652 = vunpack.c.l.b16 %v570
  %v653 = vunpack.c.h.b16 %v570
  %v654 = vunpack.c.l.b16 %v571
  %v655 = vunpack.c.l.b16 %v572
  %v656 = vunpack.c.h.b16 %v572
  %v657 = vunpack.c.l.b16 %v573
  %v658 = vunpack.c.l.b16 %v574
  %v659 = vunpack.c.h.b16 %v574
  %v660 = vunpack.c.l.b16 %v575
  %v661 = vunpack.c.l.b16 %v576
  %v662 = vunpack.c.h.b16 %v576
  %v663 = vunpack.c.l.b16 %v577
  %v664 = vunpack.c.l.b16 %v578
  %v665 = vunpack.c.h.b16 %v578
  %v666 = vunpack.c.l.b16 %v579
  %v667 = vunpack.c.l.b16 %v580
  %v668 = vunpack.c.h.b16 %v580
  %v669 = vunpack.c.l.b16 %v581
  %v670 = vunpack.c.l.b16 %v582
  %v671 = vunpack.c.h.b16 %v582
  %v672 = vunpack.c.l.b16 %v583
  %v673 = vunpack.c.l.b16 %v584
  %v674 = vunpack.c.h.b16 %v584
  %v675 = vunpack.c.l.b16 %v585
  %v676 = vunpack.c.l.b16 %v586
  %v677 = vunpack.c.h.b16 %v586
  %v678 = vunpack.c.l.b16 %v587
  %v679 = vunpack.c.l.b16 %v588
  %v680 = vunpack.c.h.b16 %v588
  %v681 = vunpack.c.l.b16 %v589
  %v682 = vunpack.c.l.b16 %v590
  %v683 = vunpack.c.h.b16 %v590
  %v684 = vunpack.c.l.b16 %v591
  %v685 = vunpack.c.l.b16 %v592
  %v686 = vunpack.c.h.b16 %v592
  %v687 = vunpack.c.l.b16 %v593
  %v688 = vunpack.c.l.b16 %v594
  %v689 = vunpack.c.h.b16 %v594
  %v690 = vunpack.c.l.b16 %v595
  %v691 = vunpack.c.l.b16 %v596
  %v692 = vunpack.c.h.b16 %v596
  %v693 = vunpack.c.l.b16 %v597
  %v694 = vunpack.c.l.b16 %v598
  %v695 = vunpack.c.h.b16 %v598
  %v696 = vunpack.c.l.b16 %v599
  %v697 = vpack.c.b16 %v652, %v649
  %v698 = vpack.c.b16 %v653, %v650
  %v699 = vpack.c.b16 %v654, %v651
  %v700 = vpack.c.b16 %v658, %v655
  %v701 = vpack.c.b16 %v659, %v656
  %v702 = vpack.c.b16 %v660, %v657
  %v703 = vpack.c.b16 %v664, %v661
  %v704 = vpack.c.b16 %v665, %v662
  %v705 = vpack.c.b16 %v666, %v663
  %v706 = vpack.c.b16 %v670, %v667
  %v707 = vpack.c.b16 %v671, %v668
  %v708 = vpack.c.b16 %v672, %v669
  %v709 = vpack.c.b16 %v676, %v673
  %v710 = vpack.c.b16 %v677, %v674
  %v711 = vpack.c.b16 %v678, %v675
  %v712 = vpack.c.b16 %v682, %v679
  %v713 = vpack.c.b16 %v683, %v680
  %v714 = vpack.c.b16 %v684, %v681
  %v715 = vpack.c.b16 %v688, %v685
  %v716 = vpack.c.b16 %v689, %v686
  %v717 = vpack.c.b16 %v690, %v687
  %v718 = vpack.c.b16 %v694, %v691
  %v719 = vpack.c.b16 %v695, %v692
  %v720 = vpack.c.b16 %v696, %v693
  %745 = vmatprep.subr.bf16.mxu0 %v719
  %746 = vmatpush1.bf16.msra.mxu0 %v718
  %747 = vmatprep.subr.bf16.mxu0 %v716
  %748 = vmatpush1.bf16.msra.mxu0 %v715
  %749 = vmatprep.subr.bf16.mxu0 %v713
  %750 = vmatpush1.bf16.msra.mxu0 %v712
  %751 = vmatprep.subr.bf16.mxu0 %v710
  %752 = vmatpush1.bf16.msra.mxu0 %v709
  %753 = vmatprep.subr.bf16.mxu0 %v707
  %754 = vmatpush1.bf16.msra.mxu0 %v706
  %755 = vmatprep.subr.bf16.mxu0 %v704
  %756 = vmatpush1.bf16.msra.mxu0 %v703
  %757 = vmatprep.subr.bf16.mxu0 %v701
  %758 = vmatpush1.bf16.msra.mxu0 %v700
  %759 = vmatprep.subr.bf16.mxu0 %v698
  %760 = vmatpush1.bf16.msra.mxu0 %v697
  %761 = vmatprep.subr.bf16.mxu0 0
  %762 = vmatpush2.bf16.msra.mxu0 0
  %763 = vmatprep.subr.bf16.mxu0 0
  %764 = vmatpush2.bf16.msra.mxu0 0
  %765 = vmatprep.subr.bf16.mxu0 0
  %766 = vmatpush2.bf16.msra.mxu0 0
  %767 = vmatprep.subr.bf16.mxu0 0
  %768 = vmatpush2.bf16.msra.mxu0 0
  %769 = vmatprep.subr.bf16.mxu0 0
  %770 = vmatpush2.bf16.msra.mxu0 0
  %771 = vmatprep.subr.bf16.mxu0 0
  %772 = vmatpush2.bf16.msra.mxu0 0
  %773 = vmatprep.subr.bf16.mxu0 0
  %774 = vmatpush2.bf16.msra.mxu0 0
  %775 = vmatprep.subr.bf16.mxu0 0
  %776 = vmatpush2.bf16.msra.mxu0 0
  %777 = vmatprep.mubr.bf16.mxu0 0
  %778 = vmatmul.mubr.bf16.gmra.mxu0 %v567
  %v779 = vpop.f32.mrf.mxu0
  %v780 = vadd.f32 %v605, %v779
  %v781 = vpop.f32.mrf.mxu0
  %v782 = vadd.f32 %v609, %v781
  %v783 = vpop.f32.mrf.mxu0
  %v784 = vpop.f32.mrf.mxu0
  %785 = vdwg.mxu0
  %786 = vmatprep.subr.bf16.mxu0 0
  %787 = vmatpush1.bf16.msra.mxu0 %v720
  %788 = vmatprep.subr.bf16.mxu0 0
  %789 = vmatpush1.bf16.msra.mxu0 %v717
  %790 = vmatprep.subr.bf16.mxu0 0
  %791 = vmatpush1.bf16.msra.mxu0 %v714
  %792 = vmatprep.subr.bf16.mxu0 0
  %793 = vmatpush1.bf16.msra.mxu0 %v711
  %794 = vmatprep.subr.bf16.mxu0 0
  %795 = vmatpush1.bf16.msra.mxu0 %v708
  %796 = vmatprep.subr.bf16.mxu0 0
  %797 = vmatpush1.bf16.msra.mxu0 %v705
  %798 = vmatprep.subr.bf16.mxu0 0
  %799 = vmatpush1.bf16.msra.mxu0 %v702
  %800 = vmatprep.subr.bf16.mxu0 0
  %801 = vmatpush1.bf16.msra.mxu0 %v699
  %802 = vmatprep.subr.bf16.mxu0 0
  %803 = vmatpush2.bf16.msra.mxu0 0
  %804 = vmatprep.subr.bf16.mxu0 0
  %805 = vmatpush2.bf16.msra.mxu0 0
  %806 = vmatprep.subr.bf16.mxu0 0
  %807 = vmatpush2.bf16.msra.mxu0 0
  %808 = vmatprep.subr.bf16.mxu0 0
  %809 = vmatpush2.bf16.msra.mxu0 0
  %810 = vmatprep.subr.bf16.mxu0 0
  %811 = vmatpush2.bf16.msra.mxu0 0
  %812 = vmatprep.subr.bf16.mxu0 0
  %813 = vmatpush2.bf16.msra.mxu0 0
  %814 = vmatprep.subr.bf16.mxu0 0
  %815 = vmatpush2.bf16.msra.mxu0 0
  %816 = vmatprep.subr.bf16.mxu0 0
  %817 = vmatpush2.bf16.msra.mxu0 0
  %818 = vmatprep.mubr.bf16.mxu0 0
  %819 = vmatmul.mubr.bf16.gmra.mxu0 %v567
  %v820 = vpop.f32.mrf.mxu0
  %v821 = vadd.f32 %v613, %v820
  %v822 = vpop.f32.mrf.mxu0
  %v823 = vpop.f32.mrf.mxu0
  %v824 = vpop.f32.mrf.mxu0
  %825 = vdwg.mxu0
  %v826 = vpack.c.bf16 %v563, %v563
  %v827 = vld [vmem:[%s3] sm:$0xff]
  %v828 = vld [vmem:[%s3 + $0x8] sm:$0xf]
  %v829 = vld [vmem:[%s3 + $0xc] sm:$0xff]
  %v830 = vld [vmem:[%s3 + $0x14] sm:$0xf]
  %v831 = vld [vmem:[%s3 + $0x18] sm:$0xff]
  %v832 = vld [vmem:[%s3 + $0x20] sm:$0xf]
  %v833 = vld [vmem:[%s3 + $0x24] sm:$0xff]
  %v834 = vld [vmem:[%s3 + $0x2c] sm:$0xf]
  %v835 = vld [vmem:[%s3 + $0x30] sm:$0xff]
  %v836 = vld [vmem:[%s3 + $0x38] sm:$0xf]
  %v837 = vld [vmem:[%s3 + $0x3c] sm:$0xff]
  %v838 = vld [vmem:[%s3 + $0x44] sm:$0xf]
  %v839 = vld [vmem:[%s3 + $0x48] sm:$0xff]
  %v840 = vld [vmem:[%s3 + $0x50] sm:$0xf]
  %v841 = vld [vmem:[%s3 + $0x54] sm:$0xff]
  %v842 = vld [vmem:[%s3 + $0x5c] sm:$0xf]
  %v843 = vld [vmem:[%s3 + $0x60] sm:$0xff]
  %v844 = vld [vmem:[%s3 + $0x68] sm:$0xf]
  %v845 = vld [vmem:[%s3 + $0x6c] sm:$0xff]
  %v846 = vld [vmem:[%s3 + $0x74] sm:$0xf]
  %v847 = vld [vmem:[%s3 + $0x78] sm:$0xff]
  %v848 = vld [vmem:[%s3 + $0x80] sm:$0xf]
  %v849 = vld [vmem:[%s3 + $0x84] sm:$0xff]
  %v850 = vld [vmem:[%s3 + $0x8c] sm:$0xf]
  %v851 = vld [vmem:[%s3 + $0x90] sm:$0xff]
  %v852 = vld [vmem:[%s3 + $0x98] sm:$0xf]
  %v853 = vld [vmem:[%s3 + $0x9c] sm:$0xff]
  %v854 = vld [vmem:[%s3 + $0xa4] sm:$0xf]
  %v855 = vld [vmem:[%s3 + $0xa8] sm:$0xff]
  %v856 = vld [vmem:[%s3 + $0xb0] sm:$0xf]
  %v857 = vld [vmem:[%s3 + $0xb4] sm:$0xff]
  %v858 = vld [vmem:[%s3 + $0xbc] sm:$0xf]
  %v891 = vunpack.c.l.b16 %v827
  %v892 = vunpack.c.h.b16 %v827
  %v893 = vunpack.c.l.b16 %v828
  %v894 = vunpack.c.l.b16 %v829
  %v895 = vunpack.c.h.b16 %v829
  %v896 = vunpack.c.l.b16 %v830
  %v897 = vunpack.c.l.b16 %v831
  %v898 = vunpack.c.h.b16 %v831
  %v899 = vunpack.c.l.b16 %v832
  %v900 = vunpack.c.l.b16 %v833
  %v901 = vunpack.c.h.b16 %v833
  %v902 = vunpack.c.l.b16 %v834
  %v903 = vunpack.c.l.b16 %v835
  %v904 = vunpack.c.h.b16 %v835
  %v905 = vunpack.c.l.b16 %v836
  %v906 = vunpack.c.l.b16 %v837
  %v907 = vunpack.c.h.b16 %v837
  %v908 = vunpack.c.l.b16 %v838
  %v909 = vunpack.c.l.b16 %v839
  %v910 = vunpack.c.h.b16 %v839
  %v911 = vunpack.c.l.b16 %v840
  %v912 = vunpack.c.l.b16 %v841
  %v913 = vunpack.c.h.b16 %v841
  %v914 = vunpack.c.l.b16 %v842
  %v915 = vunpack.c.l.b16 %v843
  %v916 = vunpack.c.h.b16 %v843
  %v917 = vunpack.c.l.b16 %v844
  %v918 = vunpack.c.l.b16 %v845
  %v919 = vunpack.c.h.b16 %v845
  %v920 = vunpack.c.l.b16 %v846
  %v921 = vunpack.c.l.b16 %v847
  %v922 = vunpack.c.h.b16 %v847
  %v923 = vunpack.c.l.b16 %v848
  %v924 = vunpack.c.l.b16 %v849
  %v925 = vunpack.c.h.b16 %v849
  %v926 = vunpack.c.l.b16 %v850
  %v927 = vunpack.c.l.b16 %v851
  %v928 = vunpack.c.h.b16 %v851
  %v929 = vunpack.c.l.b16 %v852
  %v930 = vunpack.c.l.b16 %v853
  %v931 = vunpack.c.h.b16 %v853
  %v932 = vunpack.c.l.b16 %v854
  %v933 = vunpack.c.l.b16 %v855
  %v934 = vunpack.c.h.b16 %v855
  %v935 = vunpack.c.l.b16 %v856
  %v936 = vunpack.c.l.b16 %v857
  %v937 = vunpack.c.h.b16 %v857
  %v938 = vunpack.c.l.b16 %v858
  %v939 = vpack.c.b16 %v894, %v891
  %v940 = vpack.c.b16 %v895, %v892
  %v941 = vpack.c.b16 %v896, %v893
  %v942 = vpack.c.b16 %v900, %v897
  %v943 = vpack.c.b16 %v901, %v898
  %v944 = vpack.c.b16 %v902, %v899
  %v945 = vpack.c.b16 %v906, %v903
  %v946 = vpack.c.b16 %v907, %v904
  %v947 = vpack.c.b16 %v908, %v905
  %v948 = vpack.c.b16 %v912, %v909
  %v949 = vpack.c.b16 %v913, %v910
  %v950 = vpack.c.b16 %v914, %v911
  %v951 = vpack.c.b16 %v918, %v915
  %v952 = vpack.c.b16 %v919, %v916
  %v953 = vpack.c.b16 %v920, %v917
  %v954 = vpack.c.b16 %v924, %v921
  %v955 = vpack.c.b16 %v925, %v922
  %v956 = vpack.c.b16 %v926, %v923
  %v957 = vpack.c.b16 %v930, %v927
  %v958 = vpack.c.b16 %v931, %v928
  %v959 = vpack.c.b16 %v932, %v929
  %v960 = vpack.c.b16 %v936, %v933
  %v961 = vpack.c.b16 %v937, %v934
  %v962 = vpack.c.b16 %v938, %v935
  %987 = vmatprep.subr.bf16.mxu0 %v961
  %988 = vmatpush1.bf16.msra.mxu0 %v960
  %989 = vmatprep.subr.bf16.mxu0 %v958
  %990 = vmatpush1.bf16.msra.mxu0 %v957
  %991 = vmatprep.subr.bf16.mxu0 %v955
  %992 = vmatpush1.bf16.msra.mxu0 %v954
  %993 = vmatprep.subr.bf16.mxu0 %v952
  %994 = vmatpush1.bf16.msra.mxu0 %v951
  %995 = vmatprep.subr.bf16.mxu0 %v949
  %996 = vmatpush1.bf16.msra.mxu0 %v948
  %997 = vmatprep.subr.bf16.mxu0 %v946
  %998 = vmatpush1.bf16.msra.mxu0 %v945
  %999 = vmatprep.subr.bf16.mxu0 %v943
  %1000 = vmatpush1.bf16.msra.mxu0 %v942
  %1001 = vmatprep.subr.bf16.mxu0 %v940
  %1002 = vmatpush1.bf16.msra.mxu0 %v939
  %1003 = vmatprep.subr.bf16.mxu0 0
  %1004 = vmatpush2.bf16.msra.mxu0 0
  %1005 = vmatprep.subr.bf16.mxu0 0
  %1006 = vmatpush2.bf16.msra.mxu0 0
  %1007 = vmatprep.subr.bf16.mxu0 0
  %1008 = vmatpush2.bf16.msra.mxu0 0
  %1009 = vmatprep.subr.bf16.mxu0 0
  %1010 = vmatpush2.bf16.msra.mxu0 0
  %1011 = vmatprep.subr.bf16.mxu0 0
  %1012 = vmatpush2.bf16.msra.mxu0 0
  %1013 = vmatprep.subr.bf16.mxu0 0
  %1014 = vmatpush2.bf16.msra.mxu0 0
  %1015 = vmatprep.subr.bf16.mxu0 0
  %1016 = vmatpush2.bf16.msra.mxu0 0
  %1017 = vmatprep.subr.bf16.mxu0 0
  %1018 = vmatpush2.bf16.msra.mxu0 0
  %1019 = vmatprep.mubr.bf16.mxu0 0
  %1020 = vmatmul.mubr.bf16.gmra.mxu0 %v826
  %v1021 = vpop.f32.mrf.mxu0
  %v1022 = vadd.f32 0.0, %v1021
  %v1023 = vpop.f32.mrf.mxu0
  %v1024 = vadd.f32 0.0, %v1023
  %v1025 = vpop.f32.mrf.mxu0
  %v1026 = vpop.f32.mrf.mxu0
  %1027 = vdwg.mxu0
  %1028 = vmatprep.subr.bf16.mxu0 0
  %1029 = vmatpush1.bf16.msra.mxu0 %v962
  %1030 = vmatprep.subr.bf16.mxu0 0
  %1031 = vmatpush1.bf16.msra.mxu0 %v959
  %1032 = vmatprep.subr.bf16.mxu0 0
  %1033 = vmatpush1.bf16.msra.mxu0 %v956
  %1034 = vmatprep.subr.bf16.mxu0 0
  %1035 = vmatpush1.bf16.msra.mxu0 %v953
  %1036 = vmatprep.subr.bf16.mxu0 0
  %1037 = vmatpush1.bf16.msra.mxu0 %v950
  %1038 = vmatprep.subr.bf16.mxu0 0
  %1039 = vmatpush1.bf16.msra.mxu0 %v947
  %1040 = vmatprep.subr.bf16.mxu0 0
  %1041 = vmatpush1.bf16.msra.mxu0 %v944
  %1042 = vmatprep.subr.bf16.mxu0 0
  %1043 = vmatpush1.bf16.msra.mxu0 %v941
  %1044 = vmatprep.subr.bf16.mxu0 0
  %1045 = vmatpush2.bf16.msra.mxu0 0
  %1046 = vmatprep.subr.bf16.mxu0 0
  %1047 = vmatpush2.bf16.msra.mxu0 0
  %1048 = vmatprep.subr.bf16.mxu0 0
  %1049 = vmatpush2.bf16.msra.mxu0 0
  %1050 = vmatprep.subr.bf16.mxu0 0
  %1051 = vmatpush2.bf16.msra.mxu0 0
  %1052 = vmatprep.subr.bf16.mxu0 0
  %1053 = vmatpush2.bf16.msra.mxu0 0
  %1054 = vmatprep.subr.bf16.mxu0 0
  %1055 = vmatpush2.bf16.msra.mxu0 0
  %1056 = vmatprep.subr.bf16.mxu0 0
  %1057 = vmatpush2.bf16.msra.mxu0 0
  %1058 = vmatprep.subr.bf16.mxu0 0
  %1059 = vmatpush2.bf16.msra.mxu0 0
  %1060 = vmatprep.mubr.bf16.mxu0 0
  %1061 = vmatmul.mubr.bf16.gmra.mxu0 %v826
  %v1062 = vpop.f32.mrf.mxu0
  %v1063 = vadd.f32 0.0, %v1062
  %v1064 = vpop.f32.mrf.mxu0
  %v1065 = vpop.f32.mrf.mxu0
  %v1066 = vpop.f32.mrf.mxu0
  %1067 = vdwg.mxu0
  %v1068 = vadd.f32 %v780, %v1022
  %v1069 = vxor.u32 %v1068, 2147483648
  %v1070 = vmul.f32 %v1069, 1.442695
  %v1071 = vpow.pop %v1070
  %v1072 = vadd.f32 %v1071, 1.0
  %v1073 = vrcp.pop %v1072
  %v1074 = vmul.f32 1.0, %v1073
  %v1075 = vadd.f32 %v782, %v1024
  %v1076 = vxor.u32 %v1075, 2147483648
  %v1077 = vmul.f32 %v1076, 1.442695
  %v1078 = vpow.pop %v1077
  %v1079 = vadd.f32 %v1078, 1.0
  %v1080 = vrcp.pop %v1079
  %v1081 = vmul.f32 1.0, %v1080
  %v1082 = vld [vmem:[%s5] sm:$0x1]
  %v1084 = vlaneseq
  %v1085 = vshrl.u32 %v1084, 7
  %v1086 = vsub.s32 0, %v1085
  %v1087 = vrot.slane %v1082, %v1086
  %v1089 = vadd.f32 %v1063, %v1087
  %v1090 = vmul.f32 %v1074, %v1089
  %v1091 = vadd.f32 %v821, %v1090
  %v1092 = vtanh.pop %v1091
  %v1093 = vsub.f32 1.0, %v1081
  %v1094 = vmul.f32 %v1093, %v1092
  %v1095 = vmul.f32 %v1081, %v563
  %v1096 = vadd.f32 %v1094, %v1095
  %s1097 = scalar_lea.vmem %s6, 2
  %1098 = vst [vmem:[%s1097] sm:$0x3] %v1096
  %s1099 = scalar_lea.vmem %s0, 4
  %v1100 = vld [vmem:[%s1099] sm:$0x3]
  %v1101 = vpack.c.bf16 %v1100, %v1100
  %v1102 = vld [vmem:[%s2] sm:$0xff]
  %v1103 = vld [vmem:[%s2 + $0x8] sm:$0xf]
  %v1104 = vld [vmem:[%s2 + $0xc] sm:$0xff]
  %v1105 = vld [vmem:[%s2 + $0x14] sm:$0xf]
  %v1106 = vld [vmem:[%s2 + $0x18] sm:$0xff]
  %v1107 = vld [vmem:[%s2 + $0x20] sm:$0xf]
  %v1108 = vld [vmem:[%s2 + $0x24] sm:$0xff]
  %v1109 = vld [vmem:[%s2 + $0x2c] sm:$0xf]
  %v1110 = vld [vmem:[%s2 + $0x30] sm:$0xff]
  %v1111 = vld [vmem:[%s2 + $0x38] sm:$0xf]
  %v1112 = vld [vmem:[%s2 + $0x3c] sm:$0xff]
  %v1113 = vld [vmem:[%s2 + $0x44] sm:$0xf]
  %v1114 = vld [vmem:[%s2 + $0x48] sm:$0xff]
  %v1115 = vld [vmem:[%s2 + $0x50] sm:$0xf]
  %v1116 = vld [vmem:[%s2 + $0x54] sm:$0xff]
  %v1117 = vld [vmem:[%s2 + $0x5c] sm:$0xf]
  %v1118 = vld [vmem:[%s2 + $0x60] sm:$0xff]
  %v1119 = vld [vmem:[%s2 + $0x68] sm:$0xf]
  %v1120 = vld [vmem:[%s2 + $0x6c] sm:$0xff]
  %v1121 = vld [vmem:[%s2 + $0x74] sm:$0xf]
  %v1122 = vld [vmem:[%s2 + $0x78] sm:$0xff]
  %v1123 = vld [vmem:[%s2 + $0x80] sm:$0xf]
  %v1124 = vld [vmem:[%s2 + $0x84] sm:$0xff]
  %v1125 = vld [vmem:[%s2 + $0x8c] sm:$0xf]
  %v1126 = vld [vmem:[%s2 + $0x90] sm:$0xff]
  %v1127 = vld [vmem:[%s2 + $0x98] sm:$0xf]
  %v1128 = vld [vmem:[%s2 + $0x9c] sm:$0xff]
  %v1129 = vld [vmem:[%s2 + $0xa4] sm:$0xf]
  %v1130 = vld [vmem:[%s2 + $0xa8] sm:$0xff]
  %v1131 = vld [vmem:[%s2 + $0xb0] sm:$0xf]
  %v1132 = vld [vmem:[%s2 + $0xb4] sm:$0xff]
  %v1133 = vld [vmem:[%s2 + $0xbc] sm:$0xf]
  %v1134 = vld [vmem:[%s4] sm:$0x7]
  %v1136 = vlaneseq
  %v1137 = vshrl.u32 %v1136, 7
  %v1138 = vsub.s32 0, %v1137
  %v1139 = vrot.slane %v1134, %v1138
  %v1140 = vlaneseq
  %v1141 = vshrl.u32 %v1140, 7
  %v1142 = vsub.s32 1, %v1141
  %v1143 = vrot.slane %v1134, %v1142
  %v1144 = vlaneseq
  %v1145 = vshrl.u32 %v1144, 7
  %v1146 = vsub.s32 2, %v1145
  %v1147 = vrot.slane %v1134, %v1146
  %v1183 = vunpack.c.l.b16 %v1102
  %v1184 = vunpack.c.h.b16 %v1102
  %v1185 = vunpack.c.l.b16 %v1103
  %v1186 = vunpack.c.l.b16 %v1104
  %v1187 = vunpack.c.h.b16 %v1104
  %v1188 = vunpack.c.l.b16 %v1105
  %v1189 = vunpack.c.l.b16 %v1106
  %v1190 = vunpack.c.h.b16 %v1106
  %v1191 = vunpack.c.l.b16 %v1107
  %v1192 = vunpack.c.l.b16 %v1108
  %v1193 = vunpack.c.h.b16 %v1108
  %v1194 = vunpack.c.l.b16 %v1109
  %v1195 = vunpack.c.l.b16 %v1110
  %v1196 = vunpack.c.h.b16 %v1110
  %v1197 = vunpack.c.l.b16 %v1111
  %v1198 = vunpack.c.l.b16 %v1112
  %v1199 = vunpack.c.h.b16 %v1112
  %v1200 = vunpack.c.l.b16 %v1113
  %v1201 = vunpack.c.l.b16 %v1114
  %v1202 = vunpack.c.h.b16 %v1114
  %v1203 = vunpack.c.l.b16 %v1115
  %v1204 = vunpack.c.l.b16 %v1116
  %v1205 = vunpack.c.h.b16 %v1116
  %v1206 = vunpack.c.l.b16 %v1117
  %v1207 = vunpack.c.l.b16 %v1118
  %v1208 = vunpack.c.h.b16 %v1118
  %v1209 = vunpack.c.l.b16 %v1119
  %v1210 = vunpack.c.l.b16 %v1120
  %v1211 = vunpack.c.h.b16 %v1120
  %v1212 = vunpack.c.l.b16 %v1121
  %v1213 = vunpack.c.l.b16 %v1122
  %v1214 = vunpack.c.h.b16 %v1122
  %v1215 = vunpack.c.l.b16 %v1123
  %v1216 = vunpack.c.l.b16 %v1124
  %v1217 = vunpack.c.h.b16 %v1124
  %v1218 = vunpack.c.l.b16 %v1125
  %v1219 = vunpack.c.l.b16 %v1126
  %v1220 = vunpack.c.h.b16 %v1126
  %v1221 = vunpack.c.l.b16 %v1127
  %v1222 = vunpack.c.l.b16 %v1128
  %v1223 = vunpack.c.h.b16 %v1128
  %v1224 = vunpack.c.l.b16 %v1129
  %v1225 = vunpack.c.l.b16 %v1130
  %v1226 = vunpack.c.h.b16 %v1130
  %v1227 = vunpack.c.l.b16 %v1131
  %v1228 = vunpack.c.l.b16 %v1132
  %v1229 = vunpack.c.h.b16 %v1132
  %v1230 = vunpack.c.l.b16 %v1133
  %v1231 = vpack.c.b16 %v1186, %v1183
  %v1232 = vpack.c.b16 %v1187, %v1184
  %v1233 = vpack.c.b16 %v1188, %v1185
  %v1234 = vpack.c.b16 %v1192, %v1189
  %v1235 = vpack.c.b16 %v1193, %v1190
  %v1236 = vpack.c.b16 %v1194, %v1191
  %v1237 = vpack.c.b16 %v1198, %v1195
  %v1238 = vpack.c.b16 %v1199, %v1196
  %v1239 = vpack.c.b16 %v1200, %v1197
  %v1240 = vpack.c.b16 %v1204, %v1201
  %v1241 = vpack.c.b16 %v1205, %v1202
  %v1242 = vpack.c.b16 %v1206, %v1203
  %v1243 = vpack.c.b16 %v1210, %v1207
  %v1244 = vpack.c.b16 %v1211, %v1208
  %v1245 = vpack.c.b16 %v1212, %v1209
  %v1246 = vpack.c.b16 %v1216, %v1213
  %v1247 = vpack.c.b16 %v1217, %v1214
  %v1248 = vpack.c.b16 %v1218, %v1215
  %v1249 = vpack.c.b16 %v1222, %v1219
  %v1250 = vpack.c.b16 %v1223, %v1220
  %v1251 = vpack.c.b16 %v1224, %v1221
  %v1252 = vpack.c.b16 %v1228, %v1225
  %v1253 = vpack.c.b16 %v1229, %v1226
  %v1254 = vpack.c.b16 %v1230, %v1227
  %1279 = vmatprep.subr.bf16.mxu0 %v1253
  %1280 = vmatpush1.bf16.msra.mxu0 %v1252
  %1281 = vmatprep.subr.bf16.mxu0 %v1250
  %1282 = vmatpush1.bf16.msra.mxu0 %v1249
  %1283 = vmatprep.subr.bf16.mxu0 %v1247
  %1284 = vmatpush1.bf16.msra.mxu0 %v1246
  %1285 = vmatprep.subr.bf16.mxu0 %v1244
  %1286 = vmatpush1.bf16.msra.mxu0 %v1243
  %1287 = vmatprep.subr.bf16.mxu0 %v1241
  %1288 = vmatpush1.bf16.msra.mxu0 %v1240
  %1289 = vmatprep.subr.bf16.mxu0 %v1238
  %1290 = vmatpush1.bf16.msra.mxu0 %v1237
  %1291 = vmatprep.subr.bf16.mxu0 %v1235
  %1292 = vmatpush1.bf16.msra.mxu0 %v1234
  %1293 = vmatprep.subr.bf16.mxu0 %v1232
  %1294 = vmatpush1.bf16.msra.mxu0 %v1231
  %1295 = vmatprep.subr.bf16.mxu0 0
  %1296 = vmatpush2.bf16.msra.mxu0 0
  %1297 = vmatprep.subr.bf16.mxu0 0
  %1298 = vmatpush2.bf16.msra.mxu0 0
  %1299 = vmatprep.subr.bf16.mxu0 0
  %1300 = vmatpush2.bf16.msra.mxu0 0
  %1301 = vmatprep.subr.bf16.mxu0 0
  %1302 = vmatpush2.bf16.msra.mxu0 0
  %1303 = vmatprep.subr.bf16.mxu0 0
  %1304 = vmatpush2.bf16.msra.mxu0 0
  %1305 = vmatprep.subr.bf16.mxu0 0
  %1306 = vmatpush2.bf16.msra.mxu0 0
  %1307 = vmatprep.subr.bf16.mxu0 0
  %1308 = vmatpush2.bf16.msra.mxu0 0
  %1309 = vmatprep.subr.bf16.mxu0 0
  %1310 = vmatpush2.bf16.msra.mxu0 0
  %1311 = vmatprep.mubr.bf16.mxu0 0
  %1312 = vmatmul.mubr.bf16.gmra.mxu0 %v1101
  %v1313 = vpop.f32.mrf.mxu0
  %v1314 = vadd.f32 %v1139, %v1313
  %v1315 = vpop.f32.mrf.mxu0
  %v1316 = vadd.f32 %v1143, %v1315
  %v1317 = vpop.f32.mrf.mxu0
  %v1318 = vpop.f32.mrf.mxu0
  %1319 = vdwg.mxu0
  %1320 = vmatprep.subr.bf16.mxu0 0
  %1321 = vmatpush1.bf16.msra.mxu0 %v1254
  %1322 = vmatprep.subr.bf16.mxu0 0
  %1323 = vmatpush1.bf16.msra.mxu0 %v1251
  %1324 = vmatprep.subr.bf16.mxu0 0
  %1325 = vmatpush1.bf16.msra.mxu0 %v1248
  %1326 = vmatprep.subr.bf16.mxu0 0
  %1327 = vmatpush1.bf16.msra.mxu0 %v1245
  %1328 = vmatprep.subr.bf16.mxu0 0
  %1329 = vmatpush1.bf16.msra.mxu0 %v1242
  %1330 = vmatprep.subr.bf16.mxu0 0
  %1331 = vmatpush1.bf16.msra.mxu0 %v1239
  %1332 = vmatprep.subr.bf16.mxu0 0
  %1333 = vmatpush1.bf16.msra.mxu0 %v1236
  %1334 = vmatprep.subr.bf16.mxu0 0
  %1335 = vmatpush1.bf16.msra.mxu0 %v1233
  %1336 = vmatprep.subr.bf16.mxu0 0
  %1337 = vmatpush2.bf16.msra.mxu0 0
  %1338 = vmatprep.subr.bf16.mxu0 0
  %1339 = vmatpush2.bf16.msra.mxu0 0
  %1340 = vmatprep.subr.bf16.mxu0 0
  %1341 = vmatpush2.bf16.msra.mxu0 0
  %1342 = vmatprep.subr.bf16.mxu0 0
  %1343 = vmatpush2.bf16.msra.mxu0 0
  %1344 = vmatprep.subr.bf16.mxu0 0
  %1345 = vmatpush2.bf16.msra.mxu0 0
  %1346 = vmatprep.subr.bf16.mxu0 0
  %1347 = vmatpush2.bf16.msra.mxu0 0
  %1348 = vmatprep.subr.bf16.mxu0 0
  %1349 = vmatpush2.bf16.msra.mxu0 0
  %1350 = vmatprep.subr.bf16.mxu0 0
  %1351 = vmatpush2.bf16.msra.mxu0 0
  %1352 = vmatprep.mubr.bf16.mxu0 0
  %1353 = vmatmul.mubr.bf16.gmra.mxu0 %v1101
  %v1354 = vpop.f32.mrf.mxu0
  %v1355 = vadd.f32 %v1147, %v1354
  %v1356 = vpop.f32.mrf.mxu0
  %v1357 = vpop.f32.mrf.mxu0
  %v1358 = vpop.f32.mrf.mxu0
  %1359 = vdwg.mxu0
  %v1360 = vpack.c.bf16 %v1096, %v1096
  %v1361 = vld [vmem:[%s3] sm:$0xff]
  %v1362 = vld [vmem:[%s3 + $0x8] sm:$0xf]
  %v1363 = vld [vmem:[%s3 + $0xc] sm:$0xff]
  %v1364 = vld [vmem:[%s3 + $0x14] sm:$0xf]
  %v1365 = vld [vmem:[%s3 + $0x18] sm:$0xff]
  %v1366 = vld [vmem:[%s3 + $0x20] sm:$0xf]
  %v1367 = vld [vmem:[%s3 + $0x24] sm:$0xff]
  %v1368 = vld [vmem:[%s3 + $0x2c] sm:$0xf]
  %v1369 = vld [vmem:[%s3 + $0x30] sm:$0xff]
  %v1370 = vld [vmem:[%s3 + $0x38] sm:$0xf]
  %v1371 = vld [vmem:[%s3 + $0x3c] sm:$0xff]
  %v1372 = vld [vmem:[%s3 + $0x44] sm:$0xf]
  %v1373 = vld [vmem:[%s3 + $0x48] sm:$0xff]
  %v1374 = vld [vmem:[%s3 + $0x50] sm:$0xf]
  %v1375 = vld [vmem:[%s3 + $0x54] sm:$0xff]
  %v1376 = vld [vmem:[%s3 + $0x5c] sm:$0xf]
  %v1377 = vld [vmem:[%s3 + $0x60] sm:$0xff]
  %v1378 = vld [vmem:[%s3 + $0x68] sm:$0xf]
  %v1379 = vld [vmem:[%s3 + $0x6c] sm:$0xff]
  %v1380 = vld [vmem:[%s3 + $0x74] sm:$0xf]
  %v1381 = vld [vmem:[%s3 + $0x78] sm:$0xff]
  %v1382 = vld [vmem:[%s3 + $0x80] sm:$0xf]
  %v1383 = vld [vmem:[%s3 + $0x84] sm:$0xff]
  %v1384 = vld [vmem:[%s3 + $0x8c] sm:$0xf]
  %v1385 = vld [vmem:[%s3 + $0x90] sm:$0xff]
  %v1386 = vld [vmem:[%s3 + $0x98] sm:$0xf]
  %v1387 = vld [vmem:[%s3 + $0x9c] sm:$0xff]
  %v1388 = vld [vmem:[%s3 + $0xa4] sm:$0xf]
  %v1389 = vld [vmem:[%s3 + $0xa8] sm:$0xff]
  %v1390 = vld [vmem:[%s3 + $0xb0] sm:$0xf]
  %v1391 = vld [vmem:[%s3 + $0xb4] sm:$0xff]
  %v1392 = vld [vmem:[%s3 + $0xbc] sm:$0xf]
  %v1425 = vunpack.c.l.b16 %v1361
  %v1426 = vunpack.c.h.b16 %v1361
  %v1427 = vunpack.c.l.b16 %v1362
  %v1428 = vunpack.c.l.b16 %v1363
  %v1429 = vunpack.c.h.b16 %v1363
  %v1430 = vunpack.c.l.b16 %v1364
  %v1431 = vunpack.c.l.b16 %v1365
  %v1432 = vunpack.c.h.b16 %v1365
  %v1433 = vunpack.c.l.b16 %v1366
  %v1434 = vunpack.c.l.b16 %v1367
  %v1435 = vunpack.c.h.b16 %v1367
  %v1436 = vunpack.c.l.b16 %v1368
  %v1437 = vunpack.c.l.b16 %v1369
  %v1438 = vunpack.c.h.b16 %v1369
  %v1439 = vunpack.c.l.b16 %v1370
  %v1440 = vunpack.c.l.b16 %v1371
  %v1441 = vunpack.c.h.b16 %v1371
  %v1442 = vunpack.c.l.b16 %v1372
  %v1443 = vunpack.c.l.b16 %v1373
  %v1444 = vunpack.c.h.b16 %v1373
  %v1445 = vunpack.c.l.b16 %v1374
  %v1446 = vunpack.c.l.b16 %v1375
  %v1447 = vunpack.c.h.b16 %v1375
  %v1448 = vunpack.c.l.b16 %v1376
  %v1449 = vunpack.c.l.b16 %v1377
  %v1450 = vunpack.c.h.b16 %v1377
  %v1451 = vunpack.c.l.b16 %v1378
  %v1452 = vunpack.c.l.b16 %v1379
  %v1453 = vunpack.c.h.b16 %v1379
  %v1454 = vunpack.c.l.b16 %v1380
  %v1455 = vunpack.c.l.b16 %v1381
  %v1456 = vunpack.c.h.b16 %v1381
  %v1457 = vunpack.c.l.b16 %v1382
  %v1458 = vunpack.c.l.b16 %v1383
  %v1459 = vunpack.c.h.b16 %v1383
  %v1460 = vunpack.c.l.b16 %v1384
  %v1461 = vunpack.c.l.b16 %v1385
  %v1462 = vunpack.c.h.b16 %v1385
  %v1463 = vunpack.c.l.b16 %v1386
  %v1464 = vunpack.c.l.b16 %v1387
  %v1465 = vunpack.c.h.b16 %v1387
  %v1466 = vunpack.c.l.b16 %v1388
  %v1467 = vunpack.c.l.b16 %v1389
  %v1468 = vunpack.c.h.b16 %v1389
  %v1469 = vunpack.c.l.b16 %v1390
  %v1470 = vunpack.c.l.b16 %v1391
  %v1471 = vunpack.c.h.b16 %v1391
  %v1472 = vunpack.c.l.b16 %v1392
  %v1473 = vpack.c.b16 %v1428, %v1425
  %v1474 = vpack.c.b16 %v1429, %v1426
  %v1475 = vpack.c.b16 %v1430, %v1427
  %v1476 = vpack.c.b16 %v1434, %v1431
  %v1477 = vpack.c.b16 %v1435, %v1432
  %v1478 = vpack.c.b16 %v1436, %v1433
  %v1479 = vpack.c.b16 %v1440, %v1437
  %v1480 = vpack.c.b16 %v1441, %v1438
  %v1481 = vpack.c.b16 %v1442, %v1439
  %v1482 = vpack.c.b16 %v1446, %v1443
  %v1483 = vpack.c.b16 %v1447, %v1444
  %v1484 = vpack.c.b16 %v1448, %v1445
  %v1485 = vpack.c.b16 %v1452, %v1449
  %v1486 = vpack.c.b16 %v1453, %v1450
  %v1487 = vpack.c.b16 %v1454, %v1451
  %v1488 = vpack.c.b16 %v1458, %v1455
  %v1489 = vpack.c.b16 %v1459, %v1456
  %v1490 = vpack.c.b16 %v1460, %v1457
  %v1491 = vpack.c.b16 %v1464, %v1461
  %v1492 = vpack.c.b16 %v1465, %v1462
  %v1493 = vpack.c.b16 %v1466, %v1463
  %v1494 = vpack.c.b16 %v1470, %v1467
  %v1495 = vpack.c.b16 %v1471, %v1468
  %v1496 = vpack.c.b16 %v1472, %v1469
  %1521 = vmatprep.subr.bf16.mxu0 %v1495
  %1522 = vmatpush1.bf16.msra.mxu0 %v1494
  %1523 = vmatprep.subr.bf16.mxu0 %v1492
  %1524 = vmatpush1.bf16.msra.mxu0 %v1491
  %1525 = vmatprep.subr.bf16.mxu0 %v1489
  %1526 = vmatpush1.bf16.msra.mxu0 %v1488
  %1527 = vmatprep.subr.bf16.mxu0 %v1486
  %1528 = vmatpush1.bf16.msra.mxu0 %v1485
  %1529 = vmatprep.subr.bf16.mxu0 %v1483
  %1530 = vmatpush1.bf16.msra.mxu0 %v1482
  %1531 = vmatprep.subr.bf16.mxu0 %v1480
  %1532 = vmatpush1.bf16.msra.mxu0 %v1479
  %1533 = vmatprep.subr.bf16.mxu0 %v1477
  %1534 = vmatpush1.bf16.msra.mxu0 %v1476
  %1535 = vmatprep.subr.bf16.mxu0 %v1474
  %1536 = vmatpush1.bf16.msra.mxu0 %v1473
  %1537 = vmatprep.subr.bf16.mxu0 0
  %1538 = vmatpush2.bf16.msra.mxu0 0
  %1539 = vmatprep.subr.bf16.mxu0 0
  %1540 = vmatpush2.bf16.msra.mxu0 0
  %1541 = vmatprep.subr.bf16.mxu0 0
  %1542 = vmatpush2.bf16.msra.mxu0 0
  %1543 = vmatprep.subr.bf16.mxu0 0
  %1544 = vmatpush2.bf16.msra.mxu0 0
  %1545 = vmatprep.subr.bf16.mxu0 0
  %1546 = vmatpush2.bf16.msra.mxu0 0
  %1547 = vmatprep.subr.bf16.mxu0 0
  %1548 = vmatpush2.bf16.msra.mxu0 0
  %1549 = vmatprep.subr.bf16.mxu0 0
  %1550 = vmatpush2.bf16.msra.mxu0 0
  %1551 = vmatprep.subr.bf16.mxu0 0
  %1552 = vmatpush2.bf16.msra.mxu0 0
  %1553 = vmatprep.mubr.bf16.mxu0 0
  %1554 = vmatmul.mubr.bf16.gmra.mxu0 %v1360
  %v1555 = vpop.f32.mrf.mxu0
  %v1556 = vadd.f32 0.0, %v1555
  %v1557 = vpop.f32.mrf.mxu0
  %v1558 = vadd.f32 0.0, %v1557
  %v1559 = vpop.f32.mrf.mxu0
  %v1560 = vpop.f32.mrf.mxu0
  %1561 = vdwg.mxu0
  %1562 = vmatprep.subr.bf16.mxu0 0
  %1563 = vmatpush1.bf16.msra.mxu0 %v1496
  %1564 = vmatprep.subr.bf16.mxu0 0
  %1565 = vmatpush1.bf16.msra.mxu0 %v1493
  %1566 = vmatprep.subr.bf16.mxu0 0
  %1567 = vmatpush1.bf16.msra.mxu0 %v1490
  %1568 = vmatprep.subr.bf16.mxu0 0
  %1569 = vmatpush1.bf16.msra.mxu0 %v1487
  %1570 = vmatprep.subr.bf16.mxu0 0
  %1571 = vmatpush1.bf16.msra.mxu0 %v1484
  %1572 = vmatprep.subr.bf16.mxu0 0
  %1573 = vmatpush1.bf16.msra.mxu0 %v1481
  %1574 = vmatprep.subr.bf16.mxu0 0
  %1575 = vmatpush1.bf16.msra.mxu0 %v1478
  %1576 = vmatprep.subr.bf16.mxu0 0
  %1577 = vmatpush1.bf16.msra.mxu0 %v1475
  %1578 = vmatprep.subr.bf16.mxu0 0
  %1579 = vmatpush2.bf16.msra.mxu0 0
  %1580 = vmatprep.subr.bf16.mxu0 0
  %1581 = vmatpush2.bf16.msra.mxu0 0
  %1582 = vmatprep.subr.bf16.mxu0 0
  %1583 = vmatpush2.bf16.msra.mxu0 0
  %1584 = vmatprep.subr.bf16.mxu0 0
  %1585 = vmatpush2.bf16.msra.mxu0 0
  %1586 = vmatprep.subr.bf16.mxu0 0
  %1587 = vmatpush2.bf16.msra.mxu0 0
  %1588 = vmatprep.subr.bf16.mxu0 0
  %1589 = vmatpush2.bf16.msra.mxu0 0
  %1590 = vmatprep.subr.bf16.mxu0 0
  %1591 = vmatpush2.bf16.msra.mxu0 0
  %1592 = vmatprep.subr.bf16.mxu0 0
  %1593 = vmatpush2.bf16.msra.mxu0 0
  %1594 = vmatprep.mubr.bf16.mxu0 0
  %1595 = vmatmul.mubr.bf16.gmra.mxu0 %v1360
  %v1596 = vpop.f32.mrf.mxu0
  %v1597 = vadd.f32 0.0, %v1596
  %v1598 = vpop.f32.mrf.mxu0
  %v1599 = vpop.f32.mrf.mxu0
  %v1600 = vpop.f32.mrf.mxu0
  %1601 = vdwg.mxu0
  %v1602 = vadd.f32 %v1314, %v1556
  %v1603 = vxor.u32 %v1602, 2147483648
  %v1604 = vmul.f32 %v1603, 1.442695
  %v1605 = vpow.pop %v1604
  %v1606 = vadd.f32 %v1605, 1.0
  %v1607 = vrcp.pop %v1606
  %v1608 = vmul.f32 1.0, %v1607
  %v1609 = vadd.f32 %v1316, %v1558
  %v1610 = vxor.u32 %v1609, 2147483648
  %v1611 = vmul.f32 %v1610, 1.442695
  %v1612 = vpow.pop %v1611
  %v1613 = vadd.f32 %v1612, 1.0
  %v1614 = vrcp.pop %v1613
  %v1615 = vmul.f32 1.0, %v1614
  %v1616 = vld [vmem:[%s5] sm:$0x1]
  %v1618 = vlaneseq
  %v1619 = vshrl.u32 %v1618, 7
  %v1620 = vsub.s32 0, %v1619
  %v1621 = vrot.slane %v1616, %v1620
  %v1623 = vadd.f32 %v1597, %v1621
  %v1624 = vmul.f32 %v1608, %v1623
  %v1625 = vadd.f32 %v1355, %v1624
  %v1626 = vtanh.pop %v1625
  %v1627 = vsub.f32 1.0, %v1615
  %v1628 = vmul.f32 %v1627, %v1626
  %v1629 = vmul.f32 %v1615, %v1096
  %v1630 = vadd.f32 %v1628, %v1629
  %s1631 = scalar_lea.vmem %s6, 4
  %1632 = vst [vmem:[%s1631] sm:$0x3] %v1630
  %s1633 = scalar_lea.vmem %s0, 6
  %v1634 = vld [vmem:[%s1633] sm:$0x3]
  %v1635 = vpack.c.bf16 %v1634, %v1634
  %v1636 = vld [vmem:[%s2] sm:$0xff]
  %v1637 = vld [vmem:[%s2 + $0x8] sm:$0xf]
  %v1638 = vld [vmem:[%s2 + $0xc] sm:$0xff]
  %v1639 = vld [vmem:[%s2 + $0x14] sm:$0xf]
  %v1640 = vld [vmem:[%s2 + $0x18] sm:$0xff]
  %v1641 = vld [vmem:[%s2 + $0x20] sm:$0xf]
  %v1642 = vld [vmem:[%s2 + $0x24] sm:$0xff]
  %v1643 = vld [vmem:[%s2 + $0x2c] sm:$0xf]
  %v1644 = vld [vmem:[%s2 + $0x30] sm:$0xff]
  %v1645 = vld [vmem:[%s2 + $0x38] sm:$0xf]
  %v1646 = vld [vmem:[%s2 + $0x3c] sm:$0xff]
  %v1647 = vld [vmem:[%s2 + $0x44] sm:$0xf]
  %v1648 = vld [vmem:[%s2 + $0x48] sm:$0xff]
  %v1649 = vld [vmem:[%s2 + $0x50] sm:$0xf]
  %v1650 = vld [vmem:[%s2 + $0x54] sm:$0xff]
  %v1651 = vld [vmem:[%s2 + $0x5c] sm:$0xf]
  %v1652 = vld [vmem:[%s2 + $0x60] sm:$0xff]
  %v1653 = vld [vmem:[%s2 + $0x68] sm:$0xf]
  %v1654 = vld [vmem:[%s2 + $0x6c] sm:$0xff]
  %v1655 = vld [vmem:[%s2 + $0x74] sm:$0xf]
  %v1656 = vld [vmem:[%s2 + $0x78] sm:$0xff]
  %v1657 = vld [vmem:[%s2 + $0x80] sm:$0xf]
  %v1658 = vld [vmem:[%s2 + $0x84] sm:$0xff]
  %v1659 = vld [vmem:[%s2 + $0x8c] sm:$0xf]
  %v1660 = vld [vmem:[%s2 + $0x90] sm:$0xff]
  %v1661 = vld [vmem:[%s2 + $0x98] sm:$0xf]
  %v1662 = vld [vmem:[%s2 + $0x9c] sm:$0xff]
  %v1663 = vld [vmem:[%s2 + $0xa4] sm:$0xf]
  %v1664 = vld [vmem:[%s2 + $0xa8] sm:$0xff]
  %v1665 = vld [vmem:[%s2 + $0xb0] sm:$0xf]
  %v1666 = vld [vmem:[%s2 + $0xb4] sm:$0xff]
  %v1667 = vld [vmem:[%s2 + $0xbc] sm:$0xf]
  %v1668 = vld [vmem:[%s4] sm:$0x7]
  %v1670 = vlaneseq
  %v1671 = vshrl.u32 %v1670, 7
  %v1672 = vsub.s32 0, %v1671
  %v1673 = vrot.slane %v1668, %v1672
  %v1674 = vlaneseq
  %v1675 = vshrl.u32 %v1674, 7
  %v1676 = vsub.s32 1, %v1675
  %v1677 = vrot.slane %v1668, %v1676
  %v1678 = vlaneseq
  %v1679 = vshrl.u32 %v1678, 7
  %v1680 = vsub.s32 2, %v1679
  %v1681 = vrot.slane %v1668, %v1680
  %v1717 = vunpack.c.l.b16 %v1636
  %v1718 = vunpack.c.h.b16 %v1636
  %v1719 = vunpack.c.l.b16 %v1637
  %v1720 = vunpack.c.l.b16 %v1638
  %v1721 = vunpack.c.h.b16 %v1638
  %v1722 = vunpack.c.l.b16 %v1639
  %v1723 = vunpack.c.l.b16 %v1640
  %v1724 = vunpack.c.h.b16 %v1640
  %v1725 = vunpack.c.l.b16 %v1641
  %v1726 = vunpack.c.l.b16 %v1642
  %v1727 = vunpack.c.h.b16 %v1642
  %v1728 = vunpack.c.l.b16 %v1643
  %v1729 = vunpack.c.l.b16 %v1644
  %v1730 = vunpack.c.h.b16 %v1644
  %v1731 = vunpack.c.l.b16 %v1645
  %v1732 = vunpack.c.l.b16 %v1646
  %v1733 = vunpack.c.h.b16 %v1646
  %v1734 = vunpack.c.l.b16 %v1647
  %v1735 = vunpack.c.l.b16 %v1648
  %v1736 = vunpack.c.h.b16 %v1648
  %v1737 = vunpack.c.l.b16 %v1649
  %v1738 = vunpack.c.l.b16 %v1650
  %v1739 = vunpack.c.h.b16 %v1650
  %v1740 = vunpack.c.l.b16 %v1651
  %v1741 = vunpack.c.l.b16 %v1652
  %v1742 = vunpack.c.h.b16 %v1652
  %v1743 = vunpack.c.l.b16 %v1653
  %v1744 = vunpack.c.l.b16 %v1654
  %v1745 = vunpack.c.h.b16 %v1654
  %v1746 = vunpack.c.l.b16 %v1655
  %v1747 = vunpack.c.l.b16 %v1656
  %v1748 = vunpack.c.h.b16 %v1656
  %v1749 = vunpack.c.l.b16 %v1657
  %v1750 = vunpack.c.l.b16 %v1658
  %v1751 = vunpack.c.h.b16 %v1658
  %v1752 = vunpack.c.l.b16 %v1659
  %v1753 = vunpack.c.l.b16 %v1660
  %v1754 = vunpack.c.h.b16 %v1660
  %v1755 = vunpack.c.l.b16 %v1661
  %v1756 = vunpack.c.l.b16 %v1662
  %v1757 = vunpack.c.h.b16 %v1662
  %v1758 = vunpack.c.l.b16 %v1663
  %v1759 = vunpack.c.l.b16 %v1664
  %v1760 = vunpack.c.h.b16 %v1664
  %v1761 = vunpack.c.l.b16 %v1665
  %v1762 = vunpack.c.l.b16 %v1666
  %v1763 = vunpack.c.h.b16 %v1666
  %v1764 = vunpack.c.l.b16 %v1667
  %v1765 = vpack.c.b16 %v1720, %v1717
  %v1766 = vpack.c.b16 %v1721, %v1718
  %v1767 = vpack.c.b16 %v1722, %v1719
  %v1768 = vpack.c.b16 %v1726, %v1723
  %v1769 = vpack.c.b16 %v1727, %v1724
  %v1770 = vpack.c.b16 %v1728, %v1725
  %v1771 = vpack.c.b16 %v1732, %v1729
  %v1772 = vpack.c.b16 %v1733, %v1730
  %v1773 = vpack.c.b16 %v1734, %v1731
  %v1774 = vpack.c.b16 %v1738, %v1735
  %v1775 = vpack.c.b16 %v1739, %v1736
  %v1776 = vpack.c.b16 %v1740, %v1737
  %v1777 = vpack.c.b16 %v1744, %v1741
  %v1778 = vpack.c.b16 %v1745, %v1742
  %v1779 = vpack.c.b16 %v1746, %v1743
  %v1780 = vpack.c.b16 %v1750, %v1747
  %v1781 = vpack.c.b16 %v1751, %v1748
  %v1782 = vpack.c.b16 %v1752, %v1749
  %v1783 = vpack.c.b16 %v1756, %v1753
  %v1784 = vpack.c.b16 %v1757, %v1754
  %v1785 = vpack.c.b16 %v1758, %v1755
  %v1786 = vpack.c.b16 %v1762, %v1759
  %v1787 = vpack.c.b16 %v1763, %v1760
  %v1788 = vpack.c.b16 %v1764, %v1761
  %1813 = vmatprep.subr.bf16.mxu0 %v1787
  %1814 = vmatpush1.bf16.msra.mxu0 %v1786
  %1815 = vmatprep.subr.bf16.mxu0 %v1784
  %1816 = vmatpush1.bf16.msra.mxu0 %v1783
  %1817 = vmatprep.subr.bf16.mxu0 %v1781
  %1818 = vmatpush1.bf16.msra.mxu0 %v1780
  %1819 = vmatprep.subr.bf16.mxu0 %v1778
  %1820 = vmatpush1.bf16.msra.mxu0 %v1777
  %1821 = vmatprep.subr.bf16.mxu0 %v1775
  %1822 = vmatpush1.bf16.msra.mxu0 %v1774
  %1823 = vmatprep.subr.bf16.mxu0 %v1772
  %1824 = vmatpush1.bf16.msra.mxu0 %v1771
  %1825 = vmatprep.subr.bf16.mxu0 %v1769
  %1826 = vmatpush1.bf16.msra.mxu0 %v1768
  %1827 = vmatprep.subr.bf16.mxu0 %v1766
  %1828 = vmatpush1.bf16.msra.mxu0 %v1765
  %1829 = vmatprep.subr.bf16.mxu0 0
  %1830 = vmatpush2.bf16.msra.mxu0 0
  %1831 = vmatprep.subr.bf16.mxu0 0
  %1832 = vmatpush2.bf16.msra.mxu0 0
  %1833 = vmatprep.subr.bf16.mxu0 0
  %1834 = vmatpush2.bf16.msra.mxu0 0
  %1835 = vmatprep.subr.bf16.mxu0 0
  %1836 = vmatpush2.bf16.msra.mxu0 0
  %1837 = vmatprep.subr.bf16.mxu0 0
  %1838 = vmatpush2.bf16.msra.mxu0 0
  %1839 = vmatprep.subr.bf16.mxu0 0
  %1840 = vmatpush2.bf16.msra.mxu0 0
  %1841 = vmatprep.subr.bf16.mxu0 0
  %1842 = vmatpush2.bf16.msra.mxu0 0
  %1843 = vmatprep.subr.bf16.mxu0 0
  %1844 = vmatpush2.bf16.msra.mxu0 0
  %1845 = vmatprep.mubr.bf16.mxu0 0
  %1846 = vmatmul.mubr.bf16.gmra.mxu0 %v1635
  %v1847 = vpop.f32.mrf.mxu0
  %v1848 = vadd.f32 %v1673, %v1847
  %v1849 = vpop.f32.mrf.mxu0
  %v1850 = vadd.f32 %v1677, %v1849
  %v1851 = vpop.f32.mrf.mxu0
  %v1852 = vpop.f32.mrf.mxu0
  %1853 = vdwg.mxu0
  %1854 = vmatprep.subr.bf16.mxu0 0
  %1855 = vmatpush1.bf16.msra.mxu0 %v1788
  %1856 = vmatprep.subr.bf16.mxu0 0
  %1857 = vmatpush1.bf16.msra.mxu0 %v1785
  %1858 = vmatprep.subr.bf16.mxu0 0
  %1859 = vmatpush1.bf16.msra.mxu0 %v1782
  %1860 = vmatprep.subr.bf16.mxu0 0
  %1861 = vmatpush1.bf16.msra.mxu0 %v1779
  %1862 = vmatprep.subr.bf16.mxu0 0
  %1863 = vmatpush1.bf16.msra.mxu0 %v1776
  %1864 = vmatprep.subr.bf16.mxu0 0
  %1865 = vmatpush1.bf16.msra.mxu0 %v1773
  %1866 = vmatprep.subr.bf16.mxu0 0
  %1867 = vmatpush1.bf16.msra.mxu0 %v1770
  %1868 = vmatprep.subr.bf16.mxu0 0
  %1869 = vmatpush1.bf16.msra.mxu0 %v1767
  %1870 = vmatprep.subr.bf16.mxu0 0
  %1871 = vmatpush2.bf16.msra.mxu0 0
  %1872 = vmatprep.subr.bf16.mxu0 0
  %1873 = vmatpush2.bf16.msra.mxu0 0
  %1874 = vmatprep.subr.bf16.mxu0 0
  %1875 = vmatpush2.bf16.msra.mxu0 0
  %1876 = vmatprep.subr.bf16.mxu0 0
  %1877 = vmatpush2.bf16.msra.mxu0 0
  %1878 = vmatprep.subr.bf16.mxu0 0
  %1879 = vmatpush2.bf16.msra.mxu0 0
  %1880 = vmatprep.subr.bf16.mxu0 0
  %1881 = vmatpush2.bf16.msra.mxu0 0
  %1882 = vmatprep.subr.bf16.mxu0 0
  %1883 = vmatpush2.bf16.msra.mxu0 0
  %1884 = vmatprep.subr.bf16.mxu0 0
  %1885 = vmatpush2.bf16.msra.mxu0 0
  %1886 = vmatprep.mubr.bf16.mxu0 0
  %1887 = vmatmul.mubr.bf16.gmra.mxu0 %v1635
  %v1888 = vpop.f32.mrf.mxu0
  %v1889 = vadd.f32 %v1681, %v1888
  %v1890 = vpop.f32.mrf.mxu0
  %v1891 = vpop.f32.mrf.mxu0
  %v1892 = vpop.f32.mrf.mxu0
  %1893 = vdwg.mxu0
  %v1894 = vpack.c.bf16 %v1630, %v1630
  %v1895 = vld [vmem:[%s3] sm:$0xff]
  %v1896 = vld [vmem:[%s3 + $0x8] sm:$0xf]
  %v1897 = vld [vmem:[%s3 + $0xc] sm:$0xff]
  %v1898 = vld [vmem:[%s3 + $0x14] sm:$0xf]
  %v1899 = vld [vmem:[%s3 + $0x18] sm:$0xff]
  %v1900 = vld [vmem:[%s3 + $0x20] sm:$0xf]
  %v1901 = vld [vmem:[%s3 + $0x24] sm:$0xff]
  %v1902 = vld [vmem:[%s3 + $0x2c] sm:$0xf]
  %v1903 = vld [vmem:[%s3 + $0x30] sm:$0xff]
  %v1904 = vld [vmem:[%s3 + $0x38] sm:$0xf]
  %v1905 = vld [vmem:[%s3 + $0x3c] sm:$0xff]
  %v1906 = vld [vmem:[%s3 + $0x44] sm:$0xf]
  %v1907 = vld [vmem:[%s3 + $0x48] sm:$0xff]
  %v1908 = vld [vmem:[%s3 + $0x50] sm:$0xf]
  %v1909 = vld [vmem:[%s3 + $0x54] sm:$0xff]
  %v1910 = vld [vmem:[%s3 + $0x5c] sm:$0xf]
  %v1911 = vld [vmem:[%s3 + $0x60] sm:$0xff]
  %v1912 = vld [vmem:[%s3 + $0x68] sm:$0xf]
  %v1913 = vld [vmem:[%s3 + $0x6c] sm:$0xff]
  %v1914 = vld [vmem:[%s3 + $0x74] sm:$0xf]
  %v1915 = vld [vmem:[%s3 + $0x78] sm:$0xff]
  %v1916 = vld [vmem:[%s3 + $0x80] sm:$0xf]
  %v1917 = vld [vmem:[%s3 + $0x84] sm:$0xff]
  %v1918 = vld [vmem:[%s3 + $0x8c] sm:$0xf]
  %v1919 = vld [vmem:[%s3 + $0x90] sm:$0xff]
  %v1920 = vld [vmem:[%s3 + $0x98] sm:$0xf]
  %v1921 = vld [vmem:[%s3 + $0x9c] sm:$0xff]
  %v1922 = vld [vmem:[%s3 + $0xa4] sm:$0xf]
  %v1923 = vld [vmem:[%s3 + $0xa8] sm:$0xff]
  %v1924 = vld [vmem:[%s3 + $0xb0] sm:$0xf]
  %v1925 = vld [vmem:[%s3 + $0xb4] sm:$0xff]
  %v1926 = vld [vmem:[%s3 + $0xbc] sm:$0xf]
  %v1959 = vunpack.c.l.b16 %v1895
  %v1960 = vunpack.c.h.b16 %v1895
  %v1961 = vunpack.c.l.b16 %v1896
  %v1962 = vunpack.c.l.b16 %v1897
  %v1963 = vunpack.c.h.b16 %v1897
  %v1964 = vunpack.c.l.b16 %v1898
  %v1965 = vunpack.c.l.b16 %v1899
  %v1966 = vunpack.c.h.b16 %v1899
  %v1967 = vunpack.c.l.b16 %v1900
  %v1968 = vunpack.c.l.b16 %v1901
  %v1969 = vunpack.c.h.b16 %v1901
  %v1970 = vunpack.c.l.b16 %v1902
  %v1971 = vunpack.c.l.b16 %v1903
  %v1972 = vunpack.c.h.b16 %v1903
  %v1973 = vunpack.c.l.b16 %v1904
  %v1974 = vunpack.c.l.b16 %v1905
  %v1975 = vunpack.c.h.b16 %v1905
  %v1976 = vunpack.c.l.b16 %v1906
  %v1977 = vunpack.c.l.b16 %v1907
  %v1978 = vunpack.c.h.b16 %v1907
  %v1979 = vunpack.c.l.b16 %v1908
  %v1980 = vunpack.c.l.b16 %v1909
  %v1981 = vunpack.c.h.b16 %v1909
  %v1982 = vunpack.c.l.b16 %v1910
  %v1983 = vunpack.c.l.b16 %v1911
  %v1984 = vunpack.c.h.b16 %v1911
  %v1985 = vunpack.c.l.b16 %v1912
  %v1986 = vunpack.c.l.b16 %v1913
  %v1987 = vunpack.c.h.b16 %v1913
  %v1988 = vunpack.c.l.b16 %v1914
  %v1989 = vunpack.c.l.b16 %v1915
  %v1990 = vunpack.c.h.b16 %v1915
  %v1991 = vunpack.c.l.b16 %v1916
  %v1992 = vunpack.c.l.b16 %v1917
  %v1993 = vunpack.c.h.b16 %v1917
  %v1994 = vunpack.c.l.b16 %v1918
  %v1995 = vunpack.c.l.b16 %v1919
  %v1996 = vunpack.c.h.b16 %v1919
  %v1997 = vunpack.c.l.b16 %v1920
  %v1998 = vunpack.c.l.b16 %v1921
  %v1999 = vunpack.c.h.b16 %v1921
  %v2000 = vunpack.c.l.b16 %v1922
  %v2001 = vunpack.c.l.b16 %v1923
  %v2002 = vunpack.c.h.b16 %v1923
  %v2003 = vunpack.c.l.b16 %v1924
  %v2004 = vunpack.c.l.b16 %v1925
  %v2005 = vunpack.c.h.b16 %v1925
  %v2006 = vunpack.c.l.b16 %v1926
  %v2007 = vpack.c.b16 %v1962, %v1959
  %v2008 = vpack.c.b16 %v1963, %v1960
  %v2009 = vpack.c.b16 %v1964, %v1961
  %v2010 = vpack.c.b16 %v1968, %v1965
  %v2011 = vpack.c.b16 %v1969, %v1966
  %v2012 = vpack.c.b16 %v1970, %v1967
  %v2013 = vpack.c.b16 %v1974, %v1971
  %v2014 = vpack.c.b16 %v1975, %v1972
  %v2015 = vpack.c.b16 %v1976, %v1973
  %v2016 = vpack.c.b16 %v1980, %v1977
  %v2017 = vpack.c.b16 %v1981, %v1978
  %v2018 = vpack.c.b16 %v1982, %v1979
  %v2019 = vpack.c.b16 %v1986, %v1983
  %v2020 = vpack.c.b16 %v1987, %v1984
  %v2021 = vpack.c.b16 %v1988, %v1985
  %v2022 = vpack.c.b16 %v1992, %v1989
  %v2023 = vpack.c.b16 %v1993, %v1990
  %v2024 = vpack.c.b16 %v1994, %v1991
  %v2025 = vpack.c.b16 %v1998, %v1995
  %v2026 = vpack.c.b16 %v1999, %v1996
  %v2027 = vpack.c.b16 %v2000, %v1997
  %v2028 = vpack.c.b16 %v2004, %v2001
  %v2029 = vpack.c.b16 %v2005, %v2002
  %v2030 = vpack.c.b16 %v2006, %v2003
  %2055 = vmatprep.subr.bf16.mxu0 %v2029
  %2056 = vmatpush1.bf16.msra.mxu0 %v2028
  %2057 = vmatprep.subr.bf16.mxu0 %v2026
  %2058 = vmatpush1.bf16.msra.mxu0 %v2025
  %2059 = vmatprep.subr.bf16.mxu0 %v2023
  %2060 = vmatpush1.bf16.msra.mxu0 %v2022
  %2061 = vmatprep.subr.bf16.mxu0 %v2020
  %2062 = vmatpush1.bf16.msra.mxu0 %v2019
  %2063 = vmatprep.subr.bf16.mxu0 %v2017
  %2064 = vmatpush1.bf16.msra.mxu0 %v2016
  %2065 = vmatprep.subr.bf16.mxu0 %v2014
  %2066 = vmatpush1.bf16.msra.mxu0 %v2013
  %2067 = vmatprep.subr.bf16.mxu0 %v2011
  %2068 = vmatpush1.bf16.msra.mxu0 %v2010
  %2069 = vmatprep.subr.bf16.mxu0 %v2008
  %2070 = vmatpush1.bf16.msra.mxu0 %v2007
  %2071 = vmatprep.subr.bf16.mxu0 0
  %2072 = vmatpush2.bf16.msra.mxu0 0
  %2073 = vmatprep.subr.bf16.mxu0 0
  %2074 = vmatpush2.bf16.msra.mxu0 0
  %2075 = vmatprep.subr.bf16.mxu0 0
  %2076 = vmatpush2.bf16.msra.mxu0 0
  %2077 = vmatprep.subr.bf16.mxu0 0
  %2078 = vmatpush2.bf16.msra.mxu0 0
  %2079 = vmatprep.subr.bf16.mxu0 0
  %2080 = vmatpush2.bf16.msra.mxu0 0
  %2081 = vmatprep.subr.bf16.mxu0 0
  %2082 = vmatpush2.bf16.msra.mxu0 0
  %2083 = vmatprep.subr.bf16.mxu0 0
  %2084 = vmatpush2.bf16.msra.mxu0 0
  %2085 = vmatprep.subr.bf16.mxu0 0
  %2086 = vmatpush2.bf16.msra.mxu0 0
  %2087 = vmatprep.mubr.bf16.mxu0 0
  %2088 = vmatmul.mubr.bf16.gmra.mxu0 %v1894
  %v2089 = vpop.f32.mrf.mxu0
  %v2090 = vadd.f32 0.0, %v2089
  %v2091 = vpop.f32.mrf.mxu0
  %v2092 = vadd.f32 0.0, %v2091
  %v2093 = vpop.f32.mrf.mxu0
  %v2094 = vpop.f32.mrf.mxu0
  %2095 = vdwg.mxu0
  %2096 = vmatprep.subr.bf16.mxu0 0
  %2097 = vmatpush1.bf16.msra.mxu0 %v2030
  %2098 = vmatprep.subr.bf16.mxu0 0
  %2099 = vmatpush1.bf16.msra.mxu0 %v2027
  %2100 = vmatprep.subr.bf16.mxu0 0
  %2101 = vmatpush1.bf16.msra.mxu0 %v2024
  %2102 = vmatprep.subr.bf16.mxu0 0
  %2103 = vmatpush1.bf16.msra.mxu0 %v2021
  %2104 = vmatprep.subr.bf16.mxu0 0
  %2105 = vmatpush1.bf16.msra.mxu0 %v2018
  %2106 = vmatprep.subr.bf16.mxu0 0
  %2107 = vmatpush1.bf16.msra.mxu0 %v2015
  %2108 = vmatprep.subr.bf16.mxu0 0
  %2109 = vmatpush1.bf16.msra.mxu0 %v2012
  %2110 = vmatprep.subr.bf16.mxu0 0
  %2111 = vmatpush1.bf16.msra.mxu0 %v2009
  %2112 = vmatprep.subr.bf16.mxu0 0
  %2113 = vmatpush2.bf16.msra.mxu0 0
  %2114 = vmatprep.subr.bf16.mxu0 0
  %2115 = vmatpush2.bf16.msra.mxu0 0
  %2116 = vmatprep.subr.bf16.mxu0 0
  %2117 = vmatpush2.bf16.msra.mxu0 0
  %2118 = vmatprep.subr.bf16.mxu0 0
  %2119 = vmatpush2.bf16.msra.mxu0 0
  %2120 = vmatprep.subr.bf16.mxu0 0
  %2121 = vmatpush2.bf16.msra.mxu0 0
  %2122 = vmatprep.subr.bf16.mxu0 0
  %2123 = vmatpush2.bf16.msra.mxu0 0
  %2124 = vmatprep.subr.bf16.mxu0 0
  %2125 = vmatpush2.bf16.msra.mxu0 0
  %2126 = vmatprep.subr.bf16.mxu0 0
  %2127 = vmatpush2.bf16.msra.mxu0 0
  %2128 = vmatprep.mubr.bf16.mxu0 0
  %2129 = vmatmul.mubr.bf16.gmra.mxu0 %v1894
  %v2130 = vpop.f32.mrf.mxu0
  %v2131 = vadd.f32 0.0, %v2130
  %v2132 = vpop.f32.mrf.mxu0
  %v2133 = vpop.f32.mrf.mxu0
  %v2134 = vpop.f32.mrf.mxu0
  %2135 = vdwg.mxu0
  %v2136 = vadd.f32 %v1848, %v2090
  %v2137 = vxor.u32 %v2136, 2147483648
  %v2138 = vmul.f32 %v2137, 1.442695
  %v2139 = vpow.pop %v2138
  %v2140 = vadd.f32 %v2139, 1.0
  %v2141 = vrcp.pop %v2140
  %v2142 = vmul.f32 1.0, %v2141
  %v2143 = vadd.f32 %v1850, %v2092
  %v2144 = vxor.u32 %v2143, 2147483648
  %v2145 = vmul.f32 %v2144, 1.442695
  %v2146 = vpow.pop %v2145
  %v2147 = vadd.f32 %v2146, 1.0
  %v2148 = vrcp.pop %v2147
  %v2149 = vmul.f32 1.0, %v2148
  %v2150 = vld [vmem:[%s5] sm:$0x1]
  %v2152 = vlaneseq
  %v2153 = vshrl.u32 %v2152, 7
  %v2154 = vsub.s32 0, %v2153
  %v2155 = vrot.slane %v2150, %v2154
  %v2157 = vadd.f32 %v2131, %v2155
  %v2158 = vmul.f32 %v2142, %v2157
  %v2159 = vadd.f32 %v1889, %v2158
  %v2160 = vtanh.pop %v2159
  %v2161 = vsub.f32 1.0, %v2149
  %v2162 = vmul.f32 %v2161, %v2160
  %v2163 = vmul.f32 %v2149, %v1630
  %v2164 = vadd.f32 %v2162, %v2163
  %s2165 = scalar_lea.vmem %s6, 6
  %2166 = vst [vmem:[%s2165] sm:$0x3] %v2164
  %s2167 = scalar_lea.vmem %s0, 8
  %v2168 = vld [vmem:[%s2167] sm:$0x3]
  %v2169 = vpack.c.bf16 %v2168, %v2168
  %v2170 = vld [vmem:[%s2] sm:$0xff]
  %v2171 = vld [vmem:[%s2 + $0x8] sm:$0xf]
  %v2172 = vld [vmem:[%s2 + $0xc] sm:$0xff]
  %v2173 = vld [vmem:[%s2 + $0x14] sm:$0xf]
  %v2174 = vld [vmem:[%s2 + $0x18] sm:$0xff]
  %v2175 = vld [vmem:[%s2 + $0x20] sm:$0xf]
  %v2176 = vld [vmem:[%s2 + $0x24] sm:$0xff]
  %v2177 = vld [vmem:[%s2 + $0x2c] sm:$0xf]
  %v2178 = vld [vmem:[%s2 + $0x30] sm:$0xff]
  %v2179 = vld [vmem:[%s2 + $0x38] sm:$0xf]
  %v2180 = vld [vmem:[%s2 + $0x3c] sm:$0xff]
  %v2181 = vld [vmem:[%s2 + $0x44] sm:$0xf]
  %v2182 = vld [vmem:[%s2 + $0x48] sm:$0xff]
  %v2183 = vld [vmem:[%s2 + $0x50] sm:$0xf]
  %v2184 = vld [vmem:[%s2 + $0x54] sm:$0xff]
  %v2185 = vld [vmem:[%s2 + $0x5c] sm:$0xf]
  %v2186 = vld [vmem:[%s2 + $0x60] sm:$0xff]
  %v2187 = vld [vmem:[%s2 + $0x68] sm:$0xf]
  %v2188 = vld [vmem:[%s2 + $0x6c] sm:$0xff]
  %v2189 = vld [vmem:[%s2 + $0x74] sm:$0xf]
  %v2190 = vld [vmem:[%s2 + $0x78] sm:$0xff]
  %v2191 = vld [vmem:[%s2 + $0x80] sm:$0xf]
  %v2192 = vld [vmem:[%s2 + $0x84] sm:$0xff]
  %v2193 = vld [vmem:[%s2 + $0x8c] sm:$0xf]
  %v2194 = vld [vmem:[%s2 + $0x90] sm:$0xff]
  %v2195 = vld [vmem:[%s2 + $0x98] sm:$0xf]
  %v2196 = vld [vmem:[%s2 + $0x9c] sm:$0xff]
  %v2197 = vld [vmem:[%s2 + $0xa4] sm:$0xf]
  %v2198 = vld [vmem:[%s2 + $0xa8] sm:$0xff]
  %v2199 = vld [vmem:[%s2 + $0xb0] sm:$0xf]
  %v2200 = vld [vmem:[%s2 + $0xb4] sm:$0xff]
  %v2201 = vld [vmem:[%s2 + $0xbc] sm:$0xf]
  %v2202 = vld [vmem:[%s4] sm:$0x7]
  %v2204 = vlaneseq
  %v2205 = vshrl.u32 %v2204, 7
  %v2206 = vsub.s32 0, %v2205
  %v2207 = vrot.slane %v2202, %v2206
  %v2208 = vlaneseq
  %v2209 = vshrl.u32 %v2208, 7
  %v2210 = vsub.s32 1, %v2209
  %v2211 = vrot.slane %v2202, %v2210
  %v2212 = vlaneseq
  %v2213 = vshrl.u32 %v2212, 7
  %v2214 = vsub.s32 2, %v2213
  %v2215 = vrot.slane %v2202, %v2214
  %v2251 = vunpack.c.l.b16 %v2170
  %v2252 = vunpack.c.h.b16 %v2170
  %v2253 = vunpack.c.l.b16 %v2171
  %v2254 = vunpack.c.l.b16 %v2172
  %v2255 = vunpack.c.h.b16 %v2172
  %v2256 = vunpack.c.l.b16 %v2173
  %v2257 = vunpack.c.l.b16 %v2174
  %v2258 = vunpack.c.h.b16 %v2174
  %v2259 = vunpack.c.l.b16 %v2175
  %v2260 = vunpack.c.l.b16 %v2176
  %v2261 = vunpack.c.h.b16 %v2176
  %v2262 = vunpack.c.l.b16 %v2177
  %v2263 = vunpack.c.l.b16 %v2178
  %v2264 = vunpack.c.h.b16 %v2178
  %v2265 = vunpack.c.l.b16 %v2179
  %v2266 = vunpack.c.l.b16 %v2180
  %v2267 = vunpack.c.h.b16 %v2180
  %v2268 = vunpack.c.l.b16 %v2181
  %v2269 = vunpack.c.l.b16 %v2182
  %v2270 = vunpack.c.h.b16 %v2182
  %v2271 = vunpack.c.l.b16 %v2183
  %v2272 = vunpack.c.l.b16 %v2184
  %v2273 = vunpack.c.h.b16 %v2184
  %v2274 = vunpack.c.l.b16 %v2185
  %v2275 = vunpack.c.l.b16 %v2186
  %v2276 = vunpack.c.h.b16 %v2186
  %v2277 = vunpack.c.l.b16 %v2187
  %v2278 = vunpack.c.l.b16 %v2188
  %v2279 = vunpack.c.h.b16 %v2188
  %v2280 = vunpack.c.l.b16 %v2189
  %v2281 = vunpack.c.l.b16 %v2190
  %v2282 = vunpack.c.h.b16 %v2190
  %v2283 = vunpack.c.l.b16 %v2191
  %v2284 = vunpack.c.l.b16 %v2192
  %v2285 = vunpack.c.h.b16 %v2192
  %v2286 = vunpack.c.l.b16 %v2193
  %v2287 = vunpack.c.l.b16 %v2194
  %v2288 = vunpack.c.h.b16 %v2194
  %v2289 = vunpack.c.l.b16 %v2195
  %v2290 = vunpack.c.l.b16 %v2196
  %v2291 = vunpack.c.h.b16 %v2196
  %v2292 = vunpack.c.l.b16 %v2197
  %v2293 = vunpack.c.l.b16 %v2198
  %v2294 = vunpack.c.h.b16 %v2198
  %v2295 = vunpack.c.l.b16 %v2199
  %v2296 = vunpack.c.l.b16 %v2200
  %v2297 = vunpack.c.h.b16 %v2200
  %v2298 = vunpack.c.l.b16 %v2201
  %v2299 = vpack.c.b16 %v2254, %v2251
  %v2300 = vpack.c.b16 %v2255, %v2252
  %v2301 = vpack.c.b16 %v2256, %v2253
  %v2302 = vpack.c.b16 %v2260, %v2257
  %v2303 = vpack.c.b16 %v2261, %v2258
  %v2304 = vpack.c.b16 %v2262, %v2259
  %v2305 = vpack.c.b16 %v2266, %v2263
  %v2306 = vpack.c.b16 %v2267, %v2264
  %v2307 = vpack.c.b16 %v2268, %v2265
  %v2308 = vpack.c.b16 %v2272, %v2269
  %v2309 = vpack.c.b16 %v2273, %v2270
  %v2310 = vpack.c.b16 %v2274, %v2271
  %v2311 = vpack.c.b16 %v2278, %v2275
  %v2312 = vpack.c.b16 %v2279, %v2276
  %v2313 = vpack.c.b16 %v2280, %v2277
  %v2314 = vpack.c.b16 %v2284, %v2281
  %v2315 = vpack.c.b16 %v2285, %v2282
  %v2316 = vpack.c.b16 %v2286, %v2283
  %v2317 = vpack.c.b16 %v2290, %v2287
  %v2318 = vpack.c.b16 %v2291, %v2288
  %v2319 = vpack.c.b16 %v2292, %v2289
  %v2320 = vpack.c.b16 %v2296, %v2293
  %v2321 = vpack.c.b16 %v2297, %v2294
  %v2322 = vpack.c.b16 %v2298, %v2295
  %2347 = vmatprep.subr.bf16.mxu0 %v2321
  %2348 = vmatpush1.bf16.msra.mxu0 %v2320
  %2349 = vmatprep.subr.bf16.mxu0 %v2318
  %2350 = vmatpush1.bf16.msra.mxu0 %v2317
  %2351 = vmatprep.subr.bf16.mxu0 %v2315
  %2352 = vmatpush1.bf16.msra.mxu0 %v2314
  %2353 = vmatprep.subr.bf16.mxu0 %v2312
  %2354 = vmatpush1.bf16.msra.mxu0 %v2311
  %2355 = vmatprep.subr.bf16.mxu0 %v2309
  %2356 = vmatpush1.bf16.msra.mxu0 %v2308
  %2357 = vmatprep.subr.bf16.mxu0 %v2306
  %2358 = vmatpush1.bf16.msra.mxu0 %v2305
  %2359 = vmatprep.subr.bf16.mxu0 %v2303
  %2360 = vmatpush1.bf16.msra.mxu0 %v2302
  %2361 = vmatprep.subr.bf16.mxu0 %v2300
  %2362 = vmatpush1.bf16.msra.mxu0 %v2299
  %2363 = vmatprep.subr.bf16.mxu0 0
  %2364 = vmatpush2.bf16.msra.mxu0 0
  %2365 = vmatprep.subr.bf16.mxu0 0
  %2366 = vmatpush2.bf16.msra.mxu0 0
  %2367 = vmatprep.subr.bf16.mxu0 0
  %2368 = vmatpush2.bf16.msra.mxu0 0
  %2369 = vmatprep.subr.bf16.mxu0 0
  %2370 = vmatpush2.bf16.msra.mxu0 0
  %2371 = vmatprep.subr.bf16.mxu0 0
  %2372 = vmatpush2.bf16.msra.mxu0 0
  %2373 = vmatprep.subr.bf16.mxu0 0
  %2374 = vmatpush2.bf16.msra.mxu0 0
  %2375 = vmatprep.subr.bf16.mxu0 0
  %2376 = vmatpush2.bf16.msra.mxu0 0
  %2377 = vmatprep.subr.bf16.mxu0 0
  %2378 = vmatpush2.bf16.msra.mxu0 0
  %2379 = vmatprep.mubr.bf16.mxu0 0
  %2380 = vmatmul.mubr.bf16.gmra.mxu0 %v2169
  %v2381 = vpop.f32.mrf.mxu0
  %v2382 = vadd.f32 %v2207, %v2381
  %v2383 = vpop.f32.mrf.mxu0
  %v2384 = vadd.f32 %v2211, %v2383
  %v2385 = vpop.f32.mrf.mxu0
  %v2386 = vpop.f32.mrf.mxu0
  %2387 = vdwg.mxu0
  %2388 = vmatprep.subr.bf16.mxu0 0
  %2389 = vmatpush1.bf16.msra.mxu0 %v2322
  %2390 = vmatprep.subr.bf16.mxu0 0
  %2391 = vmatpush1.bf16.msra.mxu0 %v2319
  %2392 = vmatprep.subr.bf16.mxu0 0
  %2393 = vmatpush1.bf16.msra.mxu0 %v2316
  %2394 = vmatprep.subr.bf16.mxu0 0
  %2395 = vmatpush1.bf16.msra.mxu0 %v2313
  %2396 = vmatprep.subr.bf16.mxu0 0
  %2397 = vmatpush1.bf16.msra.mxu0 %v2310
  %2398 = vmatprep.subr.bf16.mxu0 0
  %2399 = vmatpush1.bf16.msra.mxu0 %v2307
  %2400 = vmatprep.subr.bf16.mxu0 0
  %2401 = vmatpush1.bf16.msra.mxu0 %v2304
  %2402 = vmatprep.subr.bf16.mxu0 0
  %2403 = vmatpush1.bf16.msra.mxu0 %v2301
  %2404 = vmatprep.subr.bf16.mxu0 0
  %2405 = vmatpush2.bf16.msra.mxu0 0
  %2406 = vmatprep.subr.bf16.mxu0 0
  %2407 = vmatpush2.bf16.msra.mxu0 0
  %2408 = vmatprep.subr.bf16.mxu0 0
  %2409 = vmatpush2.bf16.msra.mxu0 0
  %2410 = vmatprep.subr.bf16.mxu0 0
  %2411 = vmatpush2.bf16.msra.mxu0 0
  %2412 = vmatprep.subr.bf16.mxu0 0
  %2413 = vmatpush2.bf16.msra.mxu0 0
  %2414 = vmatprep.subr.bf16.mxu0 0
  %2415 = vmatpush2.bf16.msra.mxu0 0
  %2416 = vmatprep.subr.bf16.mxu0 0
  %2417 = vmatpush2.bf16.msra.mxu0 0
  %2418 = vmatprep.subr.bf16.mxu0 0
  %2419 = vmatpush2.bf16.msra.mxu0 0
  %2420 = vmatprep.mubr.bf16.mxu0 0
  %2421 = vmatmul.mubr.bf16.gmra.mxu0 %v2169
  %v2422 = vpop.f32.mrf.mxu0
  %v2423 = vadd.f32 %v2215, %v2422
  %v2424 = vpop.f32.mrf.mxu0
  %v2425 = vpop.f32.mrf.mxu0
  %v2426 = vpop.f32.mrf.mxu0
  %2427 = vdwg.mxu0
  %v2428 = vpack.c.bf16 %v2164, %v2164
  %v2429 = vld [vmem:[%s3] sm:$0xff]
  %v2430 = vld [vmem:[%s3 + $0x8] sm:$0xf]
  %v2431 = vld [vmem:[%s3 + $0xc] sm:$0xff]
  %v2432 = vld [vmem:[%s3 + $0x14] sm:$0xf]
  %v2433 = vld [vmem:[%s3 + $0x18] sm:$0xff]
  %v2434 = vld [vmem:[%s3 + $0x20] sm:$0xf]
  %v2435 = vld [vmem:[%s3 + $0x24] sm:$0xff]
  %v2436 = vld [vmem:[%s3 + $0x2c] sm:$0xf]
  %v2437 = vld [vmem:[%s3 + $0x30] sm:$0xff]
  %v2438 = vld [vmem:[%s3 + $0x38] sm:$0xf]
  %v2439 = vld [vmem:[%s3 + $0x3c] sm:$0xff]
  %v2440 = vld [vmem:[%s3 + $0x44] sm:$0xf]
  %v2441 = vld [vmem:[%s3 + $0x48] sm:$0xff]
  %v2442 = vld [vmem:[%s3 + $0x50] sm:$0xf]
  %v2443 = vld [vmem:[%s3 + $0x54] sm:$0xff]
  %v2444 = vld [vmem:[%s3 + $0x5c] sm:$0xf]
  %v2445 = vld [vmem:[%s3 + $0x60] sm:$0xff]
  %v2446 = vld [vmem:[%s3 + $0x68] sm:$0xf]
  %v2447 = vld [vmem:[%s3 + $0x6c] sm:$0xff]
  %v2448 = vld [vmem:[%s3 + $0x74] sm:$0xf]
  %v2449 = vld [vmem:[%s3 + $0x78] sm:$0xff]
  %v2450 = vld [vmem:[%s3 + $0x80] sm:$0xf]
  %v2451 = vld [vmem:[%s3 + $0x84] sm:$0xff]
  %v2452 = vld [vmem:[%s3 + $0x8c] sm:$0xf]
  %v2453 = vld [vmem:[%s3 + $0x90] sm:$0xff]
  %v2454 = vld [vmem:[%s3 + $0x98] sm:$0xf]
  %v2455 = vld [vmem:[%s3 + $0x9c] sm:$0xff]
  %v2456 = vld [vmem:[%s3 + $0xa4] sm:$0xf]
  %v2457 = vld [vmem:[%s3 + $0xa8] sm:$0xff]
  %v2458 = vld [vmem:[%s3 + $0xb0] sm:$0xf]
  %v2459 = vld [vmem:[%s3 + $0xb4] sm:$0xff]
  %v2460 = vld [vmem:[%s3 + $0xbc] sm:$0xf]
  %v2493 = vunpack.c.l.b16 %v2429
  %v2494 = vunpack.c.h.b16 %v2429
  %v2495 = vunpack.c.l.b16 %v2430
  %v2496 = vunpack.c.l.b16 %v2431
  %v2497 = vunpack.c.h.b16 %v2431
  %v2498 = vunpack.c.l.b16 %v2432
  %v2499 = vunpack.c.l.b16 %v2433
  %v2500 = vunpack.c.h.b16 %v2433
  %v2501 = vunpack.c.l.b16 %v2434
  %v2502 = vunpack.c.l.b16 %v2435
  %v2503 = vunpack.c.h.b16 %v2435
  %v2504 = vunpack.c.l.b16 %v2436
  %v2505 = vunpack.c.l.b16 %v2437
  %v2506 = vunpack.c.h.b16 %v2437
  %v2507 = vunpack.c.l.b16 %v2438
  %v2508 = vunpack.c.l.b16 %v2439
  %v2509 = vunpack.c.h.b16 %v2439
  %v2510 = vunpack.c.l.b16 %v2440
  %v2511 = vunpack.c.l.b16 %v2441
  %v2512 = vunpack.c.h.b16 %v2441
  %v2513 = vunpack.c.l.b16 %v2442
  %v2514 = vunpack.c.l.b16 %v2443
  %v2515 = vunpack.c.h.b16 %v2443
  %v2516 = vunpack.c.l.b16 %v2444
  %v2517 = vunpack.c.l.b16 %v2445
  %v2518 = vunpack.c.h.b16 %v2445
  %v2519 = vunpack.c.l.b16 %v2446
  %v2520 = vunpack.c.l.b16 %v2447
  %v2521 = vunpack.c.h.b16 %v2447
  %v2522 = vunpack.c.l.b16 %v2448
  %v2523 = vunpack.c.l.b16 %v2449
  %v2524 = vunpack.c.h.b16 %v2449
  %v2525 = vunpack.c.l.b16 %v2450
  %v2526 = vunpack.c.l.b16 %v2451
  %v2527 = vunpack.c.h.b16 %v2451
  %v2528 = vunpack.c.l.b16 %v2452
  %v2529 = vunpack.c.l.b16 %v2453
  %v2530 = vunpack.c.h.b16 %v2453
  %v2531 = vunpack.c.l.b16 %v2454
  %v2532 = vunpack.c.l.b16 %v2455
  %v2533 = vunpack.c.h.b16 %v2455
  %v2534 = vunpack.c.l.b16 %v2456
  %v2535 = vunpack.c.l.b16 %v2457
  %v2536 = vunpack.c.h.b16 %v2457
  %v2537 = vunpack.c.l.b16 %v2458
  %v2538 = vunpack.c.l.b16 %v2459
  %v2539 = vunpack.c.h.b16 %v2459
  %v2540 = vunpack.c.l.b16 %v2460
  %v2541 = vpack.c.b16 %v2496, %v2493
  %v2542 = vpack.c.b16 %v2497, %v2494
  %v2543 = vpack.c.b16 %v2498, %v2495
  %v2544 = vpack.c.b16 %v2502, %v2499
  %v2545 = vpack.c.b16 %v2503, %v2500
  %v2546 = vpack.c.b16 %v2504, %v2501
  %v2547 = vpack.c.b16 %v2508, %v2505
  %v2548 = vpack.c.b16 %v2509, %v2506
  %v2549 = vpack.c.b16 %v2510, %v2507
  %v2550 = vpack.c.b16 %v2514, %v2511
  %v2551 = vpack.c.b16 %v2515, %v2512
  %v2552 = vpack.c.b16 %v2516, %v2513
  %v2553 = vpack.c.b16 %v2520, %v2517
  %v2554 = vpack.c.b16 %v2521, %v2518
  %v2555 = vpack.c.b16 %v2522, %v2519
  %v2556 = vpack.c.b16 %v2526, %v2523
  %v2557 = vpack.c.b16 %v2527, %v2524
  %v2558 = vpack.c.b16 %v2528, %v2525
  %v2559 = vpack.c.b16 %v2532, %v2529
  %v2560 = vpack.c.b16 %v2533, %v2530
  %v2561 = vpack.c.b16 %v2534, %v2531
  %v2562 = vpack.c.b16 %v2538, %v2535
  %v2563 = vpack.c.b16 %v2539, %v2536
  %v2564 = vpack.c.b16 %v2540, %v2537
  %2589 = vmatprep.subr.bf16.mxu0 %v2563
  %2590 = vmatpush1.bf16.msra.mxu0 %v2562
  %2591 = vmatprep.subr.bf16.mxu0 %v2560
  %2592 = vmatpush1.bf16.msra.mxu0 %v2559
  %2593 = vmatprep.subr.bf16.mxu0 %v2557
  %2594 = vmatpush1.bf16.msra.mxu0 %v2556
  %2595 = vmatprep.subr.bf16.mxu0 %v2554
  %2596 = vmatpush1.bf16.msra.mxu0 %v2553
  %2597 = vmatprep.subr.bf16.mxu0 %v2551
  %2598 = vmatpush1.bf16.msra.mxu0 %v2550
  %2599 = vmatprep.subr.bf16.mxu0 %v2548
  %2600 = vmatpush1.bf16.msra.mxu0 %v2547
  %2601 = vmatprep.subr.bf16.mxu0 %v2545
  %2602 = vmatpush1.bf16.msra.mxu0 %v2544
  %2603 = vmatprep.subr.bf16.mxu0 %v2542
  %2604 = vmatpush1.bf16.msra.mxu0 %v2541
  %2605 = vmatprep.subr.bf16.mxu0 0
  %2606 = vmatpush2.bf16.msra.mxu0 0
  %2607 = vmatprep.subr.bf16.mxu0 0
  %2608 = vmatpush2.bf16.msra.mxu0 0
  %2609 = vmatprep.subr.bf16.mxu0 0
  %2610 = vmatpush2.bf16.msra.mxu0 0
  %2611 = vmatprep.subr.bf16.mxu0 0
  %2612 = vmatpush2.bf16.msra.mxu0 0
  %2613 = vmatprep.subr.bf16.mxu0 0
  %2614 = vmatpush2.bf16.msra.mxu0 0
  %2615 = vmatprep.subr.bf16.mxu0 0
  %2616 = vmatpush2.bf16.msra.mxu0 0
  %2617 = vmatprep.subr.bf16.mxu0 0
  %2618 = vmatpush2.bf16.msra.mxu0 0
  %2619 = vmatprep.subr.bf16.mxu0 0
  %2620 = vmatpush2.bf16.msra.mxu0 0
  %2621 = vmatprep.mubr.bf16.mxu0 0
  %2622 = vmatmul.mubr.bf16.gmra.mxu0 %v2428
  %v2623 = vpop.f32.mrf.mxu0
  %v2624 = vadd.f32 0.0, %v2623
  %v2625 = vpop.f32.mrf.mxu0
  %v2626 = vadd.f32 0.0, %v2625
  %v2627 = vpop.f32.mrf.mxu0
  %v2628 = vpop.f32.mrf.mxu0
  %2629 = vdwg.mxu0
  %2630 = vmatprep.subr.bf16.mxu0 0
  %2631 = vmatpush1.bf16.msra.mxu0 %v2564
  %2632 = vmatprep.subr.bf16.mxu0 0
  %2633 = vmatpush1.bf16.msra.mxu0 %v2561
  %2634 = vmatprep.subr.bf16.mxu0 0
  %2635 = vmatpush1.bf16.msra.mxu0 %v2558
  %2636 = vmatprep.subr.bf16.mxu0 0
  %2637 = vmatpush1.bf16.msra.mxu0 %v2555
  %2638 = vmatprep.subr.bf16.mxu0 0
  %2639 = vmatpush1.bf16.msra.mxu0 %v2552
  %2640 = vmatprep.subr.bf16.mxu0 0
  %2641 = vmatpush1.bf16.msra.mxu0 %v2549
  %2642 = vmatprep.subr.bf16.mxu0 0
  %2643 = vmatpush1.bf16.msra.mxu0 %v2546
  %2644 = vmatprep.subr.bf16.mxu0 0
  %2645 = vmatpush1.bf16.msra.mxu0 %v2543
  %2646 = vmatprep.subr.bf16.mxu0 0
  %2647 = vmatpush2.bf16.msra.mxu0 0
  %2648 = vmatprep.subr.bf16.mxu0 0
  %2649 = vmatpush2.bf16.msra.mxu0 0
  %2650 = vmatprep.subr.bf16.mxu0 0
  %2651 = vmatpush2.bf16.msra.mxu0 0
  %2652 = vmatprep.subr.bf16.mxu0 0
  %2653 = vmatpush2.bf16.msra.mxu0 0
  %2654 = vmatprep.subr.bf16.mxu0 0
  %2655 = vmatpush2.bf16.msra.mxu0 0
  %2656 = vmatprep.subr.bf16.mxu0 0
  %2657 = vmatpush2.bf16.msra.mxu0 0
  %2658 = vmatprep.subr.bf16.mxu0 0
  %2659 = vmatpush2.bf16.msra.mxu0 0
  %2660 = vmatprep.subr.bf16.mxu0 0
  %2661 = vmatpush2.bf16.msra.mxu0 0
  %2662 = vmatprep.mubr.bf16.mxu0 0
  %2663 = vmatmul.mubr.bf16.gmra.mxu0 %v2428
  %v2664 = vpop.f32.mrf.mxu0
  %v2665 = vadd.f32 0.0, %v2664
  %v2666 = vpop.f32.mrf.mxu0
  %v2667 = vpop.f32.mrf.mxu0
  %v2668 = vpop.f32.mrf.mxu0
  %2669 = vdwg.mxu0
  %v2670 = vadd.f32 %v2382, %v2624
  %v2671 = vxor.u32 %v2670, 2147483648
  %v2672 = vmul.f32 %v2671, 1.442695
  %v2673 = vpow.pop %v2672
  %v2674 = vadd.f32 %v2673, 1.0
  %v2675 = vrcp.pop %v2674
  %v2676 = vmul.f32 1.0, %v2675
  %v2677 = vadd.f32 %v2384, %v2626
  %v2678 = vxor.u32 %v2677, 2147483648
  %v2679 = vmul.f32 %v2678, 1.442695
  %v2680 = vpow.pop %v2679
  %v2681 = vadd.f32 %v2680, 1.0
  %v2682 = vrcp.pop %v2681
  %v2683 = vmul.f32 1.0, %v2682
  %v2684 = vld [vmem:[%s5] sm:$0x1]
  %v2686 = vlaneseq
  %v2687 = vshrl.u32 %v2686, 7
  %v2688 = vsub.s32 0, %v2687
  %v2689 = vrot.slane %v2684, %v2688
  %v2691 = vadd.f32 %v2665, %v2689
  %v2692 = vmul.f32 %v2676, %v2691
  %v2693 = vadd.f32 %v2423, %v2692
  %v2694 = vtanh.pop %v2693
  %v2695 = vsub.f32 1.0, %v2683
  %v2696 = vmul.f32 %v2695, %v2694
  %v2697 = vmul.f32 %v2683, %v2164
  %v2698 = vadd.f32 %v2696, %v2697
  %s2699 = scalar_lea.vmem %s6, 8
  %2700 = vst [vmem:[%s2699] sm:$0x3] %v2698
  %s2701 = scalar_lea.vmem %s0, 10
  %v2702 = vld [vmem:[%s2701] sm:$0x3]
  %v2703 = vpack.c.bf16 %v2702, %v2702
  %v2704 = vld [vmem:[%s2] sm:$0xff]
  %v2705 = vld [vmem:[%s2 + $0x8] sm:$0xf]
  %v2706 = vld [vmem:[%s2 + $0xc] sm:$0xff]
  %v2707 = vld [vmem:[%s2 + $0x14] sm:$0xf]
  %v2708 = vld [vmem:[%s2 + $0x18] sm:$0xff]
  %v2709 = vld [vmem:[%s2 + $0x20] sm:$0xf]
  %v2710 = vld [vmem:[%s2 + $0x24] sm:$0xff]
  %v2711 = vld [vmem:[%s2 + $0x2c] sm:$0xf]
  %v2712 = vld [vmem:[%s2 + $0x30] sm:$0xff]
  %v2713 = vld [vmem:[%s2 + $0x38] sm:$0xf]
  %v2714 = vld [vmem:[%s2 + $0x3c] sm:$0xff]
  %v2715 = vld [vmem:[%s2 + $0x44] sm:$0xf]
  %v2716 = vld [vmem:[%s2 + $0x48] sm:$0xff]
  %v2717 = vld [vmem:[%s2 + $0x50] sm:$0xf]
  %v2718 = vld [vmem:[%s2 + $0x54] sm:$0xff]
  %v2719 = vld [vmem:[%s2 + $0x5c] sm:$0xf]
  %v2720 = vld [vmem:[%s2 + $0x60] sm:$0xff]
  %v2721 = vld [vmem:[%s2 + $0x68] sm:$0xf]
  %v2722 = vld [vmem:[%s2 + $0x6c] sm:$0xff]
  %v2723 = vld [vmem:[%s2 + $0x74] sm:$0xf]
  %v2724 = vld [vmem:[%s2 + $0x78] sm:$0xff]
  %v2725 = vld [vmem:[%s2 + $0x80] sm:$0xf]
  %v2726 = vld [vmem:[%s2 + $0x84] sm:$0xff]
  %v2727 = vld [vmem:[%s2 + $0x8c] sm:$0xf]
  %v2728 = vld [vmem:[%s2 + $0x90] sm:$0xff]
  %v2729 = vld [vmem:[%s2 + $0x98] sm:$0xf]
  %v2730 = vld [vmem:[%s2 + $0x9c] sm:$0xff]
  %v2731 = vld [vmem:[%s2 + $0xa4] sm:$0xf]
  %v2732 = vld [vmem:[%s2 + $0xa8] sm:$0xff]
  %v2733 = vld [vmem:[%s2 + $0xb0] sm:$0xf]
  %v2734 = vld [vmem:[%s2 + $0xb4] sm:$0xff]
  %v2735 = vld [vmem:[%s2 + $0xbc] sm:$0xf]
  %v2736 = vld [vmem:[%s4] sm:$0x7]
  %v2738 = vlaneseq
  %v2739 = vshrl.u32 %v2738, 7
  %v2740 = vsub.s32 0, %v2739
  %v2741 = vrot.slane %v2736, %v2740
  %v2742 = vlaneseq
  %v2743 = vshrl.u32 %v2742, 7
  %v2744 = vsub.s32 1, %v2743
  %v2745 = vrot.slane %v2736, %v2744
  %v2746 = vlaneseq
  %v2747 = vshrl.u32 %v2746, 7
  %v2748 = vsub.s32 2, %v2747
  %v2749 = vrot.slane %v2736, %v2748
  %v2785 = vunpack.c.l.b16 %v2704
  %v2786 = vunpack.c.h.b16 %v2704
  %v2787 = vunpack.c.l.b16 %v2705
  %v2788 = vunpack.c.l.b16 %v2706
  %v2789 = vunpack.c.h.b16 %v2706
  %v2790 = vunpack.c.l.b16 %v2707
  %v2791 = vunpack.c.l.b16 %v2708
  %v2792 = vunpack.c.h.b16 %v2708
  %v2793 = vunpack.c.l.b16 %v2709
  %v2794 = vunpack.c.l.b16 %v2710
  %v2795 = vunpack.c.h.b16 %v2710
  %v2796 = vunpack.c.l.b16 %v2711
  %v2797 = vunpack.c.l.b16 %v2712
  %v2798 = vunpack.c.h.b16 %v2712
  %v2799 = vunpack.c.l.b16 %v2713
  %v2800 = vunpack.c.l.b16 %v2714
  %v2801 = vunpack.c.h.b16 %v2714
  %v2802 = vunpack.c.l.b16 %v2715
  %v2803 = vunpack.c.l.b16 %v2716
  %v2804 = vunpack.c.h.b16 %v2716
  %v2805 = vunpack.c.l.b16 %v2717
  %v2806 = vunpack.c.l.b16 %v2718
  %v2807 = vunpack.c.h.b16 %v2718
  %v2808 = vunpack.c.l.b16 %v2719
  %v2809 = vunpack.c.l.b16 %v2720
  %v2810 = vunpack.c.h.b16 %v2720
  %v2811 = vunpack.c.l.b16 %v2721
  %v2812 = vunpack.c.l.b16 %v2722
  %v2813 = vunpack.c.h.b16 %v2722
  %v2814 = vunpack.c.l.b16 %v2723
  %v2815 = vunpack.c.l.b16 %v2724
  %v2816 = vunpack.c.h.b16 %v2724
  %v2817 = vunpack.c.l.b16 %v2725
  %v2818 = vunpack.c.l.b16 %v2726
  %v2819 = vunpack.c.h.b16 %v2726
  %v2820 = vunpack.c.l.b16 %v2727
  %v2821 = vunpack.c.l.b16 %v2728
  %v2822 = vunpack.c.h.b16 %v2728
  %v2823 = vunpack.c.l.b16 %v2729
  %v2824 = vunpack.c.l.b16 %v2730
  %v2825 = vunpack.c.h.b16 %v2730
  %v2826 = vunpack.c.l.b16 %v2731
  %v2827 = vunpack.c.l.b16 %v2732
  %v2828 = vunpack.c.h.b16 %v2732
  %v2829 = vunpack.c.l.b16 %v2733
  %v2830 = vunpack.c.l.b16 %v2734
  %v2831 = vunpack.c.h.b16 %v2734
  %v2832 = vunpack.c.l.b16 %v2735
  %v2833 = vpack.c.b16 %v2788, %v2785
  %v2834 = vpack.c.b16 %v2789, %v2786
  %v2835 = vpack.c.b16 %v2790, %v2787
  %v2836 = vpack.c.b16 %v2794, %v2791
  %v2837 = vpack.c.b16 %v2795, %v2792
  %v2838 = vpack.c.b16 %v2796, %v2793
  %v2839 = vpack.c.b16 %v2800, %v2797
  %v2840 = vpack.c.b16 %v2801, %v2798
  %v2841 = vpack.c.b16 %v2802, %v2799
  %v2842 = vpack.c.b16 %v2806, %v2803
  %v2843 = vpack.c.b16 %v2807, %v2804
  %v2844 = vpack.c.b16 %v2808, %v2805
  %v2845 = vpack.c.b16 %v2812, %v2809
  %v2846 = vpack.c.b16 %v2813, %v2810
  %v2847 = vpack.c.b16 %v2814, %v2811
  %v2848 = vpack.c.b16 %v2818, %v2815
  %v2849 = vpack.c.b16 %v2819, %v2816
  %v2850 = vpack.c.b16 %v2820, %v2817
  %v2851 = vpack.c.b16 %v2824, %v2821
  %v2852 = vpack.c.b16 %v2825, %v2822
  %v2853 = vpack.c.b16 %v2826, %v2823
  %v2854 = vpack.c.b16 %v2830, %v2827
  %v2855 = vpack.c.b16 %v2831, %v2828
  %v2856 = vpack.c.b16 %v2832, %v2829
  %2881 = vmatprep.subr.bf16.mxu0 %v2855
  %2882 = vmatpush1.bf16.msra.mxu0 %v2854
  %2883 = vmatprep.subr.bf16.mxu0 %v2852
  %2884 = vmatpush1.bf16.msra.mxu0 %v2851
  %2885 = vmatprep.subr.bf16.mxu0 %v2849
  %2886 = vmatpush1.bf16.msra.mxu0 %v2848
  %2887 = vmatprep.subr.bf16.mxu0 %v2846
  %2888 = vmatpush1.bf16.msra.mxu0 %v2845
  %2889 = vmatprep.subr.bf16.mxu0 %v2843
  %2890 = vmatpush1.bf16.msra.mxu0 %v2842
  %2891 = vmatprep.subr.bf16.mxu0 %v2840
  %2892 = vmatpush1.bf16.msra.mxu0 %v2839
  %2893 = vmatprep.subr.bf16.mxu0 %v2837
  %2894 = vmatpush1.bf16.msra.mxu0 %v2836
  %2895 = vmatprep.subr.bf16.mxu0 %v2834
  %2896 = vmatpush1.bf16.msra.mxu0 %v2833
  %2897 = vmatprep.subr.bf16.mxu0 0
  %2898 = vmatpush2.bf16.msra.mxu0 0
  %2899 = vmatprep.subr.bf16.mxu0 0
  %2900 = vmatpush2.bf16.msra.mxu0 0
  %2901 = vmatprep.subr.bf16.mxu0 0
  %2902 = vmatpush2.bf16.msra.mxu0 0
  %2903 = vmatprep.subr.bf16.mxu0 0
  %2904 = vmatpush2.bf16.msra.mxu0 0
  %2905 = vmatprep.subr.bf16.mxu0 0
  %2906 = vmatpush2.bf16.msra.mxu0 0
  %2907 = vmatprep.subr.bf16.mxu0 0
  %2908 = vmatpush2.bf16.msra.mxu0 0
  %2909 = vmatprep.subr.bf16.mxu0 0
  %2910 = vmatpush2.bf16.msra.mxu0 0
  %2911 = vmatprep.subr.bf16.mxu0 0
  %2912 = vmatpush2.bf16.msra.mxu0 0
  %2913 = vmatprep.mubr.bf16.mxu0 0
  %2914 = vmatmul.mubr.bf16.gmra.mxu0 %v2703
  %v2915 = vpop.f32.mrf.mxu0
  %v2916 = vadd.f32 %v2741, %v2915
  %v2917 = vpop.f32.mrf.mxu0
  %v2918 = vadd.f32 %v2745, %v2917
  %v2919 = vpop.f32.mrf.mxu0
  %v2920 = vpop.f32.mrf.mxu0
  %2921 = vdwg.mxu0
  %2922 = vmatprep.subr.bf16.mxu0 0
  %2923 = vmatpush1.bf16.msra.mxu0 %v2856
  %2924 = vmatprep.subr.bf16.mxu0 0
  %2925 = vmatpush1.bf16.msra.mxu0 %v2853
  %2926 = vmatprep.subr.bf16.mxu0 0
  %2927 = vmatpush1.bf16.msra.mxu0 %v2850
  %2928 = vmatprep.subr.bf16.mxu0 0
  %2929 = vmatpush1.bf16.msra.mxu0 %v2847
  %2930 = vmatprep.subr.bf16.mxu0 0
  %2931 = vmatpush1.bf16.msra.mxu0 %v2844
  %2932 = vmatprep.subr.bf16.mxu0 0
  %2933 = vmatpush1.bf16.msra.mxu0 %v2841
  %2934 = vmatprep.subr.bf16.mxu0 0
  %2935 = vmatpush1.bf16.msra.mxu0 %v2838
  %2936 = vmatprep.subr.bf16.mxu0 0
  %2937 = vmatpush1.bf16.msra.mxu0 %v2835
  %2938 = vmatprep.subr.bf16.mxu0 0
  %2939 = vmatpush2.bf16.msra.mxu0 0
  %2940 = vmatprep.subr.bf16.mxu0 0
  %2941 = vmatpush2.bf16.msra.mxu0 0
  %2942 = vmatprep.subr.bf16.mxu0 0
  %2943 = vmatpush2.bf16.msra.mxu0 0
  %2944 = vmatprep.subr.bf16.mxu0 0
  %2945 = vmatpush2.bf16.msra.mxu0 0
  %2946 = vmatprep.subr.bf16.mxu0 0
  %2947 = vmatpush2.bf16.msra.mxu0 0
  %2948 = vmatprep.subr.bf16.mxu0 0
  %2949 = vmatpush2.bf16.msra.mxu0 0
  %2950 = vmatprep.subr.bf16.mxu0 0
  %2951 = vmatpush2.bf16.msra.mxu0 0
  %2952 = vmatprep.subr.bf16.mxu0 0
  %2953 = vmatpush2.bf16.msra.mxu0 0
  %2954 = vmatprep.mubr.bf16.mxu0 0
  %2955 = vmatmul.mubr.bf16.gmra.mxu0 %v2703
  %v2956 = vpop.f32.mrf.mxu0
  %v2957 = vadd.f32 %v2749, %v2956
  %v2958 = vpop.f32.mrf.mxu0
  %v2959 = vpop.f32.mrf.mxu0
  %v2960 = vpop.f32.mrf.mxu0
  %2961 = vdwg.mxu0
  %v2962 = vpack.c.bf16 %v2698, %v2698
  %v2963 = vld [vmem:[%s3] sm:$0xff]
  %v2964 = vld [vmem:[%s3 + $0x8] sm:$0xf]
  %v2965 = vld [vmem:[%s3 + $0xc] sm:$0xff]
  %v2966 = vld [vmem:[%s3 + $0x14] sm:$0xf]
  %v2967 = vld [vmem:[%s3 + $0x18] sm:$0xff]
  %v2968 = vld [vmem:[%s3 + $0x20] sm:$0xf]
  %v2969 = vld [vmem:[%s3 + $0x24] sm:$0xff]
  %v2970 = vld [vmem:[%s3 + $0x2c] sm:$0xf]
  %v2971 = vld [vmem:[%s3 + $0x30] sm:$0xff]
  %v2972 = vld [vmem:[%s3 + $0x38] sm:$0xf]
  %v2973 = vld [vmem:[%s3 + $0x3c] sm:$0xff]
  %v2974 = vld [vmem:[%s3 + $0x44] sm:$0xf]
  %v2975 = vld [vmem:[%s3 + $0x48] sm:$0xff]
  %v2976 = vld [vmem:[%s3 + $0x50] sm:$0xf]
  %v2977 = vld [vmem:[%s3 + $0x54] sm:$0xff]
  %v2978 = vld [vmem:[%s3 + $0x5c] sm:$0xf]
  %v2979 = vld [vmem:[%s3 + $0x60] sm:$0xff]
  %v2980 = vld [vmem:[%s3 + $0x68] sm:$0xf]
  %v2981 = vld [vmem:[%s3 + $0x6c] sm:$0xff]
  %v2982 = vld [vmem:[%s3 + $0x74] sm:$0xf]
  %v2983 = vld [vmem:[%s3 + $0x78] sm:$0xff]
  %v2984 = vld [vmem:[%s3 + $0x80] sm:$0xf]
  %v2985 = vld [vmem:[%s3 + $0x84] sm:$0xff]
  %v2986 = vld [vmem:[%s3 + $0x8c] sm:$0xf]
  %v2987 = vld [vmem:[%s3 + $0x90] sm:$0xff]
  %v2988 = vld [vmem:[%s3 + $0x98] sm:$0xf]
  %v2989 = vld [vmem:[%s3 + $0x9c] sm:$0xff]
  %v2990 = vld [vmem:[%s3 + $0xa4] sm:$0xf]
  %v2991 = vld [vmem:[%s3 + $0xa8] sm:$0xff]
  %v2992 = vld [vmem:[%s3 + $0xb0] sm:$0xf]
  %v2993 = vld [vmem:[%s3 + $0xb4] sm:$0xff]
  %v2994 = vld [vmem:[%s3 + $0xbc] sm:$0xf]
  %v3027 = vunpack.c.l.b16 %v2963
  %v3028 = vunpack.c.h.b16 %v2963
  %v3029 = vunpack.c.l.b16 %v2964
  %v3030 = vunpack.c.l.b16 %v2965
  %v3031 = vunpack.c.h.b16 %v2965
  %v3032 = vunpack.c.l.b16 %v2966
  %v3033 = vunpack.c.l.b16 %v2967
  %v3034 = vunpack.c.h.b16 %v2967
  %v3035 = vunpack.c.l.b16 %v2968
  %v3036 = vunpack.c.l.b16 %v2969
  %v3037 = vunpack.c.h.b16 %v2969
  %v3038 = vunpack.c.l.b16 %v2970
  %v3039 = vunpack.c.l.b16 %v2971
  %v3040 = vunpack.c.h.b16 %v2971
  %v3041 = vunpack.c.l.b16 %v2972
  %v3042 = vunpack.c.l.b16 %v2973
  %v3043 = vunpack.c.h.b16 %v2973
  %v3044 = vunpack.c.l.b16 %v2974
  %v3045 = vunpack.c.l.b16 %v2975
  %v3046 = vunpack.c.h.b16 %v2975
  %v3047 = vunpack.c.l.b16 %v2976
  %v3048 = vunpack.c.l.b16 %v2977
  %v3049 = vunpack.c.h.b16 %v2977
  %v3050 = vunpack.c.l.b16 %v2978
  %v3051 = vunpack.c.l.b16 %v2979
  %v3052 = vunpack.c.h.b16 %v2979
  %v3053 = vunpack.c.l.b16 %v2980
  %v3054 = vunpack.c.l.b16 %v2981
  %v3055 = vunpack.c.h.b16 %v2981
  %v3056 = vunpack.c.l.b16 %v2982
  %v3057 = vunpack.c.l.b16 %v2983
  %v3058 = vunpack.c.h.b16 %v2983
  %v3059 = vunpack.c.l.b16 %v2984
  %v3060 = vunpack.c.l.b16 %v2985
  %v3061 = vunpack.c.h.b16 %v2985
  %v3062 = vunpack.c.l.b16 %v2986
  %v3063 = vunpack.c.l.b16 %v2987
  %v3064 = vunpack.c.h.b16 %v2987
  %v3065 = vunpack.c.l.b16 %v2988
  %v3066 = vunpack.c.l.b16 %v2989
  %v3067 = vunpack.c.h.b16 %v2989
  %v3068 = vunpack.c.l.b16 %v2990
  %v3069 = vunpack.c.l.b16 %v2991
  %v3070 = vunpack.c.h.b16 %v2991
  %v3071 = vunpack.c.l.b16 %v2992
  %v3072 = vunpack.c.l.b16 %v2993
  %v3073 = vunpack.c.h.b16 %v2993
  %v3074 = vunpack.c.l.b16 %v2994
  %v3075 = vpack.c.b16 %v3030, %v3027
  %v3076 = vpack.c.b16 %v3031, %v3028
  %v3077 = vpack.c.b16 %v3032, %v3029
  %v3078 = vpack.c.b16 %v3036, %v3033
  %v3079 = vpack.c.b16 %v3037, %v3034
  %v3080 = vpack.c.b16 %v3038, %v3035
  %v3081 = vpack.c.b16 %v3042, %v3039
  %v3082 = vpack.c.b16 %v3043, %v3040
  %v3083 = vpack.c.b16 %v3044, %v3041
  %v3084 = vpack.c.b16 %v3048, %v3045
  %v3085 = vpack.c.b16 %v3049, %v3046
  %v3086 = vpack.c.b16 %v3050, %v3047
  %v3087 = vpack.c.b16 %v3054, %v3051
  %v3088 = vpack.c.b16 %v3055, %v3052
  %v3089 = vpack.c.b16 %v3056, %v3053
  %v3090 = vpack.c.b16 %v3060, %v3057
  %v3091 = vpack.c.b16 %v3061, %v3058
  %v3092 = vpack.c.b16 %v3062, %v3059
  %v3093 = vpack.c.b16 %v3066, %v3063
  %v3094 = vpack.c.b16 %v3067, %v3064
  %v3095 = vpack.c.b16 %v3068, %v3065
  %v3096 = vpack.c.b16 %v3072, %v3069
  %v3097 = vpack.c.b16 %v3073, %v3070
  %v3098 = vpack.c.b16 %v3074, %v3071
  %3123 = vmatprep.subr.bf16.mxu0 %v3097
  %3124 = vmatpush1.bf16.msra.mxu0 %v3096
  %3125 = vmatprep.subr.bf16.mxu0 %v3094
  %3126 = vmatpush1.bf16.msra.mxu0 %v3093
  %3127 = vmatprep.subr.bf16.mxu0 %v3091
  %3128 = vmatpush1.bf16.msra.mxu0 %v3090
  %3129 = vmatprep.subr.bf16.mxu0 %v3088
  %3130 = vmatpush1.bf16.msra.mxu0 %v3087
  %3131 = vmatprep.subr.bf16.mxu0 %v3085
  %3132 = vmatpush1.bf16.msra.mxu0 %v3084
  %3133 = vmatprep.subr.bf16.mxu0 %v3082
  %3134 = vmatpush1.bf16.msra.mxu0 %v3081
  %3135 = vmatprep.subr.bf16.mxu0 %v3079
  %3136 = vmatpush1.bf16.msra.mxu0 %v3078
  %3137 = vmatprep.subr.bf16.mxu0 %v3076
  %3138 = vmatpush1.bf16.msra.mxu0 %v3075
  %3139 = vmatprep.subr.bf16.mxu0 0
  %3140 = vmatpush2.bf16.msra.mxu0 0
  %3141 = vmatprep.subr.bf16.mxu0 0
  %3142 = vmatpush2.bf16.msra.mxu0 0
  %3143 = vmatprep.subr.bf16.mxu0 0
  %3144 = vmatpush2.bf16.msra.mxu0 0
  %3145 = vmatprep.subr.bf16.mxu0 0
  %3146 = vmatpush2.bf16.msra.mxu0 0
  %3147 = vmatprep.subr.bf16.mxu0 0
  %3148 = vmatpush2.bf16.msra.mxu0 0
  %3149 = vmatprep.subr.bf16.mxu0 0
  %3150 = vmatpush2.bf16.msra.mxu0 0
  %3151 = vmatprep.subr.bf16.mxu0 0
  %3152 = vmatpush2.bf16.msra.mxu0 0
  %3153 = vmatprep.subr.bf16.mxu0 0
  %3154 = vmatpush2.bf16.msra.mxu0 0
  %3155 = vmatprep.mubr.bf16.mxu0 0
  %3156 = vmatmul.mubr.bf16.gmra.mxu0 %v2962
  %v3157 = vpop.f32.mrf.mxu0
  %v3158 = vadd.f32 0.0, %v3157
  %v3159 = vpop.f32.mrf.mxu0
  %v3160 = vadd.f32 0.0, %v3159
  %v3161 = vpop.f32.mrf.mxu0
  %v3162 = vpop.f32.mrf.mxu0
  %3163 = vdwg.mxu0
  %3164 = vmatprep.subr.bf16.mxu0 0
  %3165 = vmatpush1.bf16.msra.mxu0 %v3098
  %3166 = vmatprep.subr.bf16.mxu0 0
  %3167 = vmatpush1.bf16.msra.mxu0 %v3095
  %3168 = vmatprep.subr.bf16.mxu0 0
  %3169 = vmatpush1.bf16.msra.mxu0 %v3092
  %3170 = vmatprep.subr.bf16.mxu0 0
  %3171 = vmatpush1.bf16.msra.mxu0 %v3089
  %3172 = vmatprep.subr.bf16.mxu0 0
  %3173 = vmatpush1.bf16.msra.mxu0 %v3086
  %3174 = vmatprep.subr.bf16.mxu0 0
  %3175 = vmatpush1.bf16.msra.mxu0 %v3083
  %3176 = vmatprep.subr.bf16.mxu0 0
  %3177 = vmatpush1.bf16.msra.mxu0 %v3080
  %3178 = vmatprep.subr.bf16.mxu0 0
  %3179 = vmatpush1.bf16.msra.mxu0 %v3077
  %3180 = vmatprep.subr.bf16.mxu0 0
  %3181 = vmatpush2.bf16.msra.mxu0 0
  %3182 = vmatprep.subr.bf16.mxu0 0
  %3183 = vmatpush2.bf16.msra.mxu0 0
  %3184 = vmatprep.subr.bf16.mxu0 0
  %3185 = vmatpush2.bf16.msra.mxu0 0
  %3186 = vmatprep.subr.bf16.mxu0 0
  %3187 = vmatpush2.bf16.msra.mxu0 0
  %3188 = vmatprep.subr.bf16.mxu0 0
  %3189 = vmatpush2.bf16.msra.mxu0 0
  %3190 = vmatprep.subr.bf16.mxu0 0
  %3191 = vmatpush2.bf16.msra.mxu0 0
  %3192 = vmatprep.subr.bf16.mxu0 0
  %3193 = vmatpush2.bf16.msra.mxu0 0
  %3194 = vmatprep.subr.bf16.mxu0 0
  %3195 = vmatpush2.bf16.msra.mxu0 0
  %3196 = vmatprep.mubr.bf16.mxu0 0
  %3197 = vmatmul.mubr.bf16.gmra.mxu0 %v2962
  %v3198 = vpop.f32.mrf.mxu0
  %v3199 = vadd.f32 0.0, %v3198
  %v3200 = vpop.f32.mrf.mxu0
  %v3201 = vpop.f32.mrf.mxu0
  %v3202 = vpop.f32.mrf.mxu0
  %3203 = vdwg.mxu0
  %v3204 = vadd.f32 %v2916, %v3158
  %v3205 = vxor.u32 %v3204, 2147483648
  %v3206 = vmul.f32 %v3205, 1.442695
  %v3207 = vpow.pop %v3206
  %v3208 = vadd.f32 %v3207, 1.0
  %v3209 = vrcp.pop %v3208
  %v3210 = vmul.f32 1.0, %v3209
  %v3211 = vadd.f32 %v2918, %v3160
  %v3212 = vxor.u32 %v3211, 2147483648
  %v3213 = vmul.f32 %v3212, 1.442695
  %v3214 = vpow.pop %v3213
  %v3215 = vadd.f32 %v3214, 1.0
  %v3216 = vrcp.pop %v3215
  %v3217 = vmul.f32 1.0, %v3216
  %v3218 = vld [vmem:[%s5] sm:$0x1]
  %v3220 = vlaneseq
  %v3221 = vshrl.u32 %v3220, 7
  %v3222 = vsub.s32 0, %v3221
  %v3223 = vrot.slane %v3218, %v3222
  %v3225 = vadd.f32 %v3199, %v3223
  %v3226 = vmul.f32 %v3210, %v3225
  %v3227 = vadd.f32 %v2957, %v3226
  %v3228 = vtanh.pop %v3227
  %v3229 = vsub.f32 1.0, %v3217
  %v3230 = vmul.f32 %v3229, %v3228
  %v3231 = vmul.f32 %v3217, %v2698
  %v3232 = vadd.f32 %v3230, %v3231
  %s3233 = scalar_lea.vmem %s6, 10
  %3234 = vst [vmem:[%s3233] sm:$0x3] %v3232
  %s3235 = scalar_lea.vmem %s0, 12
  %v3236 = vld [vmem:[%s3235] sm:$0x3]
  %v3237 = vpack.c.bf16 %v3236, %v3236
  %v3238 = vld [vmem:[%s2] sm:$0xff]
  %v3239 = vld [vmem:[%s2 + $0x8] sm:$0xf]
  %v3240 = vld [vmem:[%s2 + $0xc] sm:$0xff]
  %v3241 = vld [vmem:[%s2 + $0x14] sm:$0xf]
  %v3242 = vld [vmem:[%s2 + $0x18] sm:$0xff]
  %v3243 = vld [vmem:[%s2 + $0x20] sm:$0xf]
  %v3244 = vld [vmem:[%s2 + $0x24] sm:$0xff]
  %v3245 = vld [vmem:[%s2 + $0x2c] sm:$0xf]
  %v3246 = vld [vmem:[%s2 + $0x30] sm:$0xff]
  %v3247 = vld [vmem:[%s2 + $0x38] sm:$0xf]
  %v3248 = vld [vmem:[%s2 + $0x3c] sm:$0xff]
  %v3249 = vld [vmem:[%s2 + $0x44] sm:$0xf]
  %v3250 = vld [vmem:[%s2 + $0x48] sm:$0xff]
  %v3251 = vld [vmem:[%s2 + $0x50] sm:$0xf]
  %v3252 = vld [vmem:[%s2 + $0x54] sm:$0xff]
  %v3253 = vld [vmem:[%s2 + $0x5c] sm:$0xf]
  %v3254 = vld [vmem:[%s2 + $0x60] sm:$0xff]
  %v3255 = vld [vmem:[%s2 + $0x68] sm:$0xf]
  %v3256 = vld [vmem:[%s2 + $0x6c] sm:$0xff]
  %v3257 = vld [vmem:[%s2 + $0x74] sm:$0xf]
  %v3258 = vld [vmem:[%s2 + $0x78] sm:$0xff]
  %v3259 = vld [vmem:[%s2 + $0x80] sm:$0xf]
  %v3260 = vld [vmem:[%s2 + $0x84] sm:$0xff]
  %v3261 = vld [vmem:[%s2 + $0x8c] sm:$0xf]
  %v3262 = vld [vmem:[%s2 + $0x90] sm:$0xff]
  %v3263 = vld [vmem:[%s2 + $0x98] sm:$0xf]
  %v3264 = vld [vmem:[%s2 + $0x9c] sm:$0xff]
  %v3265 = vld [vmem:[%s2 + $0xa4] sm:$0xf]
  %v3266 = vld [vmem:[%s2 + $0xa8] sm:$0xff]
  %v3267 = vld [vmem:[%s2 + $0xb0] sm:$0xf]
  %v3268 = vld [vmem:[%s2 + $0xb4] sm:$0xff]
  %v3269 = vld [vmem:[%s2 + $0xbc] sm:$0xf]
  %v3270 = vld [vmem:[%s4] sm:$0x7]
  %v3272 = vlaneseq
  %v3273 = vshrl.u32 %v3272, 7
  %v3274 = vsub.s32 0, %v3273
  %v3275 = vrot.slane %v3270, %v3274
  %v3276 = vlaneseq
  %v3277 = vshrl.u32 %v3276, 7
  %v3278 = vsub.s32 1, %v3277
  %v3279 = vrot.slane %v3270, %v3278
  %v3280 = vlaneseq
  %v3281 = vshrl.u32 %v3280, 7
  %v3282 = vsub.s32 2, %v3281
  %v3283 = vrot.slane %v3270, %v3282
  %v3319 = vunpack.c.l.b16 %v3238
  %v3320 = vunpack.c.h.b16 %v3238
  %v3321 = vunpack.c.l.b16 %v3239
  %v3322 = vunpack.c.l.b16 %v3240
  %v3323 = vunpack.c.h.b16 %v3240
  %v3324 = vunpack.c.l.b16 %v3241
  %v3325 = vunpack.c.l.b16 %v3242
  %v3326 = vunpack.c.h.b16 %v3242
  %v3327 = vunpack.c.l.b16 %v3243
  %v3328 = vunpack.c.l.b16 %v3244
  %v3329 = vunpack.c.h.b16 %v3244
  %v3330 = vunpack.c.l.b16 %v3245
  %v3331 = vunpack.c.l.b16 %v3246
  %v3332 = vunpack.c.h.b16 %v3246
  %v3333 = vunpack.c.l.b16 %v3247
  %v3334 = vunpack.c.l.b16 %v3248
  %v3335 = vunpack.c.h.b16 %v3248
  %v3336 = vunpack.c.l.b16 %v3249
  %v3337 = vunpack.c.l.b16 %v3250
  %v3338 = vunpack.c.h.b16 %v3250
  %v3339 = vunpack.c.l.b16 %v3251
  %v3340 = vunpack.c.l.b16 %v3252
  %v3341 = vunpack.c.h.b16 %v3252
  %v3342 = vunpack.c.l.b16 %v3253
  %v3343 = vunpack.c.l.b16 %v3254
  %v3344 = vunpack.c.h.b16 %v3254
  %v3345 = vunpack.c.l.b16 %v3255
  %v3346 = vunpack.c.l.b16 %v3256
  %v3347 = vunpack.c.h.b16 %v3256
  %v3348 = vunpack.c.l.b16 %v3257
  %v3349 = vunpack.c.l.b16 %v3258
  %v3350 = vunpack.c.h.b16 %v3258
  %v3351 = vunpack.c.l.b16 %v3259
  %v3352 = vunpack.c.l.b16 %v3260
  %v3353 = vunpack.c.h.b16 %v3260
  %v3354 = vunpack.c.l.b16 %v3261
  %v3355 = vunpack.c.l.b16 %v3262
  %v3356 = vunpack.c.h.b16 %v3262
  %v3357 = vunpack.c.l.b16 %v3263
  %v3358 = vunpack.c.l.b16 %v3264
  %v3359 = vunpack.c.h.b16 %v3264
  %v3360 = vunpack.c.l.b16 %v3265
  %v3361 = vunpack.c.l.b16 %v3266
  %v3362 = vunpack.c.h.b16 %v3266
  %v3363 = vunpack.c.l.b16 %v3267
  %v3364 = vunpack.c.l.b16 %v3268
  %v3365 = vunpack.c.h.b16 %v3268
  %v3366 = vunpack.c.l.b16 %v3269
  %v3367 = vpack.c.b16 %v3322, %v3319
  %v3368 = vpack.c.b16 %v3323, %v3320
  %v3369 = vpack.c.b16 %v3324, %v3321
  %v3370 = vpack.c.b16 %v3328, %v3325
  %v3371 = vpack.c.b16 %v3329, %v3326
  %v3372 = vpack.c.b16 %v3330, %v3327
  %v3373 = vpack.c.b16 %v3334, %v3331
  %v3374 = vpack.c.b16 %v3335, %v3332
  %v3375 = vpack.c.b16 %v3336, %v3333
  %v3376 = vpack.c.b16 %v3340, %v3337
  %v3377 = vpack.c.b16 %v3341, %v3338
  %v3378 = vpack.c.b16 %v3342, %v3339
  %v3379 = vpack.c.b16 %v3346, %v3343
  %v3380 = vpack.c.b16 %v3347, %v3344
  %v3381 = vpack.c.b16 %v3348, %v3345
  %v3382 = vpack.c.b16 %v3352, %v3349
  %v3383 = vpack.c.b16 %v3353, %v3350
  %v3384 = vpack.c.b16 %v3354, %v3351
  %v3385 = vpack.c.b16 %v3358, %v3355
  %v3386 = vpack.c.b16 %v3359, %v3356
  %v3387 = vpack.c.b16 %v3360, %v3357
  %v3388 = vpack.c.b16 %v3364, %v3361
  %v3389 = vpack.c.b16 %v3365, %v3362
  %v3390 = vpack.c.b16 %v3366, %v3363
  %3415 = vmatprep.subr.bf16.mxu0 %v3389
  %3416 = vmatpush1.bf16.msra.mxu0 %v3388
  %3417 = vmatprep.subr.bf16.mxu0 %v3386
  %3418 = vmatpush1.bf16.msra.mxu0 %v3385
  %3419 = vmatprep.subr.bf16.mxu0 %v3383
  %3420 = vmatpush1.bf16.msra.mxu0 %v3382
  %3421 = vmatprep.subr.bf16.mxu0 %v3380
  %3422 = vmatpush1.bf16.msra.mxu0 %v3379
  %3423 = vmatprep.subr.bf16.mxu0 %v3377
  %3424 = vmatpush1.bf16.msra.mxu0 %v3376
  %3425 = vmatprep.subr.bf16.mxu0 %v3374
  %3426 = vmatpush1.bf16.msra.mxu0 %v3373
  %3427 = vmatprep.subr.bf16.mxu0 %v3371
  %3428 = vmatpush1.bf16.msra.mxu0 %v3370
  %3429 = vmatprep.subr.bf16.mxu0 %v3368
  %3430 = vmatpush1.bf16.msra.mxu0 %v3367
  %3431 = vmatprep.subr.bf16.mxu0 0
  %3432 = vmatpush2.bf16.msra.mxu0 0
  %3433 = vmatprep.subr.bf16.mxu0 0
  %3434 = vmatpush2.bf16.msra.mxu0 0
  %3435 = vmatprep.subr.bf16.mxu0 0
  %3436 = vmatpush2.bf16.msra.mxu0 0
  %3437 = vmatprep.subr.bf16.mxu0 0
  %3438 = vmatpush2.bf16.msra.mxu0 0
  %3439 = vmatprep.subr.bf16.mxu0 0
  %3440 = vmatpush2.bf16.msra.mxu0 0
  %3441 = vmatprep.subr.bf16.mxu0 0
  %3442 = vmatpush2.bf16.msra.mxu0 0
  %3443 = vmatprep.subr.bf16.mxu0 0
  %3444 = vmatpush2.bf16.msra.mxu0 0
  %3445 = vmatprep.subr.bf16.mxu0 0
  %3446 = vmatpush2.bf16.msra.mxu0 0
  %3447 = vmatprep.mubr.bf16.mxu0 0
  %3448 = vmatmul.mubr.bf16.gmra.mxu0 %v3237
  %v3449 = vpop.f32.mrf.mxu0
  %v3450 = vadd.f32 %v3275, %v3449
  %v3451 = vpop.f32.mrf.mxu0
  %v3452 = vadd.f32 %v3279, %v3451
  %v3453 = vpop.f32.mrf.mxu0
  %v3454 = vpop.f32.mrf.mxu0
  %3455 = vdwg.mxu0
  %3456 = vmatprep.subr.bf16.mxu0 0
  %3457 = vmatpush1.bf16.msra.mxu0 %v3390
  %3458 = vmatprep.subr.bf16.mxu0 0
  %3459 = vmatpush1.bf16.msra.mxu0 %v3387
  %3460 = vmatprep.subr.bf16.mxu0 0
  %3461 = vmatpush1.bf16.msra.mxu0 %v3384
  %3462 = vmatprep.subr.bf16.mxu0 0
  %3463 = vmatpush1.bf16.msra.mxu0 %v3381
  %3464 = vmatprep.subr.bf16.mxu0 0
  %3465 = vmatpush1.bf16.msra.mxu0 %v3378
  %3466 = vmatprep.subr.bf16.mxu0 0
  %3467 = vmatpush1.bf16.msra.mxu0 %v3375
  %3468 = vmatprep.subr.bf16.mxu0 0
  %3469 = vmatpush1.bf16.msra.mxu0 %v3372
  %3470 = vmatprep.subr.bf16.mxu0 0
  %3471 = vmatpush1.bf16.msra.mxu0 %v3369
  %3472 = vmatprep.subr.bf16.mxu0 0
  %3473 = vmatpush2.bf16.msra.mxu0 0
  %3474 = vmatprep.subr.bf16.mxu0 0
  %3475 = vmatpush2.bf16.msra.mxu0 0
  %3476 = vmatprep.subr.bf16.mxu0 0
  %3477 = vmatpush2.bf16.msra.mxu0 0
  %3478 = vmatprep.subr.bf16.mxu0 0
  %3479 = vmatpush2.bf16.msra.mxu0 0
  %3480 = vmatprep.subr.bf16.mxu0 0
  %3481 = vmatpush2.bf16.msra.mxu0 0
  %3482 = vmatprep.subr.bf16.mxu0 0
  %3483 = vmatpush2.bf16.msra.mxu0 0
  %3484 = vmatprep.subr.bf16.mxu0 0
  %3485 = vmatpush2.bf16.msra.mxu0 0
  %3486 = vmatprep.subr.bf16.mxu0 0
  %3487 = vmatpush2.bf16.msra.mxu0 0
  %3488 = vmatprep.mubr.bf16.mxu0 0
  %3489 = vmatmul.mubr.bf16.gmra.mxu0 %v3237
  %v3490 = vpop.f32.mrf.mxu0
  %v3491 = vadd.f32 %v3283, %v3490
  %v3492 = vpop.f32.mrf.mxu0
  %v3493 = vpop.f32.mrf.mxu0
  %v3494 = vpop.f32.mrf.mxu0
  %3495 = vdwg.mxu0
  %v3496 = vpack.c.bf16 %v3232, %v3232
  %v3497 = vld [vmem:[%s3] sm:$0xff]
  %v3498 = vld [vmem:[%s3 + $0x8] sm:$0xf]
  %v3499 = vld [vmem:[%s3 + $0xc] sm:$0xff]
  %v3500 = vld [vmem:[%s3 + $0x14] sm:$0xf]
  %v3501 = vld [vmem:[%s3 + $0x18] sm:$0xff]
  %v3502 = vld [vmem:[%s3 + $0x20] sm:$0xf]
  %v3503 = vld [vmem:[%s3 + $0x24] sm:$0xff]
  %v3504 = vld [vmem:[%s3 + $0x2c] sm:$0xf]
  %v3505 = vld [vmem:[%s3 + $0x30] sm:$0xff]
  %v3506 = vld [vmem:[%s3 + $0x38] sm:$0xf]
  %v3507 = vld [vmem:[%s3 + $0x3c] sm:$0xff]
  %v3508 = vld [vmem:[%s3 + $0x44] sm:$0xf]
  %v3509 = vld [vmem:[%s3 + $0x48] sm:$0xff]
  %v3510 = vld [vmem:[%s3 + $0x50] sm:$0xf]
  %v3511 = vld [vmem:[%s3 + $0x54] sm:$0xff]
  %v3512 = vld [vmem:[%s3 + $0x5c] sm:$0xf]
  %v3513 = vld [vmem:[%s3 + $0x60] sm:$0xff]
  %v3514 = vld [vmem:[%s3 + $0x68] sm:$0xf]
  %v3515 = vld [vmem:[%s3 + $0x6c] sm:$0xff]
  %v3516 = vld [vmem:[%s3 + $0x74] sm:$0xf]
  %v3517 = vld [vmem:[%s3 + $0x78] sm:$0xff]
  %v3518 = vld [vmem:[%s3 + $0x80] sm:$0xf]
  %v3519 = vld [vmem:[%s3 + $0x84] sm:$0xff]
  %v3520 = vld [vmem:[%s3 + $0x8c] sm:$0xf]
  %v3521 = vld [vmem:[%s3 + $0x90] sm:$0xff]
  %v3522 = vld [vmem:[%s3 + $0x98] sm:$0xf]
  %v3523 = vld [vmem:[%s3 + $0x9c] sm:$0xff]
  %v3524 = vld [vmem:[%s3 + $0xa4] sm:$0xf]
  %v3525 = vld [vmem:[%s3 + $0xa8] sm:$0xff]
  %v3526 = vld [vmem:[%s3 + $0xb0] sm:$0xf]
  %v3527 = vld [vmem:[%s3 + $0xb4] sm:$0xff]
  %v3528 = vld [vmem:[%s3 + $0xbc] sm:$0xf]
  %v3561 = vunpack.c.l.b16 %v3497
  %v3562 = vunpack.c.h.b16 %v3497
  %v3563 = vunpack.c.l.b16 %v3498
  %v3564 = vunpack.c.l.b16 %v3499
  %v3565 = vunpack.c.h.b16 %v3499
  %v3566 = vunpack.c.l.b16 %v3500
  %v3567 = vunpack.c.l.b16 %v3501
  %v3568 = vunpack.c.h.b16 %v3501
  %v3569 = vunpack.c.l.b16 %v3502
  %v3570 = vunpack.c.l.b16 %v3503
  %v3571 = vunpack.c.h.b16 %v3503
  %v3572 = vunpack.c.l.b16 %v3504
  %v3573 = vunpack.c.l.b16 %v3505
  %v3574 = vunpack.c.h.b16 %v3505
  %v3575 = vunpack.c.l.b16 %v3506
  %v3576 = vunpack.c.l.b16 %v3507
  %v3577 = vunpack.c.h.b16 %v3507
  %v3578 = vunpack.c.l.b16 %v3508
  %v3579 = vunpack.c.l.b16 %v3509
  %v3580 = vunpack.c.h.b16 %v3509
  %v3581 = vunpack.c.l.b16 %v3510
  %v3582 = vunpack.c.l.b16 %v3511
  %v3583 = vunpack.c.h.b16 %v3511
  %v3584 = vunpack.c.l.b16 %v3512
  %v3585 = vunpack.c.l.b16 %v3513
  %v3586 = vunpack.c.h.b16 %v3513
  %v3587 = vunpack.c.l.b16 %v3514
  %v3588 = vunpack.c.l.b16 %v3515
  %v3589 = vunpack.c.h.b16 %v3515
  %v3590 = vunpack.c.l.b16 %v3516
  %v3591 = vunpack.c.l.b16 %v3517
  %v3592 = vunpack.c.h.b16 %v3517
  %v3593 = vunpack.c.l.b16 %v3518
  %v3594 = vunpack.c.l.b16 %v3519
  %v3595 = vunpack.c.h.b16 %v3519
  %v3596 = vunpack.c.l.b16 %v3520
  %v3597 = vunpack.c.l.b16 %v3521
  %v3598 = vunpack.c.h.b16 %v3521
  %v3599 = vunpack.c.l.b16 %v3522
  %v3600 = vunpack.c.l.b16 %v3523
  %v3601 = vunpack.c.h.b16 %v3523
  %v3602 = vunpack.c.l.b16 %v3524
  %v3603 = vunpack.c.l.b16 %v3525
  %v3604 = vunpack.c.h.b16 %v3525
  %v3605 = vunpack.c.l.b16 %v3526
  %v3606 = vunpack.c.l.b16 %v3527
  %v3607 = vunpack.c.h.b16 %v3527
  %v3608 = vunpack.c.l.b16 %v3528
  %v3609 = vpack.c.b16 %v3564, %v3561
  %v3610 = vpack.c.b16 %v3565, %v3562
  %v3611 = vpack.c.b16 %v3566, %v3563
  %v3612 = vpack.c.b16 %v3570, %v3567
  %v3613 = vpack.c.b16 %v3571, %v3568
  %v3614 = vpack.c.b16 %v3572, %v3569
  %v3615 = vpack.c.b16 %v3576, %v3573
  %v3616 = vpack.c.b16 %v3577, %v3574
  %v3617 = vpack.c.b16 %v3578, %v3575
  %v3618 = vpack.c.b16 %v3582, %v3579
  %v3619 = vpack.c.b16 %v3583, %v3580
  %v3620 = vpack.c.b16 %v3584, %v3581
  %v3621 = vpack.c.b16 %v3588, %v3585
  %v3622 = vpack.c.b16 %v3589, %v3586
  %v3623 = vpack.c.b16 %v3590, %v3587
  %v3624 = vpack.c.b16 %v3594, %v3591
  %v3625 = vpack.c.b16 %v3595, %v3592
  %v3626 = vpack.c.b16 %v3596, %v3593
  %v3627 = vpack.c.b16 %v3600, %v3597
  %v3628 = vpack.c.b16 %v3601, %v3598
  %v3629 = vpack.c.b16 %v3602, %v3599
  %v3630 = vpack.c.b16 %v3606, %v3603
  %v3631 = vpack.c.b16 %v3607, %v3604
  %v3632 = vpack.c.b16 %v3608, %v3605
  %3657 = vmatprep.subr.bf16.mxu0 %v3631
  %3658 = vmatpush1.bf16.msra.mxu0 %v3630
  %3659 = vmatprep.subr.bf16.mxu0 %v3628
  %3660 = vmatpush1.bf16.msra.mxu0 %v3627
  %3661 = vmatprep.subr.bf16.mxu0 %v3625
  %3662 = vmatpush1.bf16.msra.mxu0 %v3624
  %3663 = vmatprep.subr.bf16.mxu0 %v3622
  %3664 = vmatpush1.bf16.msra.mxu0 %v3621
  %3665 = vmatprep.subr.bf16.mxu0 %v3619
  %3666 = vmatpush1.bf16.msra.mxu0 %v3618
  %3667 = vmatprep.subr.bf16.mxu0 %v3616
  %3668 = vmatpush1.bf16.msra.mxu0 %v3615
  %3669 = vmatprep.subr.bf16.mxu0 %v3613
  %3670 = vmatpush1.bf16.msra.mxu0 %v3612
  %3671 = vmatprep.subr.bf16.mxu0 %v3610
  %3672 = vmatpush1.bf16.msra.mxu0 %v3609
  %3673 = vmatprep.subr.bf16.mxu0 0
  %3674 = vmatpush2.bf16.msra.mxu0 0
  %3675 = vmatprep.subr.bf16.mxu0 0
  %3676 = vmatpush2.bf16.msra.mxu0 0
  %3677 = vmatprep.subr.bf16.mxu0 0
  %3678 = vmatpush2.bf16.msra.mxu0 0
  %3679 = vmatprep.subr.bf16.mxu0 0
  %3680 = vmatpush2.bf16.msra.mxu0 0
  %3681 = vmatprep.subr.bf16.mxu0 0
  %3682 = vmatpush2.bf16.msra.mxu0 0
  %3683 = vmatprep.subr.bf16.mxu0 0
  %3684 = vmatpush2.bf16.msra.mxu0 0
  %3685 = vmatprep.subr.bf16.mxu0 0
  %3686 = vmatpush2.bf16.msra.mxu0 0
  %3687 = vmatprep.subr.bf16.mxu0 0
  %3688 = vmatpush2.bf16.msra.mxu0 0
  %3689 = vmatprep.mubr.bf16.mxu0 0
  %3690 = vmatmul.mubr.bf16.gmra.mxu0 %v3496
  %v3691 = vpop.f32.mrf.mxu0
  %v3692 = vadd.f32 0.0, %v3691
  %v3693 = vpop.f32.mrf.mxu0
  %v3694 = vadd.f32 0.0, %v3693
  %v3695 = vpop.f32.mrf.mxu0
  %v3696 = vpop.f32.mrf.mxu0
  %3697 = vdwg.mxu0
  %3698 = vmatprep.subr.bf16.mxu0 0
  %3699 = vmatpush1.bf16.msra.mxu0 %v3632
  %3700 = vmatprep.subr.bf16.mxu0 0
  %3701 = vmatpush1.bf16.msra.mxu0 %v3629
  %3702 = vmatprep.subr.bf16.mxu0 0
  %3703 = vmatpush1.bf16.msra.mxu0 %v3626
  %3704 = vmatprep.subr.bf16.mxu0 0
  %3705 = vmatpush1.bf16.msra.mxu0 %v3623
  %3706 = vmatprep.subr.bf16.mxu0 0
  %3707 = vmatpush1.bf16.msra.mxu0 %v3620
  %3708 = vmatprep.subr.bf16.mxu0 0
  %3709 = vmatpush1.bf16.msra.mxu0 %v3617
  %3710 = vmatprep.subr.bf16.mxu0 0
  %3711 = vmatpush1.bf16.msra.mxu0 %v3614
  %3712 = vmatprep.subr.bf16.mxu0 0
  %3713 = vmatpush1.bf16.msra.mxu0 %v3611
  %3714 = vmatprep.subr.bf16.mxu0 0
  %3715 = vmatpush2.bf16.msra.mxu0 0
  %3716 = vmatprep.subr.bf16.mxu0 0
  %3717 = vmatpush2.bf16.msra.mxu0 0
  %3718 = vmatprep.subr.bf16.mxu0 0
  %3719 = vmatpush2.bf16.msra.mxu0 0
  %3720 = vmatprep.subr.bf16.mxu0 0
  %3721 = vmatpush2.bf16.msra.mxu0 0
  %3722 = vmatprep.subr.bf16.mxu0 0
  %3723 = vmatpush2.bf16.msra.mxu0 0
  %3724 = vmatprep.subr.bf16.mxu0 0
  %3725 = vmatpush2.bf16.msra.mxu0 0
  %3726 = vmatprep.subr.bf16.mxu0 0
  %3727 = vmatpush2.bf16.msra.mxu0 0
  %3728 = vmatprep.subr.bf16.mxu0 0
  %3729 = vmatpush2.bf16.msra.mxu0 0
  %3730 = vmatprep.mubr.bf16.mxu0 0
  %3731 = vmatmul.mubr.bf16.gmra.mxu0 %v3496
  %v3732 = vpop.f32.mrf.mxu0
  %v3733 = vadd.f32 0.0, %v3732
  %v3734 = vpop.f32.mrf.mxu0
  %v3735 = vpop.f32.mrf.mxu0
  %v3736 = vpop.f32.mrf.mxu0
  %3737 = vdwg.mxu0
  %v3738 = vadd.f32 %v3450, %v3692
  %v3739 = vxor.u32 %v3738, 2147483648
  %v3740 = vmul.f32 %v3739, 1.442695
  %v3741 = vpow.pop %v3740
  %v3742 = vadd.f32 %v3741, 1.0
  %v3743 = vrcp.pop %v3742
  %v3744 = vmul.f32 1.0, %v3743
  %v3745 = vadd.f32 %v3452, %v3694
  %v3746 = vxor.u32 %v3745, 2147483648
  %v3747 = vmul.f32 %v3746, 1.442695
  %v3748 = vpow.pop %v3747
  %v3749 = vadd.f32 %v3748, 1.0
  %v3750 = vrcp.pop %v3749
  %v3751 = vmul.f32 1.0, %v3750
  %v3752 = vld [vmem:[%s5] sm:$0x1]
  %v3754 = vlaneseq
  %v3755 = vshrl.u32 %v3754, 7
  %v3756 = vsub.s32 0, %v3755
  %v3757 = vrot.slane %v3752, %v3756
  %v3759 = vadd.f32 %v3733, %v3757
  %v3760 = vmul.f32 %v3744, %v3759
  %v3761 = vadd.f32 %v3491, %v3760
  %v3762 = vtanh.pop %v3761
  %v3763 = vsub.f32 1.0, %v3751
  %v3764 = vmul.f32 %v3763, %v3762
  %v3765 = vmul.f32 %v3751, %v3232
  %v3766 = vadd.f32 %v3764, %v3765
  %s3767 = scalar_lea.vmem %s6, 12
  %3768 = vst [vmem:[%s3767] sm:$0x3] %v3766
  %s3769 = scalar_lea.vmem %s0, 14
  %v3770 = vld [vmem:[%s3769] sm:$0x3]
  %v3771 = vpack.c.bf16 %v3770, %v3770
  %v3772 = vld [vmem:[%s2] sm:$0xff]
  %v3773 = vld [vmem:[%s2 + $0x8] sm:$0xf]
  %v3774 = vld [vmem:[%s2 + $0xc] sm:$0xff]
  %v3775 = vld [vmem:[%s2 + $0x14] sm:$0xf]
  %v3776 = vld [vmem:[%s2 + $0x18] sm:$0xff]
  %v3777 = vld [vmem:[%s2 + $0x20] sm:$0xf]
  %v3778 = vld [vmem:[%s2 + $0x24] sm:$0xff]
  %v3779 = vld [vmem:[%s2 + $0x2c] sm:$0xf]
  %v3780 = vld [vmem:[%s2 + $0x30] sm:$0xff]
  %v3781 = vld [vmem:[%s2 + $0x38] sm:$0xf]
  %v3782 = vld [vmem:[%s2 + $0x3c] sm:$0xff]
  %v3783 = vld [vmem:[%s2 + $0x44] sm:$0xf]
  %v3784 = vld [vmem:[%s2 + $0x48] sm:$0xff]
  %v3785 = vld [vmem:[%s2 + $0x50] sm:$0xf]
  %v3786 = vld [vmem:[%s2 + $0x54] sm:$0xff]
  %v3787 = vld [vmem:[%s2 + $0x5c] sm:$0xf]
  %v3788 = vld [vmem:[%s2 + $0x60] sm:$0xff]
  %v3789 = vld [vmem:[%s2 + $0x68] sm:$0xf]
  %v3790 = vld [vmem:[%s2 + $0x6c] sm:$0xff]
  %v3791 = vld [vmem:[%s2 + $0x74] sm:$0xf]
  %v3792 = vld [vmem:[%s2 + $0x78] sm:$0xff]
  %v3793 = vld [vmem:[%s2 + $0x80] sm:$0xf]
  %v3794 = vld [vmem:[%s2 + $0x84] sm:$0xff]
  %v3795 = vld [vmem:[%s2 + $0x8c] sm:$0xf]
  %v3796 = vld [vmem:[%s2 + $0x90] sm:$0xff]
  %v3797 = vld [vmem:[%s2 + $0x98] sm:$0xf]
  %v3798 = vld [vmem:[%s2 + $0x9c] sm:$0xff]
  %v3799 = vld [vmem:[%s2 + $0xa4] sm:$0xf]
  %v3800 = vld [vmem:[%s2 + $0xa8] sm:$0xff]
  %v3801 = vld [vmem:[%s2 + $0xb0] sm:$0xf]
  %v3802 = vld [vmem:[%s2 + $0xb4] sm:$0xff]
  %v3803 = vld [vmem:[%s2 + $0xbc] sm:$0xf]
  %v3804 = vld [vmem:[%s4] sm:$0x7]
  %v3806 = vlaneseq
  %v3807 = vshrl.u32 %v3806, 7
  %v3808 = vsub.s32 0, %v3807
  %v3809 = vrot.slane %v3804, %v3808
  %v3810 = vlaneseq
  %v3811 = vshrl.u32 %v3810, 7
  %v3812 = vsub.s32 1, %v3811
  %v3813 = vrot.slane %v3804, %v3812
  %v3814 = vlaneseq
  %v3815 = vshrl.u32 %v3814, 7
  %v3816 = vsub.s32 2, %v3815
  %v3817 = vrot.slane %v3804, %v3816
  %v3853 = vunpack.c.l.b16 %v3772
  %v3854 = vunpack.c.h.b16 %v3772
  %v3855 = vunpack.c.l.b16 %v3773
  %v3856 = vunpack.c.l.b16 %v3774
  %v3857 = vunpack.c.h.b16 %v3774
  %v3858 = vunpack.c.l.b16 %v3775
  %v3859 = vunpack.c.l.b16 %v3776
  %v3860 = vunpack.c.h.b16 %v3776
  %v3861 = vunpack.c.l.b16 %v3777
  %v3862 = vunpack.c.l.b16 %v3778
  %v3863 = vunpack.c.h.b16 %v3778
  %v3864 = vunpack.c.l.b16 %v3779
  %v3865 = vunpack.c.l.b16 %v3780
  %v3866 = vunpack.c.h.b16 %v3780
  %v3867 = vunpack.c.l.b16 %v3781
  %v3868 = vunpack.c.l.b16 %v3782
  %v3869 = vunpack.c.h.b16 %v3782
  %v3870 = vunpack.c.l.b16 %v3783
  %v3871 = vunpack.c.l.b16 %v3784
  %v3872 = vunpack.c.h.b16 %v3784
  %v3873 = vunpack.c.l.b16 %v3785
  %v3874 = vunpack.c.l.b16 %v3786
  %v3875 = vunpack.c.h.b16 %v3786
  %v3876 = vunpack.c.l.b16 %v3787
  %v3877 = vunpack.c.l.b16 %v3788
  %v3878 = vunpack.c.h.b16 %v3788
  %v3879 = vunpack.c.l.b16 %v3789
  %v3880 = vunpack.c.l.b16 %v3790
  %v3881 = vunpack.c.h.b16 %v3790
  %v3882 = vunpack.c.l.b16 %v3791
  %v3883 = vunpack.c.l.b16 %v3792
  %v3884 = vunpack.c.h.b16 %v3792
  %v3885 = vunpack.c.l.b16 %v3793
  %v3886 = vunpack.c.l.b16 %v3794
  %v3887 = vunpack.c.h.b16 %v3794
  %v3888 = vunpack.c.l.b16 %v3795
  %v3889 = vunpack.c.l.b16 %v3796
  %v3890 = vunpack.c.h.b16 %v3796
  %v3891 = vunpack.c.l.b16 %v3797
  %v3892 = vunpack.c.l.b16 %v3798
  %v3893 = vunpack.c.h.b16 %v3798
  %v3894 = vunpack.c.l.b16 %v3799
  %v3895 = vunpack.c.l.b16 %v3800
  %v3896 = vunpack.c.h.b16 %v3800
  %v3897 = vunpack.c.l.b16 %v3801
  %v3898 = vunpack.c.l.b16 %v3802
  %v3899 = vunpack.c.h.b16 %v3802
  %v3900 = vunpack.c.l.b16 %v3803
  %v3901 = vpack.c.b16 %v3856, %v3853
  %v3902 = vpack.c.b16 %v3857, %v3854
  %v3903 = vpack.c.b16 %v3858, %v3855
  %v3904 = vpack.c.b16 %v3862, %v3859
  %v3905 = vpack.c.b16 %v3863, %v3860
  %v3906 = vpack.c.b16 %v3864, %v3861
  %v3907 = vpack.c.b16 %v3868, %v3865
  %v3908 = vpack.c.b16 %v3869, %v3866
  %v3909 = vpack.c.b16 %v3870, %v3867
  %v3910 = vpack.c.b16 %v3874, %v3871
  %v3911 = vpack.c.b16 %v3875, %v3872
  %v3912 = vpack.c.b16 %v3876, %v3873
  %v3913 = vpack.c.b16 %v3880, %v3877
  %v3914 = vpack.c.b16 %v3881, %v3878
  %v3915 = vpack.c.b16 %v3882, %v3879
  %v3916 = vpack.c.b16 %v3886, %v3883
  %v3917 = vpack.c.b16 %v3887, %v3884
  %v3918 = vpack.c.b16 %v3888, %v3885
  %v3919 = vpack.c.b16 %v3892, %v3889
  %v3920 = vpack.c.b16 %v3893, %v3890
  %v3921 = vpack.c.b16 %v3894, %v3891
  %v3922 = vpack.c.b16 %v3898, %v3895
  %v3923 = vpack.c.b16 %v3899, %v3896
  %v3924 = vpack.c.b16 %v3900, %v3897
  %3949 = vmatprep.subr.bf16.mxu0 %v3923
  %3950 = vmatpush1.bf16.msra.mxu0 %v3922
  %3951 = vmatprep.subr.bf16.mxu0 %v3920
  %3952 = vmatpush1.bf16.msra.mxu0 %v3919
  %3953 = vmatprep.subr.bf16.mxu0 %v3917
  %3954 = vmatpush1.bf16.msra.mxu0 %v3916
  %3955 = vmatprep.subr.bf16.mxu0 %v3914
  %3956 = vmatpush1.bf16.msra.mxu0 %v3913
  %3957 = vmatprep.subr.bf16.mxu0 %v3911
  %3958 = vmatpush1.bf16.msra.mxu0 %v3910
  %3959 = vmatprep.subr.bf16.mxu0 %v3908
  %3960 = vmatpush1.bf16.msra.mxu0 %v3907
  %3961 = vmatprep.subr.bf16.mxu0 %v3905
  %3962 = vmatpush1.bf16.msra.mxu0 %v3904
  %3963 = vmatprep.subr.bf16.mxu0 %v3902
  %3964 = vmatpush1.bf16.msra.mxu0 %v3901
  %3965 = vmatprep.subr.bf16.mxu0 0
  %3966 = vmatpush2.bf16.msra.mxu0 0
  %3967 = vmatprep.subr.bf16.mxu0 0
  %3968 = vmatpush2.bf16.msra.mxu0 0
  %3969 = vmatprep.subr.bf16.mxu0 0
  %3970 = vmatpush2.bf16.msra.mxu0 0
  %3971 = vmatprep.subr.bf16.mxu0 0
  %3972 = vmatpush2.bf16.msra.mxu0 0
  %3973 = vmatprep.subr.bf16.mxu0 0
  %3974 = vmatpush2.bf16.msra.mxu0 0
  %3975 = vmatprep.subr.bf16.mxu0 0
  %3976 = vmatpush2.bf16.msra.mxu0 0
  %3977 = vmatprep.subr.bf16.mxu0 0
  %3978 = vmatpush2.bf16.msra.mxu0 0
  %3979 = vmatprep.subr.bf16.mxu0 0
  %3980 = vmatpush2.bf16.msra.mxu0 0
  %3981 = vmatprep.mubr.bf16.mxu0 0
  %3982 = vmatmul.mubr.bf16.gmra.mxu0 %v3771
  %v3983 = vpop.f32.mrf.mxu0
  %v3984 = vadd.f32 %v3809, %v3983
  %v3985 = vpop.f32.mrf.mxu0
  %v3986 = vadd.f32 %v3813, %v3985
  %v3987 = vpop.f32.mrf.mxu0
  %v3988 = vpop.f32.mrf.mxu0
  %3989 = vdwg.mxu0
  %3990 = vmatprep.subr.bf16.mxu0 0
  %3991 = vmatpush1.bf16.msra.mxu0 %v3924
  %3992 = vmatprep.subr.bf16.mxu0 0
  %3993 = vmatpush1.bf16.msra.mxu0 %v3921
  %3994 = vmatprep.subr.bf16.mxu0 0
  %3995 = vmatpush1.bf16.msra.mxu0 %v3918
  %3996 = vmatprep.subr.bf16.mxu0 0
  %3997 = vmatpush1.bf16.msra.mxu0 %v3915
  %3998 = vmatprep.subr.bf16.mxu0 0
  %3999 = vmatpush1.bf16.msra.mxu0 %v3912
  %4000 = vmatprep.subr.bf16.mxu0 0
  %4001 = vmatpush1.bf16.msra.mxu0 %v3909
  %4002 = vmatprep.subr.bf16.mxu0 0
  %4003 = vmatpush1.bf16.msra.mxu0 %v3906
  %4004 = vmatprep.subr.bf16.mxu0 0
  %4005 = vmatpush1.bf16.msra.mxu0 %v3903
  %4006 = vmatprep.subr.bf16.mxu0 0
  %4007 = vmatpush2.bf16.msra.mxu0 0
  %4008 = vmatprep.subr.bf16.mxu0 0
  %4009 = vmatpush2.bf16.msra.mxu0 0
  %4010 = vmatprep.subr.bf16.mxu0 0
  %4011 = vmatpush2.bf16.msra.mxu0 0
  %4012 = vmatprep.subr.bf16.mxu0 0
  %4013 = vmatpush2.bf16.msra.mxu0 0
  %4014 = vmatprep.subr.bf16.mxu0 0
  %4015 = vmatpush2.bf16.msra.mxu0 0
  %4016 = vmatprep.subr.bf16.mxu0 0
  %4017 = vmatpush2.bf16.msra.mxu0 0
  %4018 = vmatprep.subr.bf16.mxu0 0
  %4019 = vmatpush2.bf16.msra.mxu0 0
  %4020 = vmatprep.subr.bf16.mxu0 0
  %4021 = vmatpush2.bf16.msra.mxu0 0
  %4022 = vmatprep.mubr.bf16.mxu0 0
  %4023 = vmatmul.mubr.bf16.gmra.mxu0 %v3771
  %v4024 = vpop.f32.mrf.mxu0
  %v4025 = vadd.f32 %v3817, %v4024
  %v4026 = vpop.f32.mrf.mxu0
  %v4027 = vpop.f32.mrf.mxu0
  %v4028 = vpop.f32.mrf.mxu0
  %4029 = vdwg.mxu0
  %v4030 = vpack.c.bf16 %v3766, %v3766
  %v4031 = vld [vmem:[%s3] sm:$0xff]
  %v4032 = vld [vmem:[%s3 + $0x8] sm:$0xf]
  %v4033 = vld [vmem:[%s3 + $0xc] sm:$0xff]
  %v4034 = vld [vmem:[%s3 + $0x14] sm:$0xf]
  %v4035 = vld [vmem:[%s3 + $0x18] sm:$0xff]
  %v4036 = vld [vmem:[%s3 + $0x20] sm:$0xf]
  %v4037 = vld [vmem:[%s3 + $0x24] sm:$0xff]
  %v4038 = vld [vmem:[%s3 + $0x2c] sm:$0xf]
  %v4039 = vld [vmem:[%s3 + $0x30] sm:$0xff]
  %v4040 = vld [vmem:[%s3 + $0x38] sm:$0xf]
  %v4041 = vld [vmem:[%s3 + $0x3c] sm:$0xff]
  %v4042 = vld [vmem:[%s3 + $0x44] sm:$0xf]
  %v4043 = vld [vmem:[%s3 + $0x48] sm:$0xff]
  %v4044 = vld [vmem:[%s3 + $0x50] sm:$0xf]
  %v4045 = vld [vmem:[%s3 + $0x54] sm:$0xff]
  %v4046 = vld [vmem:[%s3 + $0x5c] sm:$0xf]
  %v4047 = vld [vmem:[%s3 + $0x60] sm:$0xff]
  %v4048 = vld [vmem:[%s3 + $0x68] sm:$0xf]
  %v4049 = vld [vmem:[%s3 + $0x6c] sm:$0xff]
  %v4050 = vld [vmem:[%s3 + $0x74] sm:$0xf]
  %v4051 = vld [vmem:[%s3 + $0x78] sm:$0xff]
  %v4052 = vld [vmem:[%s3 + $0x80] sm:$0xf]
  %v4053 = vld [vmem:[%s3 + $0x84] sm:$0xff]
  %v4054 = vld [vmem:[%s3 + $0x8c] sm:$0xf]
  %v4055 = vld [vmem:[%s3 + $0x90] sm:$0xff]
  %v4056 = vld [vmem:[%s3 + $0x98] sm:$0xf]
  %v4057 = vld [vmem:[%s3 + $0x9c] sm:$0xff]
  %v4058 = vld [vmem:[%s3 + $0xa4] sm:$0xf]
  %v4059 = vld [vmem:[%s3 + $0xa8] sm:$0xff]
  %v4060 = vld [vmem:[%s3 + $0xb0] sm:$0xf]
  %v4061 = vld [vmem:[%s3 + $0xb4] sm:$0xff]
  %v4062 = vld [vmem:[%s3 + $0xbc] sm:$0xf]
  %v4095 = vunpack.c.l.b16 %v4031
  %v4096 = vunpack.c.h.b16 %v4031
  %v4097 = vunpack.c.l.b16 %v4032
  %v4098 = vunpack.c.l.b16 %v4033
  %v4099 = vunpack.c.h.b16 %v4033
  %v4100 = vunpack.c.l.b16 %v4034
  %v4101 = vunpack.c.l.b16 %v4035
  %v4102 = vunpack.c.h.b16 %v4035
  %v4103 = vunpack.c.l.b16 %v4036
  %v4104 = vunpack.c.l.b16 %v4037
  %v4105 = vunpack.c.h.b16 %v4037
  %v4106 = vunpack.c.l.b16 %v4038
  %v4107 = vunpack.c.l.b16 %v4039
  %v4108 = vunpack.c.h.b16 %v4039
  %v4109 = vunpack.c.l.b16 %v4040
  %v4110 = vunpack.c.l.b16 %v4041
  %v4111 = vunpack.c.h.b16 %v4041
  %v4112 = vunpack.c.l.b16 %v4042
  %v4113 = vunpack.c.l.b16 %v4043
  %v4114 = vunpack.c.h.b16 %v4043
  %v4115 = vunpack.c.l.b16 %v4044
  %v4116 = vunpack.c.l.b16 %v4045
  %v4117 = vunpack.c.h.b16 %v4045
  %v4118 = vunpack.c.l.b16 %v4046
  %v4119 = vunpack.c.l.b16 %v4047
  %v4120 = vunpack.c.h.b16 %v4047
  %v4121 = vunpack.c.l.b16 %v4048
  %v4122 = vunpack.c.l.b16 %v4049
  %v4123 = vunpack.c.h.b16 %v4049
  %v4124 = vunpack.c.l.b16 %v4050
  %v4125 = vunpack.c.l.b16 %v4051
  %v4126 = vunpack.c.h.b16 %v4051
  %v4127 = vunpack.c.l.b16 %v4052
  %v4128 = vunpack.c.l.b16 %v4053
  %v4129 = vunpack.c.h.b16 %v4053
  %v4130 = vunpack.c.l.b16 %v4054
  %v4131 = vunpack.c.l.b16 %v4055
  %v4132 = vunpack.c.h.b16 %v4055
  %v4133 = vunpack.c.l.b16 %v4056
  %v4134 = vunpack.c.l.b16 %v4057
  %v4135 = vunpack.c.h.b16 %v4057
  %v4136 = vunpack.c.l.b16 %v4058
  %v4137 = vunpack.c.l.b16 %v4059
  %v4138 = vunpack.c.h.b16 %v4059
  %v4139 = vunpack.c.l.b16 %v4060
  %v4140 = vunpack.c.l.b16 %v4061
  %v4141 = vunpack.c.h.b16 %v4061
  %v4142 = vunpack.c.l.b16 %v4062
  %v4143 = vpack.c.b16 %v4098, %v4095
  %v4144 = vpack.c.b16 %v4099, %v4096
  %v4145 = vpack.c.b16 %v4100, %v4097
  %v4146 = vpack.c.b16 %v4104, %v4101
  %v4147 = vpack.c.b16 %v4105, %v4102
  %v4148 = vpack.c.b16 %v4106, %v4103
  %v4149 = vpack.c.b16 %v4110, %v4107
  %v4150 = vpack.c.b16 %v4111, %v4108
  %v4151 = vpack.c.b16 %v4112, %v4109
  %v4152 = vpack.c.b16 %v4116, %v4113
  %v4153 = vpack.c.b16 %v4117, %v4114
  %v4154 = vpack.c.b16 %v4118, %v4115
  %v4155 = vpack.c.b16 %v4122, %v4119
  %v4156 = vpack.c.b16 %v4123, %v4120
  %v4157 = vpack.c.b16 %v4124, %v4121
  %v4158 = vpack.c.b16 %v4128, %v4125
  %v4159 = vpack.c.b16 %v4129, %v4126
  %v4160 = vpack.c.b16 %v4130, %v4127
  %v4161 = vpack.c.b16 %v4134, %v4131
  %v4162 = vpack.c.b16 %v4135, %v4132
  %v4163 = vpack.c.b16 %v4136, %v4133
  %v4164 = vpack.c.b16 %v4140, %v4137
  %v4165 = vpack.c.b16 %v4141, %v4138
  %v4166 = vpack.c.b16 %v4142, %v4139
  %4191 = vmatprep.subr.bf16.mxu0 %v4165
  %4192 = vmatpush1.bf16.msra.mxu0 %v4164
  %4193 = vmatprep.subr.bf16.mxu0 %v4162
  %4194 = vmatpush1.bf16.msra.mxu0 %v4161
  %4195 = vmatprep.subr.bf16.mxu0 %v4159
  %4196 = vmatpush1.bf16.msra.mxu0 %v4158
  %4197 = vmatprep.subr.bf16.mxu0 %v4156
  %4198 = vmatpush1.bf16.msra.mxu0 %v4155
  %4199 = vmatprep.subr.bf16.mxu0 %v4153
  %4200 = vmatpush1.bf16.msra.mxu0 %v4152
  %4201 = vmatprep.subr.bf16.mxu0 %v4150
  %4202 = vmatpush1.bf16.msra.mxu0 %v4149
  %4203 = vmatprep.subr.bf16.mxu0 %v4147
  %4204 = vmatpush1.bf16.msra.mxu0 %v4146
  %4205 = vmatprep.subr.bf16.mxu0 %v4144
  %4206 = vmatpush1.bf16.msra.mxu0 %v4143
  %4207 = vmatprep.subr.bf16.mxu0 0
  %4208 = vmatpush2.bf16.msra.mxu0 0
  %4209 = vmatprep.subr.bf16.mxu0 0
  %4210 = vmatpush2.bf16.msra.mxu0 0
  %4211 = vmatprep.subr.bf16.mxu0 0
  %4212 = vmatpush2.bf16.msra.mxu0 0
  %4213 = vmatprep.subr.bf16.mxu0 0
  %4214 = vmatpush2.bf16.msra.mxu0 0
  %4215 = vmatprep.subr.bf16.mxu0 0
  %4216 = vmatpush2.bf16.msra.mxu0 0
  %4217 = vmatprep.subr.bf16.mxu0 0
  %4218 = vmatpush2.bf16.msra.mxu0 0
  %4219 = vmatprep.subr.bf16.mxu0 0
  %4220 = vmatpush2.bf16.msra.mxu0 0
  %4221 = vmatprep.subr.bf16.mxu0 0
  %4222 = vmatpush2.bf16.msra.mxu0 0
  %4223 = vmatprep.mubr.bf16.mxu0 0
  %4224 = vmatmul.mubr.bf16.gmra.mxu0 %v4030
  %v4225 = vpop.f32.mrf.mxu0
  %v4226 = vadd.f32 0.0, %v4225
  %v4227 = vpop.f32.mrf.mxu0
  %v4228 = vadd.f32 0.0, %v4227
  %v4229 = vpop.f32.mrf.mxu0
  %v4230 = vpop.f32.mrf.mxu0
  %4231 = vdwg.mxu0
  %4232 = vmatprep.subr.bf16.mxu0 0
  %4233 = vmatpush1.bf16.msra.mxu0 %v4166
  %4234 = vmatprep.subr.bf16.mxu0 0
  %4235 = vmatpush1.bf16.msra.mxu0 %v4163
  %4236 = vmatprep.subr.bf16.mxu0 0
  %4237 = vmatpush1.bf16.msra.mxu0 %v4160
  %4238 = vmatprep.subr.bf16.mxu0 0
  %4239 = vmatpush1.bf16.msra.mxu0 %v4157
  %4240 = vmatprep.subr.bf16.mxu0 0
  %4241 = vmatpush1.bf16.msra.mxu0 %v4154
  %4242 = vmatprep.subr.bf16.mxu0 0
  %4243 = vmatpush1.bf16.msra.mxu0 %v4151
  %4244 = vmatprep.subr.bf16.mxu0 0
  %4245 = vmatpush1.bf16.msra.mxu0 %v4148
  %4246 = vmatprep.subr.bf16.mxu0 0
  %4247 = vmatpush1.bf16.msra.mxu0 %v4145
  %4248 = vmatprep.subr.bf16.mxu0 0
  %4249 = vmatpush2.bf16.msra.mxu0 0
  %4250 = vmatprep.subr.bf16.mxu0 0
  %4251 = vmatpush2.bf16.msra.mxu0 0
  %4252 = vmatprep.subr.bf16.mxu0 0
  %4253 = vmatpush2.bf16.msra.mxu0 0
  %4254 = vmatprep.subr.bf16.mxu0 0
  %4255 = vmatpush2.bf16.msra.mxu0 0
  %4256 = vmatprep.subr.bf16.mxu0 0
  %4257 = vmatpush2.bf16.msra.mxu0 0
  %4258 = vmatprep.subr.bf16.mxu0 0
  %4259 = vmatpush2.bf16.msra.mxu0 0
  %4260 = vmatprep.subr.bf16.mxu0 0
  %4261 = vmatpush2.bf16.msra.mxu0 0
  %4262 = vmatprep.subr.bf16.mxu0 0
  %4263 = vmatpush2.bf16.msra.mxu0 0
  %4264 = vmatprep.mubr.bf16.mxu0 0
  %4265 = vmatmul.mubr.bf16.gmra.mxu0 %v4030
  %v4266 = vpop.f32.mrf.mxu0
  %v4267 = vadd.f32 0.0, %v4266
  %v4268 = vpop.f32.mrf.mxu0
  %v4269 = vpop.f32.mrf.mxu0
  %v4270 = vpop.f32.mrf.mxu0
  %4271 = vdwg.mxu0
  %v4272 = vadd.f32 %v3984, %v4226
  %v4273 = vxor.u32 %v4272, 2147483648
  %v4274 = vmul.f32 %v4273, 1.442695
  %v4275 = vpow.pop %v4274
  %v4276 = vadd.f32 %v4275, 1.0
  %v4277 = vrcp.pop %v4276
  %v4278 = vmul.f32 1.0, %v4277
  %v4279 = vadd.f32 %v3986, %v4228
  %v4280 = vxor.u32 %v4279, 2147483648
  %v4281 = vmul.f32 %v4280, 1.442695
  %v4282 = vpow.pop %v4281
  %v4283 = vadd.f32 %v4282, 1.0
  %v4284 = vrcp.pop %v4283
  %v4285 = vmul.f32 1.0, %v4284
  %v4286 = vld [vmem:[%s5] sm:$0x1]
  %v4288 = vlaneseq
  %v4289 = vshrl.u32 %v4288, 7
  %v4290 = vsub.s32 0, %v4289
  %v4291 = vrot.slane %v4286, %v4290
  %v4293 = vadd.f32 %v4267, %v4291
  %v4294 = vmul.f32 %v4278, %v4293
  %v4295 = vadd.f32 %v4025, %v4294
  %v4296 = vtanh.pop %v4295
  %v4297 = vsub.f32 1.0, %v4285
  %v4298 = vmul.f32 %v4297, %v4296
  %v4299 = vmul.f32 %v4285, %v3766
  %v4300 = vadd.f32 %v4298, %v4299
  %s4301 = scalar_lea.vmem %s6, 14
  %4302 = vst [vmem:[%s4301] sm:$0x3] %v4300
  %4303 = vst [vmem:[#allocation2] sm:$0x3] %v4300
  // Predicated region
  $region30: #{my_classifier_forward.6} parent=0 // pred_check
    %p4304 = pneg %p26
  $region31: #{my_classifier_forward.6} parent=0 // pred_check_branch
    %4306 = sbr.rel (%p4304) target = $region33
  $region32: #{my_classifier_forward.6} parent=0 // pred_region
    %4307 = vst [vmem:[%s7] sm:$0x3] %v4300
  $region33: #{my_classifier_forward.6} parent=0 // pred_fallthru
    _
  // Predicated region
  $region34: #{my_classifier_forward.6} parent=0 // pred_check
    _
  $region35: #{my_classifier_forward.6} parent=0 // pred_check_branch
    %4309 = sbr.rel (0) target = $region37
  $region36: #{my_classifier_forward.6} parent=0 // pred_region
    _
  $region37: #{my_classifier_forward.6} parent=0 // pred_fallthru
    _
  // Predicated region
  $region38: #{my_classifier_forward.6} parent=0 // pred_check
    _
  $region39: #{my_classifier_forward.6} parent=0 // pred_check_branch
    %4311 = sbr.rel (0) target = $region41
  $region40: #{my_classifier_forward.6} parent=0 // pred_region
    _
  $region41: #{my_classifier_forward.6} parent=0 // pred_fallthru
    _
  // Predicated region
  $region42: #{my_classifier_forward.6} parent=0 // pred_check
    _
  $region43: #{my_classifier_forward.6} parent=0 // pred_check_branch
    %4313 = sbr.rel (0) target = $region45
  $region44: #{my_classifier_forward.6} parent=0 // pred_region
    _
  $region45: #{my_classifier_forward.6} parent=0 // pred_fallthru
    _
  // Predicated region
  $region46: #{my_classifier_forward.6} parent=0 // pred_check
    _
  $region47: #{my_classifier_forward.6} parent=0 // pred_check_branch
    %4315 = sbr.rel (0) target = $region49
  $region48: #{my_classifier_forward.6} parent=0 // pred_region
    _
  $region49: #{my_classifier_forward.6} parent=0 // pred_fallthru
    _

</llo_original>
